<compile_context>
chip_gen: v5e
topology: v5e:2x2
jax: 0.10.0
libtpu: 0.0.40
codegen_flags: <defaults>
</compile_context>

<pallas_src>
import jax
import jax.numpy as jnp
from jax.experimental import pallas as pl
from jax.experimental.pallas import tpu as pltpu


_COMPILER_PARAMS = pltpu.CompilerParams(
    dimension_semantics=("parallel",),   # batch-tile grid axis
    vmem_limit_bytes=32 << 20,           # safe on v7x's 64 MiB/TC as well
)


# ---------------------------------------------------------------------------
# Kernel 1: conv (im2col matmul) + bias + ReLU + 2x2 max-pool for a TILE of images.
#   p_ref : (4, TB*Mp, K)  bf16  all four pool phases, one DMA per step
#   w_ref : (K, Cout)      bf16  conv filter, (kh, kw, cin)-major rows (VMEM-resident)
#   b_ref : (1, Cout)      f32
#   o_ref : (TB*Mp, Cout)  bf16  pooled activations (row = b_local*Mp + pooled_pixel)
# ---------------------------------------------------------------------------
def conv_relu_pool_kernel(p_ref, w_ref, b_ref, o_ref):
    w = w_ref[...]

    def phase(r):  # one pool phase for the whole batch tile -> (TB*Mp, Cout) f32
        return jnp.dot(p_ref[r], w, preferred_element_type=jnp.float32)

    # maxpool(relu(conv)) == relu(maxpool(conv)); bias added once after the max.
    y = jnp.maximum(jnp.maximum(phase(0), phase(1)),
                    jnp.maximum(phase(2), phase(3)))
    y = y + b_ref[...]
    o_ref[...] = jnp.maximum(y, 0.0).astype(o_ref.dtype)


def conv_relu_pool(x_nhwc, w_oihw, b, *, k=5):
    """Conv2d(k, stride 1, VALID) + bias + ReLU + MaxPool2d(2, 2); NHWC in / NHWC out (bf16).

    Patch extraction and the pool-phase split are pure bf16 reindexing done by XLA in the
    wrapper (no f32 im2col intermediate); all arithmetic runs in the Pallas kernel with
    weights resident in VMEM.
    """
    B, H, W, Cin = x_nhwc.shape
    Cout = w_oihw.shape[0]
    OH, OW = H - k + 1, W - k + 1
    assert OH % 2 == 0 and OW % 2 == 0
    PH, PW = OH // 2, OW // 2
    K = k * k * Cin
    M = PH * PW
    Mp = ((M + 7) // 8) * 8          # pad pooled-pixel rows to a sublane multiple

    TB = min(B, 32)                  # images per grid step (VMEM-safe incl. v7x)
    nblk = pl.cdiv(B, TB)
    Bp = nblk * TB

    # Build bf16 pool-phase patches directly with strided slices:
    #   phase (r, s)[b, ph, pw, (kh,kw,cin)] = x[b, 2*ph + r + kh, 2*pw + s + kw, cin]
    xb = x_nhwc.astype(jnp.bfloat16)

    def build_phase(r, s):
        cols = [xb[:, r + kh: r + kh + OH: 2, s + kw: s + kw + OW: 2, :]
                for kh in range(k) for kw in range(k)]
        return jnp.concatenate(cols, axis=-1).reshape(B, M, K)

    phases = jnp.stack([build_phase(r, s) for r in (0, 1) for s in (0, 1)], axis=0)
    # Zero-pad batch and pooled-pixel axes (padded rows produce harmless values that are
    # sliced off below), then merge (batch, pixel) into rows -> phase-major (4, Bp*Mp, K).
    phases = jnp.pad(phases, ((0, 0), (0, Bp - B), (0, Mp - M), (0, 0)))
    phases = phases.reshape(4, Bp * Mp, K)

    # Torch OIHW filter -> (K, Cout) with (kh, kw, cin)-major rows, bf16 for the MXU.
    w_col = jnp.transpose(w_oihw, (2, 3, 1, 0)).reshape(K, Cout).astype(jnp.bfloat16)
    b_row = b.reshape(1, Cout).astype(jnp.float32)

    R = TB * Mp                      # rows per grid step (per phase); multiple of 8
    out = pl.pallas_call(
        conv_relu_pool_kernel,
        out_shape=jax.ShapeDtypeStruct((Bp * Mp, Cout), jnp.bfloat16),
        grid=(nblk,),
        in_specs=[pl.BlockSpec((4, R, K), lambda i: (0, i, 0)),     # one DMA per step
                  pl.BlockSpec((K, Cout), lambda i: (0, 0)),        # resident weights
                  pl.BlockSpec((1, Cout), lambda i: (0, 0))],       # resident bias
        out_specs=pl.BlockSpec((R, Cout), lambda i: (i, 0)),
        compiler_params=_COMPILER_PARAMS,
    )(phases, w_col, b_row)
    return out.reshape(Bp, Mp, Cout)[:B, :M].reshape(B, PH, PW, Cout)


# ---------------------------------------------------------------------------
# Kernel 2: fused MLP head  fc1+ReLU -> fc2+ReLU -> fc3 -> dropout(eval)=identity
#   x_ref is bf16 (conv activations are already bf16); weights bf16; epilogue f32.
# ---------------------------------------------------------------------------
def mlp_head_kernel(x_ref, w1_ref, b1_ref, w2_ref, b2_ref, w3_ref, b3_ref, o_ref):
    h = jnp.dot(x_ref[...], w1_ref[...],
                preferred_element_type=jnp.float32) + b1_ref[...]
    h = jnp.maximum(h, 0.0)
    h = jnp.dot(h.astype(jnp.bfloat16), w2_ref[...],
                preferred_element_type=jnp.float32) + b2_ref[...]
    h = jnp.maximum(h, 0.0)
    h = jnp.dot(h.astype(jnp.bfloat16), w3_ref[...],
                preferred_element_type=jnp.float32) + b3_ref[...]
    # No activation after fc3 (matches the torch forward).
    # TODO(synk): training-mode dropout (p=0.5 Bernoulli mask + 2x scale) via
    #             pltpu.prng_seed / pltpu.stateful_bernoulli; eval-mode is identity.
    o_ref[...] = h.astype(o_ref.dtype)


def mlp_head(x_flat, fcs):
    (w1, b1), (w2, b2), (w3, b3) = fcs
    w1, w2, w3 = (w.astype(jnp.bfloat16) for w in (w1, w2, w3))
    b1, b2, b3 = (bb.reshape(1, -1).astype(jnp.float32) for bb in (b1, b2, b3))
    x_flat = x_flat.astype(jnp.bfloat16)
    B, D = x_flat.shape
    Nout = w3.shape[1]
    # Whole (small) batch in one step; for large B tile by 128 so the weights stay
    # VMEM-resident (constant index_map) while input tiles stream and overlap.
    TB = B if B <= 128 else 128
    nblk = pl.cdiv(B, TB)
    Bp = nblk * TB
    if Bp != B:
        x_flat = jnp.pad(x_flat, ((0, Bp - B), (0, 0)))

    def const(shape):
        return pl.BlockSpec(shape, lambda i: (0, 0))

    out = pl.pallas_call(
        mlp_head_kernel,
        out_shape=jax.ShapeDtypeStruct((Bp, Nout), jnp.float32),
        grid=(nblk,),
        in_specs=[pl.BlockSpec((TB, D), lambda i: (i, 0)),
                  const(w1.shape), const(b1.shape),
                  const(w2.shape), const(b2.shape),
                  const(w3.shape), const(b3.shape)],
        out_specs=pl.BlockSpec((TB, Nout), lambda i: (i, 0)),
        compiler_params=_COMPILER_PARAMS,
    )(x_flat, w1, b1, w2, b2, w3, b3)
    return out[:B]


# ---------------------------------------------------------------------------
# Full forward pass (eval / inference mode), matching torch `Net.forward`.
# ---------------------------------------------------------------------------
def net_forward(x_nchw, params):
    """x_nchw: (B, 3, 32, 32) float32. Returns logits (B, 10) float32."""
    (w1, b1), (w2, b2) = params["conv1"], params["conv2"]
    x_nhwc = jnp.transpose(x_nchw, (0, 2, 3, 1))
    h = conv_relu_pool(x_nhwc, w1, b1)                    # (B, 14, 14, 6)  bf16
    h = conv_relu_pool(h, w2, b2)                         # (B, 5, 5, 16)   bf16
    B, PH2, PW2, C2 = h.shape

    # torch.flatten(x, 1) on NCHW is channel-major; instead of transposing the activations
    # per call, fold that permutation into fc1's rows (one-time trace-time reshuffle).
    (wf1, bf1), (wf2, bf2), (wf3, bf3) = params["fcs"]
    wf1p = wf1.reshape(C2, PH2, PW2, wf1.shape[1]).transpose(1, 2, 0, 3) \
              .reshape(C2 * PH2 * PW2, wf1.shape[1])
    x_flat = h.reshape(B, PH2 * PW2 * C2)                 # NHWC (h, w, c) flatten, bf16
    return mlp_head(x_flat, [(wf1p, bf1), (wf2, bf2), (wf3, bf3)])


# ---------------------------------------------------------------------------
# Pure-JAX reference (same bf16-weight / f32-accumulate numerics) and init.
# ---------------------------------------------------------------------------
def net_reference(x_nchw, params):
    bf16, f32 = jnp.bfloat16, jnp.float32
    (w1, b1), (w2, b2) = params["conv1"], params["conv2"]

    def conv(x, w, b):
        y = jax.lax.conv_general_dilated(
            x.astype(bf16), w.astype(bf16), window_strides=(1, 1), padding="VALID",
            dimension_numbers=("NCHW", "OIHW", "NCHW"), preferred_element_type=f32)
        return y + b.reshape(1, -1, 1, 1).astype(f32)

    def pool(x):
        B, C, H, W = x.shape
        return x.reshape(B, C, H // 2, 2, W // 2, 2).max(axis=(3, 5))

    h = pool(jax.nn.relu(conv(x_nchw.astype(f32), w1, b1)))
    h = pool(jax.nn.relu(conv(h, w2, b2)))
    h = h.reshape(h.shape[0], -1)                          # NCHW (c, h, w) flatten
    (wf1, bf1), (wf2, bf2), (wf3, bf3) = params["fcs"]
    h = jax.nn.relu(jnp.dot(h.astype(bf16), wf1.astype(bf16), preferred_element_type=f32) + bf1)
    h = jax.nn.relu(jnp.dot(h.astype(bf16), wf2.astype(bf16), preferred_element_type=f32) + bf2)
    h = jnp.dot(h.astype(bf16), wf3.astype(bf16), preferred_element_type=f32) + bf3
    return h  # dropout is identity in eval mode


def init_params(key):
    """Deterministic init mimicking torch defaults: U(-1/sqrt(fan_in), 1/sqrt(fan_in))."""
    def uniform(k, shape, fan_in):
        bound = 1.0 / (fan_in ** 0.5)
        return jax.random.uniform(k, shape, jnp.float32, -bound, bound)

    ks = jax.random.split(key, 10)
    return {
        "conv1": (uniform(ks[0], (6, 3, 5, 5), 3 * 25), uniform(ks[1], (6,), 3 * 25)),
        "conv2": (uniform(ks[2], (16, 6, 5, 5), 6 * 25), uniform(ks[3], (16,), 6 * 25)),
        "fcs": [
            (uniform(ks[4], (400, 120), 400), uniform(ks[5], (1, 120), 400)),
            (uniform(ks[6], (120, 84), 120), uniform(ks[7], (1, 84), 120)),
            (uniform(ks[8], (84, 10), 84), uniform(ks[9], (1, 10), 84)),
        ],
    }


if __name__ == "__main__":
    key = jax.random.PRNGKey(0)
    k_x, k_p = jax.random.split(key)

    B = 8
    x = jax.random.normal(k_x, (B, 3, 32, 32), dtype=jnp.float32)
    params = init_params(k_p)

    out = jax.jit(net_forward)(x, params)
    jax.block_until_ready(out)

    assert out.shape == (B, 10), out.shape
    assert out.dtype == jnp.float32, out.dtype

    # Sanity check vs. a plain-JAX reference using the same bf16/f32 numerics.
    ref = net_reference(x, params)
    assert jnp.allclose(out, ref, atol=5e-2, rtol=5e-2), float(jnp.max(jnp.abs(out - ref)))

    print("KERNEL_OK")
</pallas_src>

<mosaic_0001>
module attributes {stable_mosaic.version = 11 : i64} {
  func.func @conv_relu_pool_kernel(%arg0: i32, %arg1: memref<4x1600x75xbf16, #tpu.memory_space<vmem>>, %arg2: memref<75x6xbf16, #tpu.memory_space<vmem>>, %arg3: memref<1x6xf32, #tpu.memory_space<vmem>>, %arg4: memref<1600x6xbf16, #tpu.memory_space<vmem>>) attributes {dimension_semantics = [#tpu.dimension_semantics<parallel>], iteration_bounds = array<i64: 1>, scalar_prefetch = 0 : i64, scratch_operands = 0 : i64, tpu.core_type = #tpu.core_type<tc>, window_params = [{transform_indices = @transform_0, window_bounds = array<i64: 4, 1600, 75>}, {pipeline_mode = #tpu.pipeline_mode<synchronous>, transform_indices = @transform_1, window_bounds = array<i64: 75, 6>}, {pipeline_mode = #tpu.pipeline_mode<synchronous>, transform_indices = @transform_2, window_bounds = array<i64: 1, 6>}, {transform_indices = @transform_3, window_bounds = array<i64: 1600, 6>}]} {
    %c0 = arith.constant 0 : index
    %c0_0 = arith.constant 0 : index
    %0 = vector.load %arg2[%c0, %c0_0] : memref<75x6xbf16, #tpu.memory_space<vmem>>, vector<75x6xbf16>
    %c0_1 = arith.constant 0 : index
    %c0_2 = arith.constant 0 : index
    %c0_3 = arith.constant 0 : index
    %1 = vector.load %arg1[%c0_1, %c0_2, %c0_3] : memref<4x1600x75xbf16, #tpu.memory_space<vmem>>, vector<1x1600x75xbf16>
    %2 = vector.shape_cast %1 : vector<1x1600x75xbf16> to vector<1600x75xbf16>
    %cst = arith.constant dense<0.000000e+00> : vector<1600x6xf32>
    %3 = tpu.matmul %2, %0, %cst {dimension_numbers = #tpu.dot_dimension_numbers<[1], [0], [0], [1], [0, 0, 1, 1], [], []>} : vector<1600x75xbf16>, vector<75x6xbf16>, vector<1600x6xf32> -> vector<1600x6xf32>
    %c1 = arith.constant 1 : index
    %c0_4 = arith.constant 0 : index
    %c0_5 = arith.constant 0 : index
    %4 = vector.load %arg1[%c1, %c0_4, %c0_5] : memref<4x1600x75xbf16, #tpu.memory_space<vmem>>, vector<1x1600x75xbf16>
    %5 = vector.shape_cast %4 : vector<1x1600x75xbf16> to vector<1600x75xbf16>
    %cst_6 = arith.constant dense<0.000000e+00> : vector<1600x6xf32>
    %6 = tpu.matmul %5, %0, %cst_6 {dimension_numbers = #tpu.dot_dimension_numbers<[1], [0], [0], [1], [0, 0, 1, 1], [], []>} : vector<1600x75xbf16>, vector<75x6xbf16>, vector<1600x6xf32> -> vector<1600x6xf32>
    %7 = arith.maximumf %3, %6 : vector<1600x6xf32>
    %c2 = arith.constant 2 : index
    %c0_7 = arith.constant 0 : index
    %c0_8 = arith.constant 0 : index
    %8 = vector.load %arg1[%c2, %c0_7, %c0_8] : memref<4x1600x75xbf16, #tpu.memory_space<vmem>>, vector<1x1600x75xbf16>
    %9 = vector.shape_cast %8 : vector<1x1600x75xbf16> to vector<1600x75xbf16>
    %cst_9 = arith.constant dense<0.000000e+00> : vector<1600x6xf32>
    %10 = tpu.matmul %9, %0, %cst_9 {dimension_numbers = #tpu.dot_dimension_numbers<[1], [0], [0], [1], [0, 0, 1, 1], [], []>} : vector<1600x75xbf16>, vector<75x6xbf16>, vector<1600x6xf32> -> vector<1600x6xf32>
    %c3 = arith.constant 3 : index
    %c0_10 = arith.constant 0 : index
    %c0_11 = arith.constant 0 : index
    %11 = vector.load %arg1[%c3, %c0_10, %c0_11] : memref<4x1600x75xbf16, #tpu.memory_space<vmem>>, vector<1x1600x75xbf16>
    %12 = vector.shape_cast %11 : vector<1x1600x75xbf16> to vector<1600x75xbf16>
    %cst_12 = arith.constant dense<0.000000e+00> : vector<1600x6xf32>
    %13 = tpu.matmul %12, %0, %cst_12 {dimension_numbers = #tpu.dot_dimension_numbers<[1], [0], [0], [1], [0, 0, 1, 1], [], []>} : vector<1600x75xbf16>, vector<75x6xbf16>, vector<1600x6xf32> -> vector<1600x6xf32>
    %14 = arith.maximumf %10, %13 : vector<1600x6xf32>
    %15 = arith.maximumf %7, %14 : vector<1600x6xf32>
    %c0_13 = arith.constant 0 : index
    %c0_14 = arith.constant 0 : index
    %16 = vector.load %arg3[%c0_13, %c0_14] : memref<1x6xf32, #tpu.memory_space<vmem>>, vector<1x6xf32>
    %17 = vector.broadcast %16 : vector<1x6xf32> to vector<1600x6xf32>
    %18 = arith.addf %15, %17 : vector<1600x6xf32>
    %cst_15 = arith.constant 0.000000e+00 : f32
    %19 = vector.broadcast %cst_15 : f32 to vector<1600x6xf32>
    %20 = arith.maximumf %18, %19 : vector<1600x6xf32>
    %21 = arith.truncf %20 : vector<1600x6xf32> to vector<1600x6xbf16>
    %c0_16 = arith.constant 0 : index
    %c0_17 = arith.constant 0 : index
    %22 = vector.load %arg4[%c0_16, %c0_17] : memref<1600x6xbf16, #tpu.memory_space<vmem>>, vector<1600x6xbf16>
    tpu.vector_store %arg4[%c0_16, %c0_17], %21 {strides = array<i32>} : memref<1600x6xbf16, #tpu.memory_space<vmem>>, vector<1600x6xbf16>,
    return
  }
  func.func @transform_0(%arg0: i32) -> (i32, i32, i32) {
    %c0_i32 = arith.constant 0 : i32
    %c0_i32_0 = arith.constant 0 : i32
    %c0_i32_1 = arith.constant 0 : i32
    return %c0_i32, %arg0, %c0_i32_0 : i32, i32, i32
  }
  func.func @transform_1(%arg0: i32) -> (i32, i32) {
    %c0_i32 = arith.constant 0 : i32
    %c0_i32_0 = arith.constant 0 : i32
    %c0_i32_1 = arith.constant 0 : i32
    return %c0_i32, %c0_i32_0 : i32, i32
  }
  func.func @transform_2(%arg0: i32) -> (i32, i32) {
    %c0_i32 = arith.constant 0 : i32
    %c0_i32_0 = arith.constant 0 : i32
    %c0_i32_1 = arith.constant 0 : i32
    return %c0_i32, %c0_i32_0 : i32, i32
  }
  func.func @transform_3(%arg0: i32) -> (i32, i32) {
    %c0_i32 = arith.constant 0 : i32
    %c0_i32_0 = arith.constant 0 : i32
    return %arg0, %c0_i32 : i32, i32
  }
}

module attributes {stable_mosaic.version = 11 : i64} {
  func.func @conv_relu_pool_kernel(%arg0: i32, %arg1: memref<4x256x150xbf16, #tpu.memory_space<vmem>>, %arg2: memref<150x16xbf16, #tpu.memory_space<vmem>>, %arg3: memref<1x16xf32, #tpu.memory_space<vmem>>, %arg4: memref<256x16xbf16, #tpu.memory_space<vmem>>) attributes {dimension_semantics = [#tpu.dimension_semantics<parallel>], iteration_bounds = array<i64: 1>, scalar_prefetch = 0 : i64, scratch_operands = 0 : i64, tpu.core_type = #tpu.core_type<tc>, window_params = [{transform_indices = @transform_0, window_bounds = array<i64: 4, 256, 150>}, {pipeline_mode = #tpu.pipeline_mode<synchronous>, transform_indices = @transform_1, window_bounds = array<i64: 150, 16>}, {pipeline_mode = #tpu.pipeline_mode<synchronous>, transform_indices = @transform_2, window_bounds = array<i64: 1, 16>}, {transform_indices = @transform_3, window_bounds = array<i64: 256, 16>}]} {
    %c0 = arith.constant 0 : index
    %c0_0 = arith.constant 0 : index
    %0 = vector.load %arg2[%c0, %c0_0] : memref<150x16xbf16, #tpu.memory_space<vmem>>, vector<150x16xbf16>
    %c0_1 = arith.constant 0 : index
    %c0_2 = arith.constant 0 : index
    %c0_3 = arith.constant 0 : index
    %1 = vector.load %arg1[%c0_1, %c0_2, %c0_3] : memref<4x256x150xbf16, #tpu.memory_space<vmem>>, vector<1x256x150xbf16>
    %2 = vector.shape_cast %1 : vector<1x256x150xbf16> to vector<256x150xbf16>
    %cst = arith.constant dense<0.000000e+00> : vector<256x16xf32>
    %3 = tpu.matmul %2, %0, %cst {dimension_numbers = #tpu.dot_dimension_numbers<[1], [0], [0], [1], [0, 0, 1, 1], [], []>} : vector<256x150xbf16>, vector<150x16xbf16>, vector<256x16xf32> -> vector<256x16xf32>
    %c1 = arith.constant 1 : index
    %c0_4 = arith.constant 0 : index
    %c0_5 = arith.constant 0 : index
    %4 = vector.load %arg1[%c1, %c0_4, %c0_5] : memref<4x256x150xbf16, #tpu.memory_space<vmem>>, vector<1x256x150xbf16>
    %5 = vector.shape_cast %4 : vector<1x256x150xbf16> to vector<256x150xbf16>
    %cst_6 = arith.constant dense<0.000000e+00> : vector<256x16xf32>
    %6 = tpu.matmul %5, %0, %cst_6 {dimension_numbers = #tpu.dot_dimension_numbers<[1], [0], [0], [1], [0, 0, 1, 1], [], []>} : vector<256x150xbf16>, vector<150x16xbf16>, vector<256x16xf32> -> vector<256x16xf32>
    %7 = arith.maximumf %3, %6 : vector<256x16xf32>
    %c2 = arith.constant 2 : index
    %c0_7 = arith.constant 0 : index
    %c0_8 = arith.constant 0 : index
    %8 = vector.load %arg1[%c2, %c0_7, %c0_8] : memref<4x256x150xbf16, #tpu.memory_space<vmem>>, vector<1x256x150xbf16>
    %9 = vector.shape_cast %8 : vector<1x256x150xbf16> to vector<256x150xbf16>
    %cst_9 = arith.constant dense<0.000000e+00> : vector<256x16xf32>
    %10 = tpu.matmul %9, %0, %cst_9 {dimension_numbers = #tpu.dot_dimension_numbers<[1], [0], [0], [1], [0, 0, 1, 1], [], []>} : vector<256x150xbf16>, vector<150x16xbf16>, vector<256x16xf32> -> vector<256x16xf32>
    %c3 = arith.constant 3 : index
    %c0_10 = arith.constant 0 : index
    %c0_11 = arith.constant 0 : index
    %11 = vector.load %arg1[%c3, %c0_10, %c0_11] : memref<4x256x150xbf16, #tpu.memory_space<vmem>>, vector<1x256x150xbf16>
    %12 = vector.shape_cast %11 : vector<1x256x150xbf16> to vector<256x150xbf16>
    %cst_12 = arith.constant dense<0.000000e+00> : vector<256x16xf32>
    %13 = tpu.matmul %12, %0, %cst_12 {dimension_numbers = #tpu.dot_dimension_numbers<[1], [0], [0], [1], [0, 0, 1, 1], [], []>} : vector<256x150xbf16>, vector<150x16xbf16>, vector<256x16xf32> -> vector<256x16xf32>
    %14 = arith.maximumf %10, %13 : vector<256x16xf32>
    %15 = arith.maximumf %7, %14 : vector<256x16xf32>
    %c0_13 = arith.constant 0 : index
    %c0_14 = arith.constant 0 : index
    %16 = vector.load %arg3[%c0_13, %c0_14] : memref<1x16xf32, #tpu.memory_space<vmem>>, vector<1x16xf32>
    %17 = vector.broadcast %16 : vector<1x16xf32> to vector<256x16xf32>
    %18 = arith.addf %15, %17 : vector<256x16xf32>
    %cst_15 = arith.constant 0.000000e+00 : f32
    %19 = vector.broadcast %cst_15 : f32 to vector<256x16xf32>
    %20 = arith.maximumf %18, %19 : vector<256x16xf32>
    %21 = arith.truncf %20 : vector<256x16xf32> to vector<256x16xbf16>
    %c0_16 = arith.constant 0 : index
    %c0_17 = arith.constant 0 : index
    %22 = vector.load %arg4[%c0_16, %c0_17] : memref<256x16xbf16, #tpu.memory_space<vmem>>, vector<256x16xbf16>
    tpu.vector_store %arg4[%c0_16, %c0_17], %21 {strides = array<i32>} : memref<256x16xbf16, #tpu.memory_space<vmem>>, vector<256x16xbf16>,
    return
  }
  func.func @transform_0(%arg0: i32) -> (i32, i32, i32) {
    %c0_i32 = arith.constant 0 : i32
    %c0_i32_0 = arith.constant 0 : i32
    %c0_i32_1 = arith.constant 0 : i32
    return %c0_i32, %arg0, %c0_i32_0 : i32, i32, i32
  }
  func.func @transform_1(%arg0: i32) -> (i32, i32) {
    %c0_i32 = arith.constant 0 : i32
    %c0_i32_0 = arith.constant 0 : i32
    %c0_i32_1 = arith.constant 0 : i32
    return %c0_i32, %c0_i32_0 : i32, i32
  }
  func.func @transform_2(%arg0: i32) -> (i32, i32) {
    %c0_i32 = arith.constant 0 : i32
    %c0_i32_0 = arith.constant 0 : i32
    %c0_i32_1 = arith.constant 0 : i32
    return %c0_i32, %c0_i32_0 : i32, i32
  }
  func.func @transform_3(%arg0: i32) -> (i32, i32) {
    %c0_i32 = arith.constant 0 : i32
    %c0_i32_0 = arith.constant 0 : i32
    return %arg0, %c0_i32 : i32, i32
  }
}

module attributes {stable_mosaic.version = 11 : i64} {
  func.func @mlp_head_kernel(%arg0: i32, %arg1: memref<8x400xbf16, #tpu.memory_space<vmem>>, %arg2: memref<400x120xbf16, #tpu.memory_space<vmem>>, %arg3: memref<1x120xf32, #tpu.memory_space<vmem>>, %arg4: memref<120x84xbf16, #tpu.memory_space<vmem>>, %arg5: memref<1x84xf32, #tpu.memory_space<vmem>>, %arg6: memref<84x10xbf16, #tpu.memory_space<vmem>>, %arg7: memref<1x10xf32, #tpu.memory_space<vmem>>, %arg8: memref<8x10xf32, #tpu.memory_space<vmem>>) attributes {dimension_semantics = [#tpu.dimension_semantics<parallel>], iteration_bounds = array<i64: 1>, scalar_prefetch = 0 : i64, scratch_operands = 0 : i64, tpu.core_type = #tpu.core_type<tc>, window_params = [{transform_indices = @transform_0, window_bounds = array<i64: 8, 400>}, {pipeline_mode = #tpu.pipeline_mode<synchronous>, transform_indices = @transform_1, window_bounds = array<i64: 400, 120>}, {pipeline_mode = #tpu.pipeline_mode<synchronous>, transform_indices = @transform_2, window_bounds = array<i64: 1, 120>}, {pipeline_mode = #tpu.pipeline_mode<synchronous>, transform_indices = @transform_3, window_bounds = array<i64: 120, 84>}, {pipeline_mode = #tpu.pipeline_mode<synchronous>, transform_indices = @transform_4, window_bounds = array<i64: 1, 84>}, {pipeline_mode = #tpu.pipeline_mode<synchronous>, transform_indices = @transform_5, window_bounds = array<i64: 84, 10>}, {pipeline_mode = #tpu.pipeline_mode<synchronous>, transform_indices = @transform_6, window_bounds = array<i64: 1, 10>}, {transform_indices = @transform_7, window_bounds = array<i64: 8, 10>}]} {
    %c0 = arith.constant 0 : index
    %c0_0 = arith.constant 0 : index
    %0 = vector.load %arg1[%c0, %c0_0] : memref<8x400xbf16, #tpu.memory_space<vmem>>, vector<8x400xbf16>
    %c0_1 = arith.constant 0 : index
    %c0_2 = arith.constant 0 : index
    %1 = vector.load %arg2[%c0_1, %c0_2] : memref<400x120xbf16, #tpu.memory_space<vmem>>, vector<400x120xbf16>
    %cst = arith.constant dense<0.000000e+00> : vector<8x120xf32>
    %2 = tpu.matmul %0, %1, %cst {dimension_numbers = #tpu.dot_dimension_numbers<[1], [0], [0], [1], [0, 0, 1, 1], [], []>} : vector<8x400xbf16>, vector<400x120xbf16>, vector<8x120xf32> -> vector<8x120xf32>
    %c0_3 = arith.constant 0 : index
    %c0_4 = arith.constant 0 : index
    %3 = vector.load %arg3[%c0_3, %c0_4] : memref<1x120xf32, #tpu.memory_space<vmem>>, vector<1x120xf32>
    %4 = vector.broadcast %3 : vector<1x120xf32> to vector<8x120xf32>
    %5 = arith.addf %2, %4 : vector<8x120xf32>
    %cst_5 = arith.constant 0.000000e+00 : f32
    %6 = vector.broadcast %cst_5 : f32 to vector<8x120xf32>
    %7 = arith.maximumf %5, %6 : vector<8x120xf32>
    %8 = arith.truncf %7 : vector<8x120xf32> to vector<8x120xbf16>
    %c0_6 = arith.constant 0 : index
    %c0_7 = arith.constant 0 : index
    %9 = vector.load %arg4[%c0_6, %c0_7] : memref<120x84xbf16, #tpu.memory_space<vmem>>, vector<120x84xbf16>
    %cst_8 = arith.constant dense<0.000000e+00> : vector<8x84xf32>
    %10 = tpu.matmul %8, %9, %cst_8 {dimension_numbers = #tpu.dot_dimension_numbers<[1], [0], [0], [1], [0, 0, 1, 1], [], []>} : vector<8x120xbf16>, vector<120x84xbf16>, vector<8x84xf32> -> vector<8x84xf32>
    %c0_9 = arith.constant 0 : index
    %c0_10 = arith.constant 0 : index
    %11 = vector.load %arg5[%c0_9, %c0_10] : memref<1x84xf32, #tpu.memory_space<vmem>>, vector<1x84xf32>
    %12 = vector.broadcast %11 : vector<1x84xf32> to vector<8x84xf32>
    %13 = arith.addf %10, %12 : vector<8x84xf32>
    %cst_11 = arith.constant 0.000000e+00 : f32
    %14 = vector.broadcast %cst_11 : f32 to vector<8x84xf32>
    %15 = arith.maximumf %13, %14 : vector<8x84xf32>
    %16 = arith.truncf %15 : vector<8x84xf32> to vector<8x84xbf16>
    %c0_12 = arith.constant 0 : index
    %c0_13 = arith.constant 0 : index
    %17 = vector.load %arg6[%c0_12, %c0_13] : memref<84x10xbf16, #tpu.memory_space<vmem>>, vector<84x10xbf16>
    %cst_14 = arith.constant dense<0.000000e+00> : vector<8x10xf32>
    %18 = tpu.matmul %16, %17, %cst_14 {dimension_numbers = #tpu.dot_dimension_numbers<[1], [0], [0], [1], [0, 0, 1, 1], [], []>} : vector<8x84xbf16>, vector<84x10xbf16>, vector<8x10xf32> -> vector<8x10xf32>
    %c0_15 = arith.constant 0 : index
    %c0_16 = arith.constant 0 : index
    %19 = vector.load %arg7[%c0_15, %c0_16] : memref<1x10xf32, #tpu.memory_space<vmem>>, vector<1x10xf32>
    %20 = vector.broadcast %19 : vector<1x10xf32> to vector<8x10xf32>
    %21 = arith.addf %18, %20 : vector<8x10xf32>
    %c0_17 = arith.constant 0 : index
    %c0_18 = arith.constant 0 : index
    %22 = vector.load %arg8[%c0_17, %c0_18] : memref<8x10xf32, #tpu.memory_space<vmem>>, vector<8x10xf32>
    tpu.vector_store %arg8[%c0_17, %c0_18], %21 {strides = array<i32>} : memref<8x10xf32, #tpu.memory_space<vmem>>, vector<8x10xf32>,
    return
  }
  func.func @transform_0(%arg0: i32) -> (i32, i32) {
    %c0_i32 = arith.constant 0 : i32
    %c0_i32_0 = arith.constant 0 : i32
    return %arg0, %c0_i32 : i32, i32
  }
  func.func @transform_1(%arg0: i32) -> (i32, i32) {
    %c0_i32 = arith.constant 0 : i32
    %c0_i32_0 = arith.constant 0 : i32
    %c0_i32_1 = arith.constant 0 : i32
    return %c0_i32, %c0_i32_0 : i32, i32
  }
  func.func @transform_2(%arg0: i32) -> (i32, i32) {
    %c0_i32 = arith.constant 0 : i32
    %c0_i32_0 = arith.constant 0 : i32
    %c0_i32_1 = arith.constant 0 : i32
    return %c0_i32, %c0_i32_0 : i32, i32
  }
  func.func @transform_3(%arg0: i32) -> (i32, i32) {
    %c0_i32 = arith.constant 0 : i32
    %c0_i32_0 = arith.constant 0 : i32
    %c0_i32_1 = arith.constant 0 : i32
    return %c0_i32, %c0_i32_0 : i32, i32
  }
  func.func @transform_4(%arg0: i32) -> (i32, i32) {
    %c0_i32 = arith.constant 0 : i32
    %c0_i32_0 = arith.constant 0 : i32
    %c0_i32_1 = arith.constant 0 : i32
    return %c0_i32, %c0_i32_0 : i32, i32
  }
  func.func @transform_5(%arg0: i32) -> (i32, i32) {
    %c0_i32 = arith.constant 0 : i32
    %c0_i32_0 = arith.constant 0 : i32
    %c0_i32_1 = arith.constant 0 : i32
    return %c0_i32, %c0_i32_0 : i32, i32
  }
  func.func @transform_6(%arg0: i32) -> (i32, i32) {
    %c0_i32 = arith.constant 0 : i32
    %c0_i32_0 = arith.constant 0 : i32
    %c0_i32_1 = arith.constant 0 : i32
    return %c0_i32, %c0_i32_0 : i32, i32
  }
  func.func @transform_7(%arg0: i32) -> (i32, i32) {
    %c0_i32 = arith.constant 0 : i32
    %c0_i32_0 = arith.constant 0 : i32
    return %arg0, %c0_i32 : i32, i32
  }
}

</mosaic_0001>

<llo_original>
// kernel: net_forward.3
$region0: #{net_forward.3}
  #allocation0 [shape = 'u32[]', space=smem, size = 0x4, offset = 0x4, fixed_abs, tag = 'smem constant byte address 0x4 - core index']
  #allocation1 [shape = 'u32[72,128]{1,0:T(1,128)}', space=vmem, size = 0x9000, scoped, tag = 'internal scratch']
  %s0 = inlined_call_operand.vmem [shape: bf16[4,1600,75], index: 0, kind: input, shape index: {}]
  %s1 = inlined_call_operand.vmem [shape: bf16[75,6], index: 1, kind: input, shape index: {}]
  %s2 = inlined_call_operand.vmem [shape: f32[1,6], index: 2, kind: input, shape index: {}]
  %s3 = inlined_call_operand.vmem [shape: bf16[1600,6], index: 3, kind: output, shape index: {}]
  %s4 = sld [smem:[#allocation0]]
  $region22: #{net_forward.3} parent=0
    _
  %s6 = ssub.s32 1, %s4
  %s7 = scalar_select 0, %s6, %s4
  // Predicated region
  $region2: #{net_forward.3} parent=0 // pred_check
    _
  $region3: #{net_forward.3} parent=0 // pred_check_branch
    %9 = sbr.rel (0) target = $region5
  $region4: #{net_forward.3} parent=0 // pred_region
    _
  $region5: #{net_forward.3} parent=0 // pred_fallthru
    _
  // Predicated region
  $region6: #{net_forward.3} parent=0 // pred_check
    _
  $region7: #{net_forward.3} parent=0 // pred_check_branch
    %11 = sbr.rel (0) target = $region9
  $region8: #{net_forward.3} parent=0 // pred_region
    _
  $region9: #{net_forward.3} parent=0 // pred_fallthru
    _
  // Predicated region
  $region10: #{net_forward.3} parent=0 // pred_check
    _
  $region11: #{net_forward.3} parent=0 // pred_check_branch
    %13 = sbr.rel (0) target = $region13
  $region12: #{net_forward.3} parent=0 // pred_region
    _
  $region13: #{net_forward.3} parent=0 // pred_fallthru
    _
  %v15 = vld [vmem:[%s1] sm:$0xf]
  %v16 = vld [vmem:[%s1 + $0x4] sm:$0xf]
  %v17 = vld [vmem:[%s1 + $0x8] sm:$0xf]
  %v18 = vld [vmem:[%s1 + $0xc] sm:$0xf]
  %v19 = vld [vmem:[%s1 + $0x10] sm:$0xf]
  %v20 = vld [vmem:[%s1 + $0x14] sm:$0xf]
  %v21 = vld [vmem:[%s1 + $0x18] sm:$0xf]
  %v22 = vld [vmem:[%s1 + $0x1c] sm:$0xf]
  %v23 = vld [vmem:[%s1 + $0x20] sm:$0xf]
  %v24 = vld [vmem:[%s1 + $0x24] sm:$0x3]
  %v25 = vld [vmem:[%s0] sm:$0xf]
  %v26 = vld [vmem:[%s0 + $0x4] sm:$0xf]
  %v27 = vld [vmem:[%s0 + $0x8] sm:$0xf]
  %v28 = vld [vmem:[%s0 + $0xc] sm:$0xf]
  %v29 = vld [vmem:[%s0 + $0x10] sm:$0xf]
  %v30 = vld [vmem:[%s0 + $0x14] sm:$0xf]
  %v31 = vld [vmem:[%s0 + $0x18] sm:$0xf]
  %v32 = vld [vmem:[%s0 + $0x1c] sm:$0xf]
  %v33 = vld [vmem:[%s0 + $0x20] sm:$0xf]
  %v34 = vld [vmem:[%s0 + $0x24] sm:$0xf]
  %v35 = vld [vmem:[%s0 + $0x28] sm:$0xf]
  %v36 = vld [vmem:[%s0 + $0x2c] sm:$0xf]
  %v37 = vld [vmem:[%s0 + $0x30] sm:$0xf]
  %v38 = vld [vmem:[%s0 + $0x34] sm:$0xf]
  %v39 = vld [vmem:[%s0 + $0x38] sm:$0xf]
  %v40 = vld [vmem:[%s0 + $0x3c] sm:$0xf]
  %v41 = vld [vmem:[%s0 + $0x40] sm:$0xf]
  %v42 = vld [vmem:[%s0 + $0x44] sm:$0xf]
  %v43 = vld [vmem:[%s0 + $0x48] sm:$0xf]
  %v44 = vld [vmem:[%s0 + $0x4c] sm:$0xf]
  %v45 = vld [vmem:[%s0 + $0x50] sm:$0xf]
  %v46 = vld [vmem:[%s0 + $0x54] sm:$0xf]
  %v47 = vld [vmem:[%s0 + $0x58] sm:$0xf]
  %v48 = vld [vmem:[%s0 + $0x5c] sm:$0xf]
  %v49 = vld [vmem:[%s0 + $0x60] sm:$0xf]
  %v50 = vld [vmem:[%s0 + $0x64] sm:$0xf]
  %v51 = vld [vmem:[%s0 + $0x68] sm:$0xf]
  %v52 = vld [vmem:[%s0 + $0x6c] sm:$0xf]
  %v53 = vld [vmem:[%s0 + $0x70] sm:$0xf]
  %v54 = vld [vmem:[%s0 + $0x74] sm:$0xf]
  %v55 = vld [vmem:[%s0 + $0x78] sm:$0xf]
  %v56 = vld [vmem:[%s0 + $0x7c] sm:$0xf]
  %v57 = vld [vmem:[%s0 + $0x80] sm:$0xf]
  %v58 = vld [vmem:[%s0 + $0x84] sm:$0xf]
  %v59 = vld [vmem:[%s0 + $0x88] sm:$0xf]
  %v60 = vld [vmem:[%s0 + $0x8c] sm:$0xf]
  %v61 = vld [vmem:[%s0 + $0x90] sm:$0xf]
  %v62 = vld [vmem:[%s0 + $0x94] sm:$0xf]
  %v63 = vld [vmem:[%s0 + $0x98] sm:$0xf]
  %v64 = vld [vmem:[%s0 + $0x9c] sm:$0xf]
  %v65 = vld [vmem:[%s0 + $0xa0] sm:$0xf]
  %v66 = vld [vmem:[%s0 + $0xa4] sm:$0xf]
  %v67 = vld [vmem:[%s0 + $0xa8] sm:$0xf]
  %v68 = vld [vmem:[%s0 + $0xac] sm:$0xf]
  %v69 = vld [vmem:[%s0 + $0xb0] sm:$0xf]
  %v70 = vld [vmem:[%s0 + $0xb4] sm:$0xf]
  %v71 = vld [vmem:[%s0 + $0xb8] sm:$0xf]
  %v72 = vld [vmem:[%s0 + $0xbc] sm:$0xf]
  %v73 = vld [vmem:[%s0 + $0xc0] sm:$0xf]
  %v74 = vld [vmem:[%s0 + $0xc4] sm:$0xf]
  %v75 = vld [vmem:[%s0 + $0xc8] sm:$0xf]
  %v76 = vld [vmem:[%s0 + $0xcc] sm:$0xf]
  %v77 = vld [vmem:[%s0 + $0xd0] sm:$0xf]
  %v78 = vld [vmem:[%s0 + $0xd4] sm:$0xf]
  %v79 = vld [vmem:[%s0 + $0xd8] sm:$0xf]
  %v80 = vld [vmem:[%s0 + $0xdc] sm:$0xf]
  %v81 = vld [vmem:[%s0 + $0xe0] sm:$0xf]
  %v82 = vld [vmem:[%s0 + $0xe4] sm:$0xf]
  %v83 = vld [vmem:[%s0 + $0xe8] sm:$0xf]
  %v84 = vld [vmem:[%s0 + $0xec] sm:$0xf]
  %v85 = vld [vmem:[%s0 + $0xf0] sm:$0xf]
  %v86 = vld [vmem:[%s0 + $0xf4] sm:$0xf]
  %v87 = vld [vmem:[%s0 + $0xf8] sm:$0xf]
  %v88 = vld [vmem:[%s0 + $0xfc] sm:$0xf]
  %v89 = vld [vmem:[%s0 + $0x100] sm:$0xf]
  %v90 = vld [vmem:[%s0 + $0x104] sm:$0xf]
  %v91 = vld [vmem:[%s0 + $0x108] sm:$0xf]
  %v92 = vld [vmem:[%s0 + $0x10c] sm:$0xf]
  %v93 = vld [vmem:[%s0 + $0x110] sm:$0xf]
  %v94 = vld [vmem:[%s0 + $0x114] sm:$0xf]
  %v95 = vld [vmem:[%s0 + $0x118] sm:$0xf]
  %v96 = vld [vmem:[%s0 + $0x11c] sm:$0xf]
  %v97 = vld [vmem:[%s0 + $0x120] sm:$0xf]
  %v98 = vld [vmem:[%s0 + $0x124] sm:$0xf]
  %v99 = vld [vmem:[%s0 + $0x128] sm:$0xf]
  %v100 = vld [vmem:[%s0 + $0x12c] sm:$0xf]
  %v101 = vld [vmem:[%s0 + $0x130] sm:$0xf]
  %v102 = vld [vmem:[%s0 + $0x134] sm:$0xf]
  %v103 = vld [vmem:[%s0 + $0x138] sm:$0xf]
  %v104 = vld [vmem:[%s0 + $0x13c] sm:$0xf]
  %v105 = vld [vmem:[%s0 + $0x140] sm:$0xf]
  %v106 = vld [vmem:[%s0 + $0x144] sm:$0xf]
  %v107 = vld [vmem:[%s0 + $0x148] sm:$0xf]
  %v108 = vld [vmem:[%s0 + $0x14c] sm:$0xf]
  %v109 = vld [vmem:[%s0 + $0x150] sm:$0xf]
  %v110 = vld [vmem:[%s0 + $0x154] sm:$0xf]
  %v111 = vld [vmem:[%s0 + $0x158] sm:$0xf]
  %v112 = vld [vmem:[%s0 + $0x15c] sm:$0xf]
  %v113 = vld [vmem:[%s0 + $0x160] sm:$0xf]
  %v114 = vld [vmem:[%s0 + $0x164] sm:$0xf]
  %v115 = vld [vmem:[%s0 + $0x168] sm:$0xf]
  %v116 = vld [vmem:[%s0 + $0x16c] sm:$0xf]
  %v117 = vld [vmem:[%s0 + $0x170] sm:$0xf]
  %v118 = vld [vmem:[%s0 + $0x174] sm:$0xf]
  %v119 = vld [vmem:[%s0 + $0x178] sm:$0xf]
  %v120 = vld [vmem:[%s0 + $0x17c] sm:$0xf]
  %v121 = vld [vmem:[%s0 + $0x180] sm:$0xf]
  %v122 = vld [vmem:[%s0 + $0x184] sm:$0xf]
  %v123 = vld [vmem:[%s0 + $0x188] sm:$0xf]
  %v124 = vld [vmem:[%s0 + $0x18c] sm:$0xf]
  %v125 = vld [vmem:[%s0 + $0x190] sm:$0xf]
  %v126 = vld [vmem:[%s0 + $0x194] sm:$0xf]
  %v127 = vld [vmem:[%s0 + $0x198] sm:$0xf]
  %v128 = vld [vmem:[%s0 + $0x19c] sm:$0xf]
  %v129 = vld [vmem:[%s0 + $0x1a0] sm:$0xf]
  %v130 = vld [vmem:[%s0 + $0x1a4] sm:$0xf]
  %v131 = vld [vmem:[%s0 + $0x1a8] sm:$0xf]
  %v132 = vld [vmem:[%s0 + $0x1ac] sm:$0xf]
  %v133 = vld [vmem:[%s0 + $0x1b0] sm:$0xf]
  %v134 = vld [vmem:[%s0 + $0x1b4] sm:$0xf]
  %v135 = vld [vmem:[%s0 + $0x1b8] sm:$0xf]
  %v136 = vld [vmem:[%s0 + $0x1bc] sm:$0xf]
  %v137 = vld [vmem:[%s0 + $0x1c0] sm:$0xf]
  %v138 = vld [vmem:[%s0 + $0x1c4] sm:$0xf]
  %v139 = vld [vmem:[%s0 + $0x1c8] sm:$0xf]
  %v140 = vld [vmem:[%s0 + $0x1cc] sm:$0xf]
  %v141 = vld [vmem:[%s0 + $0x1d0] sm:$0xf]
  %v142 = vld [vmem:[%s0 + $0x1d4] sm:$0xf]
  %v143 = vld [vmem:[%s0 + $0x1d8] sm:$0xf]
  %v144 = vld [vmem:[%s0 + $0x1dc] sm:$0xf]
  %v145 = vld [vmem:[%s0 + $0x1e0] sm:$0xf]
  %v146 = vld [vmem:[%s0 + $0x1e4] sm:$0xf]
  %v147 = vld [vmem:[%s0 + $0x1e8] sm:$0xf]
  %v148 = vld [vmem:[%s0 + $0x1ec] sm:$0xf]
  %v149 = vld [vmem:[%s0 + $0x1f0] sm:$0xf]
  %v150 = vld [vmem:[%s0 + $0x1f4] sm:$0xf]
  %v151 = vld [vmem:[%s0 + $0x1f8] sm:$0xf]
  %v152 = vld [vmem:[%s0 + $0x1fc] sm:$0xf]
  %v153 = vld [vmem:[%s0 + $0x200] sm:$0xf]
  %v154 = vld [vmem:[%s0 + $0x204] sm:$0xf]
  %v155 = vld [vmem:[%s0 + $0x208] sm:$0xf]
  %v156 = vld [vmem:[%s0 + $0x20c] sm:$0xf]
  %v157 = vld [vmem:[%s0 + $0x210] sm:$0xf]
  %v158 = vld [vmem:[%s0 + $0x214] sm:$0xf]
  %v159 = vld [vmem:[%s0 + $0x218] sm:$0xf]
  %v160 = vld [vmem:[%s0 + $0x21c] sm:$0xf]
  %v161 = vld [vmem:[%s0 + $0x220] sm:$0xf]
  %v162 = vld [vmem:[%s0 + $0x224] sm:$0xf]
  %v163 = vld [vmem:[%s0 + $0x228] sm:$0xf]
  %v164 = vld [vmem:[%s0 + $0x22c] sm:$0xf]
  %v165 = vld [vmem:[%s0 + $0x230] sm:$0xf]
  %v166 = vld [vmem:[%s0 + $0x234] sm:$0xf]
  %v167 = vld [vmem:[%s0 + $0x238] sm:$0xf]
  %v168 = vld [vmem:[%s0 + $0x23c] sm:$0xf]
  %v169 = vld [vmem:[%s0 + $0x240] sm:$0xf]
  %v170 = vld [vmem:[%s0 + $0x244] sm:$0xf]
  %v171 = vld [vmem:[%s0 + $0x248] sm:$0xf]
  %v172 = vld [vmem:[%s0 + $0x24c] sm:$0xf]
  %v173 = vld [vmem:[%s0 + $0x250] sm:$0xf]
  %v174 = vld [vmem:[%s0 + $0x254] sm:$0xf]
  %v175 = vld [vmem:[%s0 + $0x258] sm:$0xf]
  %v176 = vld [vmem:[%s0 + $0x25c] sm:$0xf]
  %v177 = vld [vmem:[%s0 + $0x260] sm:$0xf]
  %v178 = vld [vmem:[%s0 + $0x264] sm:$0xf]
  %v179 = vld [vmem:[%s0 + $0x268] sm:$0xf]
  %v180 = vld [vmem:[%s0 + $0x26c] sm:$0xf]
  %v181 = vld [vmem:[%s0 + $0x270] sm:$0xf]
  %v182 = vld [vmem:[%s0 + $0x274] sm:$0xf]
  %v183 = vld [vmem:[%s0 + $0x278] sm:$0xf]
  %v184 = vld [vmem:[%s0 + $0x27c] sm:$0xf]
  %v185 = vld [vmem:[%s0 + $0x280] sm:$0xf]
  %v186 = vld [vmem:[%s0 + $0x284] sm:$0xf]
  %v187 = vld [vmem:[%s0 + $0x288] sm:$0xf]
  %v188 = vld [vmem:[%s0 + $0x28c] sm:$0xf]
  %v189 = vld [vmem:[%s0 + $0x290] sm:$0xf]
  %v190 = vld [vmem:[%s0 + $0x294] sm:$0xf]
  %v191 = vld [vmem:[%s0 + $0x298] sm:$0xf]
  %v192 = vld [vmem:[%s0 + $0x29c] sm:$0xf]
  %v193 = vld [vmem:[%s0 + $0x2a0] sm:$0xf]
  %v194 = vld [vmem:[%s0 + $0x2a4] sm:$0xf]
  %v195 = vld [vmem:[%s0 + $0x2a8] sm:$0xf]
  %v196 = vld [vmem:[%s0 + $0x2ac] sm:$0xf]
  %v197 = vld [vmem:[%s0 + $0x2b0] sm:$0xf]
  %v198 = vld [vmem:[%s0 + $0x2b4] sm:$0xf]
  %v199 = vld [vmem:[%s0 + $0x2b8] sm:$0xf]
  %v200 = vld [vmem:[%s0 + $0x2bc] sm:$0xf]
  %v201 = vld [vmem:[%s0 + $0x2c0] sm:$0xf]
  %v202 = vld [vmem:[%s0 + $0x2c4] sm:$0xf]
  %v203 = vld [vmem:[%s0 + $0x2c8] sm:$0xf]
  %v204 = vld [vmem:[%s0 + $0x2cc] sm:$0xf]
  %v205 = vld [vmem:[%s0 + $0x2d0] sm:$0xf]
  %v206 = vld [vmem:[%s0 + $0x2d4] sm:$0xf]
  %v207 = vld [vmem:[%s0 + $0x2d8] sm:$0xf]
  %v208 = vld [vmem:[%s0 + $0x2dc] sm:$0xf]
  %v209 = vld [vmem:[%s0 + $0x2e0] sm:$0xf]
  %v210 = vld [vmem:[%s0 + $0x2e4] sm:$0xf]
  %v211 = vld [vmem:[%s0 + $0x2e8] sm:$0xf]
  %v212 = vld [vmem:[%s0 + $0x2ec] sm:$0xf]
  %v213 = vld [vmem:[%s0 + $0x2f0] sm:$0xf]
  %v214 = vld [vmem:[%s0 + $0x2f4] sm:$0xf]
  %v215 = vld [vmem:[%s0 + $0x2f8] sm:$0xf]
  %v216 = vld [vmem:[%s0 + $0x2fc] sm:$0xf]
  %v217 = vld [vmem:[%s0 + $0x300] sm:$0xf]
  %v218 = vld [vmem:[%s0 + $0x304] sm:$0xf]
  %v219 = vld [vmem:[%s0 + $0x308] sm:$0xf]
  %v220 = vld [vmem:[%s0 + $0x30c] sm:$0xf]
  %v221 = vld [vmem:[%s0 + $0x310] sm:$0xf]
  %v222 = vld [vmem:[%s0 + $0x314] sm:$0xf]
  %v223 = vld [vmem:[%s0 + $0x318] sm:$0xf]
  %v224 = vld [vmem:[%s0 + $0x31c] sm:$0xf]
  %v425 = vunpack.c.l.b16 %v25
  %v426 = vunpack.c.l.b16 %v26
  %v427 = vunpack.c.l.b16 %v27
  %v428 = vunpack.c.l.b16 %v28
  %v429 = vunpack.c.l.b16 %v29
  %v430 = vunpack.c.l.b16 %v30
  %v431 = vunpack.c.l.b16 %v31
  %v432 = vunpack.c.l.b16 %v32
  %v433 = vunpack.c.l.b16 %v33
  %v434 = vunpack.c.l.b16 %v34
  %v435 = vunpack.c.l.b16 %v35
  %v436 = vunpack.c.l.b16 %v36
  %v437 = vunpack.c.l.b16 %v37
  %v438 = vunpack.c.l.b16 %v38
  %v439 = vunpack.c.l.b16 %v39
  %v440 = vunpack.c.l.b16 %v40
  %v441 = vunpack.c.l.b16 %v41
  %v442 = vunpack.c.l.b16 %v42
  %v443 = vunpack.c.l.b16 %v43
  %v444 = vunpack.c.l.b16 %v44
  %v445 = vunpack.c.l.b16 %v45
  %v446 = vunpack.c.l.b16 %v46
  %v447 = vunpack.c.l.b16 %v47
  %v448 = vunpack.c.l.b16 %v48
  %v449 = vunpack.c.l.b16 %v49
  %v450 = vunpack.c.l.b16 %v50
  %v451 = vunpack.c.l.b16 %v51
  %v452 = vunpack.c.l.b16 %v52
  %v453 = vunpack.c.l.b16 %v53
  %v454 = vunpack.c.l.b16 %v54
  %v455 = vunpack.c.l.b16 %v55
  %v456 = vunpack.c.l.b16 %v56
  %v457 = vunpack.c.l.b16 %v57
  %v458 = vunpack.c.l.b16 %v58
  %v459 = vunpack.c.l.b16 %v59
  %v460 = vunpack.c.l.b16 %v60
  %v461 = vunpack.c.l.b16 %v61
  %v462 = vunpack.c.l.b16 %v62
  %v463 = vunpack.c.l.b16 %v63
  %v464 = vunpack.c.l.b16 %v64
  %v465 = vunpack.c.l.b16 %v65
  %v466 = vunpack.c.l.b16 %v66
  %v467 = vunpack.c.l.b16 %v67
  %v468 = vunpack.c.l.b16 %v68
  %v469 = vunpack.c.l.b16 %v69
  %v470 = vunpack.c.l.b16 %v70
  %v471 = vunpack.c.l.b16 %v71
  %v472 = vunpack.c.l.b16 %v72
  %v473 = vunpack.c.l.b16 %v73
  %v474 = vunpack.c.l.b16 %v74
  %v475 = vunpack.c.l.b16 %v75
  %v476 = vunpack.c.l.b16 %v76
  %v477 = vunpack.c.l.b16 %v77
  %v478 = vunpack.c.l.b16 %v78
  %v479 = vunpack.c.l.b16 %v79
  %v480 = vunpack.c.l.b16 %v80
  %v481 = vunpack.c.l.b16 %v81
  %v482 = vunpack.c.l.b16 %v82
  %v483 = vunpack.c.l.b16 %v83
  %v484 = vunpack.c.l.b16 %v84
  %v485 = vunpack.c.l.b16 %v85
  %v486 = vunpack.c.l.b16 %v86
  %v487 = vunpack.c.l.b16 %v87
  %v488 = vunpack.c.l.b16 %v88
  %v489 = vunpack.c.l.b16 %v89
  %v490 = vunpack.c.l.b16 %v90
  %v491 = vunpack.c.l.b16 %v91
  %v492 = vunpack.c.l.b16 %v92
  %v493 = vunpack.c.l.b16 %v93
  %v494 = vunpack.c.l.b16 %v94
  %v495 = vunpack.c.l.b16 %v95
  %v496 = vunpack.c.l.b16 %v96
  %v497 = vunpack.c.l.b16 %v97
  %v498 = vunpack.c.l.b16 %v98
  %v499 = vunpack.c.l.b16 %v99
  %v500 = vunpack.c.l.b16 %v100
  %v501 = vunpack.c.l.b16 %v101
  %v502 = vunpack.c.l.b16 %v102
  %v503 = vunpack.c.l.b16 %v103
  %v504 = vunpack.c.l.b16 %v104
  %v505 = vunpack.c.l.b16 %v105
  %v506 = vunpack.c.l.b16 %v106
  %v507 = vunpack.c.l.b16 %v107
  %v508 = vunpack.c.l.b16 %v108
  %v509 = vunpack.c.l.b16 %v109
  %v510 = vunpack.c.l.b16 %v110
  %v511 = vunpack.c.l.b16 %v111
  %v512 = vunpack.c.l.b16 %v112
  %v513 = vunpack.c.l.b16 %v113
  %v514 = vunpack.c.l.b16 %v114
  %v515 = vunpack.c.l.b16 %v115
  %v516 = vunpack.c.l.b16 %v116
  %v517 = vunpack.c.l.b16 %v117
  %v518 = vunpack.c.l.b16 %v118
  %v519 = vunpack.c.l.b16 %v119
  %v520 = vunpack.c.l.b16 %v120
  %v521 = vunpack.c.l.b16 %v121
  %v522 = vunpack.c.l.b16 %v122
  %v523 = vunpack.c.l.b16 %v123
  %v524 = vunpack.c.l.b16 %v124
  %v525 = vunpack.c.l.b16 %v125
  %v526 = vunpack.c.l.b16 %v126
  %v527 = vunpack.c.l.b16 %v127
  %v528 = vunpack.c.l.b16 %v128
  %v529 = vunpack.c.l.b16 %v129
  %v530 = vunpack.c.l.b16 %v130
  %v531 = vunpack.c.l.b16 %v131
  %v532 = vunpack.c.l.b16 %v132
  %v533 = vunpack.c.l.b16 %v133
  %v534 = vunpack.c.l.b16 %v134
  %v535 = vunpack.c.l.b16 %v135
  %v536 = vunpack.c.l.b16 %v136
  %v537 = vunpack.c.l.b16 %v137
  %v538 = vunpack.c.l.b16 %v138
  %v539 = vunpack.c.l.b16 %v139
  %v540 = vunpack.c.l.b16 %v140
  %v541 = vunpack.c.l.b16 %v141
  %v542 = vunpack.c.l.b16 %v142
  %v543 = vunpack.c.l.b16 %v143
  %v544 = vunpack.c.l.b16 %v144
  %v545 = vunpack.c.l.b16 %v145
  %v546 = vunpack.c.l.b16 %v146
  %v547 = vunpack.c.l.b16 %v147
  %v548 = vunpack.c.l.b16 %v148
  %v549 = vunpack.c.l.b16 %v149
  %v550 = vunpack.c.l.b16 %v150
  %v551 = vunpack.c.l.b16 %v151
  %v552 = vunpack.c.l.b16 %v152
  %v553 = vunpack.c.l.b16 %v153
  %v554 = vunpack.c.l.b16 %v154
  %v555 = vunpack.c.l.b16 %v155
  %v556 = vunpack.c.l.b16 %v156
  %v557 = vunpack.c.l.b16 %v157
  %v558 = vunpack.c.l.b16 %v158
  %v559 = vunpack.c.l.b16 %v159
  %v560 = vunpack.c.l.b16 %v160
  %v561 = vunpack.c.l.b16 %v161
  %v562 = vunpack.c.l.b16 %v162
  %v563 = vunpack.c.l.b16 %v163
  %v564 = vunpack.c.l.b16 %v164
  %v565 = vunpack.c.l.b16 %v165
  %v566 = vunpack.c.l.b16 %v166
  %v567 = vunpack.c.l.b16 %v167
  %v568 = vunpack.c.l.b16 %v168
  %v569 = vunpack.c.l.b16 %v169
  %v570 = vunpack.c.l.b16 %v170
  %v571 = vunpack.c.l.b16 %v171
  %v572 = vunpack.c.l.b16 %v172
  %v573 = vunpack.c.l.b16 %v173
  %v574 = vunpack.c.l.b16 %v174
  %v575 = vunpack.c.l.b16 %v175
  %v576 = vunpack.c.l.b16 %v176
  %v577 = vunpack.c.l.b16 %v177
  %v578 = vunpack.c.l.b16 %v178
  %v579 = vunpack.c.l.b16 %v179
  %v580 = vunpack.c.l.b16 %v180
  %v581 = vunpack.c.l.b16 %v181
  %v582 = vunpack.c.l.b16 %v182
  %v583 = vunpack.c.l.b16 %v183
  %v584 = vunpack.c.l.b16 %v184
  %v585 = vunpack.c.l.b16 %v185
  %v586 = vunpack.c.l.b16 %v186
  %v587 = vunpack.c.l.b16 %v187
  %v588 = vunpack.c.l.b16 %v188
  %v589 = vunpack.c.l.b16 %v189
  %v590 = vunpack.c.l.b16 %v190
  %v591 = vunpack.c.l.b16 %v191
  %v592 = vunpack.c.l.b16 %v192
  %v593 = vunpack.c.l.b16 %v193
  %v594 = vunpack.c.l.b16 %v194
  %v595 = vunpack.c.l.b16 %v195
  %v596 = vunpack.c.l.b16 %v196
  %v597 = vunpack.c.l.b16 %v197
  %v598 = vunpack.c.l.b16 %v198
  %v599 = vunpack.c.l.b16 %v199
  %v600 = vunpack.c.l.b16 %v200
  %v601 = vunpack.c.l.b16 %v201
  %v602 = vunpack.c.l.b16 %v202
  %v603 = vunpack.c.l.b16 %v203
  %v604 = vunpack.c.l.b16 %v204
  %v605 = vunpack.c.l.b16 %v205
  %v606 = vunpack.c.l.b16 %v206
  %v607 = vunpack.c.l.b16 %v207
  %v608 = vunpack.c.l.b16 %v208
  %v609 = vunpack.c.l.b16 %v209
  %v610 = vunpack.c.l.b16 %v210
  %v611 = vunpack.c.l.b16 %v211
  %v612 = vunpack.c.l.b16 %v212
  %v613 = vunpack.c.l.b16 %v213
  %v614 = vunpack.c.l.b16 %v214
  %v615 = vunpack.c.l.b16 %v215
  %v616 = vunpack.c.l.b16 %v216
  %v617 = vunpack.c.l.b16 %v217
  %v618 = vunpack.c.l.b16 %v218
  %v619 = vunpack.c.l.b16 %v219
  %v620 = vunpack.c.l.b16 %v220
  %v621 = vunpack.c.l.b16 %v221
  %v622 = vunpack.c.l.b16 %v222
  %v623 = vunpack.c.l.b16 %v223
  %v624 = vunpack.c.l.b16 %v224
  %v625 = vpack.c.b16 %v426, %v425
  %v626 = vpack.c.b16 %v428, %v427
  %v627 = vpack.c.b16 %v430, %v429
  %v628 = vpack.c.b16 %v432, %v431
  %v629 = vpack.c.b16 %v434, %v433
  %v630 = vpack.c.b16 %v436, %v435
  %v631 = vpack.c.b16 %v438, %v437
  %v632 = vpack.c.b16 %v440, %v439
  %v633 = vpack.c.b16 %v442, %v441
  %v634 = vpack.c.b16 %v444, %v443
  %v635 = vpack.c.b16 %v446, %v445
  %v636 = vpack.c.b16 %v448, %v447
  %v637 = vpack.c.b16 %v450, %v449
  %v638 = vpack.c.b16 %v452, %v451
  %v639 = vpack.c.b16 %v454, %v453
  %v640 = vpack.c.b16 %v456, %v455
  %v641 = vpack.c.b16 %v458, %v457
  %v642 = vpack.c.b16 %v460, %v459
  %v643 = vpack.c.b16 %v462, %v461
  %v644 = vpack.c.b16 %v464, %v463
  %v645 = vpack.c.b16 %v466, %v465
  %v646 = vpack.c.b16 %v468, %v467
  %v647 = vpack.c.b16 %v470, %v469
  %v648 = vpack.c.b16 %v472, %v471
  %v649 = vpack.c.b16 %v474, %v473
  %v650 = vpack.c.b16 %v476, %v475
  %v651 = vpack.c.b16 %v478, %v477
  %v652 = vpack.c.b16 %v480, %v479
  %v653 = vpack.c.b16 %v482, %v481
  %v654 = vpack.c.b16 %v484, %v483
  %v655 = vpack.c.b16 %v486, %v485
  %v656 = vpack.c.b16 %v488, %v487
  %v657 = vpack.c.b16 %v490, %v489
  %v658 = vpack.c.b16 %v492, %v491
  %v659 = vpack.c.b16 %v494, %v493
  %v660 = vpack.c.b16 %v496, %v495
  %v661 = vpack.c.b16 %v498, %v497
  %v662 = vpack.c.b16 %v500, %v499
  %v663 = vpack.c.b16 %v502, %v501
  %v664 = vpack.c.b16 %v504, %v503
  %v665 = vpack.c.b16 %v506, %v505
  %v666 = vpack.c.b16 %v508, %v507
  %v667 = vpack.c.b16 %v510, %v509
  %v668 = vpack.c.b16 %v512, %v511
  %v669 = vpack.c.b16 %v514, %v513
  %v670 = vpack.c.b16 %v516, %v515
  %v671 = vpack.c.b16 %v518, %v517
  %v672 = vpack.c.b16 %v520, %v519
  %v673 = vpack.c.b16 %v522, %v521
  %v674 = vpack.c.b16 %v524, %v523
  %v675 = vpack.c.b16 %v526, %v525
  %v676 = vpack.c.b16 %v528, %v527
  %v677 = vpack.c.b16 %v530, %v529
  %v678 = vpack.c.b16 %v532, %v531
  %v679 = vpack.c.b16 %v534, %v533
  %v680 = vpack.c.b16 %v536, %v535
  %v681 = vpack.c.b16 %v538, %v537
  %v682 = vpack.c.b16 %v540, %v539
  %v683 = vpack.c.b16 %v542, %v541
  %v684 = vpack.c.b16 %v544, %v543
  %v685 = vpack.c.b16 %v546, %v545
  %v686 = vpack.c.b16 %v548, %v547
  %v687 = vpack.c.b16 %v550, %v549
  %v688 = vpack.c.b16 %v552, %v551
  %v689 = vpack.c.b16 %v554, %v553
  %v690 = vpack.c.b16 %v556, %v555
  %v691 = vpack.c.b16 %v558, %v557
  %v692 = vpack.c.b16 %v560, %v559
  %v693 = vpack.c.b16 %v562, %v561
  %v694 = vpack.c.b16 %v564, %v563
  %v695 = vpack.c.b16 %v566, %v565
  %v696 = vpack.c.b16 %v568, %v567
  %v697 = vpack.c.b16 %v570, %v569
  %v698 = vpack.c.b16 %v572, %v571
  %v699 = vpack.c.b16 %v574, %v573
  %v700 = vpack.c.b16 %v576, %v575
  %v701 = vpack.c.b16 %v578, %v577
  %v702 = vpack.c.b16 %v580, %v579
  %v703 = vpack.c.b16 %v582, %v581
  %v704 = vpack.c.b16 %v584, %v583
  %v705 = vpack.c.b16 %v586, %v585
  %v706 = vpack.c.b16 %v588, %v587
  %v707 = vpack.c.b16 %v590, %v589
  %v708 = vpack.c.b16 %v592, %v591
  %v709 = vpack.c.b16 %v594, %v593
  %v710 = vpack.c.b16 %v596, %v595
  %v711 = vpack.c.b16 %v598, %v597
  %v712 = vpack.c.b16 %v600, %v599
  %v713 = vpack.c.b16 %v602, %v601
  %v714 = vpack.c.b16 %v604, %v603
  %v715 = vpack.c.b16 %v606, %v605
  %v716 = vpack.c.b16 %v608, %v607
  %v717 = vpack.c.b16 %v610, %v609
  %v718 = vpack.c.b16 %v612, %v611
  %v719 = vpack.c.b16 %v614, %v613
  %v720 = vpack.c.b16 %v616, %v615
  %v721 = vpack.c.b16 %v618, %v617
  %v722 = vpack.c.b16 %v620, %v619
  %v723 = vpack.c.b16 %v622, %v621
  %v724 = vpack.c.b16 %v624, %v623
  %v735 = vunpack.c.l.b16 %v15
  %v736 = vunpack.c.l.b16 %v16
  %v737 = vunpack.c.l.b16 %v17
  %v738 = vunpack.c.l.b16 %v18
  %v739 = vunpack.c.l.b16 %v19
  %v740 = vunpack.c.l.b16 %v20
  %v741 = vunpack.c.l.b16 %v21
  %v742 = vunpack.c.l.b16 %v22
  %v743 = vunpack.c.l.b16 %v23
  %v744 = vunpack.c.l.b16 %v24
  %v745 = vpack.c.b16 %v736, %v735
  %v746 = vpack.c.b16 %v738, %v737
  %v747 = vpack.c.b16 %v740, %v739
  %v748 = vpack.c.b16 %v742, %v741
  %v749 = vpack.c.b16 %v744, %v743
  %vm754 = vcmask 613376
  %v756 = vsel %vm754, %v625, 0
  %v759 = vsel %vm754, %v626, 0
  %v762 = vsel %vm754, %v627, 0
  %v765 = vsel %vm754, %v628, 0
  %v768 = vsel %vm754, %v629, 0
  %v771 = vsel %vm754, %v630, 0
  %v774 = vsel %vm754, %v631, 0
  %v777 = vsel %vm754, %v632, 0
  %v780 = vsel %vm754, %v633, 0
  %v783 = vsel %vm754, %v634, 0
  %v786 = vsel %vm754, %v635, 0
  %v789 = vsel %vm754, %v636, 0
  %v792 = vsel %vm754, %v637, 0
  %v795 = vsel %vm754, %v638, 0
  %v798 = vsel %vm754, %v639, 0
  %v801 = vsel %vm754, %v640, 0
  %v804 = vsel %vm754, %v641, 0
  %v807 = vsel %vm754, %v642, 0
  %v810 = vsel %vm754, %v643, 0
  %v813 = vsel %vm754, %v644, 0
  %v816 = vsel %vm754, %v645, 0
  %v819 = vsel %vm754, %v646, 0
  %v822 = vsel %vm754, %v647, 0
  %v825 = vsel %vm754, %v648, 0
  %v828 = vsel %vm754, %v649, 0
  %v831 = vsel %vm754, %v650, 0
  %v834 = vsel %vm754, %v651, 0
  %v837 = vsel %vm754, %v652, 0
  %v840 = vsel %vm754, %v653, 0
  %v843 = vsel %vm754, %v654, 0
  %v846 = vsel %vm754, %v655, 0
  %v849 = vsel %vm754, %v656, 0
  %v852 = vsel %vm754, %v657, 0
  %v855 = vsel %vm754, %v658, 0
  %v858 = vsel %vm754, %v659, 0
  %v861 = vsel %vm754, %v660, 0
  %v864 = vsel %vm754, %v661, 0
  %v867 = vsel %vm754, %v662, 0
  %v870 = vsel %vm754, %v663, 0
  %v873 = vsel %vm754, %v664, 0
  %v876 = vsel %vm754, %v665, 0
  %v879 = vsel %vm754, %v666, 0
  %v882 = vsel %vm754, %v667, 0
  %v885 = vsel %vm754, %v668, 0
  %v888 = vsel %vm754, %v669, 0
  %v891 = vsel %vm754, %v670, 0
  %v894 = vsel %vm754, %v671, 0
  %v897 = vsel %vm754, %v672, 0
  %v900 = vsel %vm754, %v673, 0
  %v903 = vsel %vm754, %v674, 0
  %v906 = vsel %vm754, %v675, 0
  %v909 = vsel %vm754, %v676, 0
  %v912 = vsel %vm754, %v677, 0
  %v915 = vsel %vm754, %v678, 0
  %v918 = vsel %vm754, %v679, 0
  %v921 = vsel %vm754, %v680, 0
  %v924 = vsel %vm754, %v681, 0
  %v927 = vsel %vm754, %v682, 0
  %v930 = vsel %vm754, %v683, 0
  %v933 = vsel %vm754, %v684, 0
  %v936 = vsel %vm754, %v685, 0
  %v939 = vsel %vm754, %v686, 0
  %v942 = vsel %vm754, %v687, 0
  %v945 = vsel %vm754, %v688, 0
  %v948 = vsel %vm754, %v689, 0
  %v951 = vsel %vm754, %v690, 0
  %v954 = vsel %vm754, %v691, 0
  %v957 = vsel %vm754, %v692, 0
  %v960 = vsel %vm754, %v693, 0
  %v963 = vsel %vm754, %v694, 0
  %v966 = vsel %vm754, %v695, 0
  %v969 = vsel %vm754, %v696, 0
  %v972 = vsel %vm754, %v697, 0
  %v975 = vsel %vm754, %v698, 0
  %v978 = vsel %vm754, %v699, 0
  %v981 = vsel %vm754, %v700, 0
  %v984 = vsel %vm754, %v701, 0
  %v987 = vsel %vm754, %v702, 0
  %v990 = vsel %vm754, %v703, 0
  %v993 = vsel %vm754, %v704, 0
  %v996 = vsel %vm754, %v705, 0
  %v999 = vsel %vm754, %v706, 0
  %v1002 = vsel %vm754, %v707, 0
  %v1005 = vsel %vm754, %v708, 0
  %v1008 = vsel %vm754, %v709, 0
  %v1011 = vsel %vm754, %v710, 0
  %v1014 = vsel %vm754, %v711, 0
  %v1017 = vsel %vm754, %v712, 0
  %v1020 = vsel %vm754, %v713, 0
  %v1023 = vsel %vm754, %v714, 0
  %v1026 = vsel %vm754, %v715, 0
  %v1029 = vsel %vm754, %v716, 0
  %v1032 = vsel %vm754, %v717, 0
  %v1035 = vsel %vm754, %v718, 0
  %v1038 = vsel %vm754, %v719, 0
  %v1041 = vsel %vm754, %v720, 0
  %v1044 = vsel %vm754, %v721, 0
  %v1047 = vsel %vm754, %v722, 0
  %v1050 = vsel %vm754, %v723, 0
  %v1053 = vsel %vm754, %v724, 0
  %vm1055 = vcmask 1044480
  %vm1056 = vcmask 1045504
  %v1057 = vsel %vm1055, 4294967295, 65535
  %v1058 = vsel %vm1056, %v1057, 0
  %v1060 = vand.u32 %v749, %v1058
  %1062 = vmatpush.bf16.msra.mxu0 0
  %1063 = vmatpush.bf16.msra.mxu0 0
  %1064 = vmatpush.bf16.msra.mxu0 0
  %1065 = vmatpush.bf16.msra.mxu0 %v1060
  %1066 = vmatpush.bf16.msra.mxu0 %v748
  %1067 = vmatpush.bf16.msra.mxu0 %v747
  %1068 = vmatpush.bf16.msra.mxu0 %v746
  %1069 = vmatpush.bf16.msra.mxu0 %v745
  %1070 = vmatmul.bf16.gmra.mxu0 %v756
  %v1071 = vpop.f32.mrf.mxu0
  %v1072 = vadd.f32 0.0, %v1071
  %v1073 = vpop.f32.mrf.mxu0
  %v1074 = vadd.f32 0.0, %v1073
  %1075 = vmatmul.bf16.gmra.mxu0 %v759
  %v1076 = vpop.f32.mrf.mxu0
  %v1077 = vadd.f32 0.0, %v1076
  %v1078 = vpop.f32.mrf.mxu0
  %v1079 = vadd.f32 0.0, %v1078
  %1080 = vmatmul.bf16.gmra.mxu0 %v762
  %v1081 = vpop.f32.mrf.mxu0
  %v1082 = vadd.f32 0.0, %v1081
  %v1083 = vpop.f32.mrf.mxu0
  %v1084 = vadd.f32 0.0, %v1083
  %1085 = vmatmul.bf16.gmra.mxu0 %v765
  %v1086 = vpop.f32.mrf.mxu0
  %v1087 = vadd.f32 0.0, %v1086
  %v1088 = vpop.f32.mrf.mxu0
  %v1089 = vadd.f32 0.0, %v1088
  %1090 = vmatmul.bf16.gmra.mxu0 %v768
  %v1091 = vpop.f32.mrf.mxu0
  %v1092 = vadd.f32 0.0, %v1091
  %v1093 = vpop.f32.mrf.mxu0
  %v1094 = vadd.f32 0.0, %v1093
  %1095 = vmatmul.bf16.gmra.mxu0 %v771
  %v1096 = vpop.f32.mrf.mxu0
  %v1097 = vadd.f32 0.0, %v1096
  %v1098 = vpop.f32.mrf.mxu0
  %v1099 = vadd.f32 0.0, %v1098
  %1100 = vmatmul.bf16.gmra.mxu0 %v774
  %v1101 = vpop.f32.mrf.mxu0
  %v1102 = vadd.f32 0.0, %v1101
  %v1103 = vpop.f32.mrf.mxu0
  %v1104 = vadd.f32 0.0, %v1103
  %1105 = vmatmul.bf16.gmra.mxu0 %v777
  %v1106 = vpop.f32.mrf.mxu0
  %v1107 = vadd.f32 0.0, %v1106
  %v1108 = vpop.f32.mrf.mxu0
  %v1109 = vadd.f32 0.0, %v1108
  %1110 = vmatmul.bf16.gmra.mxu0 %v780
  %v1111 = vpop.f32.mrf.mxu0
  %v1112 = vadd.f32 0.0, %v1111
  %v1113 = vpop.f32.mrf.mxu0
  %v1114 = vadd.f32 0.0, %v1113
  %1115 = vmatmul.bf16.gmra.mxu0 %v783
  %v1116 = vpop.f32.mrf.mxu0
  %v1117 = vadd.f32 0.0, %v1116
  %v1118 = vpop.f32.mrf.mxu0
  %v1119 = vadd.f32 0.0, %v1118
  %1120 = vmatmul.bf16.gmra.mxu0 %v786
  %v1121 = vpop.f32.mrf.mxu0
  %v1122 = vadd.f32 0.0, %v1121
  %v1123 = vpop.f32.mrf.mxu0
  %v1124 = vadd.f32 0.0, %v1123
  %1125 = vmatmul.bf16.gmra.mxu0 %v789
  %v1126 = vpop.f32.mrf.mxu0
  %v1127 = vadd.f32 0.0, %v1126
  %v1128 = vpop.f32.mrf.mxu0
  %v1129 = vadd.f32 0.0, %v1128
  %1130 = vmatmul.bf16.gmra.mxu0 %v792
  %v1131 = vpop.f32.mrf.mxu0
  %v1132 = vadd.f32 0.0, %v1131
  %v1133 = vpop.f32.mrf.mxu0
  %v1134 = vadd.f32 0.0, %v1133
  %1135 = vmatmul.bf16.gmra.mxu0 %v795
  %v1136 = vpop.f32.mrf.mxu0
  %v1137 = vadd.f32 0.0, %v1136
  %v1138 = vpop.f32.mrf.mxu0
  %v1139 = vadd.f32 0.0, %v1138
  %1140 = vmatmul.bf16.gmra.mxu0 %v798
  %v1141 = vpop.f32.mrf.mxu0
  %v1142 = vadd.f32 0.0, %v1141
  %v1143 = vpop.f32.mrf.mxu0
  %v1144 = vadd.f32 0.0, %v1143
  %1145 = vmatmul.bf16.gmra.mxu0 %v801
  %v1146 = vpop.f32.mrf.mxu0
  %v1147 = vadd.f32 0.0, %v1146
  %v1148 = vpop.f32.mrf.mxu0
  %v1149 = vadd.f32 0.0, %v1148
  %1150 = vmatmul.bf16.gmra.mxu0 %v804
  %v1151 = vpop.f32.mrf.mxu0
  %v1152 = vadd.f32 0.0, %v1151
  %v1153 = vpop.f32.mrf.mxu0
  %v1154 = vadd.f32 0.0, %v1153
  %1155 = vmatmul.bf16.gmra.mxu0 %v807
  %v1156 = vpop.f32.mrf.mxu0
  %v1157 = vadd.f32 0.0, %v1156
  %v1158 = vpop.f32.mrf.mxu0
  %v1159 = vadd.f32 0.0, %v1158
  %1160 = vmatmul.bf16.gmra.mxu0 %v810
  %v1161 = vpop.f32.mrf.mxu0
  %v1162 = vadd.f32 0.0, %v1161
  %v1163 = vpop.f32.mrf.mxu0
  %v1164 = vadd.f32 0.0, %v1163
  %1165 = vmatmul.bf16.gmra.mxu0 %v813
  %v1166 = vpop.f32.mrf.mxu0
  %v1167 = vadd.f32 0.0, %v1166
  %v1168 = vpop.f32.mrf.mxu0
  %v1169 = vadd.f32 0.0, %v1168
  %1170 = vmatmul.bf16.gmra.mxu0 %v816
  %v1171 = vpop.f32.mrf.mxu0
  %v1172 = vadd.f32 0.0, %v1171
  %v1173 = vpop.f32.mrf.mxu0
  %v1174 = vadd.f32 0.0, %v1173
  %1175 = vmatmul.bf16.gmra.mxu0 %v819
  %v1176 = vpop.f32.mrf.mxu0
  %v1177 = vadd.f32 0.0, %v1176
  %v1178 = vpop.f32.mrf.mxu0
  %v1179 = vadd.f32 0.0, %v1178
  %1180 = vmatmul.bf16.gmra.mxu0 %v822
  %v1181 = vpop.f32.mrf.mxu0
  %v1182 = vadd.f32 0.0, %v1181
  %v1183 = vpop.f32.mrf.mxu0
  %v1184 = vadd.f32 0.0, %v1183
  %1185 = vmatmul.bf16.gmra.mxu0 %v825
  %v1186 = vpop.f32.mrf.mxu0
  %v1187 = vadd.f32 0.0, %v1186
  %v1188 = vpop.f32.mrf.mxu0
  %v1189 = vadd.f32 0.0, %v1188
  %1190 = vmatmul.bf16.gmra.mxu0 %v828
  %v1191 = vpop.f32.mrf.mxu0
  %v1192 = vadd.f32 0.0, %v1191
  %v1193 = vpop.f32.mrf.mxu0
  %v1194 = vadd.f32 0.0, %v1193
  %1195 = vmatmul.bf16.gmra.mxu0 %v831
  %v1196 = vpop.f32.mrf.mxu0
  %v1197 = vadd.f32 0.0, %v1196
  %v1198 = vpop.f32.mrf.mxu0
  %v1199 = vadd.f32 0.0, %v1198
  %1200 = vmatmul.bf16.gmra.mxu0 %v834
  %v1201 = vpop.f32.mrf.mxu0
  %v1202 = vadd.f32 0.0, %v1201
  %v1203 = vpop.f32.mrf.mxu0
  %v1204 = vadd.f32 0.0, %v1203
  %1205 = vmatmul.bf16.gmra.mxu0 %v837
  %v1206 = vpop.f32.mrf.mxu0
  %v1207 = vadd.f32 0.0, %v1206
  %v1208 = vpop.f32.mrf.mxu0
  %v1209 = vadd.f32 0.0, %v1208
  %1210 = vmatmul.bf16.gmra.mxu0 %v840
  %v1211 = vpop.f32.mrf.mxu0
  %v1212 = vadd.f32 0.0, %v1211
  %v1213 = vpop.f32.mrf.mxu0
  %v1214 = vadd.f32 0.0, %v1213
  %1215 = vmatmul.bf16.gmra.mxu0 %v843
  %v1216 = vpop.f32.mrf.mxu0
  %v1217 = vadd.f32 0.0, %v1216
  %v1218 = vpop.f32.mrf.mxu0
  %v1219 = vadd.f32 0.0, %v1218
  %1220 = vmatmul.bf16.gmra.mxu0 %v846
  %v1221 = vpop.f32.mrf.mxu0
  %v1222 = vadd.f32 0.0, %v1221
  %v1223 = vpop.f32.mrf.mxu0
  %v1224 = vadd.f32 0.0, %v1223
  %1225 = vmatmul.bf16.gmra.mxu0 %v849
  %v1226 = vpop.f32.mrf.mxu0
  %v1227 = vadd.f32 0.0, %v1226
  %v1228 = vpop.f32.mrf.mxu0
  %v1229 = vadd.f32 0.0, %v1228
  %1230 = vmatmul.bf16.gmra.mxu0 %v852
  %v1231 = vpop.f32.mrf.mxu0
  %v1232 = vadd.f32 0.0, %v1231
  %v1233 = vpop.f32.mrf.mxu0
  %v1234 = vadd.f32 0.0, %v1233
  %1235 = vmatmul.bf16.gmra.mxu0 %v855
  %v1236 = vpop.f32.mrf.mxu0
  %v1237 = vadd.f32 0.0, %v1236
  %v1238 = vpop.f32.mrf.mxu0
  %v1239 = vadd.f32 0.0, %v1238
  %1240 = vmatmul.bf16.gmra.mxu0 %v858
  %v1241 = vpop.f32.mrf.mxu0
  %v1242 = vadd.f32 0.0, %v1241
  %v1243 = vpop.f32.mrf.mxu0
  %v1244 = vadd.f32 0.0, %v1243
  %1245 = vmatmul.bf16.gmra.mxu0 %v861
  %v1246 = vpop.f32.mrf.mxu0
  %v1247 = vadd.f32 0.0, %v1246
  %v1248 = vpop.f32.mrf.mxu0
  %v1249 = vadd.f32 0.0, %v1248
  %1250 = vmatmul.bf16.gmra.mxu0 %v864
  %v1251 = vpop.f32.mrf.mxu0
  %v1252 = vadd.f32 0.0, %v1251
  %v1253 = vpop.f32.mrf.mxu0
  %v1254 = vadd.f32 0.0, %v1253
  %1255 = vmatmul.bf16.gmra.mxu0 %v867
  %v1256 = vpop.f32.mrf.mxu0
  %v1257 = vadd.f32 0.0, %v1256
  %v1258 = vpop.f32.mrf.mxu0
  %v1259 = vadd.f32 0.0, %v1258
  %1260 = vmatmul.bf16.gmra.mxu0 %v870
  %v1261 = vpop.f32.mrf.mxu0
  %v1262 = vadd.f32 0.0, %v1261
  %v1263 = vpop.f32.mrf.mxu0
  %v1264 = vadd.f32 0.0, %v1263
  %1265 = vmatmul.bf16.gmra.mxu0 %v873
  %v1266 = vpop.f32.mrf.mxu0
  %v1267 = vadd.f32 0.0, %v1266
  %v1268 = vpop.f32.mrf.mxu0
  %v1269 = vadd.f32 0.0, %v1268
  %1270 = vmatmul.bf16.gmra.mxu0 %v876
  %v1271 = vpop.f32.mrf.mxu0
  %v1272 = vadd.f32 0.0, %v1271
  %v1273 = vpop.f32.mrf.mxu0
  %v1274 = vadd.f32 0.0, %v1273
  %1275 = vmatmul.bf16.gmra.mxu0 %v879
  %v1276 = vpop.f32.mrf.mxu0
  %v1277 = vadd.f32 0.0, %v1276
  %v1278 = vpop.f32.mrf.mxu0
  %v1279 = vadd.f32 0.0, %v1278
  %1280 = vmatmul.bf16.gmra.mxu0 %v882
  %v1281 = vpop.f32.mrf.mxu0
  %v1282 = vadd.f32 0.0, %v1281
  %v1283 = vpop.f32.mrf.mxu0
  %v1284 = vadd.f32 0.0, %v1283
  %1285 = vmatmul.bf16.gmra.mxu0 %v885
  %v1286 = vpop.f32.mrf.mxu0
  %v1287 = vadd.f32 0.0, %v1286
  %v1288 = vpop.f32.mrf.mxu0
  %v1289 = vadd.f32 0.0, %v1288
  %1290 = vmatmul.bf16.gmra.mxu0 %v888
  %v1291 = vpop.f32.mrf.mxu0
  %v1292 = vadd.f32 0.0, %v1291
  %v1293 = vpop.f32.mrf.mxu0
  %v1294 = vadd.f32 0.0, %v1293
  %1295 = vmatmul.bf16.gmra.mxu0 %v891
  %v1296 = vpop.f32.mrf.mxu0
  %v1297 = vadd.f32 0.0, %v1296
  %v1298 = vpop.f32.mrf.mxu0
  %v1299 = vadd.f32 0.0, %v1298
  %1300 = vmatmul.bf16.gmra.mxu0 %v894
  %v1301 = vpop.f32.mrf.mxu0
  %v1302 = vadd.f32 0.0, %v1301
  %v1303 = vpop.f32.mrf.mxu0
  %v1304 = vadd.f32 0.0, %v1303
  %1305 = vmatmul.bf16.gmra.mxu0 %v897
  %v1306 = vpop.f32.mrf.mxu0
  %v1307 = vadd.f32 0.0, %v1306
  %v1308 = vpop.f32.mrf.mxu0
  %v1309 = vadd.f32 0.0, %v1308
  %1310 = vmatmul.bf16.gmra.mxu0 %v900
  %v1311 = vpop.f32.mrf.mxu0
  %v1312 = vadd.f32 0.0, %v1311
  %v1313 = vpop.f32.mrf.mxu0
  %v1314 = vadd.f32 0.0, %v1313
  %1315 = vmatmul.bf16.gmra.mxu0 %v903
  %v1316 = vpop.f32.mrf.mxu0
  %v1317 = vadd.f32 0.0, %v1316
  %v1318 = vpop.f32.mrf.mxu0
  %v1319 = vadd.f32 0.0, %v1318
  %1320 = vmatmul.bf16.gmra.mxu0 %v906
  %v1321 = vpop.f32.mrf.mxu0
  %v1322 = vadd.f32 0.0, %v1321
  %v1323 = vpop.f32.mrf.mxu0
  %v1324 = vadd.f32 0.0, %v1323
  %1325 = vmatmul.bf16.gmra.mxu0 %v909
  %v1326 = vpop.f32.mrf.mxu0
  %v1327 = vadd.f32 0.0, %v1326
  %v1328 = vpop.f32.mrf.mxu0
  %v1329 = vadd.f32 0.0, %v1328
  %1330 = vmatmul.bf16.gmra.mxu0 %v912
  %v1331 = vpop.f32.mrf.mxu0
  %v1332 = vadd.f32 0.0, %v1331
  %v1333 = vpop.f32.mrf.mxu0
  %v1334 = vadd.f32 0.0, %v1333
  %1335 = vmatmul.bf16.gmra.mxu0 %v915
  %v1336 = vpop.f32.mrf.mxu0
  %v1337 = vadd.f32 0.0, %v1336
  %v1338 = vpop.f32.mrf.mxu0
  %v1339 = vadd.f32 0.0, %v1338
  %1340 = vmatmul.bf16.gmra.mxu0 %v918
  %v1341 = vpop.f32.mrf.mxu0
  %v1342 = vadd.f32 0.0, %v1341
  %v1343 = vpop.f32.mrf.mxu0
  %v1344 = vadd.f32 0.0, %v1343
  %1345 = vmatmul.bf16.gmra.mxu0 %v921
  %v1346 = vpop.f32.mrf.mxu0
  %v1347 = vadd.f32 0.0, %v1346
  %v1348 = vpop.f32.mrf.mxu0
  %v1349 = vadd.f32 0.0, %v1348
  %1350 = vmatmul.bf16.gmra.mxu0 %v924
  %v1351 = vpop.f32.mrf.mxu0
  %v1352 = vadd.f32 0.0, %v1351
  %v1353 = vpop.f32.mrf.mxu0
  %v1354 = vadd.f32 0.0, %v1353
  %1355 = vmatmul.bf16.gmra.mxu0 %v927
  %v1356 = vpop.f32.mrf.mxu0
  %v1357 = vadd.f32 0.0, %v1356
  %v1358 = vpop.f32.mrf.mxu0
  %v1359 = vadd.f32 0.0, %v1358
  %1360 = vmatmul.bf16.gmra.mxu0 %v930
  %v1361 = vpop.f32.mrf.mxu0
  %v1362 = vadd.f32 0.0, %v1361
  %v1363 = vpop.f32.mrf.mxu0
  %v1364 = vadd.f32 0.0, %v1363
  %1365 = vmatmul.bf16.gmra.mxu0 %v933
  %v1366 = vpop.f32.mrf.mxu0
  %v1367 = vadd.f32 0.0, %v1366
  %v1368 = vpop.f32.mrf.mxu0
  %v1369 = vadd.f32 0.0, %v1368
  %1370 = vmatmul.bf16.gmra.mxu0 %v936
  %v1371 = vpop.f32.mrf.mxu0
  %v1372 = vadd.f32 0.0, %v1371
  %v1373 = vpop.f32.mrf.mxu0
  %v1374 = vadd.f32 0.0, %v1373
  %1375 = vmatmul.bf16.gmra.mxu0 %v939
  %v1376 = vpop.f32.mrf.mxu0
  %v1377 = vadd.f32 0.0, %v1376
  %v1378 = vpop.f32.mrf.mxu0
  %v1379 = vadd.f32 0.0, %v1378
  %1380 = vmatmul.bf16.gmra.mxu0 %v942
  %v1381 = vpop.f32.mrf.mxu0
  %v1382 = vadd.f32 0.0, %v1381
  %v1383 = vpop.f32.mrf.mxu0
  %v1384 = vadd.f32 0.0, %v1383
  %1385 = vmatmul.bf16.gmra.mxu0 %v945
  %v1386 = vpop.f32.mrf.mxu0
  %v1387 = vadd.f32 0.0, %v1386
  %v1388 = vpop.f32.mrf.mxu0
  %v1389 = vadd.f32 0.0, %v1388
  %1390 = vmatmul.bf16.gmra.mxu0 %v948
  %v1391 = vpop.f32.mrf.mxu0
  %v1392 = vadd.f32 0.0, %v1391
  %v1393 = vpop.f32.mrf.mxu0
  %v1394 = vadd.f32 0.0, %v1393
  %1395 = vmatmul.bf16.gmra.mxu0 %v951
  %v1396 = vpop.f32.mrf.mxu0
  %v1397 = vadd.f32 0.0, %v1396
  %v1398 = vpop.f32.mrf.mxu0
  %v1399 = vadd.f32 0.0, %v1398
  %1400 = vmatmul.bf16.gmra.mxu0 %v954
  %v1401 = vpop.f32.mrf.mxu0
  %v1402 = vadd.f32 0.0, %v1401
  %v1403 = vpop.f32.mrf.mxu0
  %v1404 = vadd.f32 0.0, %v1403
  %1405 = vmatmul.bf16.gmra.mxu0 %v957
  %v1406 = vpop.f32.mrf.mxu0
  %v1407 = vadd.f32 0.0, %v1406
  %v1408 = vpop.f32.mrf.mxu0
  %v1409 = vadd.f32 0.0, %v1408
  %1410 = vmatmul.bf16.gmra.mxu0 %v960
  %v1411 = vpop.f32.mrf.mxu0
  %v1412 = vadd.f32 0.0, %v1411
  %v1413 = vpop.f32.mrf.mxu0
  %v1414 = vadd.f32 0.0, %v1413
  %1415 = vmatmul.bf16.gmra.mxu0 %v963
  %v1416 = vpop.f32.mrf.mxu0
  %v1417 = vadd.f32 0.0, %v1416
  %v1418 = vpop.f32.mrf.mxu0
  %v1419 = vadd.f32 0.0, %v1418
  %1420 = vmatmul.bf16.gmra.mxu0 %v966
  %v1421 = vpop.f32.mrf.mxu0
  %v1422 = vadd.f32 0.0, %v1421
  %v1423 = vpop.f32.mrf.mxu0
  %v1424 = vadd.f32 0.0, %v1423
  %1425 = vmatmul.bf16.gmra.mxu0 %v969
  %v1426 = vpop.f32.mrf.mxu0
  %v1427 = vadd.f32 0.0, %v1426
  %v1428 = vpop.f32.mrf.mxu0
  %v1429 = vadd.f32 0.0, %v1428
  %1430 = vmatmul.bf16.gmra.mxu0 %v972
  %v1431 = vpop.f32.mrf.mxu0
  %v1432 = vadd.f32 0.0, %v1431
  %v1433 = vpop.f32.mrf.mxu0
  %v1434 = vadd.f32 0.0, %v1433
  %1435 = vmatmul.bf16.gmra.mxu0 %v975
  %v1436 = vpop.f32.mrf.mxu0
  %v1437 = vadd.f32 0.0, %v1436
  %v1438 = vpop.f32.mrf.mxu0
  %v1439 = vadd.f32 0.0, %v1438
  %1440 = vmatmul.bf16.gmra.mxu0 %v978
  %v1441 = vpop.f32.mrf.mxu0
  %v1442 = vadd.f32 0.0, %v1441
  %v1443 = vpop.f32.mrf.mxu0
  %v1444 = vadd.f32 0.0, %v1443
  %1445 = vmatmul.bf16.gmra.mxu0 %v981
  %v1446 = vpop.f32.mrf.mxu0
  %v1447 = vadd.f32 0.0, %v1446
  %v1448 = vpop.f32.mrf.mxu0
  %v1449 = vadd.f32 0.0, %v1448
  %1450 = vmatmul.bf16.gmra.mxu0 %v984
  %v1451 = vpop.f32.mrf.mxu0
  %v1452 = vadd.f32 0.0, %v1451
  %v1453 = vpop.f32.mrf.mxu0
  %v1454 = vadd.f32 0.0, %v1453
  %1455 = vmatmul.bf16.gmra.mxu0 %v987
  %v1456 = vpop.f32.mrf.mxu0
  %v1457 = vadd.f32 0.0, %v1456
  %v1458 = vpop.f32.mrf.mxu0
  %v1459 = vadd.f32 0.0, %v1458
  %1460 = vmatmul.bf16.gmra.mxu0 %v990
  %v1461 = vpop.f32.mrf.mxu0
  %v1462 = vadd.f32 0.0, %v1461
  %v1463 = vpop.f32.mrf.mxu0
  %v1464 = vadd.f32 0.0, %v1463
  %1465 = vmatmul.bf16.gmra.mxu0 %v993
  %v1466 = vpop.f32.mrf.mxu0
  %v1467 = vadd.f32 0.0, %v1466
  %v1468 = vpop.f32.mrf.mxu0
  %v1469 = vadd.f32 0.0, %v1468
  %1470 = vmatmul.bf16.gmra.mxu0 %v996
  %v1471 = vpop.f32.mrf.mxu0
  %v1472 = vadd.f32 0.0, %v1471
  %v1473 = vpop.f32.mrf.mxu0
  %v1474 = vadd.f32 0.0, %v1473
  %1475 = vmatmul.bf16.gmra.mxu0 %v999
  %v1476 = vpop.f32.mrf.mxu0
  %v1477 = vadd.f32 0.0, %v1476
  %v1478 = vpop.f32.mrf.mxu0
  %v1479 = vadd.f32 0.0, %v1478
  %1480 = vmatmul.bf16.gmra.mxu0 %v1002
  %v1481 = vpop.f32.mrf.mxu0
  %v1482 = vadd.f32 0.0, %v1481
  %v1483 = vpop.f32.mrf.mxu0
  %v1484 = vadd.f32 0.0, %v1483
  %1485 = vmatmul.bf16.gmra.mxu0 %v1005
  %v1486 = vpop.f32.mrf.mxu0
  %v1487 = vadd.f32 0.0, %v1486
  %v1488 = vpop.f32.mrf.mxu0
  %v1489 = vadd.f32 0.0, %v1488
  %1490 = vmatmul.bf16.gmra.mxu0 %v1008
  %v1491 = vpop.f32.mrf.mxu0
  %v1492 = vadd.f32 0.0, %v1491
  %v1493 = vpop.f32.mrf.mxu0
  %v1494 = vadd.f32 0.0, %v1493
  %1495 = vmatmul.bf16.gmra.mxu0 %v1011
  %v1496 = vpop.f32.mrf.mxu0
  %v1497 = vadd.f32 0.0, %v1496
  %v1498 = vpop.f32.mrf.mxu0
  %v1499 = vadd.f32 0.0, %v1498
  %1500 = vmatmul.bf16.gmra.mxu0 %v1014
  %v1501 = vpop.f32.mrf.mxu0
  %v1502 = vadd.f32 0.0, %v1501
  %v1503 = vpop.f32.mrf.mxu0
  %v1504 = vadd.f32 0.0, %v1503
  %1505 = vmatmul.bf16.gmra.mxu0 %v1017
  %v1506 = vpop.f32.mrf.mxu0
  %v1507 = vadd.f32 0.0, %v1506
  %v1508 = vpop.f32.mrf.mxu0
  %v1509 = vadd.f32 0.0, %v1508
  %1510 = vmatmul.bf16.gmra.mxu0 %v1020
  %v1511 = vpop.f32.mrf.mxu0
  %v1512 = vadd.f32 0.0, %v1511
  %v1513 = vpop.f32.mrf.mxu0
  %v1514 = vadd.f32 0.0, %v1513
  %1515 = vmatmul.bf16.gmra.mxu0 %v1023
  %v1516 = vpop.f32.mrf.mxu0
  %v1517 = vadd.f32 0.0, %v1516
  %v1518 = vpop.f32.mrf.mxu0
  %v1519 = vadd.f32 0.0, %v1518
  %1520 = vmatmul.bf16.gmra.mxu0 %v1026
  %v1521 = vpop.f32.mrf.mxu0
  %v1522 = vadd.f32 0.0, %v1521
  %v1523 = vpop.f32.mrf.mxu0
  %v1524 = vadd.f32 0.0, %v1523
  %1525 = vmatmul.bf16.gmra.mxu0 %v1029
  %v1526 = vpop.f32.mrf.mxu0
  %v1527 = vadd.f32 0.0, %v1526
  %v1528 = vpop.f32.mrf.mxu0
  %v1529 = vadd.f32 0.0, %v1528
  %1530 = vmatmul.bf16.gmra.mxu0 %v1032
  %v1531 = vpop.f32.mrf.mxu0
  %v1532 = vadd.f32 0.0, %v1531
  %v1533 = vpop.f32.mrf.mxu0
  %v1534 = vadd.f32 0.0, %v1533
  %1535 = vmatmul.bf16.gmra.mxu0 %v1035
  %v1536 = vpop.f32.mrf.mxu0
  %v1537 = vadd.f32 0.0, %v1536
  %v1538 = vpop.f32.mrf.mxu0
  %v1539 = vadd.f32 0.0, %v1538
  %1540 = vmatmul.bf16.gmra.mxu0 %v1038
  %v1541 = vpop.f32.mrf.mxu0
  %v1542 = vadd.f32 0.0, %v1541
  %v1543 = vpop.f32.mrf.mxu0
  %v1544 = vadd.f32 0.0, %v1543
  %1545 = vmatmul.bf16.gmra.mxu0 %v1041
  %v1546 = vpop.f32.mrf.mxu0
  %v1547 = vadd.f32 0.0, %v1546
  %v1548 = vpop.f32.mrf.mxu0
  %v1549 = vadd.f32 0.0, %v1548
  %1550 = vmatmul.bf16.gmra.mxu0 %v1044
  %v1551 = vpop.f32.mrf.mxu0
  %v1552 = vadd.f32 0.0, %v1551
  %v1553 = vpop.f32.mrf.mxu0
  %v1554 = vadd.f32 0.0, %v1553
  %1555 = vmatmul.bf16.gmra.mxu0 %v1047
  %v1556 = vpop.f32.mrf.mxu0
  %v1557 = vadd.f32 0.0, %v1556
  %v1558 = vpop.f32.mrf.mxu0
  %v1559 = vadd.f32 0.0, %v1558
  %1560 = vmatmul.bf16.gmra.mxu0 %v1050
  %v1561 = vpop.f32.mrf.mxu0
  %v1562 = vadd.f32 0.0, %v1561
  %v1563 = vpop.f32.mrf.mxu0
  %v1564 = vadd.f32 0.0, %v1563
  %1565 = vmatmul.bf16.gmra.mxu0 %v1053
  %v1566 = vpop.f32.mrf.mxu0
  %v1567 = vadd.f32 0.0, %v1566
  %v1568 = vpop.f32.mrf.mxu0
  %v1569 = vadd.f32 0.0, %v1568
  %1570 = vdwg.mxu0
  %s1571 = scalar_lea.vmem %s0, 800
  %v1572 = vld [vmem:[%s1571] sm:$0xf]
  %v1573 = vld [vmem:[%s1571 + $0x4] sm:$0xf]
  %v1574 = vld [vmem:[%s1571 + $0x8] sm:$0xf]
  %v1575 = vld [vmem:[%s1571 + $0xc] sm:$0xf]
  %v1576 = vld [vmem:[%s1571 + $0x10] sm:$0xf]
  %v1577 = vld [vmem:[%s1571 + $0x14] sm:$0xf]
  %v1578 = vld [vmem:[%s1571 + $0x18] sm:$0xf]
  %v1579 = vld [vmem:[%s1571 + $0x1c] sm:$0xf]
  %v1580 = vld [vmem:[%s1571 + $0x20] sm:$0xf]
  %v1581 = vld [vmem:[%s1571 + $0x24] sm:$0xf]
  %v1582 = vld [vmem:[%s1571 + $0x28] sm:$0xf]
  %v1583 = vld [vmem:[%s1571 + $0x2c] sm:$0xf]
  %v1584 = vld [vmem:[%s1571 + $0x30] sm:$0xf]
  %v1585 = vld [vmem:[%s1571 + $0x34] sm:$0xf]
  %v1586 = vld [vmem:[%s1571 + $0x38] sm:$0xf]
  %v1587 = vld [vmem:[%s1571 + $0x3c] sm:$0xf]
  %v1588 = vld [vmem:[%s1571 + $0x40] sm:$0xf]
  %v1589 = vld [vmem:[%s1571 + $0x44] sm:$0xf]
  %v1590 = vld [vmem:[%s1571 + $0x48] sm:$0xf]
  %v1591 = vld [vmem:[%s1571 + $0x4c] sm:$0xf]
  %v1592 = vld [vmem:[%s1571 + $0x50] sm:$0xf]
  %v1593 = vld [vmem:[%s1571 + $0x54] sm:$0xf]
  %v1594 = vld [vmem:[%s1571 + $0x58] sm:$0xf]
  %v1595 = vld [vmem:[%s1571 + $0x5c] sm:$0xf]
  %v1596 = vld [vmem:[%s1571 + $0x60] sm:$0xf]
  %v1597 = vld [vmem:[%s1571 + $0x64] sm:$0xf]
  %v1598 = vld [vmem:[%s1571 + $0x68] sm:$0xf]
  %v1599 = vld [vmem:[%s1571 + $0x6c] sm:$0xf]
  %v1600 = vld [vmem:[%s1571 + $0x70] sm:$0xf]
  %v1601 = vld [vmem:[%s1571 + $0x74] sm:$0xf]
  %v1602 = vld [vmem:[%s1571 + $0x78] sm:$0xf]
  %v1603 = vld [vmem:[%s1571 + $0x7c] sm:$0xf]
  %v1604 = vld [vmem:[%s1571 + $0x80] sm:$0xf]
  %v1605 = vld [vmem:[%s1571 + $0x84] sm:$0xf]
  %v1606 = vld [vmem:[%s1571 + $0x88] sm:$0xf]
  %v1607 = vld [vmem:[%s1571 + $0x8c] sm:$0xf]
  %v1608 = vld [vmem:[%s1571 + $0x90] sm:$0xf]
  %v1609 = vld [vmem:[%s1571 + $0x94] sm:$0xf]
  %v1610 = vld [vmem:[%s1571 + $0x98] sm:$0xf]
  %v1611 = vld [vmem:[%s1571 + $0x9c] sm:$0xf]
  %v1612 = vld [vmem:[%s1571 + $0xa0] sm:$0xf]
  %v1613 = vld [vmem:[%s1571 + $0xa4] sm:$0xf]
  %v1614 = vld [vmem:[%s1571 + $0xa8] sm:$0xf]
  %v1615 = vld [vmem:[%s1571 + $0xac] sm:$0xf]
  %v1616 = vld [vmem:[%s1571 + $0xb0] sm:$0xf]
  %v1617 = vld [vmem:[%s1571 + $0xb4] sm:$0xf]
  %v1618 = vld [vmem:[%s1571 + $0xb8] sm:$0xf]
  %v1619 = vld [vmem:[%s1571 + $0xbc] sm:$0xf]
  %v1620 = vld [vmem:[%s1571 + $0xc0] sm:$0xf]
  %v1621 = vld [vmem:[%s1571 + $0xc4] sm:$0xf]
  %v1622 = vld [vmem:[%s1571 + $0xc8] sm:$0xf]
  %v1623 = vld [vmem:[%s1571 + $0xcc] sm:$0xf]
  %v1624 = vld [vmem:[%s1571 + $0xd0] sm:$0xf]
  %v1625 = vld [vmem:[%s1571 + $0xd4] sm:$0xf]
  %v1626 = vld [vmem:[%s1571 + $0xd8] sm:$0xf]
  %v1627 = vld [vmem:[%s1571 + $0xdc] sm:$0xf]
  %v1628 = vld [vmem:[%s1571 + $0xe0] sm:$0xf]
  %v1629 = vld [vmem:[%s1571 + $0xe4] sm:$0xf]
  %v1630 = vld [vmem:[%s1571 + $0xe8] sm:$0xf]
  %v1631 = vld [vmem:[%s1571 + $0xec] sm:$0xf]
  %v1632 = vld [vmem:[%s1571 + $0xf0] sm:$0xf]
  %v1633 = vld [vmem:[%s1571 + $0xf4] sm:$0xf]
  %v1634 = vld [vmem:[%s1571 + $0xf8] sm:$0xf]
  %v1635 = vld [vmem:[%s1571 + $0xfc] sm:$0xf]
  %v1636 = vld [vmem:[%s1571 + $0x100] sm:$0xf]
  %v1637 = vld [vmem:[%s1571 + $0x104] sm:$0xf]
  %v1638 = vld [vmem:[%s1571 + $0x108] sm:$0xf]
  %v1639 = vld [vmem:[%s1571 + $0x10c] sm:$0xf]
  %v1640 = vld [vmem:[%s1571 + $0x110] sm:$0xf]
  %v1641 = vld [vmem:[%s1571 + $0x114] sm:$0xf]
  %v1642 = vld [vmem:[%s1571 + $0x118] sm:$0xf]
  %v1643 = vld [vmem:[%s1571 + $0x11c] sm:$0xf]
  %v1644 = vld [vmem:[%s1571 + $0x120] sm:$0xf]
  %v1645 = vld [vmem:[%s1571 + $0x124] sm:$0xf]
  %v1646 = vld [vmem:[%s1571 + $0x128] sm:$0xf]
  %v1647 = vld [vmem:[%s1571 + $0x12c] sm:$0xf]
  %v1648 = vld [vmem:[%s1571 + $0x130] sm:$0xf]
  %v1649 = vld [vmem:[%s1571 + $0x134] sm:$0xf]
  %v1650 = vld [vmem:[%s1571 + $0x138] sm:$0xf]
  %v1651 = vld [vmem:[%s1571 + $0x13c] sm:$0xf]
  %v1652 = vld [vmem:[%s1571 + $0x140] sm:$0xf]
  %v1653 = vld [vmem:[%s1571 + $0x144] sm:$0xf]
  %v1654 = vld [vmem:[%s1571 + $0x148] sm:$0xf]
  %v1655 = vld [vmem:[%s1571 + $0x14c] sm:$0xf]
  %v1656 = vld [vmem:[%s1571 + $0x150] sm:$0xf]
  %v1657 = vld [vmem:[%s1571 + $0x154] sm:$0xf]
  %v1658 = vld [vmem:[%s1571 + $0x158] sm:$0xf]
  %v1659 = vld [vmem:[%s1571 + $0x15c] sm:$0xf]
  %v1660 = vld [vmem:[%s1571 + $0x160] sm:$0xf]
  %v1661 = vld [vmem:[%s1571 + $0x164] sm:$0xf]
  %v1662 = vld [vmem:[%s1571 + $0x168] sm:$0xf]
  %v1663 = vld [vmem:[%s1571 + $0x16c] sm:$0xf]
  %v1664 = vld [vmem:[%s1571 + $0x170] sm:$0xf]
  %v1665 = vld [vmem:[%s1571 + $0x174] sm:$0xf]
  %v1666 = vld [vmem:[%s1571 + $0x178] sm:$0xf]
  %v1667 = vld [vmem:[%s1571 + $0x17c] sm:$0xf]
  %v1668 = vld [vmem:[%s1571 + $0x180] sm:$0xf]
  %v1669 = vld [vmem:[%s1571 + $0x184] sm:$0xf]
  %v1670 = vld [vmem:[%s1571 + $0x188] sm:$0xf]
  %v1671 = vld [vmem:[%s1571 + $0x18c] sm:$0xf]
  %v1672 = vld [vmem:[%s1571 + $0x190] sm:$0xf]
  %v1673 = vld [vmem:[%s1571 + $0x194] sm:$0xf]
  %v1674 = vld [vmem:[%s1571 + $0x198] sm:$0xf]
  %v1675 = vld [vmem:[%s1571 + $0x19c] sm:$0xf]
  %v1676 = vld [vmem:[%s1571 + $0x1a0] sm:$0xf]
  %v1677 = vld [vmem:[%s1571 + $0x1a4] sm:$0xf]
  %v1678 = vld [vmem:[%s1571 + $0x1a8] sm:$0xf]
  %v1679 = vld [vmem:[%s1571 + $0x1ac] sm:$0xf]
  %v1680 = vld [vmem:[%s1571 + $0x1b0] sm:$0xf]
  %v1681 = vld [vmem:[%s1571 + $0x1b4] sm:$0xf]
  %v1682 = vld [vmem:[%s1571 + $0x1b8] sm:$0xf]
  %v1683 = vld [vmem:[%s1571 + $0x1bc] sm:$0xf]
  %v1684 = vld [vmem:[%s1571 + $0x1c0] sm:$0xf]
  %v1685 = vld [vmem:[%s1571 + $0x1c4] sm:$0xf]
  %v1686 = vld [vmem:[%s1571 + $0x1c8] sm:$0xf]
  %v1687 = vld [vmem:[%s1571 + $0x1cc] sm:$0xf]
  %v1688 = vld [vmem:[%s1571 + $0x1d0] sm:$0xf]
  %v1689 = vld [vmem:[%s1571 + $0x1d4] sm:$0xf]
  %v1690 = vld [vmem:[%s1571 + $0x1d8] sm:$0xf]
  %v1691 = vld [vmem:[%s1571 + $0x1dc] sm:$0xf]
  %v1692 = vld [vmem:[%s1571 + $0x1e0] sm:$0xf]
  %v1693 = vld [vmem:[%s1571 + $0x1e4] sm:$0xf]
  %v1694 = vld [vmem:[%s1571 + $0x1e8] sm:$0xf]
  %v1695 = vld [vmem:[%s1571 + $0x1ec] sm:$0xf]
  %v1696 = vld [vmem:[%s1571 + $0x1f0] sm:$0xf]
  %v1697 = vld [vmem:[%s1571 + $0x1f4] sm:$0xf]
  %v1698 = vld [vmem:[%s1571 + $0x1f8] sm:$0xf]
  %v1699 = vld [vmem:[%s1571 + $0x1fc] sm:$0xf]
  %v1700 = vld [vmem:[%s1571 + $0x200] sm:$0xf]
  %v1701 = vld [vmem:[%s1571 + $0x204] sm:$0xf]
  %v1702 = vld [vmem:[%s1571 + $0x208] sm:$0xf]
  %v1703 = vld [vmem:[%s1571 + $0x20c] sm:$0xf]
  %v1704 = vld [vmem:[%s1571 + $0x210] sm:$0xf]
  %v1705 = vld [vmem:[%s1571 + $0x214] sm:$0xf]
  %v1706 = vld [vmem:[%s1571 + $0x218] sm:$0xf]
  %v1707 = vld [vmem:[%s1571 + $0x21c] sm:$0xf]
  %v1708 = vld [vmem:[%s1571 + $0x220] sm:$0xf]
  %v1709 = vld [vmem:[%s1571 + $0x224] sm:$0xf]
  %v1710 = vld [vmem:[%s1571 + $0x228] sm:$0xf]
  %v1711 = vld [vmem:[%s1571 + $0x22c] sm:$0xf]
  %v1712 = vld [vmem:[%s1571 + $0x230] sm:$0xf]
  %v1713 = vld [vmem:[%s1571 + $0x234] sm:$0xf]
  %v1714 = vld [vmem:[%s1571 + $0x238] sm:$0xf]
  %v1715 = vld [vmem:[%s1571 + $0x23c] sm:$0xf]
  %v1716 = vld [vmem:[%s1571 + $0x240] sm:$0xf]
  %v1717 = vld [vmem:[%s1571 + $0x244] sm:$0xf]
  %v1718 = vld [vmem:[%s1571 + $0x248] sm:$0xf]
  %v1719 = vld [vmem:[%s1571 + $0x24c] sm:$0xf]
  %v1720 = vld [vmem:[%s1571 + $0x250] sm:$0xf]
  %v1721 = vld [vmem:[%s1571 + $0x254] sm:$0xf]
  %v1722 = vld [vmem:[%s1571 + $0x258] sm:$0xf]
  %v1723 = vld [vmem:[%s1571 + $0x25c] sm:$0xf]
  %v1724 = vld [vmem:[%s1571 + $0x260] sm:$0xf]
  %v1725 = vld [vmem:[%s1571 + $0x264] sm:$0xf]
  %v1726 = vld [vmem:[%s1571 + $0x268] sm:$0xf]
  %v1727 = vld [vmem:[%s1571 + $0x26c] sm:$0xf]
  %v1728 = vld [vmem:[%s1571 + $0x270] sm:$0xf]
  %v1729 = vld [vmem:[%s1571 + $0x274] sm:$0xf]
  %v1730 = vld [vmem:[%s1571 + $0x278] sm:$0xf]
  %v1731 = vld [vmem:[%s1571 + $0x27c] sm:$0xf]
  %v1732 = vld [vmem:[%s1571 + $0x280] sm:$0xf]
  %v1733 = vld [vmem:[%s1571 + $0x284] sm:$0xf]
  %v1734 = vld [vmem:[%s1571 + $0x288] sm:$0xf]
  %v1735 = vld [vmem:[%s1571 + $0x28c] sm:$0xf]
  %v1736 = vld [vmem:[%s1571 + $0x290] sm:$0xf]
  %v1737 = vld [vmem:[%s1571 + $0x294] sm:$0xf]
  %v1738 = vld [vmem:[%s1571 + $0x298] sm:$0xf]
  %v1739 = vld [vmem:[%s1571 + $0x29c] sm:$0xf]
  %v1740 = vld [vmem:[%s1571 + $0x2a0] sm:$0xf]
  %v1741 = vld [vmem:[%s1571 + $0x2a4] sm:$0xf]
  %v1742 = vld [vmem:[%s1571 + $0x2a8] sm:$0xf]
  %v1743 = vld [vmem:[%s1571 + $0x2ac] sm:$0xf]
  %v1744 = vld [vmem:[%s1571 + $0x2b0] sm:$0xf]
  %v1745 = vld [vmem:[%s1571 + $0x2b4] sm:$0xf]
  %v1746 = vld [vmem:[%s1571 + $0x2b8] sm:$0xf]
  %v1747 = vld [vmem:[%s1571 + $0x2bc] sm:$0xf]
  %v1748 = vld [vmem:[%s1571 + $0x2c0] sm:$0xf]
  %v1749 = vld [vmem:[%s1571 + $0x2c4] sm:$0xf]
  %v1750 = vld [vmem:[%s1571 + $0x2c8] sm:$0xf]
  %v1751 = vld [vmem:[%s1571 + $0x2cc] sm:$0xf]
  %v1752 = vld [vmem:[%s1571 + $0x2d0] sm:$0xf]
  %v1753 = vld [vmem:[%s1571 + $0x2d4] sm:$0xf]
  %v1754 = vld [vmem:[%s1571 + $0x2d8] sm:$0xf]
  %v1755 = vld [vmem:[%s1571 + $0x2dc] sm:$0xf]
  %v1756 = vld [vmem:[%s1571 + $0x2e0] sm:$0xf]
  %v1757 = vld [vmem:[%s1571 + $0x2e4] sm:$0xf]
  %v1758 = vld [vmem:[%s1571 + $0x2e8] sm:$0xf]
  %v1759 = vld [vmem:[%s1571 + $0x2ec] sm:$0xf]
  %v1760 = vld [vmem:[%s1571 + $0x2f0] sm:$0xf]
  %v1761 = vld [vmem:[%s1571 + $0x2f4] sm:$0xf]
  %v1762 = vld [vmem:[%s1571 + $0x2f8] sm:$0xf]
  %v1763 = vld [vmem:[%s1571 + $0x2fc] sm:$0xf]
  %v1764 = vld [vmem:[%s1571 + $0x300] sm:$0xf]
  %v1765 = vld [vmem:[%s1571 + $0x304] sm:$0xf]
  %v1766 = vld [vmem:[%s1571 + $0x308] sm:$0xf]
  %v1767 = vld [vmem:[%s1571 + $0x30c] sm:$0xf]
  %v1768 = vld [vmem:[%s1571 + $0x310] sm:$0xf]
  %v1769 = vld [vmem:[%s1571 + $0x314] sm:$0xf]
  %v1770 = vld [vmem:[%s1571 + $0x318] sm:$0xf]
  %v1771 = vld [vmem:[%s1571 + $0x31c] sm:$0xf]
  %v1972 = vunpack.c.l.b16 %v1572
  %v1973 = vunpack.c.l.b16 %v1573
  %v1974 = vunpack.c.l.b16 %v1574
  %v1975 = vunpack.c.l.b16 %v1575
  %v1976 = vunpack.c.l.b16 %v1576
  %v1977 = vunpack.c.l.b16 %v1577
  %v1978 = vunpack.c.l.b16 %v1578
  %v1979 = vunpack.c.l.b16 %v1579
  %v1980 = vunpack.c.l.b16 %v1580
  %v1981 = vunpack.c.l.b16 %v1581
  %v1982 = vunpack.c.l.b16 %v1582
  %v1983 = vunpack.c.l.b16 %v1583
  %v1984 = vunpack.c.l.b16 %v1584
  %v1985 = vunpack.c.l.b16 %v1585
  %v1986 = vunpack.c.l.b16 %v1586
  %v1987 = vunpack.c.l.b16 %v1587
  %v1988 = vunpack.c.l.b16 %v1588
  %v1989 = vunpack.c.l.b16 %v1589
  %v1990 = vunpack.c.l.b16 %v1590
  %v1991 = vunpack.c.l.b16 %v1591
  %v1992 = vunpack.c.l.b16 %v1592
  %v1993 = vunpack.c.l.b16 %v1593
  %v1994 = vunpack.c.l.b16 %v1594
  %v1995 = vunpack.c.l.b16 %v1595
  %v1996 = vunpack.c.l.b16 %v1596
  %v1997 = vunpack.c.l.b16 %v1597
  %v1998 = vunpack.c.l.b16 %v1598
  %v1999 = vunpack.c.l.b16 %v1599
  %v2000 = vunpack.c.l.b16 %v1600
  %v2001 = vunpack.c.l.b16 %v1601
  %v2002 = vunpack.c.l.b16 %v1602
  %v2003 = vunpack.c.l.b16 %v1603
  %v2004 = vunpack.c.l.b16 %v1604
  %v2005 = vunpack.c.l.b16 %v1605
  %v2006 = vunpack.c.l.b16 %v1606
  %v2007 = vunpack.c.l.b16 %v1607
  %v2008 = vunpack.c.l.b16 %v1608
  %v2009 = vunpack.c.l.b16 %v1609
  %v2010 = vunpack.c.l.b16 %v1610
  %v2011 = vunpack.c.l.b16 %v1611
  %v2012 = vunpack.c.l.b16 %v1612
  %v2013 = vunpack.c.l.b16 %v1613
  %v2014 = vunpack.c.l.b16 %v1614
  %v2015 = vunpack.c.l.b16 %v1615
  %v2016 = vunpack.c.l.b16 %v1616
  %v2017 = vunpack.c.l.b16 %v1617
  %v2018 = vunpack.c.l.b16 %v1618
  %v2019 = vunpack.c.l.b16 %v1619
  %v2020 = vunpack.c.l.b16 %v1620
  %v2021 = vunpack.c.l.b16 %v1621
  %v2022 = vunpack.c.l.b16 %v1622
  %v2023 = vunpack.c.l.b16 %v1623
  %v2024 = vunpack.c.l.b16 %v1624
  %v2025 = vunpack.c.l.b16 %v1625
  %v2026 = vunpack.c.l.b16 %v1626
  %v2027 = vunpack.c.l.b16 %v1627
  %v2028 = vunpack.c.l.b16 %v1628
  %v2029 = vunpack.c.l.b16 %v1629
  %v2030 = vunpack.c.l.b16 %v1630
  %v2031 = vunpack.c.l.b16 %v1631
  %v2032 = vunpack.c.l.b16 %v1632
  %v2033 = vunpack.c.l.b16 %v1633
  %v2034 = vunpack.c.l.b16 %v1634
  %v2035 = vunpack.c.l.b16 %v1635
  %v2036 = vunpack.c.l.b16 %v1636
  %v2037 = vunpack.c.l.b16 %v1637
  %v2038 = vunpack.c.l.b16 %v1638
  %v2039 = vunpack.c.l.b16 %v1639
  %v2040 = vunpack.c.l.b16 %v1640
  %v2041 = vunpack.c.l.b16 %v1641
  %v2042 = vunpack.c.l.b16 %v1642
  %v2043 = vunpack.c.l.b16 %v1643
  %v2044 = vunpack.c.l.b16 %v1644
  %v2045 = vunpack.c.l.b16 %v1645
  %v2046 = vunpack.c.l.b16 %v1646
  %v2047 = vunpack.c.l.b16 %v1647
  %v2048 = vunpack.c.l.b16 %v1648
  %v2049 = vunpack.c.l.b16 %v1649
  %v2050 = vunpack.c.l.b16 %v1650
  %v2051 = vunpack.c.l.b16 %v1651
  %v2052 = vunpack.c.l.b16 %v1652
  %v2053 = vunpack.c.l.b16 %v1653
  %v2054 = vunpack.c.l.b16 %v1654
  %v2055 = vunpack.c.l.b16 %v1655
  %v2056 = vunpack.c.l.b16 %v1656
  %v2057 = vunpack.c.l.b16 %v1657
  %v2058 = vunpack.c.l.b16 %v1658
  %v2059 = vunpack.c.l.b16 %v1659
  %v2060 = vunpack.c.l.b16 %v1660
  %v2061 = vunpack.c.l.b16 %v1661
  %v2062 = vunpack.c.l.b16 %v1662
  %v2063 = vunpack.c.l.b16 %v1663
  %v2064 = vunpack.c.l.b16 %v1664
  %v2065 = vunpack.c.l.b16 %v1665
  %v2066 = vunpack.c.l.b16 %v1666
  %v2067 = vunpack.c.l.b16 %v1667
  %v2068 = vunpack.c.l.b16 %v1668
  %v2069 = vunpack.c.l.b16 %v1669
  %v2070 = vunpack.c.l.b16 %v1670
  %v2071 = vunpack.c.l.b16 %v1671
  %v2072 = vunpack.c.l.b16 %v1672
  %v2073 = vunpack.c.l.b16 %v1673
  %v2074 = vunpack.c.l.b16 %v1674
  %v2075 = vunpack.c.l.b16 %v1675
  %v2076 = vunpack.c.l.b16 %v1676
  %v2077 = vunpack.c.l.b16 %v1677
  %v2078 = vunpack.c.l.b16 %v1678
  %v2079 = vunpack.c.l.b16 %v1679
  %v2080 = vunpack.c.l.b16 %v1680
  %v2081 = vunpack.c.l.b16 %v1681
  %v2082 = vunpack.c.l.b16 %v1682
  %v2083 = vunpack.c.l.b16 %v1683
  %v2084 = vunpack.c.l.b16 %v1684
  %v2085 = vunpack.c.l.b16 %v1685
  %v2086 = vunpack.c.l.b16 %v1686
  %v2087 = vunpack.c.l.b16 %v1687
  %v2088 = vunpack.c.l.b16 %v1688
  %v2089 = vunpack.c.l.b16 %v1689
  %v2090 = vunpack.c.l.b16 %v1690
  %v2091 = vunpack.c.l.b16 %v1691
  %v2092 = vunpack.c.l.b16 %v1692
  %v2093 = vunpack.c.l.b16 %v1693
  %v2094 = vunpack.c.l.b16 %v1694
  %v2095 = vunpack.c.l.b16 %v1695
  %v2096 = vunpack.c.l.b16 %v1696
  %v2097 = vunpack.c.l.b16 %v1697
  %v2098 = vunpack.c.l.b16 %v1698
  %v2099 = vunpack.c.l.b16 %v1699
  %v2100 = vunpack.c.l.b16 %v1700
  %v2101 = vunpack.c.l.b16 %v1701
  %v2102 = vunpack.c.l.b16 %v1702
  %v2103 = vunpack.c.l.b16 %v1703
  %v2104 = vunpack.c.l.b16 %v1704
  %v2105 = vunpack.c.l.b16 %v1705
  %v2106 = vunpack.c.l.b16 %v1706
  %v2107 = vunpack.c.l.b16 %v1707
  %v2108 = vunpack.c.l.b16 %v1708
  %v2109 = vunpack.c.l.b16 %v1709
  %v2110 = vunpack.c.l.b16 %v1710
  %v2111 = vunpack.c.l.b16 %v1711
  %v2112 = vunpack.c.l.b16 %v1712
  %v2113 = vunpack.c.l.b16 %v1713
  %v2114 = vunpack.c.l.b16 %v1714
  %v2115 = vunpack.c.l.b16 %v1715
  %v2116 = vunpack.c.l.b16 %v1716
  %v2117 = vunpack.c.l.b16 %v1717
  %v2118 = vunpack.c.l.b16 %v1718
  %v2119 = vunpack.c.l.b16 %v1719
  %v2120 = vunpack.c.l.b16 %v1720
  %v2121 = vunpack.c.l.b16 %v1721
  %v2122 = vunpack.c.l.b16 %v1722
  %v2123 = vunpack.c.l.b16 %v1723
  %v2124 = vunpack.c.l.b16 %v1724
  %v2125 = vunpack.c.l.b16 %v1725
  %v2126 = vunpack.c.l.b16 %v1726
  %v2127 = vunpack.c.l.b16 %v1727
  %v2128 = vunpack.c.l.b16 %v1728
  %v2129 = vunpack.c.l.b16 %v1729
  %v2130 = vunpack.c.l.b16 %v1730
  %v2131 = vunpack.c.l.b16 %v1731
  %v2132 = vunpack.c.l.b16 %v1732
  %v2133 = vunpack.c.l.b16 %v1733
  %v2134 = vunpack.c.l.b16 %v1734
  %v2135 = vunpack.c.l.b16 %v1735
  %v2136 = vunpack.c.l.b16 %v1736
  %v2137 = vunpack.c.l.b16 %v1737
  %v2138 = vunpack.c.l.b16 %v1738
  %v2139 = vunpack.c.l.b16 %v1739
  %v2140 = vunpack.c.l.b16 %v1740
  %v2141 = vunpack.c.l.b16 %v1741
  %v2142 = vunpack.c.l.b16 %v1742
  %v2143 = vunpack.c.l.b16 %v1743
  %v2144 = vunpack.c.l.b16 %v1744
  %v2145 = vunpack.c.l.b16 %v1745
  %v2146 = vunpack.c.l.b16 %v1746
  %v2147 = vunpack.c.l.b16 %v1747
  %v2148 = vunpack.c.l.b16 %v1748
  %v2149 = vunpack.c.l.b16 %v1749
  %v2150 = vunpack.c.l.b16 %v1750
  %v2151 = vunpack.c.l.b16 %v1751
  %v2152 = vunpack.c.l.b16 %v1752
  %v2153 = vunpack.c.l.b16 %v1753
  %v2154 = vunpack.c.l.b16 %v1754
  %v2155 = vunpack.c.l.b16 %v1755
  %v2156 = vunpack.c.l.b16 %v1756
  %v2157 = vunpack.c.l.b16 %v1757
  %v2158 = vunpack.c.l.b16 %v1758
  %v2159 = vunpack.c.l.b16 %v1759
  %v2160 = vunpack.c.l.b16 %v1760
  %v2161 = vunpack.c.l.b16 %v1761
  %v2162 = vunpack.c.l.b16 %v1762
  %v2163 = vunpack.c.l.b16 %v1763
  %v2164 = vunpack.c.l.b16 %v1764
  %v2165 = vunpack.c.l.b16 %v1765
  %v2166 = vunpack.c.l.b16 %v1766
  %v2167 = vunpack.c.l.b16 %v1767
  %v2168 = vunpack.c.l.b16 %v1768
  %v2169 = vunpack.c.l.b16 %v1769
  %v2170 = vunpack.c.l.b16 %v1770
  %v2171 = vunpack.c.l.b16 %v1771
  %v2172 = vpack.c.b16 %v1973, %v1972
  %v2173 = vpack.c.b16 %v1975, %v1974
  %v2174 = vpack.c.b16 %v1977, %v1976
  %v2175 = vpack.c.b16 %v1979, %v1978
  %v2176 = vpack.c.b16 %v1981, %v1980
  %v2177 = vpack.c.b16 %v1983, %v1982
  %v2178 = vpack.c.b16 %v1985, %v1984
  %v2179 = vpack.c.b16 %v1987, %v1986
  %v2180 = vpack.c.b16 %v1989, %v1988
  %v2181 = vpack.c.b16 %v1991, %v1990
  %v2182 = vpack.c.b16 %v1993, %v1992
  %v2183 = vpack.c.b16 %v1995, %v1994
  %v2184 = vpack.c.b16 %v1997, %v1996
  %v2185 = vpack.c.b16 %v1999, %v1998
  %v2186 = vpack.c.b16 %v2001, %v2000
  %v2187 = vpack.c.b16 %v2003, %v2002
  %v2188 = vpack.c.b16 %v2005, %v2004
  %v2189 = vpack.c.b16 %v2007, %v2006
  %v2190 = vpack.c.b16 %v2009, %v2008
  %v2191 = vpack.c.b16 %v2011, %v2010
  %v2192 = vpack.c.b16 %v2013, %v2012
  %v2193 = vpack.c.b16 %v2015, %v2014
  %v2194 = vpack.c.b16 %v2017, %v2016
  %v2195 = vpack.c.b16 %v2019, %v2018
  %v2196 = vpack.c.b16 %v2021, %v2020
  %v2197 = vpack.c.b16 %v2023, %v2022
  %v2198 = vpack.c.b16 %v2025, %v2024
  %v2199 = vpack.c.b16 %v2027, %v2026
  %v2200 = vpack.c.b16 %v2029, %v2028
  %v2201 = vpack.c.b16 %v2031, %v2030
  %v2202 = vpack.c.b16 %v2033, %v2032
  %v2203 = vpack.c.b16 %v2035, %v2034
  %v2204 = vpack.c.b16 %v2037, %v2036
  %v2205 = vpack.c.b16 %v2039, %v2038
  %v2206 = vpack.c.b16 %v2041, %v2040
  %v2207 = vpack.c.b16 %v2043, %v2042
  %v2208 = vpack.c.b16 %v2045, %v2044
  %v2209 = vpack.c.b16 %v2047, %v2046
  %v2210 = vpack.c.b16 %v2049, %v2048
  %v2211 = vpack.c.b16 %v2051, %v2050
  %v2212 = vpack.c.b16 %v2053, %v2052
  %v2213 = vpack.c.b16 %v2055, %v2054
  %v2214 = vpack.c.b16 %v2057, %v2056
  %v2215 = vpack.c.b16 %v2059, %v2058
  %v2216 = vpack.c.b16 %v2061, %v2060
  %v2217 = vpack.c.b16 %v2063, %v2062
  %v2218 = vpack.c.b16 %v2065, %v2064
  %v2219 = vpack.c.b16 %v2067, %v2066
  %v2220 = vpack.c.b16 %v2069, %v2068
  %v2221 = vpack.c.b16 %v2071, %v2070
  %v2222 = vpack.c.b16 %v2073, %v2072
  %v2223 = vpack.c.b16 %v2075, %v2074
  %v2224 = vpack.c.b16 %v2077, %v2076
  %v2225 = vpack.c.b16 %v2079, %v2078
  %v2226 = vpack.c.b16 %v2081, %v2080
  %v2227 = vpack.c.b16 %v2083, %v2082
  %v2228 = vpack.c.b16 %v2085, %v2084
  %v2229 = vpack.c.b16 %v2087, %v2086
  %v2230 = vpack.c.b16 %v2089, %v2088
  %v2231 = vpack.c.b16 %v2091, %v2090
  %v2232 = vpack.c.b16 %v2093, %v2092
  %v2233 = vpack.c.b16 %v2095, %v2094
  %v2234 = vpack.c.b16 %v2097, %v2096
  %v2235 = vpack.c.b16 %v2099, %v2098
  %v2236 = vpack.c.b16 %v2101, %v2100
  %v2237 = vpack.c.b16 %v2103, %v2102
  %v2238 = vpack.c.b16 %v2105, %v2104
  %v2239 = vpack.c.b16 %v2107, %v2106
  %v2240 = vpack.c.b16 %v2109, %v2108
  %v2241 = vpack.c.b16 %v2111, %v2110
  %v2242 = vpack.c.b16 %v2113, %v2112
  %v2243 = vpack.c.b16 %v2115, %v2114
  %v2244 = vpack.c.b16 %v2117, %v2116
  %v2245 = vpack.c.b16 %v2119, %v2118
  %v2246 = vpack.c.b16 %v2121, %v2120
  %v2247 = vpack.c.b16 %v2123, %v2122
  %v2248 = vpack.c.b16 %v2125, %v2124
  %v2249 = vpack.c.b16 %v2127, %v2126
  %v2250 = vpack.c.b16 %v2129, %v2128
  %v2251 = vpack.c.b16 %v2131, %v2130
  %v2252 = vpack.c.b16 %v2133, %v2132
  %v2253 = vpack.c.b16 %v2135, %v2134
  %v2254 = vpack.c.b16 %v2137, %v2136
  %v2255 = vpack.c.b16 %v2139, %v2138
  %v2256 = vpack.c.b16 %v2141, %v2140
  %v2257 = vpack.c.b16 %v2143, %v2142
  %v2258 = vpack.c.b16 %v2145, %v2144
  %v2259 = vpack.c.b16 %v2147, %v2146
  %v2260 = vpack.c.b16 %v2149, %v2148
  %v2261 = vpack.c.b16 %v2151, %v2150
  %v2262 = vpack.c.b16 %v2153, %v2152
  %v2263 = vpack.c.b16 %v2155, %v2154
  %v2264 = vpack.c.b16 %v2157, %v2156
  %v2265 = vpack.c.b16 %v2159, %v2158
  %v2266 = vpack.c.b16 %v2161, %v2160
  %v2267 = vpack.c.b16 %v2163, %v2162
  %v2268 = vpack.c.b16 %v2165, %v2164
  %v2269 = vpack.c.b16 %v2167, %v2166
  %v2270 = vpack.c.b16 %v2169, %v2168
  %v2271 = vpack.c.b16 %v2171, %v2170
  %v2273 = vsel %vm754, %v2172, 0
  %v2276 = vsel %vm754, %v2173, 0
  %v2279 = vsel %vm754, %v2174, 0
  %v2282 = vsel %vm754, %v2175, 0
  %v2285 = vsel %vm754, %v2176, 0
  %v2288 = vsel %vm754, %v2177, 0
  %v2291 = vsel %vm754, %v2178, 0
  %v2294 = vsel %vm754, %v2179, 0
  %v2297 = vsel %vm754, %v2180, 0
  %v2300 = vsel %vm754, %v2181, 0
  %v2303 = vsel %vm754, %v2182, 0
  %v2306 = vsel %vm754, %v2183, 0
  %v2309 = vsel %vm754, %v2184, 0
  %v2312 = vsel %vm754, %v2185, 0
  %v2315 = vsel %vm754, %v2186, 0
  %v2318 = vsel %vm754, %v2187, 0
  %v2321 = vsel %vm754, %v2188, 0
  %v2324 = vsel %vm754, %v2189, 0
  %v2327 = vsel %vm754, %v2190, 0
  %v2330 = vsel %vm754, %v2191, 0
  %v2333 = vsel %vm754, %v2192, 0
  %v2336 = vsel %vm754, %v2193, 0
  %v2339 = vsel %vm754, %v2194, 0
  %v2342 = vsel %vm754, %v2195, 0
  %v2345 = vsel %vm754, %v2196, 0
  %v2348 = vsel %vm754, %v2197, 0
  %v2351 = vsel %vm754, %v2198, 0
  %v2354 = vsel %vm754, %v2199, 0
  %v2357 = vsel %vm754, %v2200, 0
  %v2360 = vsel %vm754, %v2201, 0
  %v2363 = vsel %vm754, %v2202, 0
  %v2366 = vsel %vm754, %v2203, 0
  %v2369 = vsel %vm754, %v2204, 0
  %v2372 = vsel %vm754, %v2205, 0
  %v2375 = vsel %vm754, %v2206, 0
  %v2378 = vsel %vm754, %v2207, 0
  %v2381 = vsel %vm754, %v2208, 0
  %v2384 = vsel %vm754, %v2209, 0
  %v2387 = vsel %vm754, %v2210, 0
  %v2390 = vsel %vm754, %v2211, 0
  %v2393 = vsel %vm754, %v2212, 0
  %v2396 = vsel %vm754, %v2213, 0
  %v2399 = vsel %vm754, %v2214, 0
  %v2402 = vsel %vm754, %v2215, 0
  %v2405 = vsel %vm754, %v2216, 0
  %v2408 = vsel %vm754, %v2217, 0
  %v2411 = vsel %vm754, %v2218, 0
  %v2414 = vsel %vm754, %v2219, 0
  %v2417 = vsel %vm754, %v2220, 0
  %v2420 = vsel %vm754, %v2221, 0
  %v2423 = vsel %vm754, %v2222, 0
  %v2426 = vsel %vm754, %v2223, 0
  %v2429 = vsel %vm754, %v2224, 0
  %v2432 = vsel %vm754, %v2225, 0
  %v2435 = vsel %vm754, %v2226, 0
  %v2438 = vsel %vm754, %v2227, 0
  %v2441 = vsel %vm754, %v2228, 0
  %v2444 = vsel %vm754, %v2229, 0
  %v2447 = vsel %vm754, %v2230, 0
  %v2450 = vsel %vm754, %v2231, 0
  %v2453 = vsel %vm754, %v2232, 0
  %v2456 = vsel %vm754, %v2233, 0
  %v2459 = vsel %vm754, %v2234, 0
  %v2462 = vsel %vm754, %v2235, 0
  %v2465 = vsel %vm754, %v2236, 0
  %v2468 = vsel %vm754, %v2237, 0
  %v2471 = vsel %vm754, %v2238, 0
  %v2474 = vsel %vm754, %v2239, 0
  %v2477 = vsel %vm754, %v2240, 0
  %v2480 = vsel %vm754, %v2241, 0
  %v2483 = vsel %vm754, %v2242, 0
  %v2486 = vsel %vm754, %v2243, 0
  %v2489 = vsel %vm754, %v2244, 0
  %v2492 = vsel %vm754, %v2245, 0
  %v2495 = vsel %vm754, %v2246, 0
  %v2498 = vsel %vm754, %v2247, 0
  %v2501 = vsel %vm754, %v2248, 0
  %v2504 = vsel %vm754, %v2249, 0
  %v2507 = vsel %vm754, %v2250, 0
  %v2510 = vsel %vm754, %v2251, 0
  %v2513 = vsel %vm754, %v2252, 0
  %v2516 = vsel %vm754, %v2253, 0
  %v2519 = vsel %vm754, %v2254, 0
  %v2522 = vsel %vm754, %v2255, 0
  %v2525 = vsel %vm754, %v2256, 0
  %v2528 = vsel %vm754, %v2257, 0
  %v2531 = vsel %vm754, %v2258, 0
  %v2534 = vsel %vm754, %v2259, 0
  %v2537 = vsel %vm754, %v2260, 0
  %v2540 = vsel %vm754, %v2261, 0
  %v2543 = vsel %vm754, %v2262, 0
  %v2546 = vsel %vm754, %v2263, 0
  %v2549 = vsel %vm754, %v2264, 0
  %v2552 = vsel %vm754, %v2265, 0
  %v2555 = vsel %vm754, %v2266, 0
  %v2558 = vsel %vm754, %v2267, 0
  %v2561 = vsel %vm754, %v2268, 0
  %v2564 = vsel %vm754, %v2269, 0
  %v2567 = vsel %vm754, %v2270, 0
  %v2570 = vsel %vm754, %v2271, 0
  %2572 = vmatpush.bf16.msra.mxu0 0
  %2573 = vmatpush.bf16.msra.mxu0 0
  %2574 = vmatpush.bf16.msra.mxu0 0
  %2575 = vmatpush.bf16.msra.mxu0 %v1060
  %2576 = vmatpush.bf16.msra.mxu0 %v748
  %2577 = vmatpush.bf16.msra.mxu0 %v747
  %2578 = vmatpush.bf16.msra.mxu0 %v746
  %2579 = vmatpush.bf16.msra.mxu0 %v745
  %2580 = vmatmul.bf16.gmra.mxu0 %v2273
  %v2581 = vpop.f32.mrf.mxu0
  %v2582 = vadd.f32 0.0, %v2581
  %v2583 = vpop.f32.mrf.mxu0
  %v2584 = vadd.f32 0.0, %v2583
  %2585 = vmatmul.bf16.gmra.mxu0 %v2276
  %v2586 = vpop.f32.mrf.mxu0
  %v2587 = vadd.f32 0.0, %v2586
  %v2588 = vpop.f32.mrf.mxu0
  %v2589 = vadd.f32 0.0, %v2588
  %2590 = vmatmul.bf16.gmra.mxu0 %v2279
  %v2591 = vpop.f32.mrf.mxu0
  %v2592 = vadd.f32 0.0, %v2591
  %v2593 = vpop.f32.mrf.mxu0
  %v2594 = vadd.f32 0.0, %v2593
  %2595 = vmatmul.bf16.gmra.mxu0 %v2282
  %v2596 = vpop.f32.mrf.mxu0
  %v2597 = vadd.f32 0.0, %v2596
  %v2598 = vpop.f32.mrf.mxu0
  %v2599 = vadd.f32 0.0, %v2598
  %2600 = vmatmul.bf16.gmra.mxu0 %v2285
  %v2601 = vpop.f32.mrf.mxu0
  %v2602 = vadd.f32 0.0, %v2601
  %v2603 = vpop.f32.mrf.mxu0
  %v2604 = vadd.f32 0.0, %v2603
  %2605 = vmatmul.bf16.gmra.mxu0 %v2288
  %v2606 = vpop.f32.mrf.mxu0
  %v2607 = vadd.f32 0.0, %v2606
  %v2608 = vpop.f32.mrf.mxu0
  %v2609 = vadd.f32 0.0, %v2608
  %2610 = vmatmul.bf16.gmra.mxu0 %v2291
  %v2611 = vpop.f32.mrf.mxu0
  %v2612 = vadd.f32 0.0, %v2611
  %v2613 = vpop.f32.mrf.mxu0
  %v2614 = vadd.f32 0.0, %v2613
  %2615 = vmatmul.bf16.gmra.mxu0 %v2294
  %v2616 = vpop.f32.mrf.mxu0
  %v2617 = vadd.f32 0.0, %v2616
  %v2618 = vpop.f32.mrf.mxu0
  %v2619 = vadd.f32 0.0, %v2618
  %2620 = vmatmul.bf16.gmra.mxu0 %v2297
  %v2621 = vpop.f32.mrf.mxu0
  %v2622 = vadd.f32 0.0, %v2621
  %v2623 = vpop.f32.mrf.mxu0
  %v2624 = vadd.f32 0.0, %v2623
  %2625 = vmatmul.bf16.gmra.mxu0 %v2300
  %v2626 = vpop.f32.mrf.mxu0
  %v2627 = vadd.f32 0.0, %v2626
  %v2628 = vpop.f32.mrf.mxu0
  %v2629 = vadd.f32 0.0, %v2628
  %2630 = vmatmul.bf16.gmra.mxu0 %v2303
  %v2631 = vpop.f32.mrf.mxu0
  %v2632 = vadd.f32 0.0, %v2631
  %v2633 = vpop.f32.mrf.mxu0
  %v2634 = vadd.f32 0.0, %v2633
  %2635 = vmatmul.bf16.gmra.mxu0 %v2306
  %v2636 = vpop.f32.mrf.mxu0
  %v2637 = vadd.f32 0.0, %v2636
  %v2638 = vpop.f32.mrf.mxu0
  %v2639 = vadd.f32 0.0, %v2638
  %2640 = vmatmul.bf16.gmra.mxu0 %v2309
  %v2641 = vpop.f32.mrf.mxu0
  %v2642 = vadd.f32 0.0, %v2641
  %v2643 = vpop.f32.mrf.mxu0
  %v2644 = vadd.f32 0.0, %v2643
  %2645 = vmatmul.bf16.gmra.mxu0 %v2312
  %v2646 = vpop.f32.mrf.mxu0
  %v2647 = vadd.f32 0.0, %v2646
  %v2648 = vpop.f32.mrf.mxu0
  %v2649 = vadd.f32 0.0, %v2648
  %2650 = vmatmul.bf16.gmra.mxu0 %v2315
  %v2651 = vpop.f32.mrf.mxu0
  %v2652 = vadd.f32 0.0, %v2651
  %v2653 = vpop.f32.mrf.mxu0
  %v2654 = vadd.f32 0.0, %v2653
  %2655 = vmatmul.bf16.gmra.mxu0 %v2318
  %v2656 = vpop.f32.mrf.mxu0
  %v2657 = vadd.f32 0.0, %v2656
  %v2658 = vpop.f32.mrf.mxu0
  %v2659 = vadd.f32 0.0, %v2658
  %2660 = vmatmul.bf16.gmra.mxu0 %v2321
  %v2661 = vpop.f32.mrf.mxu0
  %v2662 = vadd.f32 0.0, %v2661
  %v2663 = vpop.f32.mrf.mxu0
  %v2664 = vadd.f32 0.0, %v2663
  %2665 = vmatmul.bf16.gmra.mxu0 %v2324
  %v2666 = vpop.f32.mrf.mxu0
  %v2667 = vadd.f32 0.0, %v2666
  %v2668 = vpop.f32.mrf.mxu0
  %v2669 = vadd.f32 0.0, %v2668
  %2670 = vmatmul.bf16.gmra.mxu0 %v2327
  %v2671 = vpop.f32.mrf.mxu0
  %v2672 = vadd.f32 0.0, %v2671
  %v2673 = vpop.f32.mrf.mxu0
  %v2674 = vadd.f32 0.0, %v2673
  %2675 = vmatmul.bf16.gmra.mxu0 %v2330
  %v2676 = vpop.f32.mrf.mxu0
  %v2677 = vadd.f32 0.0, %v2676
  %v2678 = vpop.f32.mrf.mxu0
  %v2679 = vadd.f32 0.0, %v2678
  %2680 = vmatmul.bf16.gmra.mxu0 %v2333
  %v2681 = vpop.f32.mrf.mxu0
  %v2682 = vadd.f32 0.0, %v2681
  %v2683 = vpop.f32.mrf.mxu0
  %v2684 = vadd.f32 0.0, %v2683
  %2685 = vmatmul.bf16.gmra.mxu0 %v2336
  %v2686 = vpop.f32.mrf.mxu0
  %v2687 = vadd.f32 0.0, %v2686
  %v2688 = vpop.f32.mrf.mxu0
  %v2689 = vadd.f32 0.0, %v2688
  %2690 = vmatmul.bf16.gmra.mxu0 %v2339
  %v2691 = vpop.f32.mrf.mxu0
  %v2692 = vadd.f32 0.0, %v2691
  %v2693 = vpop.f32.mrf.mxu0
  %v2694 = vadd.f32 0.0, %v2693
  %2695 = vmatmul.bf16.gmra.mxu0 %v2342
  %v2696 = vpop.f32.mrf.mxu0
  %v2697 = vadd.f32 0.0, %v2696
  %v2698 = vpop.f32.mrf.mxu0
  %v2699 = vadd.f32 0.0, %v2698
  %2700 = vmatmul.bf16.gmra.mxu0 %v2345
  %v2701 = vpop.f32.mrf.mxu0
  %v2702 = vadd.f32 0.0, %v2701
  %v2703 = vpop.f32.mrf.mxu0
  %v2704 = vadd.f32 0.0, %v2703
  %2705 = vmatmul.bf16.gmra.mxu0 %v2348
  %v2706 = vpop.f32.mrf.mxu0
  %v2707 = vadd.f32 0.0, %v2706
  %v2708 = vpop.f32.mrf.mxu0
  %v2709 = vadd.f32 0.0, %v2708
  %2710 = vmatmul.bf16.gmra.mxu0 %v2351
  %v2711 = vpop.f32.mrf.mxu0
  %v2712 = vadd.f32 0.0, %v2711
  %v2713 = vpop.f32.mrf.mxu0
  %v2714 = vadd.f32 0.0, %v2713
  %2715 = vmatmul.bf16.gmra.mxu0 %v2354
  %v2716 = vpop.f32.mrf.mxu0
  %v2717 = vadd.f32 0.0, %v2716
  %v2718 = vpop.f32.mrf.mxu0
  %v2719 = vadd.f32 0.0, %v2718
  %2720 = vmatmul.bf16.gmra.mxu0 %v2357
  %v2721 = vpop.f32.mrf.mxu0
  %v2722 = vadd.f32 0.0, %v2721
  %v2723 = vpop.f32.mrf.mxu0
  %v2724 = vadd.f32 0.0, %v2723
  %2725 = vmatmul.bf16.gmra.mxu0 %v2360
  %v2726 = vpop.f32.mrf.mxu0
  %v2727 = vadd.f32 0.0, %v2726
  %v2728 = vpop.f32.mrf.mxu0
  %v2729 = vadd.f32 0.0, %v2728
  %2730 = vmatmul.bf16.gmra.mxu0 %v2363
  %v2731 = vpop.f32.mrf.mxu0
  %v2732 = vadd.f32 0.0, %v2731
  %v2733 = vpop.f32.mrf.mxu0
  %v2734 = vadd.f32 0.0, %v2733
  %2735 = vmatmul.bf16.gmra.mxu0 %v2366
  %v2736 = vpop.f32.mrf.mxu0
  %v2737 = vadd.f32 0.0, %v2736
  %v2738 = vpop.f32.mrf.mxu0
  %v2739 = vadd.f32 0.0, %v2738
  %2740 = vmatmul.bf16.gmra.mxu0 %v2369
  %v2741 = vpop.f32.mrf.mxu0
  %v2742 = vadd.f32 0.0, %v2741
  %v2743 = vpop.f32.mrf.mxu0
  %v2744 = vadd.f32 0.0, %v2743
  %2745 = vmatmul.bf16.gmra.mxu0 %v2372
  %v2746 = vpop.f32.mrf.mxu0
  %v2747 = vadd.f32 0.0, %v2746
  %v2748 = vpop.f32.mrf.mxu0
  %v2749 = vadd.f32 0.0, %v2748
  %2750 = vmatmul.bf16.gmra.mxu0 %v2375
  %v2751 = vpop.f32.mrf.mxu0
  %v2752 = vadd.f32 0.0, %v2751
  %v2753 = vpop.f32.mrf.mxu0
  %v2754 = vadd.f32 0.0, %v2753
  %2755 = vmatmul.bf16.gmra.mxu0 %v2378
  %v2756 = vpop.f32.mrf.mxu0
  %v2757 = vadd.f32 0.0, %v2756
  %v2758 = vpop.f32.mrf.mxu0
  %v2759 = vadd.f32 0.0, %v2758
  %2760 = vmatmul.bf16.gmra.mxu0 %v2381
  %v2761 = vpop.f32.mrf.mxu0
  %v2762 = vadd.f32 0.0, %v2761
  %v2763 = vpop.f32.mrf.mxu0
  %v2764 = vadd.f32 0.0, %v2763
  %2765 = vmatmul.bf16.gmra.mxu0 %v2384
  %v2766 = vpop.f32.mrf.mxu0
  %v2767 = vadd.f32 0.0, %v2766
  %v2768 = vpop.f32.mrf.mxu0
  %v2769 = vadd.f32 0.0, %v2768
  %2770 = vmatmul.bf16.gmra.mxu0 %v2387
  %v2771 = vpop.f32.mrf.mxu0
  %v2772 = vadd.f32 0.0, %v2771
  %v2773 = vpop.f32.mrf.mxu0
  %v2774 = vadd.f32 0.0, %v2773
  %2775 = vmatmul.bf16.gmra.mxu0 %v2390
  %v2776 = vpop.f32.mrf.mxu0
  %v2777 = vadd.f32 0.0, %v2776
  %v2778 = vpop.f32.mrf.mxu0
  %v2779 = vadd.f32 0.0, %v2778
  %2780 = vmatmul.bf16.gmra.mxu0 %v2393
  %v2781 = vpop.f32.mrf.mxu0
  %v2782 = vadd.f32 0.0, %v2781
  %v2783 = vpop.f32.mrf.mxu0
  %v2784 = vadd.f32 0.0, %v2783
  %2785 = vmatmul.bf16.gmra.mxu0 %v2396
  %v2786 = vpop.f32.mrf.mxu0
  %v2787 = vadd.f32 0.0, %v2786
  %v2788 = vpop.f32.mrf.mxu0
  %v2789 = vadd.f32 0.0, %v2788
  %2790 = vmatmul.bf16.gmra.mxu0 %v2399
  %v2791 = vpop.f32.mrf.mxu0
  %v2792 = vadd.f32 0.0, %v2791
  %v2793 = vpop.f32.mrf.mxu0
  %v2794 = vadd.f32 0.0, %v2793
  %2795 = vmatmul.bf16.gmra.mxu0 %v2402
  %v2796 = vpop.f32.mrf.mxu0
  %v2797 = vadd.f32 0.0, %v2796
  %v2798 = vpop.f32.mrf.mxu0
  %v2799 = vadd.f32 0.0, %v2798
  %2800 = vmatmul.bf16.gmra.mxu0 %v2405
  %v2801 = vpop.f32.mrf.mxu0
  %v2802 = vadd.f32 0.0, %v2801
  %v2803 = vpop.f32.mrf.mxu0
  %v2804 = vadd.f32 0.0, %v2803
  %2805 = vmatmul.bf16.gmra.mxu0 %v2408
  %v2806 = vpop.f32.mrf.mxu0
  %v2807 = vadd.f32 0.0, %v2806
  %v2808 = vpop.f32.mrf.mxu0
  %v2809 = vadd.f32 0.0, %v2808
  %2810 = vmatmul.bf16.gmra.mxu0 %v2411
  %v2811 = vpop.f32.mrf.mxu0
  %v2812 = vadd.f32 0.0, %v2811
  %v2813 = vpop.f32.mrf.mxu0
  %v2814 = vadd.f32 0.0, %v2813
  %2815 = vmatmul.bf16.gmra.mxu0 %v2414
  %v2816 = vpop.f32.mrf.mxu0
  %v2817 = vadd.f32 0.0, %v2816
  %v2818 = vpop.f32.mrf.mxu0
  %v2819 = vadd.f32 0.0, %v2818
  %2820 = vmatmul.bf16.gmra.mxu0 %v2417
  %v2821 = vpop.f32.mrf.mxu0
  %v2822 = vadd.f32 0.0, %v2821
  %v2823 = vpop.f32.mrf.mxu0
  %v2824 = vadd.f32 0.0, %v2823
  %2825 = vmatmul.bf16.gmra.mxu0 %v2420
  %v2826 = vpop.f32.mrf.mxu0
  %v2827 = vadd.f32 0.0, %v2826
  %v2828 = vpop.f32.mrf.mxu0
  %v2829 = vadd.f32 0.0, %v2828
  %2830 = vmatmul.bf16.gmra.mxu0 %v2423
  %v2831 = vpop.f32.mrf.mxu0
  %v2832 = vadd.f32 0.0, %v2831
  %v2833 = vpop.f32.mrf.mxu0
  %v2834 = vadd.f32 0.0, %v2833
  %2835 = vmatmul.bf16.gmra.mxu0 %v2426
  %v2836 = vpop.f32.mrf.mxu0
  %v2837 = vadd.f32 0.0, %v2836
  %v2838 = vpop.f32.mrf.mxu0
  %v2839 = vadd.f32 0.0, %v2838
  %2840 = vmatmul.bf16.gmra.mxu0 %v2429
  %v2841 = vpop.f32.mrf.mxu0
  %v2842 = vadd.f32 0.0, %v2841
  %v2843 = vpop.f32.mrf.mxu0
  %v2844 = vadd.f32 0.0, %v2843
  %2845 = vmatmul.bf16.gmra.mxu0 %v2432
  %v2846 = vpop.f32.mrf.mxu0
  %v2847 = vadd.f32 0.0, %v2846
  %v2848 = vpop.f32.mrf.mxu0
  %v2849 = vadd.f32 0.0, %v2848
  %2850 = vmatmul.bf16.gmra.mxu0 %v2435
  %v2851 = vpop.f32.mrf.mxu0
  %v2852 = vadd.f32 0.0, %v2851
  %v2853 = vpop.f32.mrf.mxu0
  %v2854 = vadd.f32 0.0, %v2853
  %2855 = vmatmul.bf16.gmra.mxu0 %v2438
  %v2856 = vpop.f32.mrf.mxu0
  %v2857 = vadd.f32 0.0, %v2856
  %v2858 = vpop.f32.mrf.mxu0
  %v2859 = vadd.f32 0.0, %v2858
  %2860 = vmatmul.bf16.gmra.mxu0 %v2441
  %v2861 = vpop.f32.mrf.mxu0
  %v2862 = vadd.f32 0.0, %v2861
  %v2863 = vpop.f32.mrf.mxu0
  %v2864 = vadd.f32 0.0, %v2863
  %2865 = vmatmul.bf16.gmra.mxu0 %v2444
  %v2866 = vpop.f32.mrf.mxu0
  %v2867 = vadd.f32 0.0, %v2866
  %v2868 = vpop.f32.mrf.mxu0
  %v2869 = vadd.f32 0.0, %v2868
  %2870 = vmatmul.bf16.gmra.mxu0 %v2447
  %v2871 = vpop.f32.mrf.mxu0
  %v2872 = vadd.f32 0.0, %v2871
  %v2873 = vpop.f32.mrf.mxu0
  %v2874 = vadd.f32 0.0, %v2873
  %2875 = vmatmul.bf16.gmra.mxu0 %v2450
  %v2876 = vpop.f32.mrf.mxu0
  %v2877 = vadd.f32 0.0, %v2876
  %v2878 = vpop.f32.mrf.mxu0
  %v2879 = vadd.f32 0.0, %v2878
  %2880 = vmatmul.bf16.gmra.mxu0 %v2453
  %v2881 = vpop.f32.mrf.mxu0
  %v2882 = vadd.f32 0.0, %v2881
  %v2883 = vpop.f32.mrf.mxu0
  %v2884 = vadd.f32 0.0, %v2883
  %2885 = vmatmul.bf16.gmra.mxu0 %v2456
  %v2886 = vpop.f32.mrf.mxu0
  %v2887 = vadd.f32 0.0, %v2886
  %v2888 = vpop.f32.mrf.mxu0
  %v2889 = vadd.f32 0.0, %v2888
  %2890 = vmatmul.bf16.gmra.mxu0 %v2459
  %v2891 = vpop.f32.mrf.mxu0
  %v2892 = vadd.f32 0.0, %v2891
  %v2893 = vpop.f32.mrf.mxu0
  %v2894 = vadd.f32 0.0, %v2893
  %2895 = vmatmul.bf16.gmra.mxu0 %v2462
  %v2896 = vpop.f32.mrf.mxu0
  %v2897 = vadd.f32 0.0, %v2896
  %v2898 = vpop.f32.mrf.mxu0
  %v2899 = vadd.f32 0.0, %v2898
  %2900 = vmatmul.bf16.gmra.mxu0 %v2465
  %v2901 = vpop.f32.mrf.mxu0
  %v2902 = vadd.f32 0.0, %v2901
  %v2903 = vpop.f32.mrf.mxu0
  %v2904 = vadd.f32 0.0, %v2903
  %2905 = vmatmul.bf16.gmra.mxu0 %v2468
  %v2906 = vpop.f32.mrf.mxu0
  %v2907 = vadd.f32 0.0, %v2906
  %v2908 = vpop.f32.mrf.mxu0
  %v2909 = vadd.f32 0.0, %v2908
  %2910 = vmatmul.bf16.gmra.mxu0 %v2471
  %v2911 = vpop.f32.mrf.mxu0
  %v2912 = vadd.f32 0.0, %v2911
  %v2913 = vpop.f32.mrf.mxu0
  %v2914 = vadd.f32 0.0, %v2913
  %2915 = vmatmul.bf16.gmra.mxu0 %v2474
  %v2916 = vpop.f32.mrf.mxu0
  %v2917 = vadd.f32 0.0, %v2916
  %v2918 = vpop.f32.mrf.mxu0
  %v2919 = vadd.f32 0.0, %v2918
  %2920 = vmatmul.bf16.gmra.mxu0 %v2477
  %v2921 = vpop.f32.mrf.mxu0
  %v2922 = vadd.f32 0.0, %v2921
  %v2923 = vpop.f32.mrf.mxu0
  %v2924 = vadd.f32 0.0, %v2923
  %2925 = vmatmul.bf16.gmra.mxu0 %v2480
  %v2926 = vpop.f32.mrf.mxu0
  %v2927 = vadd.f32 0.0, %v2926
  %v2928 = vpop.f32.mrf.mxu0
  %v2929 = vadd.f32 0.0, %v2928
  %2930 = vmatmul.bf16.gmra.mxu0 %v2483
  %v2931 = vpop.f32.mrf.mxu0
  %v2932 = vadd.f32 0.0, %v2931
  %v2933 = vpop.f32.mrf.mxu0
  %v2934 = vadd.f32 0.0, %v2933
  %2935 = vmatmul.bf16.gmra.mxu0 %v2486
  %v2936 = vpop.f32.mrf.mxu0
  %v2937 = vadd.f32 0.0, %v2936
  %v2938 = vpop.f32.mrf.mxu0
  %v2939 = vadd.f32 0.0, %v2938
  %2940 = vmatmul.bf16.gmra.mxu0 %v2489
  %v2941 = vpop.f32.mrf.mxu0
  %v2942 = vadd.f32 0.0, %v2941
  %v2943 = vpop.f32.mrf.mxu0
  %v2944 = vadd.f32 0.0, %v2943
  %2945 = vmatmul.bf16.gmra.mxu0 %v2492
  %v2946 = vpop.f32.mrf.mxu0
  %v2947 = vadd.f32 0.0, %v2946
  %v2948 = vpop.f32.mrf.mxu0
  %v2949 = vadd.f32 0.0, %v2948
  %2950 = vmatmul.bf16.gmra.mxu0 %v2495
  %v2951 = vpop.f32.mrf.mxu0
  %v2952 = vadd.f32 0.0, %v2951
  %v2953 = vpop.f32.mrf.mxu0
  %v2954 = vadd.f32 0.0, %v2953
  %2955 = vmatmul.bf16.gmra.mxu0 %v2498
  %v2956 = vpop.f32.mrf.mxu0
  %v2957 = vadd.f32 0.0, %v2956
  %v2958 = vpop.f32.mrf.mxu0
  %v2959 = vadd.f32 0.0, %v2958
  %2960 = vmatmul.bf16.gmra.mxu0 %v2501
  %v2961 = vpop.f32.mrf.mxu0
  %v2962 = vadd.f32 0.0, %v2961
  %v2963 = vpop.f32.mrf.mxu0
  %v2964 = vadd.f32 0.0, %v2963
  %2965 = vmatmul.bf16.gmra.mxu0 %v2504
  %v2966 = vpop.f32.mrf.mxu0
  %v2967 = vadd.f32 0.0, %v2966
  %v2968 = vpop.f32.mrf.mxu0
  %v2969 = vadd.f32 0.0, %v2968
  %2970 = vmatmul.bf16.gmra.mxu0 %v2507
  %v2971 = vpop.f32.mrf.mxu0
  %v2972 = vadd.f32 0.0, %v2971
  %v2973 = vpop.f32.mrf.mxu0
  %v2974 = vadd.f32 0.0, %v2973
  %2975 = vmatmul.bf16.gmra.mxu0 %v2510
  %v2976 = vpop.f32.mrf.mxu0
  %v2977 = vadd.f32 0.0, %v2976
  %v2978 = vpop.f32.mrf.mxu0
  %v2979 = vadd.f32 0.0, %v2978
  %2980 = vmatmul.bf16.gmra.mxu0 %v2513
  %v2981 = vpop.f32.mrf.mxu0
  %v2982 = vadd.f32 0.0, %v2981
  %v2983 = vpop.f32.mrf.mxu0
  %v2984 = vadd.f32 0.0, %v2983
  %2985 = vmatmul.bf16.gmra.mxu0 %v2516
  %v2986 = vpop.f32.mrf.mxu0
  %v2987 = vadd.f32 0.0, %v2986
  %v2988 = vpop.f32.mrf.mxu0
  %v2989 = vadd.f32 0.0, %v2988
  %2990 = vmatmul.bf16.gmra.mxu0 %v2519
  %v2991 = vpop.f32.mrf.mxu0
  %v2992 = vadd.f32 0.0, %v2991
  %v2993 = vpop.f32.mrf.mxu0
  %v2994 = vadd.f32 0.0, %v2993
  %2995 = vmatmul.bf16.gmra.mxu0 %v2522
  %v2996 = vpop.f32.mrf.mxu0
  %v2997 = vadd.f32 0.0, %v2996
  %v2998 = vpop.f32.mrf.mxu0
  %v2999 = vadd.f32 0.0, %v2998
  %3000 = vmatmul.bf16.gmra.mxu0 %v2525
  %v3001 = vpop.f32.mrf.mxu0
  %v3002 = vadd.f32 0.0, %v3001
  %v3003 = vpop.f32.mrf.mxu0
  %v3004 = vadd.f32 0.0, %v3003
  %3005 = vmatmul.bf16.gmra.mxu0 %v2528
  %v3006 = vpop.f32.mrf.mxu0
  %v3007 = vadd.f32 0.0, %v3006
  %v3008 = vpop.f32.mrf.mxu0
  %v3009 = vadd.f32 0.0, %v3008
  %3010 = vmatmul.bf16.gmra.mxu0 %v2531
  %v3011 = vpop.f32.mrf.mxu0
  %v3012 = vadd.f32 0.0, %v3011
  %v3013 = vpop.f32.mrf.mxu0
  %v3014 = vadd.f32 0.0, %v3013
  %3015 = vmatmul.bf16.gmra.mxu0 %v2534
  %v3016 = vpop.f32.mrf.mxu0
  %v3017 = vadd.f32 0.0, %v3016
  %v3018 = vpop.f32.mrf.mxu0
  %v3019 = vadd.f32 0.0, %v3018
  %3020 = vmatmul.bf16.gmra.mxu0 %v2537
  %v3021 = vpop.f32.mrf.mxu0
  %v3022 = vadd.f32 0.0, %v3021
  %v3023 = vpop.f32.mrf.mxu0
  %v3024 = vadd.f32 0.0, %v3023
  %3025 = vmatmul.bf16.gmra.mxu0 %v2540
  %v3026 = vpop.f32.mrf.mxu0
  %v3027 = vadd.f32 0.0, %v3026
  %v3028 = vpop.f32.mrf.mxu0
  %v3029 = vadd.f32 0.0, %v3028
  %3030 = vmatmul.bf16.gmra.mxu0 %v2543
  %v3031 = vpop.f32.mrf.mxu0
  %v3032 = vadd.f32 0.0, %v3031
  %v3033 = vpop.f32.mrf.mxu0
  %v3034 = vadd.f32 0.0, %v3033
  %3035 = vmatmul.bf16.gmra.mxu0 %v2546
  %v3036 = vpop.f32.mrf.mxu0
  %v3037 = vadd.f32 0.0, %v3036
  %v3038 = vpop.f32.mrf.mxu0
  %v3039 = vadd.f32 0.0, %v3038
  %3040 = vmatmul.bf16.gmra.mxu0 %v2549
  %v3041 = vpop.f32.mrf.mxu0
  %v3042 = vadd.f32 0.0, %v3041
  %v3043 = vpop.f32.mrf.mxu0
  %v3044 = vadd.f32 0.0, %v3043
  %3045 = vmatmul.bf16.gmra.mxu0 %v2552
  %v3046 = vpop.f32.mrf.mxu0
  %v3047 = vadd.f32 0.0, %v3046
  %v3048 = vpop.f32.mrf.mxu0
  %v3049 = vadd.f32 0.0, %v3048
  %3050 = vmatmul.bf16.gmra.mxu0 %v2555
  %v3051 = vpop.f32.mrf.mxu0
  %v3052 = vadd.f32 0.0, %v3051
  %v3053 = vpop.f32.mrf.mxu0
  %v3054 = vadd.f32 0.0, %v3053
  %3055 = vmatmul.bf16.gmra.mxu0 %v2558
  %v3056 = vpop.f32.mrf.mxu0
  %v3057 = vadd.f32 0.0, %v3056
  %v3058 = vpop.f32.mrf.mxu0
  %v3059 = vadd.f32 0.0, %v3058
  %3060 = vmatmul.bf16.gmra.mxu0 %v2561
  %v3061 = vpop.f32.mrf.mxu0
  %v3062 = vadd.f32 0.0, %v3061
  %v3063 = vpop.f32.mrf.mxu0
  %v3064 = vadd.f32 0.0, %v3063
  %3065 = vmatmul.bf16.gmra.mxu0 %v2564
  %v3066 = vpop.f32.mrf.mxu0
  %v3067 = vadd.f32 0.0, %v3066
  %v3068 = vpop.f32.mrf.mxu0
  %v3069 = vadd.f32 0.0, %v3068
  %3070 = vmatmul.bf16.gmra.mxu0 %v2567
  %v3071 = vpop.f32.mrf.mxu0
  %v3072 = vadd.f32 0.0, %v3071
  %v3073 = vpop.f32.mrf.mxu0
  %v3074 = vadd.f32 0.0, %v3073
  %3075 = vmatmul.bf16.gmra.mxu0 %v2570
  %v3076 = vpop.f32.mrf.mxu0
  %v3077 = vadd.f32 0.0, %v3076
  %v3078 = vpop.f32.mrf.mxu0
  %v3079 = vadd.f32 0.0, %v3078
  %3080 = vdwg.mxu0
  %v3081 = vmax.f32 %v1072, %v2582
  %v3082 = vmax.f32 %v1074, %v2584
  %v3083 = vmax.f32 %v1077, %v2587
  %v3084 = vmax.f32 %v1079, %v2589
  %v3085 = vmax.f32 %v1082, %v2592
  %v3086 = vmax.f32 %v1084, %v2594
  %v3087 = vmax.f32 %v1087, %v2597
  %v3088 = vmax.f32 %v1089, %v2599
  %v3089 = vmax.f32 %v1092, %v2602
  %v3090 = vmax.f32 %v1094, %v2604
  %v3091 = vmax.f32 %v1097, %v2607
  %v3092 = vmax.f32 %v1099, %v2609
  %v3093 = vmax.f32 %v1102, %v2612
  %v3094 = vmax.f32 %v1104, %v2614
  %v3095 = vmax.f32 %v1107, %v2617
  %v3096 = vmax.f32 %v1109, %v2619
  %v3097 = vmax.f32 %v1112, %v2622
  %v3098 = vmax.f32 %v1114, %v2624
  %v3099 = vmax.f32 %v1117, %v2627
  %v3100 = vmax.f32 %v1119, %v2629
  %v3101 = vmax.f32 %v1122, %v2632
  %v3102 = vmax.f32 %v1124, %v2634
  %v3103 = vmax.f32 %v1127, %v2637
  %v3104 = vmax.f32 %v1129, %v2639
  %v3105 = vmax.f32 %v1132, %v2642
  %v3106 = vmax.f32 %v1134, %v2644
  %v3107 = vmax.f32 %v1137, %v2647
  %v3108 = vmax.f32 %v1139, %v2649
  %v3109 = vmax.f32 %v1142, %v2652
  %v3110 = vmax.f32 %v1144, %v2654
  %v3111 = vmax.f32 %v1147, %v2657
  %v3112 = vmax.f32 %v1149, %v2659
  %v3113 = vmax.f32 %v1152, %v2662
  %v3114 = vmax.f32 %v1154, %v2664
  %v3115 = vmax.f32 %v1157, %v2667
  %v3116 = vmax.f32 %v1159, %v2669
  %v3117 = vmax.f32 %v1162, %v2672
  %v3118 = vmax.f32 %v1164, %v2674
  %v3119 = vmax.f32 %v1167, %v2677
  %v3120 = vmax.f32 %v1169, %v2679
  %v3121 = vmax.f32 %v1172, %v2682
  %v3122 = vmax.f32 %v1174, %v2684
  %v3123 = vmax.f32 %v1177, %v2687
  %v3124 = vmax.f32 %v1179, %v2689
  %v3125 = vmax.f32 %v1182, %v2692
  %v3126 = vmax.f32 %v1184, %v2694
  %v3127 = vmax.f32 %v1187, %v2697
  %v3128 = vmax.f32 %v1189, %v2699
  %v3129 = vmax.f32 %v1192, %v2702
  %v3130 = vmax.f32 %v1194, %v2704
  %v3131 = vmax.f32 %v1197, %v2707
  %v3132 = vmax.f32 %v1199, %v2709
  %v3133 = vmax.f32 %v1202, %v2712
  %v3134 = vmax.f32 %v1204, %v2714
  %v3135 = vmax.f32 %v1207, %v2717
  %v3136 = vmax.f32 %v1209, %v2719
  %v3137 = vmax.f32 %v1212, %v2722
  %v3138 = vmax.f32 %v1214, %v2724
  %v3139 = vmax.f32 %v1217, %v2727
  %v3140 = vmax.f32 %v1219, %v2729
  %v3141 = vmax.f32 %v1222, %v2732
  %v3142 = vmax.f32 %v1224, %v2734
  %v3143 = vmax.f32 %v1227, %v2737
  %v3144 = vmax.f32 %v1229, %v2739
  %v3145 = vmax.f32 %v1232, %v2742
  %v3146 = vmax.f32 %v1234, %v2744
  %v3147 = vmax.f32 %v1237, %v2747
  %v3148 = vmax.f32 %v1239, %v2749
  %v3149 = vmax.f32 %v1242, %v2752
  %v3150 = vmax.f32 %v1244, %v2754
  %v3151 = vmax.f32 %v1247, %v2757
  %v3152 = vmax.f32 %v1249, %v2759
  %v3153 = vmax.f32 %v1252, %v2762
  %v3154 = vmax.f32 %v1254, %v2764
  %v3155 = vmax.f32 %v1257, %v2767
  %v3156 = vmax.f32 %v1259, %v2769
  %v3157 = vmax.f32 %v1262, %v2772
  %v3158 = vmax.f32 %v1264, %v2774
  %v3159 = vmax.f32 %v1267, %v2777
  %v3160 = vmax.f32 %v1269, %v2779
  %v3161 = vmax.f32 %v1272, %v2782
  %v3162 = vmax.f32 %v1274, %v2784
  %v3163 = vmax.f32 %v1277, %v2787
  %v3164 = vmax.f32 %v1279, %v2789
  %v3165 = vmax.f32 %v1282, %v2792
  %v3166 = vmax.f32 %v1284, %v2794
  %v3167 = vmax.f32 %v1287, %v2797
  %v3168 = vmax.f32 %v1289, %v2799
  %v3169 = vmax.f32 %v1292, %v2802
  %v3170 = vmax.f32 %v1294, %v2804
  %v3171 = vmax.f32 %v1297, %v2807
  %v3172 = vmax.f32 %v1299, %v2809
  %v3173 = vmax.f32 %v1302, %v2812
  %v3174 = vmax.f32 %v1304, %v2814
  %v3175 = vmax.f32 %v1307, %v2817
  %v3176 = vmax.f32 %v1309, %v2819
  %v3177 = vmax.f32 %v1312, %v2822
  %v3178 = vmax.f32 %v1314, %v2824
  %v3179 = vmax.f32 %v1317, %v2827
  %v3180 = vmax.f32 %v1319, %v2829
  %v3181 = vmax.f32 %v1322, %v2832
  %v3182 = vmax.f32 %v1324, %v2834
  %v3183 = vmax.f32 %v1327, %v2837
  %v3184 = vmax.f32 %v1329, %v2839
  %v3185 = vmax.f32 %v1332, %v2842
  %v3186 = vmax.f32 %v1334, %v2844
  %v3187 = vmax.f32 %v1337, %v2847
  %v3188 = vmax.f32 %v1339, %v2849
  %v3189 = vmax.f32 %v1342, %v2852
  %v3190 = vmax.f32 %v1344, %v2854
  %v3191 = vmax.f32 %v1347, %v2857
  %v3192 = vmax.f32 %v1349, %v2859
  %v3193 = vmax.f32 %v1352, %v2862
  %v3194 = vmax.f32 %v1354, %v2864
  %v3195 = vmax.f32 %v1357, %v2867
  %v3196 = vmax.f32 %v1359, %v2869
  %v3197 = vmax.f32 %v1362, %v2872
  %v3198 = vmax.f32 %v1364, %v2874
  %v3199 = vmax.f32 %v1367, %v2877
  %v3200 = vmax.f32 %v1369, %v2879
  %v3201 = vmax.f32 %v1372, %v2882
  %v3202 = vmax.f32 %v1374, %v2884
  %v3203 = vmax.f32 %v1377, %v2887
  %v3204 = vmax.f32 %v1379, %v2889
  %v3205 = vmax.f32 %v1382, %v2892
  %v3206 = vmax.f32 %v1384, %v2894
  %v3207 = vmax.f32 %v1387, %v2897
  %v3208 = vmax.f32 %v1389, %v2899
  %v3209 = vmax.f32 %v1392, %v2902
  %v3210 = vmax.f32 %v1394, %v2904
  %v3211 = vmax.f32 %v1397, %v2907
  %v3212 = vmax.f32 %v1399, %v2909
  %v3213 = vmax.f32 %v1402, %v2912
  %v3214 = vmax.f32 %v1404, %v2914
  %v3215 = vmax.f32 %v1407, %v2917
  %v3216 = vmax.f32 %v1409, %v2919
  %v3217 = vmax.f32 %v1412, %v2922
  %v3218 = vmax.f32 %v1414, %v2924
  %v3219 = vmax.f32 %v1417, %v2927
  %v3220 = vmax.f32 %v1419, %v2929
  %v3221 = vmax.f32 %v1422, %v2932
  %v3222 = vmax.f32 %v1424, %v2934
  %v3223 = vmax.f32 %v1427, %v2937
  %v3224 = vmax.f32 %v1429, %v2939
  %v3225 = vmax.f32 %v1432, %v2942
  %v3226 = vmax.f32 %v1434, %v2944
  %v3227 = vmax.f32 %v1437, %v2947
  %v3228 = vmax.f32 %v1439, %v2949
  %v3229 = vmax.f32 %v1442, %v2952
  %v3230 = vmax.f32 %v1444, %v2954
  %v3231 = vmax.f32 %v1447, %v2957
  %v3232 = vmax.f32 %v1449, %v2959
  %v3233 = vmax.f32 %v1452, %v2962
  %v3234 = vmax.f32 %v1454, %v2964
  %v3235 = vmax.f32 %v1457, %v2967
  %v3236 = vmax.f32 %v1459, %v2969
  %v3237 = vmax.f32 %v1462, %v2972
  %v3238 = vmax.f32 %v1464, %v2974
  %v3239 = vmax.f32 %v1467, %v2977
  %v3240 = vmax.f32 %v1469, %v2979
  %v3241 = vmax.f32 %v1472, %v2982
  %v3242 = vmax.f32 %v1474, %v2984
  %v3243 = vmax.f32 %v1477, %v2987
  %v3244 = vmax.f32 %v1479, %v2989
  %v3245 = vmax.f32 %v1482, %v2992
  %v3246 = vmax.f32 %v1484, %v2994
  %v3247 = vmax.f32 %v1487, %v2997
  %v3248 = vmax.f32 %v1489, %v2999
  %v3249 = vmax.f32 %v1492, %v3002
  %v3250 = vmax.f32 %v1494, %v3004
  %v3251 = vmax.f32 %v1497, %v3007
  %v3252 = vmax.f32 %v1499, %v3009
  %v3253 = vmax.f32 %v1502, %v3012
  %v3254 = vmax.f32 %v1504, %v3014
  %v3255 = vmax.f32 %v1507, %v3017
  %v3256 = vmax.f32 %v1509, %v3019
  %v3257 = vmax.f32 %v1512, %v3022
  %v3258 = vmax.f32 %v1514, %v3024
  %v3259 = vmax.f32 %v1517, %v3027
  %v3260 = vmax.f32 %v1519, %v3029
  %v3261 = vmax.f32 %v1522, %v3032
  %v3262 = vmax.f32 %v1524, %v3034
  %v3263 = vmax.f32 %v1527, %v3037
  %v3264 = vmax.f32 %v1529, %v3039
  %v3265 = vmax.f32 %v1532, %v3042
  %v3266 = vmax.f32 %v1534, %v3044
  %v3267 = vmax.f32 %v1537, %v3047
  %v3268 = vmax.f32 %v1539, %v3049
  %v3269 = vmax.f32 %v1542, %v3052
  %v3270 = vmax.f32 %v1544, %v3054
  %v3271 = vmax.f32 %v1547, %v3057
  %v3272 = vmax.f32 %v1549, %v3059
  %v3273 = vmax.f32 %v1552, %v3062
  %v3274 = vmax.f32 %v1554, %v3064
  %v3275 = vmax.f32 %v1557, %v3067
  %v3276 = vmax.f32 %v1559, %v3069
  %v3277 = vmax.f32 %v1562, %v3072
  %v3278 = vmax.f32 %v1564, %v3074
  %v3279 = vmax.f32 %v1567, %v3077
  %v3280 = vmax.f32 %v1569, %v3079
  %s3281 = scalar_lea.vmem %s0, 1600
  %v3282 = vld [vmem:[%s3281] sm:$0xf]
  %v3283 = vld [vmem:[%s3281 + $0x4] sm:$0xf]
  %v3284 = vld [vmem:[%s3281 + $0x8] sm:$0xf]
  %v3285 = vld [vmem:[%s3281 + $0xc] sm:$0xf]
  %v3286 = vld [vmem:[%s3281 + $0x10] sm:$0xf]
  %v3287 = vld [vmem:[%s3281 + $0x14] sm:$0xf]
  %v3288 = vld [vmem:[%s3281 + $0x18] sm:$0xf]
  %v3289 = vld [vmem:[%s3281 + $0x1c] sm:$0xf]
  %v3290 = vld [vmem:[%s3281 + $0x20] sm:$0xf]
  %v3291 = vld [vmem:[%s3281 + $0x24] sm:$0xf]
  %v3292 = vld [vmem:[%s3281 + $0x28] sm:$0xf]
  %v3293 = vld [vmem:[%s3281 + $0x2c] sm:$0xf]
  %v3294 = vld [vmem:[%s3281 + $0x30] sm:$0xf]
  %v3295 = vld [vmem:[%s3281 + $0x34] sm:$0xf]
  %v3296 = vld [vmem:[%s3281 + $0x38] sm:$0xf]
  %v3297 = vld [vmem:[%s3281 + $0x3c] sm:$0xf]
  %v3298 = vld [vmem:[%s3281 + $0x40] sm:$0xf]
  %v3299 = vld [vmem:[%s3281 + $0x44] sm:$0xf]
  %v3300 = vld [vmem:[%s3281 + $0x48] sm:$0xf]
  %v3301 = vld [vmem:[%s3281 + $0x4c] sm:$0xf]
  %v3302 = vld [vmem:[%s3281 + $0x50] sm:$0xf]
  %v3303 = vld [vmem:[%s3281 + $0x54] sm:$0xf]
  %v3304 = vld [vmem:[%s3281 + $0x58] sm:$0xf]
  %v3305 = vld [vmem:[%s3281 + $0x5c] sm:$0xf]
  %v3306 = vld [vmem:[%s3281 + $0x60] sm:$0xf]
  %v3307 = vld [vmem:[%s3281 + $0x64] sm:$0xf]
  %v3308 = vld [vmem:[%s3281 + $0x68] sm:$0xf]
  %v3309 = vld [vmem:[%s3281 + $0x6c] sm:$0xf]
  %v3310 = vld [vmem:[%s3281 + $0x70] sm:$0xf]
  %v3311 = vld [vmem:[%s3281 + $0x74] sm:$0xf]
  %v3312 = vld [vmem:[%s3281 + $0x78] sm:$0xf]
  %v3313 = vld [vmem:[%s3281 + $0x7c] sm:$0xf]
  %v3314 = vld [vmem:[%s3281 + $0x80] sm:$0xf]
  %v3315 = vld [vmem:[%s3281 + $0x84] sm:$0xf]
  %v3316 = vld [vmem:[%s3281 + $0x88] sm:$0xf]
  %v3317 = vld [vmem:[%s3281 + $0x8c] sm:$0xf]
  %v3318 = vld [vmem:[%s3281 + $0x90] sm:$0xf]
  %v3319 = vld [vmem:[%s3281 + $0x94] sm:$0xf]
  %v3320 = vld [vmem:[%s3281 + $0x98] sm:$0xf]
  %v3321 = vld [vmem:[%s3281 + $0x9c] sm:$0xf]
  %v3322 = vld [vmem:[%s3281 + $0xa0] sm:$0xf]
  %v3323 = vld [vmem:[%s3281 + $0xa4] sm:$0xf]
  %v3324 = vld [vmem:[%s3281 + $0xa8] sm:$0xf]
  %v3325 = vld [vmem:[%s3281 + $0xac] sm:$0xf]
  %v3326 = vld [vmem:[%s3281 + $0xb0] sm:$0xf]
  %v3327 = vld [vmem:[%s3281 + $0xb4] sm:$0xf]
  %v3328 = vld [vmem:[%s3281 + $0xb8] sm:$0xf]
  %v3329 = vld [vmem:[%s3281 + $0xbc] sm:$0xf]
  %v3330 = vld [vmem:[%s3281 + $0xc0] sm:$0xf]
  %v3331 = vld [vmem:[%s3281 + $0xc4] sm:$0xf]
  %v3332 = vld [vmem:[%s3281 + $0xc8] sm:$0xf]
  %v3333 = vld [vmem:[%s3281 + $0xcc] sm:$0xf]
  %v3334 = vld [vmem:[%s3281 + $0xd0] sm:$0xf]
  %v3335 = vld [vmem:[%s3281 + $0xd4] sm:$0xf]
  %v3336 = vld [vmem:[%s3281 + $0xd8] sm:$0xf]
  %v3337 = vld [vmem:[%s3281 + $0xdc] sm:$0xf]
  %v3338 = vld [vmem:[%s3281 + $0xe0] sm:$0xf]
  %v3339 = vld [vmem:[%s3281 + $0xe4] sm:$0xf]
  %v3340 = vld [vmem:[%s3281 + $0xe8] sm:$0xf]
  %v3341 = vld [vmem:[%s3281 + $0xec] sm:$0xf]
  %v3342 = vld [vmem:[%s3281 + $0xf0] sm:$0xf]
  %v3343 = vld [vmem:[%s3281 + $0xf4] sm:$0xf]
  %v3344 = vld [vmem:[%s3281 + $0xf8] sm:$0xf]
  %v3345 = vld [vmem:[%s3281 + $0xfc] sm:$0xf]
  %v3346 = vld [vmem:[%s3281 + $0x100] sm:$0xf]
  %v3347 = vld [vmem:[%s3281 + $0x104] sm:$0xf]
  %v3348 = vld [vmem:[%s3281 + $0x108] sm:$0xf]
  %v3349 = vld [vmem:[%s3281 + $0x10c] sm:$0xf]
  %v3350 = vld [vmem:[%s3281 + $0x110] sm:$0xf]
  %v3351 = vld [vmem:[%s3281 + $0x114] sm:$0xf]
  %v3352 = vld [vmem:[%s3281 + $0x118] sm:$0xf]
  %v3353 = vld [vmem:[%s3281 + $0x11c] sm:$0xf]
  %v3354 = vld [vmem:[%s3281 + $0x120] sm:$0xf]
  %v3355 = vld [vmem:[%s3281 + $0x124] sm:$0xf]
  %v3356 = vld [vmem:[%s3281 + $0x128] sm:$0xf]
  %v3357 = vld [vmem:[%s3281 + $0x12c] sm:$0xf]
  %v3358 = vld [vmem:[%s3281 + $0x130] sm:$0xf]
  %v3359 = vld [vmem:[%s3281 + $0x134] sm:$0xf]
  %v3360 = vld [vmem:[%s3281 + $0x138] sm:$0xf]
  %v3361 = vld [vmem:[%s3281 + $0x13c] sm:$0xf]
  %v3362 = vld [vmem:[%s3281 + $0x140] sm:$0xf]
  %v3363 = vld [vmem:[%s3281 + $0x144] sm:$0xf]
  %v3364 = vld [vmem:[%s3281 + $0x148] sm:$0xf]
  %v3365 = vld [vmem:[%s3281 + $0x14c] sm:$0xf]
  %v3366 = vld [vmem:[%s3281 + $0x150] sm:$0xf]
  %v3367 = vld [vmem:[%s3281 + $0x154] sm:$0xf]
  %v3368 = vld [vmem:[%s3281 + $0x158] sm:$0xf]
  %v3369 = vld [vmem:[%s3281 + $0x15c] sm:$0xf]
  %v3370 = vld [vmem:[%s3281 + $0x160] sm:$0xf]
  %v3371 = vld [vmem:[%s3281 + $0x164] sm:$0xf]
  %v3372 = vld [vmem:[%s3281 + $0x168] sm:$0xf]
  %v3373 = vld [vmem:[%s3281 + $0x16c] sm:$0xf]
  %v3374 = vld [vmem:[%s3281 + $0x170] sm:$0xf]
  %v3375 = vld [vmem:[%s3281 + $0x174] sm:$0xf]
  %v3376 = vld [vmem:[%s3281 + $0x178] sm:$0xf]
  %v3377 = vld [vmem:[%s3281 + $0x17c] sm:$0xf]
  %v3378 = vld [vmem:[%s3281 + $0x180] sm:$0xf]
  %v3379 = vld [vmem:[%s3281 + $0x184] sm:$0xf]
  %v3380 = vld [vmem:[%s3281 + $0x188] sm:$0xf]
  %v3381 = vld [vmem:[%s3281 + $0x18c] sm:$0xf]
  %v3382 = vld [vmem:[%s3281 + $0x190] sm:$0xf]
  %v3383 = vld [vmem:[%s3281 + $0x194] sm:$0xf]
  %v3384 = vld [vmem:[%s3281 + $0x198] sm:$0xf]
  %v3385 = vld [vmem:[%s3281 + $0x19c] sm:$0xf]
  %v3386 = vld [vmem:[%s3281 + $0x1a0] sm:$0xf]
  %v3387 = vld [vmem:[%s3281 + $0x1a4] sm:$0xf]
  %v3388 = vld [vmem:[%s3281 + $0x1a8] sm:$0xf]
  %v3389 = vld [vmem:[%s3281 + $0x1ac] sm:$0xf]
  %v3390 = vld [vmem:[%s3281 + $0x1b0] sm:$0xf]
  %v3391 = vld [vmem:[%s3281 + $0x1b4] sm:$0xf]
  %v3392 = vld [vmem:[%s3281 + $0x1b8] sm:$0xf]
  %v3393 = vld [vmem:[%s3281 + $0x1bc] sm:$0xf]
  %v3394 = vld [vmem:[%s3281 + $0x1c0] sm:$0xf]
  %v3395 = vld [vmem:[%s3281 + $0x1c4] sm:$0xf]
  %v3396 = vld [vmem:[%s3281 + $0x1c8] sm:$0xf]
  %v3397 = vld [vmem:[%s3281 + $0x1cc] sm:$0xf]
  %v3398 = vld [vmem:[%s3281 + $0x1d0] sm:$0xf]
  %v3399 = vld [vmem:[%s3281 + $0x1d4] sm:$0xf]
  %v3400 = vld [vmem:[%s3281 + $0x1d8] sm:$0xf]
  %v3401 = vld [vmem:[%s3281 + $0x1dc] sm:$0xf]
  %v3402 = vld [vmem:[%s3281 + $0x1e0] sm:$0xf]
  %v3403 = vld [vmem:[%s3281 + $0x1e4] sm:$0xf]
  %v3404 = vld [vmem:[%s3281 + $0x1e8] sm:$0xf]
  %v3405 = vld [vmem:[%s3281 + $0x1ec] sm:$0xf]
  %v3406 = vld [vmem:[%s3281 + $0x1f0] sm:$0xf]
  %v3407 = vld [vmem:[%s3281 + $0x1f4] sm:$0xf]
  %v3408 = vld [vmem:[%s3281 + $0x1f8] sm:$0xf]
  %v3409 = vld [vmem:[%s3281 + $0x1fc] sm:$0xf]
  %v3410 = vld [vmem:[%s3281 + $0x200] sm:$0xf]
  %v3411 = vld [vmem:[%s3281 + $0x204] sm:$0xf]
  %v3412 = vld [vmem:[%s3281 + $0x208] sm:$0xf]
  %v3413 = vld [vmem:[%s3281 + $0x20c] sm:$0xf]
  %v3414 = vld [vmem:[%s3281 + $0x210] sm:$0xf]
  %v3415 = vld [vmem:[%s3281 + $0x214] sm:$0xf]
  %v3416 = vld [vmem:[%s3281 + $0x218] sm:$0xf]
  %v3417 = vld [vmem:[%s3281 + $0x21c] sm:$0xf]
  %v3418 = vld [vmem:[%s3281 + $0x220] sm:$0xf]
  %v3419 = vld [vmem:[%s3281 + $0x224] sm:$0xf]
  %v3420 = vld [vmem:[%s3281 + $0x228] sm:$0xf]
  %v3421 = vld [vmem:[%s3281 + $0x22c] sm:$0xf]
  %v3422 = vld [vmem:[%s3281 + $0x230] sm:$0xf]
  %v3423 = vld [vmem:[%s3281 + $0x234] sm:$0xf]
  %v3424 = vld [vmem:[%s3281 + $0x238] sm:$0xf]
  %v3425 = vld [vmem:[%s3281 + $0x23c] sm:$0xf]
  %v3426 = vld [vmem:[%s3281 + $0x240] sm:$0xf]
  %v3427 = vld [vmem:[%s3281 + $0x244] sm:$0xf]
  %v3428 = vld [vmem:[%s3281 + $0x248] sm:$0xf]
  %v3429 = vld [vmem:[%s3281 + $0x24c] sm:$0xf]
  %v3430 = vld [vmem:[%s3281 + $0x250] sm:$0xf]
  %v3431 = vld [vmem:[%s3281 + $0x254] sm:$0xf]
  %v3432 = vld [vmem:[%s3281 + $0x258] sm:$0xf]
  %v3433 = vld [vmem:[%s3281 + $0x25c] sm:$0xf]
  %v3434 = vld [vmem:[%s3281 + $0x260] sm:$0xf]
  %v3435 = vld [vmem:[%s3281 + $0x264] sm:$0xf]
  %v3436 = vld [vmem:[%s3281 + $0x268] sm:$0xf]
  %v3437 = vld [vmem:[%s3281 + $0x26c] sm:$0xf]
  %v3438 = vld [vmem:[%s3281 + $0x270] sm:$0xf]
  %v3439 = vld [vmem:[%s3281 + $0x274] sm:$0xf]
  %v3440 = vld [vmem:[%s3281 + $0x278] sm:$0xf]
  %v3441 = vld [vmem:[%s3281 + $0x27c] sm:$0xf]
  %v3442 = vld [vmem:[%s3281 + $0x280] sm:$0xf]
  %v3443 = vld [vmem:[%s3281 + $0x284] sm:$0xf]
  %v3444 = vld [vmem:[%s3281 + $0x288] sm:$0xf]
  %v3445 = vld [vmem:[%s3281 + $0x28c] sm:$0xf]
  %v3446 = vld [vmem:[%s3281 + $0x290] sm:$0xf]
  %v3447 = vld [vmem:[%s3281 + $0x294] sm:$0xf]
  %v3448 = vld [vmem:[%s3281 + $0x298] sm:$0xf]
  %v3449 = vld [vmem:[%s3281 + $0x29c] sm:$0xf]
  %v3450 = vld [vmem:[%s3281 + $0x2a0] sm:$0xf]
  %v3451 = vld [vmem:[%s3281 + $0x2a4] sm:$0xf]
  %v3452 = vld [vmem:[%s3281 + $0x2a8] sm:$0xf]
  %v3453 = vld [vmem:[%s3281 + $0x2ac] sm:$0xf]
  %v3454 = vld [vmem:[%s3281 + $0x2b0] sm:$0xf]
  %v3455 = vld [vmem:[%s3281 + $0x2b4] sm:$0xf]
  %v3456 = vld [vmem:[%s3281 + $0x2b8] sm:$0xf]
  %v3457 = vld [vmem:[%s3281 + $0x2bc] sm:$0xf]
  %v3458 = vld [vmem:[%s3281 + $0x2c0] sm:$0xf]
  %v3459 = vld [vmem:[%s3281 + $0x2c4] sm:$0xf]
  %v3460 = vld [vmem:[%s3281 + $0x2c8] sm:$0xf]
  %v3461 = vld [vmem:[%s3281 + $0x2cc] sm:$0xf]
  %v3462 = vld [vmem:[%s3281 + $0x2d0] sm:$0xf]
  %v3463 = vld [vmem:[%s3281 + $0x2d4] sm:$0xf]
  %v3464 = vld [vmem:[%s3281 + $0x2d8] sm:$0xf]
  %v3465 = vld [vmem:[%s3281 + $0x2dc] sm:$0xf]
  %v3466 = vld [vmem:[%s3281 + $0x2e0] sm:$0xf]
  %v3467 = vld [vmem:[%s3281 + $0x2e4] sm:$0xf]
  %v3468 = vld [vmem:[%s3281 + $0x2e8] sm:$0xf]
  %v3469 = vld [vmem:[%s3281 + $0x2ec] sm:$0xf]
  %v3470 = vld [vmem:[%s3281 + $0x2f0] sm:$0xf]
  %v3471 = vld [vmem:[%s3281 + $0x2f4] sm:$0xf]
  %v3472 = vld [vmem:[%s3281 + $0x2f8] sm:$0xf]
  %v3473 = vld [vmem:[%s3281 + $0x2fc] sm:$0xf]
  %v3474 = vld [vmem:[%s3281 + $0x300] sm:$0xf]
  %v3475 = vld [vmem:[%s3281 + $0x304] sm:$0xf]
  %v3476 = vld [vmem:[%s3281 + $0x308] sm:$0xf]
  %v3477 = vld [vmem:[%s3281 + $0x30c] sm:$0xf]
  %v3478 = vld [vmem:[%s3281 + $0x310] sm:$0xf]
  %v3479 = vld [vmem:[%s3281 + $0x314] sm:$0xf]
  %v3480 = vld [vmem:[%s3281 + $0x318] sm:$0xf]
  %v3481 = vld [vmem:[%s3281 + $0x31c] sm:$0xf]
  %v3682 = vunpack.c.l.b16 %v3282
  %v3683 = vunpack.c.l.b16 %v3283
  %v3684 = vunpack.c.l.b16 %v3284
  %v3685 = vunpack.c.l.b16 %v3285
  %v3686 = vunpack.c.l.b16 %v3286
  %v3687 = vunpack.c.l.b16 %v3287
  %v3688 = vunpack.c.l.b16 %v3288
  %v3689 = vunpack.c.l.b16 %v3289
  %v3690 = vunpack.c.l.b16 %v3290
  %v3691 = vunpack.c.l.b16 %v3291
  %v3692 = vunpack.c.l.b16 %v3292
  %v3693 = vunpack.c.l.b16 %v3293
  %v3694 = vunpack.c.l.b16 %v3294
  %v3695 = vunpack.c.l.b16 %v3295
  %v3696 = vunpack.c.l.b16 %v3296
  %v3697 = vunpack.c.l.b16 %v3297
  %v3698 = vunpack.c.l.b16 %v3298
  %v3699 = vunpack.c.l.b16 %v3299
  %v3700 = vunpack.c.l.b16 %v3300
  %v3701 = vunpack.c.l.b16 %v3301
  %v3702 = vunpack.c.l.b16 %v3302
  %v3703 = vunpack.c.l.b16 %v3303
  %v3704 = vunpack.c.l.b16 %v3304
  %v3705 = vunpack.c.l.b16 %v3305
  %v3706 = vunpack.c.l.b16 %v3306
  %v3707 = vunpack.c.l.b16 %v3307
  %v3708 = vunpack.c.l.b16 %v3308
  %v3709 = vunpack.c.l.b16 %v3309
  %v3710 = vunpack.c.l.b16 %v3310
  %v3711 = vunpack.c.l.b16 %v3311
  %v3712 = vunpack.c.l.b16 %v3312
  %v3713 = vunpack.c.l.b16 %v3313
  %v3714 = vunpack.c.l.b16 %v3314
  %v3715 = vunpack.c.l.b16 %v3315
  %v3716 = vunpack.c.l.b16 %v3316
  %v3717 = vunpack.c.l.b16 %v3317
  %v3718 = vunpack.c.l.b16 %v3318
  %v3719 = vunpack.c.l.b16 %v3319
  %v3720 = vunpack.c.l.b16 %v3320
  %v3721 = vunpack.c.l.b16 %v3321
  %v3722 = vunpack.c.l.b16 %v3322
  %v3723 = vunpack.c.l.b16 %v3323
  %v3724 = vunpack.c.l.b16 %v3324
  %v3725 = vunpack.c.l.b16 %v3325
  %v3726 = vunpack.c.l.b16 %v3326
  %v3727 = vunpack.c.l.b16 %v3327
  %v3728 = vunpack.c.l.b16 %v3328
  %v3729 = vunpack.c.l.b16 %v3329
  %v3730 = vunpack.c.l.b16 %v3330
  %v3731 = vunpack.c.l.b16 %v3331
  %v3732 = vunpack.c.l.b16 %v3332
  %v3733 = vunpack.c.l.b16 %v3333
  %v3734 = vunpack.c.l.b16 %v3334
  %v3735 = vunpack.c.l.b16 %v3335
  %v3736 = vunpack.c.l.b16 %v3336
  %v3737 = vunpack.c.l.b16 %v3337
  %v3738 = vunpack.c.l.b16 %v3338
  %v3739 = vunpack.c.l.b16 %v3339
  %v3740 = vunpack.c.l.b16 %v3340
  %v3741 = vunpack.c.l.b16 %v3341
  %v3742 = vunpack.c.l.b16 %v3342
  %v3743 = vunpack.c.l.b16 %v3343
  %v3744 = vunpack.c.l.b16 %v3344
  %v3745 = vunpack.c.l.b16 %v3345
  %v3746 = vunpack.c.l.b16 %v3346
  %v3747 = vunpack.c.l.b16 %v3347
  %v3748 = vunpack.c.l.b16 %v3348
  %v3749 = vunpack.c.l.b16 %v3349
  %v3750 = vunpack.c.l.b16 %v3350
  %v3751 = vunpack.c.l.b16 %v3351
  %v3752 = vunpack.c.l.b16 %v3352
  %v3753 = vunpack.c.l.b16 %v3353
  %v3754 = vunpack.c.l.b16 %v3354
  %v3755 = vunpack.c.l.b16 %v3355
  %v3756 = vunpack.c.l.b16 %v3356
  %v3757 = vunpack.c.l.b16 %v3357
  %v3758 = vunpack.c.l.b16 %v3358
  %v3759 = vunpack.c.l.b16 %v3359
  %v3760 = vunpack.c.l.b16 %v3360
  %v3761 = vunpack.c.l.b16 %v3361
  %v3762 = vunpack.c.l.b16 %v3362
  %v3763 = vunpack.c.l.b16 %v3363
  %v3764 = vunpack.c.l.b16 %v3364
  %v3765 = vunpack.c.l.b16 %v3365
  %v3766 = vunpack.c.l.b16 %v3366
  %v3767 = vunpack.c.l.b16 %v3367
  %v3768 = vunpack.c.l.b16 %v3368
  %v3769 = vunpack.c.l.b16 %v3369
  %v3770 = vunpack.c.l.b16 %v3370
  %v3771 = vunpack.c.l.b16 %v3371
  %v3772 = vunpack.c.l.b16 %v3372
  %v3773 = vunpack.c.l.b16 %v3373
  %v3774 = vunpack.c.l.b16 %v3374
  %v3775 = vunpack.c.l.b16 %v3375
  %v3776 = vunpack.c.l.b16 %v3376
  %v3777 = vunpack.c.l.b16 %v3377
  %v3778 = vunpack.c.l.b16 %v3378
  %v3779 = vunpack.c.l.b16 %v3379
  %v3780 = vunpack.c.l.b16 %v3380
  %v3781 = vunpack.c.l.b16 %v3381
  %v3782 = vunpack.c.l.b16 %v3382
  %v3783 = vunpack.c.l.b16 %v3383
  %v3784 = vunpack.c.l.b16 %v3384
  %v3785 = vunpack.c.l.b16 %v3385
  %v3786 = vunpack.c.l.b16 %v3386
  %v3787 = vunpack.c.l.b16 %v3387
  %v3788 = vunpack.c.l.b16 %v3388
  %v3789 = vunpack.c.l.b16 %v3389
  %v3790 = vunpack.c.l.b16 %v3390
  %v3791 = vunpack.c.l.b16 %v3391
  %v3792 = vunpack.c.l.b16 %v3392
  %v3793 = vunpack.c.l.b16 %v3393
  %v3794 = vunpack.c.l.b16 %v3394
  %v3795 = vunpack.c.l.b16 %v3395
  %v3796 = vunpack.c.l.b16 %v3396
  %v3797 = vunpack.c.l.b16 %v3397
  %v3798 = vunpack.c.l.b16 %v3398
  %v3799 = vunpack.c.l.b16 %v3399
  %v3800 = vunpack.c.l.b16 %v3400
  %v3801 = vunpack.c.l.b16 %v3401
  %v3802 = vunpack.c.l.b16 %v3402
  %v3803 = vunpack.c.l.b16 %v3403
  %v3804 = vunpack.c.l.b16 %v3404
  %v3805 = vunpack.c.l.b16 %v3405
  %v3806 = vunpack.c.l.b16 %v3406
  %v3807 = vunpack.c.l.b16 %v3407
  %v3808 = vunpack.c.l.b16 %v3408
  %v3809 = vunpack.c.l.b16 %v3409
  %v3810 = vunpack.c.l.b16 %v3410
  %v3811 = vunpack.c.l.b16 %v3411
  %v3812 = vunpack.c.l.b16 %v3412
  %v3813 = vunpack.c.l.b16 %v3413
  %v3814 = vunpack.c.l.b16 %v3414
  %v3815 = vunpack.c.l.b16 %v3415
  %v3816 = vunpack.c.l.b16 %v3416
  %v3817 = vunpack.c.l.b16 %v3417
  %v3818 = vunpack.c.l.b16 %v3418
  %v3819 = vunpack.c.l.b16 %v3419
  %v3820 = vunpack.c.l.b16 %v3420
  %v3821 = vunpack.c.l.b16 %v3421
  %v3822 = vunpack.c.l.b16 %v3422
  %v3823 = vunpack.c.l.b16 %v3423
  %v3824 = vunpack.c.l.b16 %v3424
  %v3825 = vunpack.c.l.b16 %v3425
  %v3826 = vunpack.c.l.b16 %v3426
  %v3827 = vunpack.c.l.b16 %v3427
  %v3828 = vunpack.c.l.b16 %v3428
  %v3829 = vunpack.c.l.b16 %v3429
  %v3830 = vunpack.c.l.b16 %v3430
  %v3831 = vunpack.c.l.b16 %v3431
  %v3832 = vunpack.c.l.b16 %v3432
  %v3833 = vunpack.c.l.b16 %v3433
  %v3834 = vunpack.c.l.b16 %v3434
  %v3835 = vunpack.c.l.b16 %v3435
  %v3836 = vunpack.c.l.b16 %v3436
  %v3837 = vunpack.c.l.b16 %v3437
  %v3838 = vunpack.c.l.b16 %v3438
  %v3839 = vunpack.c.l.b16 %v3439
  %v3840 = vunpack.c.l.b16 %v3440
  %v3841 = vunpack.c.l.b16 %v3441
  %v3842 = vunpack.c.l.b16 %v3442
  %v3843 = vunpack.c.l.b16 %v3443
  %v3844 = vunpack.c.l.b16 %v3444
  %v3845 = vunpack.c.l.b16 %v3445
  %v3846 = vunpack.c.l.b16 %v3446
  %v3847 = vunpack.c.l.b16 %v3447
  %v3848 = vunpack.c.l.b16 %v3448
  %v3849 = vunpack.c.l.b16 %v3449
  %v3850 = vunpack.c.l.b16 %v3450
  %v3851 = vunpack.c.l.b16 %v3451
  %v3852 = vunpack.c.l.b16 %v3452
  %v3853 = vunpack.c.l.b16 %v3453
  %v3854 = vunpack.c.l.b16 %v3454
  %v3855 = vunpack.c.l.b16 %v3455
  %v3856 = vunpack.c.l.b16 %v3456
  %v3857 = vunpack.c.l.b16 %v3457
  %v3858 = vunpack.c.l.b16 %v3458
  %v3859 = vunpack.c.l.b16 %v3459
  %v3860 = vunpack.c.l.b16 %v3460
  %v3861 = vunpack.c.l.b16 %v3461
  %v3862 = vunpack.c.l.b16 %v3462
  %v3863 = vunpack.c.l.b16 %v3463
  %v3864 = vunpack.c.l.b16 %v3464
  %v3865 = vunpack.c.l.b16 %v3465
  %v3866 = vunpack.c.l.b16 %v3466
  %v3867 = vunpack.c.l.b16 %v3467
  %v3868 = vunpack.c.l.b16 %v3468
  %v3869 = vunpack.c.l.b16 %v3469
  %v3870 = vunpack.c.l.b16 %v3470
  %v3871 = vunpack.c.l.b16 %v3471
  %v3872 = vunpack.c.l.b16 %v3472
  %v3873 = vunpack.c.l.b16 %v3473
  %v3874 = vunpack.c.l.b16 %v3474
  %v3875 = vunpack.c.l.b16 %v3475
  %v3876 = vunpack.c.l.b16 %v3476
  %v3877 = vunpack.c.l.b16 %v3477
  %v3878 = vunpack.c.l.b16 %v3478
  %v3879 = vunpack.c.l.b16 %v3479
  %v3880 = vunpack.c.l.b16 %v3480
  %v3881 = vunpack.c.l.b16 %v3481
  %v3882 = vpack.c.b16 %v3683, %v3682
  %v3883 = vpack.c.b16 %v3685, %v3684
  %v3884 = vpack.c.b16 %v3687, %v3686
  %v3885 = vpack.c.b16 %v3689, %v3688
  %v3886 = vpack.c.b16 %v3691, %v3690
  %v3887 = vpack.c.b16 %v3693, %v3692
  %v3888 = vpack.c.b16 %v3695, %v3694
  %v3889 = vpack.c.b16 %v3697, %v3696
  %v3890 = vpack.c.b16 %v3699, %v3698
  %v3891 = vpack.c.b16 %v3701, %v3700
  %v3892 = vpack.c.b16 %v3703, %v3702
  %v3893 = vpack.c.b16 %v3705, %v3704
  %v3894 = vpack.c.b16 %v3707, %v3706
  %v3895 = vpack.c.b16 %v3709, %v3708
  %v3896 = vpack.c.b16 %v3711, %v3710
  %v3897 = vpack.c.b16 %v3713, %v3712
  %v3898 = vpack.c.b16 %v3715, %v3714
  %v3899 = vpack.c.b16 %v3717, %v3716
  %v3900 = vpack.c.b16 %v3719, %v3718
  %v3901 = vpack.c.b16 %v3721, %v3720
  %v3902 = vpack.c.b16 %v3723, %v3722
  %v3903 = vpack.c.b16 %v3725, %v3724
  %v3904 = vpack.c.b16 %v3727, %v3726
  %v3905 = vpack.c.b16 %v3729, %v3728
  %v3906 = vpack.c.b16 %v3731, %v3730
  %v3907 = vpack.c.b16 %v3733, %v3732
  %v3908 = vpack.c.b16 %v3735, %v3734
  %v3909 = vpack.c.b16 %v3737, %v3736
  %v3910 = vpack.c.b16 %v3739, %v3738
  %v3911 = vpack.c.b16 %v3741, %v3740
  %v3912 = vpack.c.b16 %v3743, %v3742
  %v3913 = vpack.c.b16 %v3745, %v3744
  %v3914 = vpack.c.b16 %v3747, %v3746
  %v3915 = vpack.c.b16 %v3749, %v3748
  %v3916 = vpack.c.b16 %v3751, %v3750
  %v3917 = vpack.c.b16 %v3753, %v3752
  %v3918 = vpack.c.b16 %v3755, %v3754
  %v3919 = vpack.c.b16 %v3757, %v3756
  %v3920 = vpack.c.b16 %v3759, %v3758
  %v3921 = vpack.c.b16 %v3761, %v3760
  %v3922 = vpack.c.b16 %v3763, %v3762
  %v3923 = vpack.c.b16 %v3765, %v3764
  %v3924 = vpack.c.b16 %v3767, %v3766
  %v3925 = vpack.c.b16 %v3769, %v3768
  %v3926 = vpack.c.b16 %v3771, %v3770
  %v3927 = vpack.c.b16 %v3773, %v3772
  %v3928 = vpack.c.b16 %v3775, %v3774
  %v3929 = vpack.c.b16 %v3777, %v3776
  %v3930 = vpack.c.b16 %v3779, %v3778
  %v3931 = vpack.c.b16 %v3781, %v3780
  %v3932 = vpack.c.b16 %v3783, %v3782
  %v3933 = vpack.c.b16 %v3785, %v3784
  %v3934 = vpack.c.b16 %v3787, %v3786
  %v3935 = vpack.c.b16 %v3789, %v3788
  %v3936 = vpack.c.b16 %v3791, %v3790
  %v3937 = vpack.c.b16 %v3793, %v3792
  %v3938 = vpack.c.b16 %v3795, %v3794
  %v3939 = vpack.c.b16 %v3797, %v3796
  %v3940 = vpack.c.b16 %v3799, %v3798
  %v3941 = vpack.c.b16 %v3801, %v3800
  %v3942 = vpack.c.b16 %v3803, %v3802
  %v3943 = vpack.c.b16 %v3805, %v3804
  %v3944 = vpack.c.b16 %v3807, %v3806
  %v3945 = vpack.c.b16 %v3809, %v3808
  %v3946 = vpack.c.b16 %v3811, %v3810
  %v3947 = vpack.c.b16 %v3813, %v3812
  %v3948 = vpack.c.b16 %v3815, %v3814
  %v3949 = vpack.c.b16 %v3817, %v3816
  %v3950 = vpack.c.b16 %v3819, %v3818
  %v3951 = vpack.c.b16 %v3821, %v3820
  %v3952 = vpack.c.b16 %v3823, %v3822
  %v3953 = vpack.c.b16 %v3825, %v3824
  %v3954 = vpack.c.b16 %v3827, %v3826
  %v3955 = vpack.c.b16 %v3829, %v3828
  %v3956 = vpack.c.b16 %v3831, %v3830
  %v3957 = vpack.c.b16 %v3833, %v3832
  %v3958 = vpack.c.b16 %v3835, %v3834
  %v3959 = vpack.c.b16 %v3837, %v3836
  %v3960 = vpack.c.b16 %v3839, %v3838
  %v3961 = vpack.c.b16 %v3841, %v3840
  %v3962 = vpack.c.b16 %v3843, %v3842
  %v3963 = vpack.c.b16 %v3845, %v3844
  %v3964 = vpack.c.b16 %v3847, %v3846
  %v3965 = vpack.c.b16 %v3849, %v3848
  %v3966 = vpack.c.b16 %v3851, %v3850
  %v3967 = vpack.c.b16 %v3853, %v3852
  %v3968 = vpack.c.b16 %v3855, %v3854
  %v3969 = vpack.c.b16 %v3857, %v3856
  %v3970 = vpack.c.b16 %v3859, %v3858
  %v3971 = vpack.c.b16 %v3861, %v3860
  %v3972 = vpack.c.b16 %v3863, %v3862
  %v3973 = vpack.c.b16 %v3865, %v3864
  %v3974 = vpack.c.b16 %v3867, %v3866
  %v3975 = vpack.c.b16 %v3869, %v3868
  %v3976 = vpack.c.b16 %v3871, %v3870
  %v3977 = vpack.c.b16 %v3873, %v3872
  %v3978 = vpack.c.b16 %v3875, %v3874
  %v3979 = vpack.c.b16 %v3877, %v3876
  %v3980 = vpack.c.b16 %v3879, %v3878
  %v3981 = vpack.c.b16 %v3881, %v3880
  %v3983 = vsel %vm754, %v3882, 0
  %v3986 = vsel %vm754, %v3883, 0
  %v3989 = vsel %vm754, %v3884, 0
  %v3992 = vsel %vm754, %v3885, 0
  %v3995 = vsel %vm754, %v3886, 0
  %v3998 = vsel %vm754, %v3887, 0
  %v4001 = vsel %vm754, %v3888, 0
  %v4004 = vsel %vm754, %v3889, 0
  %v4007 = vsel %vm754, %v3890, 0
  %v4010 = vsel %vm754, %v3891, 0
  %v4013 = vsel %vm754, %v3892, 0
  %v4016 = vsel %vm754, %v3893, 0
  %v4019 = vsel %vm754, %v3894, 0
  %v4022 = vsel %vm754, %v3895, 0
  %v4025 = vsel %vm754, %v3896, 0
  %v4028 = vsel %vm754, %v3897, 0
  %v4031 = vsel %vm754, %v3898, 0
  %v4034 = vsel %vm754, %v3899, 0
  %v4037 = vsel %vm754, %v3900, 0
  %v4040 = vsel %vm754, %v3901, 0
  %v4043 = vsel %vm754, %v3902, 0
  %v4046 = vsel %vm754, %v3903, 0
  %v4049 = vsel %vm754, %v3904, 0
  %v4052 = vsel %vm754, %v3905, 0
  %v4055 = vsel %vm754, %v3906, 0
  %v4058 = vsel %vm754, %v3907, 0
  %v4061 = vsel %vm754, %v3908, 0
  %v4064 = vsel %vm754, %v3909, 0
  %v4067 = vsel %vm754, %v3910, 0
  %v4070 = vsel %vm754, %v3911, 0
  %v4073 = vsel %vm754, %v3912, 0
  %v4076 = vsel %vm754, %v3913, 0
  %v4079 = vsel %vm754, %v3914, 0
  %v4082 = vsel %vm754, %v3915, 0
  %v4085 = vsel %vm754, %v3916, 0
  %v4088 = vsel %vm754, %v3917, 0
  %v4091 = vsel %vm754, %v3918, 0
  %v4094 = vsel %vm754, %v3919, 0
  %v4097 = vsel %vm754, %v3920, 0
  %v4100 = vsel %vm754, %v3921, 0
  %v4103 = vsel %vm754, %v3922, 0
  %v4106 = vsel %vm754, %v3923, 0
  %v4109 = vsel %vm754, %v3924, 0
  %v4112 = vsel %vm754, %v3925, 0
  %v4115 = vsel %vm754, %v3926, 0
  %v4118 = vsel %vm754, %v3927, 0
  %v4121 = vsel %vm754, %v3928, 0
  %v4124 = vsel %vm754, %v3929, 0
  %v4127 = vsel %vm754, %v3930, 0
  %v4130 = vsel %vm754, %v3931, 0
  %v4133 = vsel %vm754, %v3932, 0
  %v4136 = vsel %vm754, %v3933, 0
  %v4139 = vsel %vm754, %v3934, 0
  %v4142 = vsel %vm754, %v3935, 0
  %v4145 = vsel %vm754, %v3936, 0
  %v4148 = vsel %vm754, %v3937, 0
  %v4151 = vsel %vm754, %v3938, 0
  %v4154 = vsel %vm754, %v3939, 0
  %v4157 = vsel %vm754, %v3940, 0
  %v4160 = vsel %vm754, %v3941, 0
  %v4163 = vsel %vm754, %v3942, 0
  %v4166 = vsel %vm754, %v3943, 0
  %v4169 = vsel %vm754, %v3944, 0
  %v4172 = vsel %vm754, %v3945, 0
  %v4175 = vsel %vm754, %v3946, 0
  %v4178 = vsel %vm754, %v3947, 0
  %v4181 = vsel %vm754, %v3948, 0
  %v4184 = vsel %vm754, %v3949, 0
  %v4187 = vsel %vm754, %v3950, 0
  %v4190 = vsel %vm754, %v3951, 0
  %v4193 = vsel %vm754, %v3952, 0
  %v4196 = vsel %vm754, %v3953, 0
  %v4199 = vsel %vm754, %v3954, 0
  %v4202 = vsel %vm754, %v3955, 0
  %v4205 = vsel %vm754, %v3956, 0
  %v4208 = vsel %vm754, %v3957, 0
  %v4211 = vsel %vm754, %v3958, 0
  %v4214 = vsel %vm754, %v3959, 0
  %v4217 = vsel %vm754, %v3960, 0
  %v4220 = vsel %vm754, %v3961, 0
  %v4223 = vsel %vm754, %v3962, 0
  %v4226 = vsel %vm754, %v3963, 0
  %v4229 = vsel %vm754, %v3964, 0
  %v4232 = vsel %vm754, %v3965, 0
  %v4235 = vsel %vm754, %v3966, 0
  %v4238 = vsel %vm754, %v3967, 0
  %v4241 = vsel %vm754, %v3968, 0
  %v4244 = vsel %vm754, %v3969, 0
  %v4247 = vsel %vm754, %v3970, 0
  %v4250 = vsel %vm754, %v3971, 0
  %v4253 = vsel %vm754, %v3972, 0
  %v4256 = vsel %vm754, %v3973, 0
  %v4259 = vsel %vm754, %v3974, 0
  %v4262 = vsel %vm754, %v3975, 0
  %v4265 = vsel %vm754, %v3976, 0
  %v4268 = vsel %vm754, %v3977, 0
  %v4271 = vsel %vm754, %v3978, 0
  %v4274 = vsel %vm754, %v3979, 0
  %v4277 = vsel %vm754, %v3980, 0
  %v4280 = vsel %vm754, %v3981, 0
  %4282 = vmatpush.bf16.msra.mxu0 0
  %4283 = vmatpush.bf16.msra.mxu0 0
  %4284 = vmatpush.bf16.msra.mxu0 0
  %4285 = vmatpush.bf16.msra.mxu0 %v1060
  %4286 = vmatpush.bf16.msra.mxu0 %v748
  %4287 = vmatpush.bf16.msra.mxu0 %v747
  %4288 = vmatpush.bf16.msra.mxu0 %v746
  %4289 = vmatpush.bf16.msra.mxu0 %v745
  %4290 = vmatmul.bf16.gmra.mxu0 %v3983
  %v4291 = vpop.f32.mrf.mxu0
  %v4292 = vadd.f32 0.0, %v4291
  %v4293 = vpop.f32.mrf.mxu0
  %v4294 = vadd.f32 0.0, %v4293
  %4295 = vmatmul.bf16.gmra.mxu0 %v3986
  %v4296 = vpop.f32.mrf.mxu0
  %v4297 = vadd.f32 0.0, %v4296
  %v4298 = vpop.f32.mrf.mxu0
  %v4299 = vadd.f32 0.0, %v4298
  %4300 = vmatmul.bf16.gmra.mxu0 %v3989
  %v4301 = vpop.f32.mrf.mxu0
  %v4302 = vadd.f32 0.0, %v4301
  %v4303 = vpop.f32.mrf.mxu0
  %v4304 = vadd.f32 0.0, %v4303
  %4305 = vmatmul.bf16.gmra.mxu0 %v3992
  %v4306 = vpop.f32.mrf.mxu0
  %v4307 = vadd.f32 0.0, %v4306
  %v4308 = vpop.f32.mrf.mxu0
  %v4309 = vadd.f32 0.0, %v4308
  %4310 = vmatmul.bf16.gmra.mxu0 %v3995
  %v4311 = vpop.f32.mrf.mxu0
  %v4312 = vadd.f32 0.0, %v4311
  %v4313 = vpop.f32.mrf.mxu0
  %v4314 = vadd.f32 0.0, %v4313
  %4315 = vmatmul.bf16.gmra.mxu0 %v3998
  %v4316 = vpop.f32.mrf.mxu0
  %v4317 = vadd.f32 0.0, %v4316
  %v4318 = vpop.f32.mrf.mxu0
  %v4319 = vadd.f32 0.0, %v4318
  %4320 = vmatmul.bf16.gmra.mxu0 %v4001
  %v4321 = vpop.f32.mrf.mxu0
  %v4322 = vadd.f32 0.0, %v4321
  %v4323 = vpop.f32.mrf.mxu0
  %v4324 = vadd.f32 0.0, %v4323
  %4325 = vmatmul.bf16.gmra.mxu0 %v4004
  %v4326 = vpop.f32.mrf.mxu0
  %v4327 = vadd.f32 0.0, %v4326
  %v4328 = vpop.f32.mrf.mxu0
  %v4329 = vadd.f32 0.0, %v4328
  %4330 = vmatmul.bf16.gmra.mxu0 %v4007
  %v4331 = vpop.f32.mrf.mxu0
  %v4332 = vadd.f32 0.0, %v4331
  %v4333 = vpop.f32.mrf.mxu0
  %v4334 = vadd.f32 0.0, %v4333
  %4335 = vmatmul.bf16.gmra.mxu0 %v4010
  %v4336 = vpop.f32.mrf.mxu0
  %v4337 = vadd.f32 0.0, %v4336
  %v4338 = vpop.f32.mrf.mxu0
  %v4339 = vadd.f32 0.0, %v4338
  %4340 = vmatmul.bf16.gmra.mxu0 %v4013
  %v4341 = vpop.f32.mrf.mxu0
  %v4342 = vadd.f32 0.0, %v4341
  %v4343 = vpop.f32.mrf.mxu0
  %v4344 = vadd.f32 0.0, %v4343
  %4345 = vmatmul.bf16.gmra.mxu0 %v4016
  %v4346 = vpop.f32.mrf.mxu0
  %v4347 = vadd.f32 0.0, %v4346
  %v4348 = vpop.f32.mrf.mxu0
  %v4349 = vadd.f32 0.0, %v4348
  %4350 = vmatmul.bf16.gmra.mxu0 %v4019
  %v4351 = vpop.f32.mrf.mxu0
  %v4352 = vadd.f32 0.0, %v4351
  %v4353 = vpop.f32.mrf.mxu0
  %v4354 = vadd.f32 0.0, %v4353
  %4355 = vmatmul.bf16.gmra.mxu0 %v4022
  %v4356 = vpop.f32.mrf.mxu0
  %v4357 = vadd.f32 0.0, %v4356
  %v4358 = vpop.f32.mrf.mxu0
  %v4359 = vadd.f32 0.0, %v4358
  %4360 = vmatmul.bf16.gmra.mxu0 %v4025
  %v4361 = vpop.f32.mrf.mxu0
  %v4362 = vadd.f32 0.0, %v4361
  %v4363 = vpop.f32.mrf.mxu0
  %v4364 = vadd.f32 0.0, %v4363
  %4365 = vmatmul.bf16.gmra.mxu0 %v4028
  %v4366 = vpop.f32.mrf.mxu0
  %v4367 = vadd.f32 0.0, %v4366
  %v4368 = vpop.f32.mrf.mxu0
  %v4369 = vadd.f32 0.0, %v4368
  %4370 = vmatmul.bf16.gmra.mxu0 %v4031
  %v4371 = vpop.f32.mrf.mxu0
  %v4372 = vadd.f32 0.0, %v4371
  %v4373 = vpop.f32.mrf.mxu0
  %v4374 = vadd.f32 0.0, %v4373
  %4375 = vmatmul.bf16.gmra.mxu0 %v4034
  %v4376 = vpop.f32.mrf.mxu0
  %v4377 = vadd.f32 0.0, %v4376
  %v4378 = vpop.f32.mrf.mxu0
  %v4379 = vadd.f32 0.0, %v4378
  %4380 = vmatmul.bf16.gmra.mxu0 %v4037
  %v4381 = vpop.f32.mrf.mxu0
  %v4382 = vadd.f32 0.0, %v4381
  %v4383 = vpop.f32.mrf.mxu0
  %v4384 = vadd.f32 0.0, %v4383
  %4385 = vmatmul.bf16.gmra.mxu0 %v4040
  %v4386 = vpop.f32.mrf.mxu0
  %v4387 = vadd.f32 0.0, %v4386
  %v4388 = vpop.f32.mrf.mxu0
  %v4389 = vadd.f32 0.0, %v4388
  %4390 = vmatmul.bf16.gmra.mxu0 %v4043
  %v4391 = vpop.f32.mrf.mxu0
  %v4392 = vadd.f32 0.0, %v4391
  %v4393 = vpop.f32.mrf.mxu0
  %v4394 = vadd.f32 0.0, %v4393
  %4395 = vmatmul.bf16.gmra.mxu0 %v4046
  %v4396 = vpop.f32.mrf.mxu0
  %v4397 = vadd.f32 0.0, %v4396
  %v4398 = vpop.f32.mrf.mxu0
  %v4399 = vadd.f32 0.0, %v4398
  %4400 = vmatmul.bf16.gmra.mxu0 %v4049
  %v4401 = vpop.f32.mrf.mxu0
  %v4402 = vadd.f32 0.0, %v4401
  %v4403 = vpop.f32.mrf.mxu0
  %v4404 = vadd.f32 0.0, %v4403
  %4405 = vmatmul.bf16.gmra.mxu0 %v4052
  %v4406 = vpop.f32.mrf.mxu0
  %v4407 = vadd.f32 0.0, %v4406
  %v4408 = vpop.f32.mrf.mxu0
  %v4409 = vadd.f32 0.0, %v4408
  %4410 = vmatmul.bf16.gmra.mxu0 %v4055
  %v4411 = vpop.f32.mrf.mxu0
  %v4412 = vadd.f32 0.0, %v4411
  %v4413 = vpop.f32.mrf.mxu0
  %v4414 = vadd.f32 0.0, %v4413
  %4415 = vmatmul.bf16.gmra.mxu0 %v4058
  %v4416 = vpop.f32.mrf.mxu0
  %v4417 = vadd.f32 0.0, %v4416
  %v4418 = vpop.f32.mrf.mxu0
  %v4419 = vadd.f32 0.0, %v4418
  %4420 = vmatmul.bf16.gmra.mxu0 %v4061
  %v4421 = vpop.f32.mrf.mxu0
  %v4422 = vadd.f32 0.0, %v4421
  %v4423 = vpop.f32.mrf.mxu0
  %v4424 = vadd.f32 0.0, %v4423
  %4425 = vmatmul.bf16.gmra.mxu0 %v4064
  %v4426 = vpop.f32.mrf.mxu0
  %v4427 = vadd.f32 0.0, %v4426
  %v4428 = vpop.f32.mrf.mxu0
  %v4429 = vadd.f32 0.0, %v4428
  %4430 = vmatmul.bf16.gmra.mxu0 %v4067
  %v4431 = vpop.f32.mrf.mxu0
  %v4432 = vadd.f32 0.0, %v4431
  %v4433 = vpop.f32.mrf.mxu0
  %v4434 = vadd.f32 0.0, %v4433
  %4435 = vmatmul.bf16.gmra.mxu0 %v4070
  %v4436 = vpop.f32.mrf.mxu0
  %v4437 = vadd.f32 0.0, %v4436
  %v4438 = vpop.f32.mrf.mxu0
  %v4439 = vadd.f32 0.0, %v4438
  %4440 = vmatmul.bf16.gmra.mxu0 %v4073
  %v4441 = vpop.f32.mrf.mxu0
  %v4442 = vadd.f32 0.0, %v4441
  %v4443 = vpop.f32.mrf.mxu0
  %v4444 = vadd.f32 0.0, %v4443
  %4445 = vmatmul.bf16.gmra.mxu0 %v4076
  %v4446 = vpop.f32.mrf.mxu0
  %v4447 = vadd.f32 0.0, %v4446
  %v4448 = vpop.f32.mrf.mxu0
  %v4449 = vadd.f32 0.0, %v4448
  %4450 = vmatmul.bf16.gmra.mxu0 %v4079
  %v4451 = vpop.f32.mrf.mxu0
  %v4452 = vadd.f32 0.0, %v4451
  %v4453 = vpop.f32.mrf.mxu0
  %v4454 = vadd.f32 0.0, %v4453
  %4455 = vmatmul.bf16.gmra.mxu0 %v4082
  %v4456 = vpop.f32.mrf.mxu0
  %v4457 = vadd.f32 0.0, %v4456
  %v4458 = vpop.f32.mrf.mxu0
  %v4459 = vadd.f32 0.0, %v4458
  %4460 = vmatmul.bf16.gmra.mxu0 %v4085
  %v4461 = vpop.f32.mrf.mxu0
  %v4462 = vadd.f32 0.0, %v4461
  %v4463 = vpop.f32.mrf.mxu0
  %v4464 = vadd.f32 0.0, %v4463
  %4465 = vmatmul.bf16.gmra.mxu0 %v4088
  %v4466 = vpop.f32.mrf.mxu0
  %v4467 = vadd.f32 0.0, %v4466
  %v4468 = vpop.f32.mrf.mxu0
  %v4469 = vadd.f32 0.0, %v4468
  %4470 = vmatmul.bf16.gmra.mxu0 %v4091
  %v4471 = vpop.f32.mrf.mxu0
  %v4472 = vadd.f32 0.0, %v4471
  %v4473 = vpop.f32.mrf.mxu0
  %v4474 = vadd.f32 0.0, %v4473
  %4475 = vmatmul.bf16.gmra.mxu0 %v4094
  %v4476 = vpop.f32.mrf.mxu0
  %v4477 = vadd.f32 0.0, %v4476
  %v4478 = vpop.f32.mrf.mxu0
  %v4479 = vadd.f32 0.0, %v4478
  %4480 = vmatmul.bf16.gmra.mxu0 %v4097
  %v4481 = vpop.f32.mrf.mxu0
  %v4482 = vadd.f32 0.0, %v4481
  %v4483 = vpop.f32.mrf.mxu0
  %v4484 = vadd.f32 0.0, %v4483
  %4485 = vmatmul.bf16.gmra.mxu0 %v4100
  %v4486 = vpop.f32.mrf.mxu0
  %v4487 = vadd.f32 0.0, %v4486
  %v4488 = vpop.f32.mrf.mxu0
  %v4489 = vadd.f32 0.0, %v4488
  %4490 = vmatmul.bf16.gmra.mxu0 %v4103
  %v4491 = vpop.f32.mrf.mxu0
  %v4492 = vadd.f32 0.0, %v4491
  %v4493 = vpop.f32.mrf.mxu0
  %v4494 = vadd.f32 0.0, %v4493
  %4495 = vmatmul.bf16.gmra.mxu0 %v4106
  %v4496 = vpop.f32.mrf.mxu0
  %v4497 = vadd.f32 0.0, %v4496
  %v4498 = vpop.f32.mrf.mxu0
  %v4499 = vadd.f32 0.0, %v4498
  %4500 = vmatmul.bf16.gmra.mxu0 %v4109
  %v4501 = vpop.f32.mrf.mxu0
  %v4502 = vadd.f32 0.0, %v4501
  %v4503 = vpop.f32.mrf.mxu0
  %v4504 = vadd.f32 0.0, %v4503
  %4505 = vmatmul.bf16.gmra.mxu0 %v4112
  %v4506 = vpop.f32.mrf.mxu0
  %v4507 = vadd.f32 0.0, %v4506
  %v4508 = vpop.f32.mrf.mxu0
  %v4509 = vadd.f32 0.0, %v4508
  %4510 = vmatmul.bf16.gmra.mxu0 %v4115
  %v4511 = vpop.f32.mrf.mxu0
  %v4512 = vadd.f32 0.0, %v4511
  %v4513 = vpop.f32.mrf.mxu0
  %v4514 = vadd.f32 0.0, %v4513
  %4515 = vmatmul.bf16.gmra.mxu0 %v4118
  %v4516 = vpop.f32.mrf.mxu0
  %v4517 = vadd.f32 0.0, %v4516
  %v4518 = vpop.f32.mrf.mxu0
  %v4519 = vadd.f32 0.0, %v4518
  %4520 = vmatmul.bf16.gmra.mxu0 %v4121
  %v4521 = vpop.f32.mrf.mxu0
  %v4522 = vadd.f32 0.0, %v4521
  %v4523 = vpop.f32.mrf.mxu0
  %v4524 = vadd.f32 0.0, %v4523
  %4525 = vmatmul.bf16.gmra.mxu0 %v4124
  %v4526 = vpop.f32.mrf.mxu0
  %v4527 = vadd.f32 0.0, %v4526
  %v4528 = vpop.f32.mrf.mxu0
  %v4529 = vadd.f32 0.0, %v4528
  %4530 = vmatmul.bf16.gmra.mxu0 %v4127
  %v4531 = vpop.f32.mrf.mxu0
  %v4532 = vadd.f32 0.0, %v4531
  %v4533 = vpop.f32.mrf.mxu0
  %v4534 = vadd.f32 0.0, %v4533
  %4535 = vmatmul.bf16.gmra.mxu0 %v4130
  %v4536 = vpop.f32.mrf.mxu0
  %v4537 = vadd.f32 0.0, %v4536
  %v4538 = vpop.f32.mrf.mxu0
  %v4539 = vadd.f32 0.0, %v4538
  %4540 = vmatmul.bf16.gmra.mxu0 %v4133
  %v4541 = vpop.f32.mrf.mxu0
  %v4542 = vadd.f32 0.0, %v4541
  %v4543 = vpop.f32.mrf.mxu0
  %v4544 = vadd.f32 0.0, %v4543
  %4545 = vmatmul.bf16.gmra.mxu0 %v4136
  %v4546 = vpop.f32.mrf.mxu0
  %v4547 = vadd.f32 0.0, %v4546
  %v4548 = vpop.f32.mrf.mxu0
  %v4549 = vadd.f32 0.0, %v4548
  %4550 = vmatmul.bf16.gmra.mxu0 %v4139
  %v4551 = vpop.f32.mrf.mxu0
  %v4552 = vadd.f32 0.0, %v4551
  %v4553 = vpop.f32.mrf.mxu0
  %v4554 = vadd.f32 0.0, %v4553
  %4555 = vmatmul.bf16.gmra.mxu0 %v4142
  %v4556 = vpop.f32.mrf.mxu0
  %v4557 = vadd.f32 0.0, %v4556
  %v4558 = vpop.f32.mrf.mxu0
  %v4559 = vadd.f32 0.0, %v4558
  %4560 = vmatmul.bf16.gmra.mxu0 %v4145
  %v4561 = vpop.f32.mrf.mxu0
  %v4562 = vadd.f32 0.0, %v4561
  %v4563 = vpop.f32.mrf.mxu0
  %v4564 = vadd.f32 0.0, %v4563
  %4565 = vmatmul.bf16.gmra.mxu0 %v4148
  %v4566 = vpop.f32.mrf.mxu0
  %v4567 = vadd.f32 0.0, %v4566
  %v4568 = vpop.f32.mrf.mxu0
  %v4569 = vadd.f32 0.0, %v4568
  %4570 = vmatmul.bf16.gmra.mxu0 %v4151
  %v4571 = vpop.f32.mrf.mxu0
  %v4572 = vadd.f32 0.0, %v4571
  %v4573 = vpop.f32.mrf.mxu0
  %v4574 = vadd.f32 0.0, %v4573
  %4575 = vmatmul.bf16.gmra.mxu0 %v4154
  %v4576 = vpop.f32.mrf.mxu0
  %v4577 = vadd.f32 0.0, %v4576
  %v4578 = vpop.f32.mrf.mxu0
  %v4579 = vadd.f32 0.0, %v4578
  %4580 = vmatmul.bf16.gmra.mxu0 %v4157
  %v4581 = vpop.f32.mrf.mxu0
  %v4582 = vadd.f32 0.0, %v4581
  %v4583 = vpop.f32.mrf.mxu0
  %v4584 = vadd.f32 0.0, %v4583
  %4585 = vmatmul.bf16.gmra.mxu0 %v4160
  %v4586 = vpop.f32.mrf.mxu0
  %v4587 = vadd.f32 0.0, %v4586
  %v4588 = vpop.f32.mrf.mxu0
  %v4589 = vadd.f32 0.0, %v4588
  %4590 = vmatmul.bf16.gmra.mxu0 %v4163
  %v4591 = vpop.f32.mrf.mxu0
  %v4592 = vadd.f32 0.0, %v4591
  %v4593 = vpop.f32.mrf.mxu0
  %v4594 = vadd.f32 0.0, %v4593
  %4595 = vmatmul.bf16.gmra.mxu0 %v4166
  %v4596 = vpop.f32.mrf.mxu0
  %v4597 = vadd.f32 0.0, %v4596
  %v4598 = vpop.f32.mrf.mxu0
  %v4599 = vadd.f32 0.0, %v4598
  %4600 = vmatmul.bf16.gmra.mxu0 %v4169
  %v4601 = vpop.f32.mrf.mxu0
  %v4602 = vadd.f32 0.0, %v4601
  %v4603 = vpop.f32.mrf.mxu0
  %v4604 = vadd.f32 0.0, %v4603
  %4605 = vmatmul.bf16.gmra.mxu0 %v4172
  %v4606 = vpop.f32.mrf.mxu0
  %v4607 = vadd.f32 0.0, %v4606
  %v4608 = vpop.f32.mrf.mxu0
  %v4609 = vadd.f32 0.0, %v4608
  %4610 = vmatmul.bf16.gmra.mxu0 %v4175
  %v4611 = vpop.f32.mrf.mxu0
  %v4612 = vadd.f32 0.0, %v4611
  %v4613 = vpop.f32.mrf.mxu0
  %v4614 = vadd.f32 0.0, %v4613
  %4615 = vmatmul.bf16.gmra.mxu0 %v4178
  %v4616 = vpop.f32.mrf.mxu0
  %v4617 = vadd.f32 0.0, %v4616
  %v4618 = vpop.f32.mrf.mxu0
  %v4619 = vadd.f32 0.0, %v4618
  %4620 = vmatmul.bf16.gmra.mxu0 %v4181
  %v4621 = vpop.f32.mrf.mxu0
  %v4622 = vadd.f32 0.0, %v4621
  %v4623 = vpop.f32.mrf.mxu0
  %v4624 = vadd.f32 0.0, %v4623
  %4625 = vmatmul.bf16.gmra.mxu0 %v4184
  %v4626 = vpop.f32.mrf.mxu0
  %v4627 = vadd.f32 0.0, %v4626
  %v4628 = vpop.f32.mrf.mxu0
  %v4629 = vadd.f32 0.0, %v4628
  %4630 = vmatmul.bf16.gmra.mxu0 %v4187
  %v4631 = vpop.f32.mrf.mxu0
  %v4632 = vadd.f32 0.0, %v4631
  %v4633 = vpop.f32.mrf.mxu0
  %v4634 = vadd.f32 0.0, %v4633
  %4635 = vmatmul.bf16.gmra.mxu0 %v4190
  %v4636 = vpop.f32.mrf.mxu0
  %v4637 = vadd.f32 0.0, %v4636
  %v4638 = vpop.f32.mrf.mxu0
  %v4639 = vadd.f32 0.0, %v4638
  %4640 = vmatmul.bf16.gmra.mxu0 %v4193
  %v4641 = vpop.f32.mrf.mxu0
  %v4642 = vadd.f32 0.0, %v4641
  %v4643 = vpop.f32.mrf.mxu0
  %v4644 = vadd.f32 0.0, %v4643
  %4645 = vmatmul.bf16.gmra.mxu0 %v4196
  %v4646 = vpop.f32.mrf.mxu0
  %v4647 = vadd.f32 0.0, %v4646
  %v4648 = vpop.f32.mrf.mxu0
  %v4649 = vadd.f32 0.0, %v4648
  %4650 = vmatmul.bf16.gmra.mxu0 %v4199
  %v4651 = vpop.f32.mrf.mxu0
  %v4652 = vadd.f32 0.0, %v4651
  %v4653 = vpop.f32.mrf.mxu0
  %v4654 = vadd.f32 0.0, %v4653
  %4655 = vmatmul.bf16.gmra.mxu0 %v4202
  %v4656 = vpop.f32.mrf.mxu0
  %v4657 = vadd.f32 0.0, %v4656
  %v4658 = vpop.f32.mrf.mxu0
  %v4659 = vadd.f32 0.0, %v4658
  %4660 = vmatmul.bf16.gmra.mxu0 %v4205
  %v4661 = vpop.f32.mrf.mxu0
  %v4662 = vadd.f32 0.0, %v4661
  %v4663 = vpop.f32.mrf.mxu0
  %v4664 = vadd.f32 0.0, %v4663
  %4665 = vmatmul.bf16.gmra.mxu0 %v4208
  %v4666 = vpop.f32.mrf.mxu0
  %v4667 = vadd.f32 0.0, %v4666
  %v4668 = vpop.f32.mrf.mxu0
  %v4669 = vadd.f32 0.0, %v4668
  %4670 = vmatmul.bf16.gmra.mxu0 %v4211
  %v4671 = vpop.f32.mrf.mxu0
  %v4672 = vadd.f32 0.0, %v4671
  %v4673 = vpop.f32.mrf.mxu0
  %v4674 = vadd.f32 0.0, %v4673
  %4675 = vmatmul.bf16.gmra.mxu0 %v4214
  %v4676 = vpop.f32.mrf.mxu0
  %v4677 = vadd.f32 0.0, %v4676
  %v4678 = vpop.f32.mrf.mxu0
  %v4679 = vadd.f32 0.0, %v4678
  %4680 = vmatmul.bf16.gmra.mxu0 %v4217
  %v4681 = vpop.f32.mrf.mxu0
  %v4682 = vadd.f32 0.0, %v4681
  %v4683 = vpop.f32.mrf.mxu0
  %v4684 = vadd.f32 0.0, %v4683
  %4685 = vmatmul.bf16.gmra.mxu0 %v4220
  %v4686 = vpop.f32.mrf.mxu0
  %v4687 = vadd.f32 0.0, %v4686
  %v4688 = vpop.f32.mrf.mxu0
  %v4689 = vadd.f32 0.0, %v4688
  %4690 = vmatmul.bf16.gmra.mxu0 %v4223
  %v4691 = vpop.f32.mrf.mxu0
  %v4692 = vadd.f32 0.0, %v4691
  %v4693 = vpop.f32.mrf.mxu0
  %v4694 = vadd.f32 0.0, %v4693
  %4695 = vmatmul.bf16.gmra.mxu0 %v4226
  %v4696 = vpop.f32.mrf.mxu0
  %v4697 = vadd.f32 0.0, %v4696
  %v4698 = vpop.f32.mrf.mxu0
  %v4699 = vadd.f32 0.0, %v4698
  %4700 = vmatmul.bf16.gmra.mxu0 %v4229
  %v4701 = vpop.f32.mrf.mxu0
  %v4702 = vadd.f32 0.0, %v4701
  %v4703 = vpop.f32.mrf.mxu0
  %v4704 = vadd.f32 0.0, %v4703
  %4705 = vmatmul.bf16.gmra.mxu0 %v4232
  %v4706 = vpop.f32.mrf.mxu0
  %v4707 = vadd.f32 0.0, %v4706
  %v4708 = vpop.f32.mrf.mxu0
  %v4709 = vadd.f32 0.0, %v4708
  %4710 = vmatmul.bf16.gmra.mxu0 %v4235
  %v4711 = vpop.f32.mrf.mxu0
  %v4712 = vadd.f32 0.0, %v4711
  %v4713 = vpop.f32.mrf.mxu0
  %v4714 = vadd.f32 0.0, %v4713
  %4715 = vmatmul.bf16.gmra.mxu0 %v4238
  %v4716 = vpop.f32.mrf.mxu0
  %v4717 = vadd.f32 0.0, %v4716
  %v4718 = vpop.f32.mrf.mxu0
  %v4719 = vadd.f32 0.0, %v4718
  %4720 = vmatmul.bf16.gmra.mxu0 %v4241
  %v4721 = vpop.f32.mrf.mxu0
  %v4722 = vadd.f32 0.0, %v4721
  %v4723 = vpop.f32.mrf.mxu0
  %v4724 = vadd.f32 0.0, %v4723
  %4725 = vmatmul.bf16.gmra.mxu0 %v4244
  %v4726 = vpop.f32.mrf.mxu0
  %v4727 = vadd.f32 0.0, %v4726
  %v4728 = vpop.f32.mrf.mxu0
  %v4729 = vadd.f32 0.0, %v4728
  %4730 = vmatmul.bf16.gmra.mxu0 %v4247
  %v4731 = vpop.f32.mrf.mxu0
  %v4732 = vadd.f32 0.0, %v4731
  %v4733 = vpop.f32.mrf.mxu0
  %v4734 = vadd.f32 0.0, %v4733
  %4735 = vmatmul.bf16.gmra.mxu0 %v4250
  %v4736 = vpop.f32.mrf.mxu0
  %v4737 = vadd.f32 0.0, %v4736
  %v4738 = vpop.f32.mrf.mxu0
  %v4739 = vadd.f32 0.0, %v4738
  %4740 = vmatmul.bf16.gmra.mxu0 %v4253
  %v4741 = vpop.f32.mrf.mxu0
  %v4742 = vadd.f32 0.0, %v4741
  %v4743 = vpop.f32.mrf.mxu0
  %v4744 = vadd.f32 0.0, %v4743
  %4745 = vmatmul.bf16.gmra.mxu0 %v4256
  %v4746 = vpop.f32.mrf.mxu0
  %v4747 = vadd.f32 0.0, %v4746
  %v4748 = vpop.f32.mrf.mxu0
  %v4749 = vadd.f32 0.0, %v4748
  %4750 = vmatmul.bf16.gmra.mxu0 %v4259
  %v4751 = vpop.f32.mrf.mxu0
  %v4752 = vadd.f32 0.0, %v4751
  %v4753 = vpop.f32.mrf.mxu0
  %v4754 = vadd.f32 0.0, %v4753
  %4755 = vmatmul.bf16.gmra.mxu0 %v4262
  %v4756 = vpop.f32.mrf.mxu0
  %v4757 = vadd.f32 0.0, %v4756
  %v4758 = vpop.f32.mrf.mxu0
  %v4759 = vadd.f32 0.0, %v4758
  %4760 = vmatmul.bf16.gmra.mxu0 %v4265
  %v4761 = vpop.f32.mrf.mxu0
  %v4762 = vadd.f32 0.0, %v4761
  %v4763 = vpop.f32.mrf.mxu0
  %v4764 = vadd.f32 0.0, %v4763
  %4765 = vmatmul.bf16.gmra.mxu0 %v4268
  %v4766 = vpop.f32.mrf.mxu0
  %v4767 = vadd.f32 0.0, %v4766
  %v4768 = vpop.f32.mrf.mxu0
  %v4769 = vadd.f32 0.0, %v4768
  %4770 = vmatmul.bf16.gmra.mxu0 %v4271
  %v4771 = vpop.f32.mrf.mxu0
  %v4772 = vadd.f32 0.0, %v4771
  %v4773 = vpop.f32.mrf.mxu0
  %v4774 = vadd.f32 0.0, %v4773
  %4775 = vmatmul.bf16.gmra.mxu0 %v4274
  %v4776 = vpop.f32.mrf.mxu0
  %v4777 = vadd.f32 0.0, %v4776
  %v4778 = vpop.f32.mrf.mxu0
  %v4779 = vadd.f32 0.0, %v4778
  %4780 = vmatmul.bf16.gmra.mxu0 %v4277
  %v4781 = vpop.f32.mrf.mxu0
  %v4782 = vadd.f32 0.0, %v4781
  %v4783 = vpop.f32.mrf.mxu0
  %v4784 = vadd.f32 0.0, %v4783
  %4785 = vmatmul.bf16.gmra.mxu0 %v4280
  %v4786 = vpop.f32.mrf.mxu0
  %v4787 = vadd.f32 0.0, %v4786
  %v4788 = vpop.f32.mrf.mxu0
  %v4789 = vadd.f32 0.0, %v4788
  %4790 = vdwg.mxu0
  %s4791 = scalar_lea.vmem %s0, 2400
  %v4792 = vld [vmem:[%s4791] sm:$0xf]
  %v4793 = vld [vmem:[%s4791 + $0x4] sm:$0xf]
  %v4794 = vld [vmem:[%s4791 + $0x8] sm:$0xf]
  %v4795 = vld [vmem:[%s4791 + $0xc] sm:$0xf]
  %v4796 = vld [vmem:[%s4791 + $0x10] sm:$0xf]
  %v4797 = vld [vmem:[%s4791 + $0x14] sm:$0xf]
  %v4798 = vld [vmem:[%s4791 + $0x18] sm:$0xf]
  %v4799 = vld [vmem:[%s4791 + $0x1c] sm:$0xf]
  %v4800 = vld [vmem:[%s4791 + $0x20] sm:$0xf]
  %v4801 = vld [vmem:[%s4791 + $0x24] sm:$0xf]
  %v4802 = vld [vmem:[%s4791 + $0x28] sm:$0xf]
  %v4803 = vld [vmem:[%s4791 + $0x2c] sm:$0xf]
  %v4804 = vld [vmem:[%s4791 + $0x30] sm:$0xf]
  %v4805 = vld [vmem:[%s4791 + $0x34] sm:$0xf]
  %v4806 = vld [vmem:[%s4791 + $0x38] sm:$0xf]
  %v4807 = vld [vmem:[%s4791 + $0x3c] sm:$0xf]
  %v4808 = vld [vmem:[%s4791 + $0x40] sm:$0xf]
  %v4809 = vld [vmem:[%s4791 + $0x44] sm:$0xf]
  %v4810 = vld [vmem:[%s4791 + $0x48] sm:$0xf]
  %v4811 = vld [vmem:[%s4791 + $0x4c] sm:$0xf]
  %v4812 = vld [vmem:[%s4791 + $0x50] sm:$0xf]
  %v4813 = vld [vmem:[%s4791 + $0x54] sm:$0xf]
  %v4814 = vld [vmem:[%s4791 + $0x58] sm:$0xf]
  %v4815 = vld [vmem:[%s4791 + $0x5c] sm:$0xf]
  %v4816 = vld [vmem:[%s4791 + $0x60] sm:$0xf]
  %v4817 = vld [vmem:[%s4791 + $0x64] sm:$0xf]
  %v4818 = vld [vmem:[%s4791 + $0x68] sm:$0xf]
  %v4819 = vld [vmem:[%s4791 + $0x6c] sm:$0xf]
  %v4820 = vld [vmem:[%s4791 + $0x70] sm:$0xf]
  %v4821 = vld [vmem:[%s4791 + $0x74] sm:$0xf]
  %v4822 = vld [vmem:[%s4791 + $0x78] sm:$0xf]
  %v4823 = vld [vmem:[%s4791 + $0x7c] sm:$0xf]
  %v4824 = vld [vmem:[%s4791 + $0x80] sm:$0xf]
  %v4825 = vld [vmem:[%s4791 + $0x84] sm:$0xf]
  %v4826 = vld [vmem:[%s4791 + $0x88] sm:$0xf]
  %v4827 = vld [vmem:[%s4791 + $0x8c] sm:$0xf]
  %v4828 = vld [vmem:[%s4791 + $0x90] sm:$0xf]
  %v4829 = vld [vmem:[%s4791 + $0x94] sm:$0xf]
  %v4830 = vld [vmem:[%s4791 + $0x98] sm:$0xf]
  %v4831 = vld [vmem:[%s4791 + $0x9c] sm:$0xf]
  %v4832 = vld [vmem:[%s4791 + $0xa0] sm:$0xf]
  %v4833 = vld [vmem:[%s4791 + $0xa4] sm:$0xf]
  %v4834 = vld [vmem:[%s4791 + $0xa8] sm:$0xf]
  %v4835 = vld [vmem:[%s4791 + $0xac] sm:$0xf]
  %v4836 = vld [vmem:[%s4791 + $0xb0] sm:$0xf]
  %v4837 = vld [vmem:[%s4791 + $0xb4] sm:$0xf]
  %v4838 = vld [vmem:[%s4791 + $0xb8] sm:$0xf]
  %v4839 = vld [vmem:[%s4791 + $0xbc] sm:$0xf]
  %v4840 = vld [vmem:[%s4791 + $0xc0] sm:$0xf]
  %v4841 = vld [vmem:[%s4791 + $0xc4] sm:$0xf]
  %v4842 = vld [vmem:[%s4791 + $0xc8] sm:$0xf]
  %v4843 = vld [vmem:[%s4791 + $0xcc] sm:$0xf]
  %v4844 = vld [vmem:[%s4791 + $0xd0] sm:$0xf]
  %v4845 = vld [vmem:[%s4791 + $0xd4] sm:$0xf]
  %v4846 = vld [vmem:[%s4791 + $0xd8] sm:$0xf]
  %v4847 = vld [vmem:[%s4791 + $0xdc] sm:$0xf]
  %v4848 = vld [vmem:[%s4791 + $0xe0] sm:$0xf]
  %v4849 = vld [vmem:[%s4791 + $0xe4] sm:$0xf]
  %v4850 = vld [vmem:[%s4791 + $0xe8] sm:$0xf]
  %v4851 = vld [vmem:[%s4791 + $0xec] sm:$0xf]
  %v4852 = vld [vmem:[%s4791 + $0xf0] sm:$0xf]
  %v4853 = vld [vmem:[%s4791 + $0xf4] sm:$0xf]
  %v4854 = vld [vmem:[%s4791 + $0xf8] sm:$0xf]
  %v4855 = vld [vmem:[%s4791 + $0xfc] sm:$0xf]
  %v4856 = vld [vmem:[%s4791 + $0x100] sm:$0xf]
  %v4857 = vld [vmem:[%s4791 + $0x104] sm:$0xf]
  %v4858 = vld [vmem:[%s4791 + $0x108] sm:$0xf]
  %v4859 = vld [vmem:[%s4791 + $0x10c] sm:$0xf]
  %v4860 = vld [vmem:[%s4791 + $0x110] sm:$0xf]
  %v4861 = vld [vmem:[%s4791 + $0x114] sm:$0xf]
  %v4862 = vld [vmem:[%s4791 + $0x118] sm:$0xf]
  %v4863 = vld [vmem:[%s4791 + $0x11c] sm:$0xf]
  %v4864 = vld [vmem:[%s4791 + $0x120] sm:$0xf]
  %v4865 = vld [vmem:[%s4791 + $0x124] sm:$0xf]
  %v4866 = vld [vmem:[%s4791 + $0x128] sm:$0xf]
  %v4867 = vld [vmem:[%s4791 + $0x12c] sm:$0xf]
  %v4868 = vld [vmem:[%s4791 + $0x130] sm:$0xf]
  %v4869 = vld [vmem:[%s4791 + $0x134] sm:$0xf]
  %v4870 = vld [vmem:[%s4791 + $0x138] sm:$0xf]
  %v4871 = vld [vmem:[%s4791 + $0x13c] sm:$0xf]
  %v4872 = vld [vmem:[%s4791 + $0x140] sm:$0xf]
  %v4873 = vld [vmem:[%s4791 + $0x144] sm:$0xf]
  %v4874 = vld [vmem:[%s4791 + $0x148] sm:$0xf]
  %v4875 = vld [vmem:[%s4791 + $0x14c] sm:$0xf]
  %v4876 = vld [vmem:[%s4791 + $0x150] sm:$0xf]
  %v4877 = vld [vmem:[%s4791 + $0x154] sm:$0xf]
  %v4878 = vld [vmem:[%s4791 + $0x158] sm:$0xf]
  %v4879 = vld [vmem:[%s4791 + $0x15c] sm:$0xf]
  %v4880 = vld [vmem:[%s4791 + $0x160] sm:$0xf]
  %v4881 = vld [vmem:[%s4791 + $0x164] sm:$0xf]
  %v4882 = vld [vmem:[%s4791 + $0x168] sm:$0xf]
  %v4883 = vld [vmem:[%s4791 + $0x16c] sm:$0xf]
  %v4884 = vld [vmem:[%s4791 + $0x170] sm:$0xf]
  %v4885 = vld [vmem:[%s4791 + $0x174] sm:$0xf]
  %v4886 = vld [vmem:[%s4791 + $0x178] sm:$0xf]
  %v4887 = vld [vmem:[%s4791 + $0x17c] sm:$0xf]
  %v4888 = vld [vmem:[%s4791 + $0x180] sm:$0xf]
  %v4889 = vld [vmem:[%s4791 + $0x184] sm:$0xf]
  %v4890 = vld [vmem:[%s4791 + $0x188] sm:$0xf]
  %v4891 = vld [vmem:[%s4791 + $0x18c] sm:$0xf]
  %v4892 = vld [vmem:[%s4791 + $0x190] sm:$0xf]
  %v4893 = vld [vmem:[%s4791 + $0x194] sm:$0xf]
  %v4894 = vld [vmem:[%s4791 + $0x198] sm:$0xf]
  %v4895 = vld [vmem:[%s4791 + $0x19c] sm:$0xf]
  %v4896 = vld [vmem:[%s4791 + $0x1a0] sm:$0xf]
  %v4897 = vld [vmem:[%s4791 + $0x1a4] sm:$0xf]
  %v4898 = vld [vmem:[%s4791 + $0x1a8] sm:$0xf]
  %v4899 = vld [vmem:[%s4791 + $0x1ac] sm:$0xf]
  %v4900 = vld [vmem:[%s4791 + $0x1b0] sm:$0xf]
  %v4901 = vld [vmem:[%s4791 + $0x1b4] sm:$0xf]
  %v4902 = vld [vmem:[%s4791 + $0x1b8] sm:$0xf]
  %v4903 = vld [vmem:[%s4791 + $0x1bc] sm:$0xf]
  %v4904 = vld [vmem:[%s4791 + $0x1c0] sm:$0xf]
  %v4905 = vld [vmem:[%s4791 + $0x1c4] sm:$0xf]
  %v4906 = vld [vmem:[%s4791 + $0x1c8] sm:$0xf]
  %v4907 = vld [vmem:[%s4791 + $0x1cc] sm:$0xf]
  %v4908 = vld [vmem:[%s4791 + $0x1d0] sm:$0xf]
  %v4909 = vld [vmem:[%s4791 + $0x1d4] sm:$0xf]
  %v4910 = vld [vmem:[%s4791 + $0x1d8] sm:$0xf]
  %v4911 = vld [vmem:[%s4791 + $0x1dc] sm:$0xf]
  %v4912 = vld [vmem:[%s4791 + $0x1e0] sm:$0xf]
  %v4913 = vld [vmem:[%s4791 + $0x1e4] sm:$0xf]
  %v4914 = vld [vmem:[%s4791 + $0x1e8] sm:$0xf]
  %v4915 = vld [vmem:[%s4791 + $0x1ec] sm:$0xf]
  %v4916 = vld [vmem:[%s4791 + $0x1f0] sm:$0xf]
  %v4917 = vld [vmem:[%s4791 + $0x1f4] sm:$0xf]
  %v4918 = vld [vmem:[%s4791 + $0x1f8] sm:$0xf]
  %v4919 = vld [vmem:[%s4791 + $0x1fc] sm:$0xf]
  %v4920 = vld [vmem:[%s4791 + $0x200] sm:$0xf]
  %v4921 = vld [vmem:[%s4791 + $0x204] sm:$0xf]
  %v4922 = vld [vmem:[%s4791 + $0x208] sm:$0xf]
  %v4923 = vld [vmem:[%s4791 + $0x20c] sm:$0xf]
  %v4924 = vld [vmem:[%s4791 + $0x210] sm:$0xf]
  %v4925 = vld [vmem:[%s4791 + $0x214] sm:$0xf]
  %v4926 = vld [vmem:[%s4791 + $0x218] sm:$0xf]
  %v4927 = vld [vmem:[%s4791 + $0x21c] sm:$0xf]
  %v4928 = vld [vmem:[%s4791 + $0x220] sm:$0xf]
  %v4929 = vld [vmem:[%s4791 + $0x224] sm:$0xf]
  %v4930 = vld [vmem:[%s4791 + $0x228] sm:$0xf]
  %v4931 = vld [vmem:[%s4791 + $0x22c] sm:$0xf]
  %v4932 = vld [vmem:[%s4791 + $0x230] sm:$0xf]
  %v4933 = vld [vmem:[%s4791 + $0x234] sm:$0xf]
  %v4934 = vld [vmem:[%s4791 + $0x238] sm:$0xf]
  %v4935 = vld [vmem:[%s4791 + $0x23c] sm:$0xf]
  %v4936 = vld [vmem:[%s4791 + $0x240] sm:$0xf]
  %v4937 = vld [vmem:[%s4791 + $0x244] sm:$0xf]
  %v4938 = vld [vmem:[%s4791 + $0x248] sm:$0xf]
  %v4939 = vld [vmem:[%s4791 + $0x24c] sm:$0xf]
  %v4940 = vld [vmem:[%s4791 + $0x250] sm:$0xf]
  %v4941 = vld [vmem:[%s4791 + $0x254] sm:$0xf]
  %v4942 = vld [vmem:[%s4791 + $0x258] sm:$0xf]
  %v4943 = vld [vmem:[%s4791 + $0x25c] sm:$0xf]
  %v4944 = vld [vmem:[%s4791 + $0x260] sm:$0xf]
  %v4945 = vld [vmem:[%s4791 + $0x264] sm:$0xf]
  %v4946 = vld [vmem:[%s4791 + $0x268] sm:$0xf]
  %v4947 = vld [vmem:[%s4791 + $0x26c] sm:$0xf]
  %v4948 = vld [vmem:[%s4791 + $0x270] sm:$0xf]
  %v4949 = vld [vmem:[%s4791 + $0x274] sm:$0xf]
  %v4950 = vld [vmem:[%s4791 + $0x278] sm:$0xf]
  %v4951 = vld [vmem:[%s4791 + $0x27c] sm:$0xf]
  %v4952 = vld [vmem:[%s4791 + $0x280] sm:$0xf]
  %v4953 = vld [vmem:[%s4791 + $0x284] sm:$0xf]
  %v4954 = vld [vmem:[%s4791 + $0x288] sm:$0xf]
  %v4955 = vld [vmem:[%s4791 + $0x28c] sm:$0xf]
  %v4956 = vld [vmem:[%s4791 + $0x290] sm:$0xf]
  %v4957 = vld [vmem:[%s4791 + $0x294] sm:$0xf]
  %v4958 = vld [vmem:[%s4791 + $0x298] sm:$0xf]
  %v4959 = vld [vmem:[%s4791 + $0x29c] sm:$0xf]
  %v4960 = vld [vmem:[%s4791 + $0x2a0] sm:$0xf]
  %v4961 = vld [vmem:[%s4791 + $0x2a4] sm:$0xf]
  %v4962 = vld [vmem:[%s4791 + $0x2a8] sm:$0xf]
  %v4963 = vld [vmem:[%s4791 + $0x2ac] sm:$0xf]
  %v4964 = vld [vmem:[%s4791 + $0x2b0] sm:$0xf]
  %v4965 = vld [vmem:[%s4791 + $0x2b4] sm:$0xf]
  %v4966 = vld [vmem:[%s4791 + $0x2b8] sm:$0xf]
  %v4967 = vld [vmem:[%s4791 + $0x2bc] sm:$0xf]
  %v4968 = vld [vmem:[%s4791 + $0x2c0] sm:$0xf]
  %v4969 = vld [vmem:[%s4791 + $0x2c4] sm:$0xf]
  %v4970 = vld [vmem:[%s4791 + $0x2c8] sm:$0xf]
  %v4971 = vld [vmem:[%s4791 + $0x2cc] sm:$0xf]
  %v4972 = vld [vmem:[%s4791 + $0x2d0] sm:$0xf]
  %v4973 = vld [vmem:[%s4791 + $0x2d4] sm:$0xf]
  %v4974 = vld [vmem:[%s4791 + $0x2d8] sm:$0xf]
  %v4975 = vld [vmem:[%s4791 + $0x2dc] sm:$0xf]
  %v4976 = vld [vmem:[%s4791 + $0x2e0] sm:$0xf]
  %v4977 = vld [vmem:[%s4791 + $0x2e4] sm:$0xf]
  %v4978 = vld [vmem:[%s4791 + $0x2e8] sm:$0xf]
  %v4979 = vld [vmem:[%s4791 + $0x2ec] sm:$0xf]
  %v4980 = vld [vmem:[%s4791 + $0x2f0] sm:$0xf]
  %v4981 = vld [vmem:[%s4791 + $0x2f4] sm:$0xf]
  %v4982 = vld [vmem:[%s4791 + $0x2f8] sm:$0xf]
  %v4983 = vld [vmem:[%s4791 + $0x2fc] sm:$0xf]
  %v4984 = vld [vmem:[%s4791 + $0x300] sm:$0xf]
  %v4985 = vld [vmem:[%s4791 + $0x304] sm:$0xf]
  %v4986 = vld [vmem:[%s4791 + $0x308] sm:$0xf]
  %v4987 = vld [vmem:[%s4791 + $0x30c] sm:$0xf]
  %v4988 = vld [vmem:[%s4791 + $0x310] sm:$0xf]
  %v4989 = vld [vmem:[%s4791 + $0x314] sm:$0xf]
  %v4990 = vld [vmem:[%s4791 + $0x318] sm:$0xf]
  %v4991 = vld [vmem:[%s4791 + $0x31c] sm:$0xf]
  %v5192 = vunpack.c.l.b16 %v4792
  %v5193 = vunpack.c.l.b16 %v4793
  %v5194 = vunpack.c.l.b16 %v4794
  %v5195 = vunpack.c.l.b16 %v4795
  %v5196 = vunpack.c.l.b16 %v4796
  %v5197 = vunpack.c.l.b16 %v4797
  %v5198 = vunpack.c.l.b16 %v4798
  %v5199 = vunpack.c.l.b16 %v4799
  %v5200 = vunpack.c.l.b16 %v4800
  %v5201 = vunpack.c.l.b16 %v4801
  %v5202 = vunpack.c.l.b16 %v4802
  %v5203 = vunpack.c.l.b16 %v4803
  %v5204 = vunpack.c.l.b16 %v4804
  %v5205 = vunpack.c.l.b16 %v4805
  %v5206 = vunpack.c.l.b16 %v4806
  %v5207 = vunpack.c.l.b16 %v4807
  %v5208 = vunpack.c.l.b16 %v4808
  %v5209 = vunpack.c.l.b16 %v4809
  %v5210 = vunpack.c.l.b16 %v4810
  %v5211 = vunpack.c.l.b16 %v4811
  %v5212 = vunpack.c.l.b16 %v4812
  %v5213 = vunpack.c.l.b16 %v4813
  %v5214 = vunpack.c.l.b16 %v4814
  %v5215 = vunpack.c.l.b16 %v4815
  %v5216 = vunpack.c.l.b16 %v4816
  %v5217 = vunpack.c.l.b16 %v4817
  %v5218 = vunpack.c.l.b16 %v4818
  %v5219 = vunpack.c.l.b16 %v4819
  %v5220 = vunpack.c.l.b16 %v4820
  %v5221 = vunpack.c.l.b16 %v4821
  %v5222 = vunpack.c.l.b16 %v4822
  %v5223 = vunpack.c.l.b16 %v4823
  %v5224 = vunpack.c.l.b16 %v4824
  %v5225 = vunpack.c.l.b16 %v4825
  %v5226 = vunpack.c.l.b16 %v4826
  %v5227 = vunpack.c.l.b16 %v4827
  %v5228 = vunpack.c.l.b16 %v4828
  %v5229 = vunpack.c.l.b16 %v4829
  %v5230 = vunpack.c.l.b16 %v4830
  %v5231 = vunpack.c.l.b16 %v4831
  %v5232 = vunpack.c.l.b16 %v4832
  %v5233 = vunpack.c.l.b16 %v4833
  %v5234 = vunpack.c.l.b16 %v4834
  %v5235 = vunpack.c.l.b16 %v4835
  %v5236 = vunpack.c.l.b16 %v4836
  %v5237 = vunpack.c.l.b16 %v4837
  %v5238 = vunpack.c.l.b16 %v4838
  %v5239 = vunpack.c.l.b16 %v4839
  %v5240 = vunpack.c.l.b16 %v4840
  %v5241 = vunpack.c.l.b16 %v4841
  %v5242 = vunpack.c.l.b16 %v4842
  %v5243 = vunpack.c.l.b16 %v4843
  %v5244 = vunpack.c.l.b16 %v4844
  %v5245 = vunpack.c.l.b16 %v4845
  %v5246 = vunpack.c.l.b16 %v4846
  %v5247 = vunpack.c.l.b16 %v4847
  %v5248 = vunpack.c.l.b16 %v4848
  %v5249 = vunpack.c.l.b16 %v4849
  %v5250 = vunpack.c.l.b16 %v4850
  %v5251 = vunpack.c.l.b16 %v4851
  %v5252 = vunpack.c.l.b16 %v4852
  %v5253 = vunpack.c.l.b16 %v4853
  %v5254 = vunpack.c.l.b16 %v4854
  %v5255 = vunpack.c.l.b16 %v4855
  %v5256 = vunpack.c.l.b16 %v4856
  %v5257 = vunpack.c.l.b16 %v4857
  %v5258 = vunpack.c.l.b16 %v4858
  %v5259 = vunpack.c.l.b16 %v4859
  %v5260 = vunpack.c.l.b16 %v4860
  %v5261 = vunpack.c.l.b16 %v4861
  %v5262 = vunpack.c.l.b16 %v4862
  %v5263 = vunpack.c.l.b16 %v4863
  %v5264 = vunpack.c.l.b16 %v4864
  %v5265 = vunpack.c.l.b16 %v4865
  %v5266 = vunpack.c.l.b16 %v4866
  %v5267 = vunpack.c.l.b16 %v4867
  %v5268 = vunpack.c.l.b16 %v4868
  %v5269 = vunpack.c.l.b16 %v4869
  %v5270 = vunpack.c.l.b16 %v4870
  %v5271 = vunpack.c.l.b16 %v4871
  %v5272 = vunpack.c.l.b16 %v4872
  %v5273 = vunpack.c.l.b16 %v4873
  %v5274 = vunpack.c.l.b16 %v4874
  %v5275 = vunpack.c.l.b16 %v4875
  %v5276 = vunpack.c.l.b16 %v4876
  %v5277 = vunpack.c.l.b16 %v4877
  %v5278 = vunpack.c.l.b16 %v4878
  %v5279 = vunpack.c.l.b16 %v4879
  %v5280 = vunpack.c.l.b16 %v4880
  %v5281 = vunpack.c.l.b16 %v4881
  %v5282 = vunpack.c.l.b16 %v4882
  %v5283 = vunpack.c.l.b16 %v4883
  %v5284 = vunpack.c.l.b16 %v4884
  %v5285 = vunpack.c.l.b16 %v4885
  %v5286 = vunpack.c.l.b16 %v4886
  %v5287 = vunpack.c.l.b16 %v4887
  %v5288 = vunpack.c.l.b16 %v4888
  %v5289 = vunpack.c.l.b16 %v4889
  %v5290 = vunpack.c.l.b16 %v4890
  %v5291 = vunpack.c.l.b16 %v4891
  %v5292 = vunpack.c.l.b16 %v4892
  %v5293 = vunpack.c.l.b16 %v4893
  %v5294 = vunpack.c.l.b16 %v4894
  %v5295 = vunpack.c.l.b16 %v4895
  %v5296 = vunpack.c.l.b16 %v4896
  %v5297 = vunpack.c.l.b16 %v4897
  %v5298 = vunpack.c.l.b16 %v4898
  %v5299 = vunpack.c.l.b16 %v4899
  %v5300 = vunpack.c.l.b16 %v4900
  %v5301 = vunpack.c.l.b16 %v4901
  %v5302 = vunpack.c.l.b16 %v4902
  %v5303 = vunpack.c.l.b16 %v4903
  %v5304 = vunpack.c.l.b16 %v4904
  %v5305 = vunpack.c.l.b16 %v4905
  %v5306 = vunpack.c.l.b16 %v4906
  %v5307 = vunpack.c.l.b16 %v4907
  %v5308 = vunpack.c.l.b16 %v4908
  %v5309 = vunpack.c.l.b16 %v4909
  %v5310 = vunpack.c.l.b16 %v4910
  %v5311 = vunpack.c.l.b16 %v4911
  %v5312 = vunpack.c.l.b16 %v4912
  %v5313 = vunpack.c.l.b16 %v4913
  %v5314 = vunpack.c.l.b16 %v4914
  %v5315 = vunpack.c.l.b16 %v4915
  %v5316 = vunpack.c.l.b16 %v4916
  %v5317 = vunpack.c.l.b16 %v4917
  %v5318 = vunpack.c.l.b16 %v4918
  %v5319 = vunpack.c.l.b16 %v4919
  %v5320 = vunpack.c.l.b16 %v4920
  %v5321 = vunpack.c.l.b16 %v4921
  %v5322 = vunpack.c.l.b16 %v4922
  %v5323 = vunpack.c.l.b16 %v4923
  %v5324 = vunpack.c.l.b16 %v4924
  %v5325 = vunpack.c.l.b16 %v4925
  %v5326 = vunpack.c.l.b16 %v4926
  %v5327 = vunpack.c.l.b16 %v4927
  %v5328 = vunpack.c.l.b16 %v4928
  %v5329 = vunpack.c.l.b16 %v4929
  %v5330 = vunpack.c.l.b16 %v4930
  %v5331 = vunpack.c.l.b16 %v4931
  %v5332 = vunpack.c.l.b16 %v4932
  %v5333 = vunpack.c.l.b16 %v4933
  %v5334 = vunpack.c.l.b16 %v4934
  %v5335 = vunpack.c.l.b16 %v4935
  %v5336 = vunpack.c.l.b16 %v4936
  %v5337 = vunpack.c.l.b16 %v4937
  %v5338 = vunpack.c.l.b16 %v4938
  %v5339 = vunpack.c.l.b16 %v4939
  %v5340 = vunpack.c.l.b16 %v4940
  %v5341 = vunpack.c.l.b16 %v4941
  %v5342 = vunpack.c.l.b16 %v4942
  %v5343 = vunpack.c.l.b16 %v4943
  %v5344 = vunpack.c.l.b16 %v4944
  %v5345 = vunpack.c.l.b16 %v4945
  %v5346 = vunpack.c.l.b16 %v4946
  %v5347 = vunpack.c.l.b16 %v4947
  %v5348 = vunpack.c.l.b16 %v4948
  %v5349 = vunpack.c.l.b16 %v4949
  %v5350 = vunpack.c.l.b16 %v4950
  %v5351 = vunpack.c.l.b16 %v4951
  %v5352 = vunpack.c.l.b16 %v4952
  %v5353 = vunpack.c.l.b16 %v4953
  %v5354 = vunpack.c.l.b16 %v4954
  %v5355 = vunpack.c.l.b16 %v4955
  %v5356 = vunpack.c.l.b16 %v4956
  %v5357 = vunpack.c.l.b16 %v4957
  %v5358 = vunpack.c.l.b16 %v4958
  %v5359 = vunpack.c.l.b16 %v4959
  %v5360 = vunpack.c.l.b16 %v4960
  %v5361 = vunpack.c.l.b16 %v4961
  %v5362 = vunpack.c.l.b16 %v4962
  %v5363 = vunpack.c.l.b16 %v4963
  %v5364 = vunpack.c.l.b16 %v4964
  %v5365 = vunpack.c.l.b16 %v4965
  %v5366 = vunpack.c.l.b16 %v4966
  %v5367 = vunpack.c.l.b16 %v4967
  %v5368 = vunpack.c.l.b16 %v4968
  %v5369 = vunpack.c.l.b16 %v4969
  %v5370 = vunpack.c.l.b16 %v4970
  %v5371 = vunpack.c.l.b16 %v4971
  %v5372 = vunpack.c.l.b16 %v4972
  %v5373 = vunpack.c.l.b16 %v4973
  %v5374 = vunpack.c.l.b16 %v4974
  %v5375 = vunpack.c.l.b16 %v4975
  %v5376 = vunpack.c.l.b16 %v4976
  %v5377 = vunpack.c.l.b16 %v4977
  %v5378 = vunpack.c.l.b16 %v4978
  %v5379 = vunpack.c.l.b16 %v4979
  %v5380 = vunpack.c.l.b16 %v4980
  %v5381 = vunpack.c.l.b16 %v4981
  %v5382 = vunpack.c.l.b16 %v4982
  %v5383 = vunpack.c.l.b16 %v4983
  %v5384 = vunpack.c.l.b16 %v4984
  %v5385 = vunpack.c.l.b16 %v4985
  %v5386 = vunpack.c.l.b16 %v4986
  %v5387 = vunpack.c.l.b16 %v4987
  %v5388 = vunpack.c.l.b16 %v4988
  %v5389 = vunpack.c.l.b16 %v4989
  %v5390 = vunpack.c.l.b16 %v4990
  %v5391 = vunpack.c.l.b16 %v4991
  %v5392 = vpack.c.b16 %v5193, %v5192
  %v5393 = vpack.c.b16 %v5195, %v5194
  %v5394 = vpack.c.b16 %v5197, %v5196
  %v5395 = vpack.c.b16 %v5199, %v5198
  %v5396 = vpack.c.b16 %v5201, %v5200
  %v5397 = vpack.c.b16 %v5203, %v5202
  %v5398 = vpack.c.b16 %v5205, %v5204
  %v5399 = vpack.c.b16 %v5207, %v5206
  %v5400 = vpack.c.b16 %v5209, %v5208
  %v5401 = vpack.c.b16 %v5211, %v5210
  %v5402 = vpack.c.b16 %v5213, %v5212
  %v5403 = vpack.c.b16 %v5215, %v5214
  %v5404 = vpack.c.b16 %v5217, %v5216
  %v5405 = vpack.c.b16 %v5219, %v5218
  %v5406 = vpack.c.b16 %v5221, %v5220
  %v5407 = vpack.c.b16 %v5223, %v5222
  %v5408 = vpack.c.b16 %v5225, %v5224
  %v5409 = vpack.c.b16 %v5227, %v5226
  %v5410 = vpack.c.b16 %v5229, %v5228
  %v5411 = vpack.c.b16 %v5231, %v5230
  %v5412 = vpack.c.b16 %v5233, %v5232
  %v5413 = vpack.c.b16 %v5235, %v5234
  %v5414 = vpack.c.b16 %v5237, %v5236
  %v5415 = vpack.c.b16 %v5239, %v5238
  %v5416 = vpack.c.b16 %v5241, %v5240
  %v5417 = vpack.c.b16 %v5243, %v5242
  %v5418 = vpack.c.b16 %v5245, %v5244
  %v5419 = vpack.c.b16 %v5247, %v5246
  %v5420 = vpack.c.b16 %v5249, %v5248
  %v5421 = vpack.c.b16 %v5251, %v5250
  %v5422 = vpack.c.b16 %v5253, %v5252
  %v5423 = vpack.c.b16 %v5255, %v5254
  %v5424 = vpack.c.b16 %v5257, %v5256
  %v5425 = vpack.c.b16 %v5259, %v5258
  %v5426 = vpack.c.b16 %v5261, %v5260
  %v5427 = vpack.c.b16 %v5263, %v5262
  %v5428 = vpack.c.b16 %v5265, %v5264
  %v5429 = vpack.c.b16 %v5267, %v5266
  %v5430 = vpack.c.b16 %v5269, %v5268
  %v5431 = vpack.c.b16 %v5271, %v5270
  %v5432 = vpack.c.b16 %v5273, %v5272
  %v5433 = vpack.c.b16 %v5275, %v5274
  %v5434 = vpack.c.b16 %v5277, %v5276
  %v5435 = vpack.c.b16 %v5279, %v5278
  %v5436 = vpack.c.b16 %v5281, %v5280
  %v5437 = vpack.c.b16 %v5283, %v5282
  %v5438 = vpack.c.b16 %v5285, %v5284
  %v5439 = vpack.c.b16 %v5287, %v5286
  %v5440 = vpack.c.b16 %v5289, %v5288
  %v5441 = vpack.c.b16 %v5291, %v5290
  %v5442 = vpack.c.b16 %v5293, %v5292
  %v5443 = vpack.c.b16 %v5295, %v5294
  %v5444 = vpack.c.b16 %v5297, %v5296
  %v5445 = vpack.c.b16 %v5299, %v5298
  %v5446 = vpack.c.b16 %v5301, %v5300
  %v5447 = vpack.c.b16 %v5303, %v5302
  %v5448 = vpack.c.b16 %v5305, %v5304
  %v5449 = vpack.c.b16 %v5307, %v5306
  %v5450 = vpack.c.b16 %v5309, %v5308
  %v5451 = vpack.c.b16 %v5311, %v5310
  %v5452 = vpack.c.b16 %v5313, %v5312
  %v5453 = vpack.c.b16 %v5315, %v5314
  %v5454 = vpack.c.b16 %v5317, %v5316
  %v5455 = vpack.c.b16 %v5319, %v5318
  %v5456 = vpack.c.b16 %v5321, %v5320
  %v5457 = vpack.c.b16 %v5323, %v5322
  %v5458 = vpack.c.b16 %v5325, %v5324
  %v5459 = vpack.c.b16 %v5327, %v5326
  %v5460 = vpack.c.b16 %v5329, %v5328
  %v5461 = vpack.c.b16 %v5331, %v5330
  %v5462 = vpack.c.b16 %v5333, %v5332
  %v5463 = vpack.c.b16 %v5335, %v5334
  %v5464 = vpack.c.b16 %v5337, %v5336
  %v5465 = vpack.c.b16 %v5339, %v5338
  %v5466 = vpack.c.b16 %v5341, %v5340
  %v5467 = vpack.c.b16 %v5343, %v5342
  %v5468 = vpack.c.b16 %v5345, %v5344
  %v5469 = vpack.c.b16 %v5347, %v5346
  %v5470 = vpack.c.b16 %v5349, %v5348
  %v5471 = vpack.c.b16 %v5351, %v5350
  %v5472 = vpack.c.b16 %v5353, %v5352
  %v5473 = vpack.c.b16 %v5355, %v5354
  %v5474 = vpack.c.b16 %v5357, %v5356
  %v5475 = vpack.c.b16 %v5359, %v5358
  %v5476 = vpack.c.b16 %v5361, %v5360
  %v5477 = vpack.c.b16 %v5363, %v5362
  %v5478 = vpack.c.b16 %v5365, %v5364
  %v5479 = vpack.c.b16 %v5367, %v5366
  %v5480 = vpack.c.b16 %v5369, %v5368
  %v5481 = vpack.c.b16 %v5371, %v5370
  %v5482 = vpack.c.b16 %v5373, %v5372
  %v5483 = vpack.c.b16 %v5375, %v5374
  %v5484 = vpack.c.b16 %v5377, %v5376
  %v5485 = vpack.c.b16 %v5379, %v5378
  %v5486 = vpack.c.b16 %v5381, %v5380
  %v5487 = vpack.c.b16 %v5383, %v5382
  %v5488 = vpack.c.b16 %v5385, %v5384
  %v5489 = vpack.c.b16 %v5387, %v5386
  %v5490 = vpack.c.b16 %v5389, %v5388
  %v5491 = vpack.c.b16 %v5391, %v5390
  %v5493 = vsel %vm754, %v5392, 0
  %v5496 = vsel %vm754, %v5393, 0
  %v5499 = vsel %vm754, %v5394, 0
  %v5502 = vsel %vm754, %v5395, 0
  %v5505 = vsel %vm754, %v5396, 0
  %v5508 = vsel %vm754, %v5397, 0
  %v5511 = vsel %vm754, %v5398, 0
  %v5514 = vsel %vm754, %v5399, 0
  %v5517 = vsel %vm754, %v5400, 0
  %v5520 = vsel %vm754, %v5401, 0
  %v5523 = vsel %vm754, %v5402, 0
  %v5526 = vsel %vm754, %v5403, 0
  %v5529 = vsel %vm754, %v5404, 0
  %v5532 = vsel %vm754, %v5405, 0
  %v5535 = vsel %vm754, %v5406, 0
  %v5538 = vsel %vm754, %v5407, 0
  %v5541 = vsel %vm754, %v5408, 0
  %v5544 = vsel %vm754, %v5409, 0
  %v5547 = vsel %vm754, %v5410, 0
  %v5550 = vsel %vm754, %v5411, 0
  %v5553 = vsel %vm754, %v5412, 0
  %v5556 = vsel %vm754, %v5413, 0
  %v5559 = vsel %vm754, %v5414, 0
  %v5562 = vsel %vm754, %v5415, 0
  %v5565 = vsel %vm754, %v5416, 0
  %v5568 = vsel %vm754, %v5417, 0
  %v5571 = vsel %vm754, %v5418, 0
  %v5574 = vsel %vm754, %v5419, 0
  %v5577 = vsel %vm754, %v5420, 0
  %v5580 = vsel %vm754, %v5421, 0
  %v5583 = vsel %vm754, %v5422, 0
  %v5586 = vsel %vm754, %v5423, 0
  %v5589 = vsel %vm754, %v5424, 0
  %v5592 = vsel %vm754, %v5425, 0
  %v5595 = vsel %vm754, %v5426, 0
  %v5598 = vsel %vm754, %v5427, 0
  %v5601 = vsel %vm754, %v5428, 0
  %v5604 = vsel %vm754, %v5429, 0
  %v5607 = vsel %vm754, %v5430, 0
  %v5610 = vsel %vm754, %v5431, 0
  %v5613 = vsel %vm754, %v5432, 0
  %v5616 = vsel %vm754, %v5433, 0
  %v5619 = vsel %vm754, %v5434, 0
  %v5622 = vsel %vm754, %v5435, 0
  %v5625 = vsel %vm754, %v5436, 0
  %v5628 = vsel %vm754, %v5437, 0
  %v5631 = vsel %vm754, %v5438, 0
  %v5634 = vsel %vm754, %v5439, 0
  %v5637 = vsel %vm754, %v5440, 0
  %v5640 = vsel %vm754, %v5441, 0
  %v5643 = vsel %vm754, %v5442, 0
  %v5646 = vsel %vm754, %v5443, 0
  %v5649 = vsel %vm754, %v5444, 0
  %v5652 = vsel %vm754, %v5445, 0
  %v5655 = vsel %vm754, %v5446, 0
  %v5658 = vsel %vm754, %v5447, 0
  %v5661 = vsel %vm754, %v5448, 0
  %v5664 = vsel %vm754, %v5449, 0
  %v5667 = vsel %vm754, %v5450, 0
  %v5670 = vsel %vm754, %v5451, 0
  %v5673 = vsel %vm754, %v5452, 0
  %v5676 = vsel %vm754, %v5453, 0
  %v5679 = vsel %vm754, %v5454, 0
  %v5682 = vsel %vm754, %v5455, 0
  %v5685 = vsel %vm754, %v5456, 0
  %v5688 = vsel %vm754, %v5457, 0
  %v5691 = vsel %vm754, %v5458, 0
  %v5694 = vsel %vm754, %v5459, 0
  %v5697 = vsel %vm754, %v5460, 0
  %v5700 = vsel %vm754, %v5461, 0
  %v5703 = vsel %vm754, %v5462, 0
  %v5706 = vsel %vm754, %v5463, 0
  %v5709 = vsel %vm754, %v5464, 0
  %v5712 = vsel %vm754, %v5465, 0
  %v5715 = vsel %vm754, %v5466, 0
  %v5718 = vsel %vm754, %v5467, 0
  %v5721 = vsel %vm754, %v5468, 0
  %v5724 = vsel %vm754, %v5469, 0
  %v5727 = vsel %vm754, %v5470, 0
  %v5730 = vsel %vm754, %v5471, 0
  %v5733 = vsel %vm754, %v5472, 0
  %v5736 = vsel %vm754, %v5473, 0
  %v5739 = vsel %vm754, %v5474, 0
  %v5742 = vsel %vm754, %v5475, 0
  %v5745 = vsel %vm754, %v5476, 0
  %v5748 = vsel %vm754, %v5477, 0
  %v5751 = vsel %vm754, %v5478, 0
  %v5754 = vsel %vm754, %v5479, 0
  %v5757 = vsel %vm754, %v5480, 0
  %v5760 = vsel %vm754, %v5481, 0
  %v5763 = vsel %vm754, %v5482, 0
  %v5766 = vsel %vm754, %v5483, 0
  %v5769 = vsel %vm754, %v5484, 0
  %v5772 = vsel %vm754, %v5485, 0
  %v5775 = vsel %vm754, %v5486, 0
  %v5778 = vsel %vm754, %v5487, 0
  %v5781 = vsel %vm754, %v5488, 0
  %v5784 = vsel %vm754, %v5489, 0
  %v5787 = vsel %vm754, %v5490, 0
  %v5790 = vsel %vm754, %v5491, 0
  %5792 = vmatpush.bf16.msra.mxu0 0
  %5793 = vmatpush.bf16.msra.mxu0 0
  %5794 = vmatpush.bf16.msra.mxu0 0
  %5795 = vmatpush.bf16.msra.mxu0 %v1060
  %5796 = vmatpush.bf16.msra.mxu0 %v748
  %5797 = vmatpush.bf16.msra.mxu0 %v747
  %5798 = vmatpush.bf16.msra.mxu0 %v746
  %5799 = vmatpush.bf16.msra.mxu0 %v745
  %5800 = vmatmul.bf16.gmra.mxu0 %v5493
  %v5801 = vpop.f32.mrf.mxu0
  %v5802 = vadd.f32 0.0, %v5801
  %v5803 = vpop.f32.mrf.mxu0
  %v5804 = vadd.f32 0.0, %v5803
  %5805 = vmatmul.bf16.gmra.mxu0 %v5496
  %v5806 = vpop.f32.mrf.mxu0
  %v5807 = vadd.f32 0.0, %v5806
  %v5808 = vpop.f32.mrf.mxu0
  %v5809 = vadd.f32 0.0, %v5808
  %5810 = vmatmul.bf16.gmra.mxu0 %v5499
  %v5811 = vpop.f32.mrf.mxu0
  %v5812 = vadd.f32 0.0, %v5811
  %v5813 = vpop.f32.mrf.mxu0
  %v5814 = vadd.f32 0.0, %v5813
  %5815 = vmatmul.bf16.gmra.mxu0 %v5502
  %v5816 = vpop.f32.mrf.mxu0
  %v5817 = vadd.f32 0.0, %v5816
  %v5818 = vpop.f32.mrf.mxu0
  %v5819 = vadd.f32 0.0, %v5818
  %5820 = vmatmul.bf16.gmra.mxu0 %v5505
  %v5821 = vpop.f32.mrf.mxu0
  %v5822 = vadd.f32 0.0, %v5821
  %v5823 = vpop.f32.mrf.mxu0
  %v5824 = vadd.f32 0.0, %v5823
  %5825 = vmatmul.bf16.gmra.mxu0 %v5508
  %v5826 = vpop.f32.mrf.mxu0
  %v5827 = vadd.f32 0.0, %v5826
  %v5828 = vpop.f32.mrf.mxu0
  %v5829 = vadd.f32 0.0, %v5828
  %5830 = vmatmul.bf16.gmra.mxu0 %v5511
  %v5831 = vpop.f32.mrf.mxu0
  %v5832 = vadd.f32 0.0, %v5831
  %v5833 = vpop.f32.mrf.mxu0
  %v5834 = vadd.f32 0.0, %v5833
  %5835 = vmatmul.bf16.gmra.mxu0 %v5514
  %v5836 = vpop.f32.mrf.mxu0
  %v5837 = vadd.f32 0.0, %v5836
  %v5838 = vpop.f32.mrf.mxu0
  %v5839 = vadd.f32 0.0, %v5838
  %5840 = vmatmul.bf16.gmra.mxu0 %v5517
  %v5841 = vpop.f32.mrf.mxu0
  %v5842 = vadd.f32 0.0, %v5841
  %v5843 = vpop.f32.mrf.mxu0
  %v5844 = vadd.f32 0.0, %v5843
  %5845 = vmatmul.bf16.gmra.mxu0 %v5520
  %v5846 = vpop.f32.mrf.mxu0
  %v5847 = vadd.f32 0.0, %v5846
  %v5848 = vpop.f32.mrf.mxu0
  %v5849 = vadd.f32 0.0, %v5848
  %5850 = vmatmul.bf16.gmra.mxu0 %v5523
  %v5851 = vpop.f32.mrf.mxu0
  %v5852 = vadd.f32 0.0, %v5851
  %v5853 = vpop.f32.mrf.mxu0
  %v5854 = vadd.f32 0.0, %v5853
  %5855 = vmatmul.bf16.gmra.mxu0 %v5526
  %v5856 = vpop.f32.mrf.mxu0
  %v5857 = vadd.f32 0.0, %v5856
  %v5858 = vpop.f32.mrf.mxu0
  %v5859 = vadd.f32 0.0, %v5858
  %5860 = vmatmul.bf16.gmra.mxu0 %v5529
  %v5861 = vpop.f32.mrf.mxu0
  %v5862 = vadd.f32 0.0, %v5861
  %v5863 = vpop.f32.mrf.mxu0
  %v5864 = vadd.f32 0.0, %v5863
  %5865 = vmatmul.bf16.gmra.mxu0 %v5532
  %v5866 = vpop.f32.mrf.mxu0
  %v5867 = vadd.f32 0.0, %v5866
  %v5868 = vpop.f32.mrf.mxu0
  %v5869 = vadd.f32 0.0, %v5868
  %5870 = vmatmul.bf16.gmra.mxu0 %v5535
  %v5871 = vpop.f32.mrf.mxu0
  %v5872 = vadd.f32 0.0, %v5871
  %v5873 = vpop.f32.mrf.mxu0
  %v5874 = vadd.f32 0.0, %v5873
  %5875 = vmatmul.bf16.gmra.mxu0 %v5538
  %v5876 = vpop.f32.mrf.mxu0
  %v5877 = vadd.f32 0.0, %v5876
  %v5878 = vpop.f32.mrf.mxu0
  %v5879 = vadd.f32 0.0, %v5878
  %5880 = vmatmul.bf16.gmra.mxu0 %v5541
  %v5881 = vpop.f32.mrf.mxu0
  %v5882 = vadd.f32 0.0, %v5881
  %v5883 = vpop.f32.mrf.mxu0
  %v5884 = vadd.f32 0.0, %v5883
  %5885 = vmatmul.bf16.gmra.mxu0 %v5544
  %v5886 = vpop.f32.mrf.mxu0
  %v5887 = vadd.f32 0.0, %v5886
  %v5888 = vpop.f32.mrf.mxu0
  %v5889 = vadd.f32 0.0, %v5888
  %5890 = vmatmul.bf16.gmra.mxu0 %v5547
  %v5891 = vpop.f32.mrf.mxu0
  %v5892 = vadd.f32 0.0, %v5891
  %v5893 = vpop.f32.mrf.mxu0
  %v5894 = vadd.f32 0.0, %v5893
  %5895 = vmatmul.bf16.gmra.mxu0 %v5550
  %v5896 = vpop.f32.mrf.mxu0
  %v5897 = vadd.f32 0.0, %v5896
  %v5898 = vpop.f32.mrf.mxu0
  %v5899 = vadd.f32 0.0, %v5898
  %5900 = vmatmul.bf16.gmra.mxu0 %v5553
  %v5901 = vpop.f32.mrf.mxu0
  %v5902 = vadd.f32 0.0, %v5901
  %v5903 = vpop.f32.mrf.mxu0
  %v5904 = vadd.f32 0.0, %v5903
  %5905 = vmatmul.bf16.gmra.mxu0 %v5556
  %v5906 = vpop.f32.mrf.mxu0
  %v5907 = vadd.f32 0.0, %v5906
  %v5908 = vpop.f32.mrf.mxu0
  %v5909 = vadd.f32 0.0, %v5908
  %5910 = vmatmul.bf16.gmra.mxu0 %v5559
  %v5911 = vpop.f32.mrf.mxu0
  %v5912 = vadd.f32 0.0, %v5911
  %v5913 = vpop.f32.mrf.mxu0
  %v5914 = vadd.f32 0.0, %v5913
  %5915 = vmatmul.bf16.gmra.mxu0 %v5562
  %v5916 = vpop.f32.mrf.mxu0
  %v5917 = vadd.f32 0.0, %v5916
  %v5918 = vpop.f32.mrf.mxu0
  %v5919 = vadd.f32 0.0, %v5918
  %5920 = vmatmul.bf16.gmra.mxu0 %v5565
  %v5921 = vpop.f32.mrf.mxu0
  %v5922 = vadd.f32 0.0, %v5921
  %v5923 = vpop.f32.mrf.mxu0
  %v5924 = vadd.f32 0.0, %v5923
  %5925 = vmatmul.bf16.gmra.mxu0 %v5568
  %v5926 = vpop.f32.mrf.mxu0
  %v5927 = vadd.f32 0.0, %v5926
  %v5928 = vpop.f32.mrf.mxu0
  %v5929 = vadd.f32 0.0, %v5928
  %5930 = vmatmul.bf16.gmra.mxu0 %v5571
  %v5931 = vpop.f32.mrf.mxu0
  %v5932 = vadd.f32 0.0, %v5931
  %v5933 = vpop.f32.mrf.mxu0
  %v5934 = vadd.f32 0.0, %v5933
  %5935 = vmatmul.bf16.gmra.mxu0 %v5574
  %v5936 = vpop.f32.mrf.mxu0
  %v5937 = vadd.f32 0.0, %v5936
  %v5938 = vpop.f32.mrf.mxu0
  %v5939 = vadd.f32 0.0, %v5938
  %5940 = vmatmul.bf16.gmra.mxu0 %v5577
  %v5941 = vpop.f32.mrf.mxu0
  %v5942 = vadd.f32 0.0, %v5941
  %v5943 = vpop.f32.mrf.mxu0
  %v5944 = vadd.f32 0.0, %v5943
  %5945 = vmatmul.bf16.gmra.mxu0 %v5580
  %v5946 = vpop.f32.mrf.mxu0
  %v5947 = vadd.f32 0.0, %v5946
  %v5948 = vpop.f32.mrf.mxu0
  %v5949 = vadd.f32 0.0, %v5948
  %5950 = vmatmul.bf16.gmra.mxu0 %v5583
  %v5951 = vpop.f32.mrf.mxu0
  %v5952 = vadd.f32 0.0, %v5951
  %v5953 = vpop.f32.mrf.mxu0
  %v5954 = vadd.f32 0.0, %v5953
  %5955 = vmatmul.bf16.gmra.mxu0 %v5586
  %v5956 = vpop.f32.mrf.mxu0
  %v5957 = vadd.f32 0.0, %v5956
  %v5958 = vpop.f32.mrf.mxu0
  %v5959 = vadd.f32 0.0, %v5958
  %5960 = vmatmul.bf16.gmra.mxu0 %v5589
  %v5961 = vpop.f32.mrf.mxu0
  %v5962 = vadd.f32 0.0, %v5961
  %v5963 = vpop.f32.mrf.mxu0
  %v5964 = vadd.f32 0.0, %v5963
  %5965 = vmatmul.bf16.gmra.mxu0 %v5592
  %v5966 = vpop.f32.mrf.mxu0
  %v5967 = vadd.f32 0.0, %v5966
  %v5968 = vpop.f32.mrf.mxu0
  %v5969 = vadd.f32 0.0, %v5968
  %5970 = vmatmul.bf16.gmra.mxu0 %v5595
  %v5971 = vpop.f32.mrf.mxu0
  %v5972 = vadd.f32 0.0, %v5971
  %v5973 = vpop.f32.mrf.mxu0
  %v5974 = vadd.f32 0.0, %v5973
  %5975 = vmatmul.bf16.gmra.mxu0 %v5598
  %v5976 = vpop.f32.mrf.mxu0
  %v5977 = vadd.f32 0.0, %v5976
  %v5978 = vpop.f32.mrf.mxu0
  %v5979 = vadd.f32 0.0, %v5978
  %5980 = vmatmul.bf16.gmra.mxu0 %v5601
  %v5981 = vpop.f32.mrf.mxu0
  %v5982 = vadd.f32 0.0, %v5981
  %v5983 = vpop.f32.mrf.mxu0
  %v5984 = vadd.f32 0.0, %v5983
  %5985 = vmatmul.bf16.gmra.mxu0 %v5604
  %v5986 = vpop.f32.mrf.mxu0
  %v5987 = vadd.f32 0.0, %v5986
  %v5988 = vpop.f32.mrf.mxu0
  %v5989 = vadd.f32 0.0, %v5988
  %5990 = vmatmul.bf16.gmra.mxu0 %v5607
  %v5991 = vpop.f32.mrf.mxu0
  %v5992 = vadd.f32 0.0, %v5991
  %v5993 = vpop.f32.mrf.mxu0
  %v5994 = vadd.f32 0.0, %v5993
  %5995 = vmatmul.bf16.gmra.mxu0 %v5610
  %v5996 = vpop.f32.mrf.mxu0
  %v5997 = vadd.f32 0.0, %v5996
  %v5998 = vpop.f32.mrf.mxu0
  %v5999 = vadd.f32 0.0, %v5998
  %6000 = vmatmul.bf16.gmra.mxu0 %v5613
  %v6001 = vpop.f32.mrf.mxu0
  %v6002 = vadd.f32 0.0, %v6001
  %v6003 = vpop.f32.mrf.mxu0
  %v6004 = vadd.f32 0.0, %v6003
  %6005 = vmatmul.bf16.gmra.mxu0 %v5616
  %v6006 = vpop.f32.mrf.mxu0
  %v6007 = vadd.f32 0.0, %v6006
  %v6008 = vpop.f32.mrf.mxu0
  %v6009 = vadd.f32 0.0, %v6008
  %6010 = vmatmul.bf16.gmra.mxu0 %v5619
  %v6011 = vpop.f32.mrf.mxu0
  %v6012 = vadd.f32 0.0, %v6011
  %v6013 = vpop.f32.mrf.mxu0
  %v6014 = vadd.f32 0.0, %v6013
  %6015 = vmatmul.bf16.gmra.mxu0 %v5622
  %v6016 = vpop.f32.mrf.mxu0
  %v6017 = vadd.f32 0.0, %v6016
  %v6018 = vpop.f32.mrf.mxu0
  %v6019 = vadd.f32 0.0, %v6018
  %6020 = vmatmul.bf16.gmra.mxu0 %v5625
  %v6021 = vpop.f32.mrf.mxu0
  %v6022 = vadd.f32 0.0, %v6021
  %v6023 = vpop.f32.mrf.mxu0
  %v6024 = vadd.f32 0.0, %v6023
  %6025 = vmatmul.bf16.gmra.mxu0 %v5628
  %v6026 = vpop.f32.mrf.mxu0
  %v6027 = vadd.f32 0.0, %v6026
  %v6028 = vpop.f32.mrf.mxu0
  %v6029 = vadd.f32 0.0, %v6028
  %6030 = vmatmul.bf16.gmra.mxu0 %v5631
  %v6031 = vpop.f32.mrf.mxu0
  %v6032 = vadd.f32 0.0, %v6031
  %v6033 = vpop.f32.mrf.mxu0
  %v6034 = vadd.f32 0.0, %v6033
  %6035 = vmatmul.bf16.gmra.mxu0 %v5634
  %v6036 = vpop.f32.mrf.mxu0
  %v6037 = vadd.f32 0.0, %v6036
  %v6038 = vpop.f32.mrf.mxu0
  %v6039 = vadd.f32 0.0, %v6038
  %6040 = vmatmul.bf16.gmra.mxu0 %v5637
  %v6041 = vpop.f32.mrf.mxu0
  %v6042 = vadd.f32 0.0, %v6041
  %v6043 = vpop.f32.mrf.mxu0
  %v6044 = vadd.f32 0.0, %v6043
  %6045 = vmatmul.bf16.gmra.mxu0 %v5640
  %v6046 = vpop.f32.mrf.mxu0
  %v6047 = vadd.f32 0.0, %v6046
  %v6048 = vpop.f32.mrf.mxu0
  %v6049 = vadd.f32 0.0, %v6048
  %6050 = vmatmul.bf16.gmra.mxu0 %v5643
  %v6051 = vpop.f32.mrf.mxu0
  %v6052 = vadd.f32 0.0, %v6051
  %v6053 = vpop.f32.mrf.mxu0
  %v6054 = vadd.f32 0.0, %v6053
  %6055 = vmatmul.bf16.gmra.mxu0 %v5646
  %v6056 = vpop.f32.mrf.mxu0
  %v6057 = vadd.f32 0.0, %v6056
  %v6058 = vpop.f32.mrf.mxu0
  %v6059 = vadd.f32 0.0, %v6058
  %6060 = vmatmul.bf16.gmra.mxu0 %v5649
  %v6061 = vpop.f32.mrf.mxu0
  %v6062 = vadd.f32 0.0, %v6061
  %v6063 = vpop.f32.mrf.mxu0
  %v6064 = vadd.f32 0.0, %v6063
  %6065 = vmatmul.bf16.gmra.mxu0 %v5652
  %v6066 = vpop.f32.mrf.mxu0
  %v6067 = vadd.f32 0.0, %v6066
  %v6068 = vpop.f32.mrf.mxu0
  %v6069 = vadd.f32 0.0, %v6068
  %6070 = vmatmul.bf16.gmra.mxu0 %v5655
  %v6071 = vpop.f32.mrf.mxu0
  %v6072 = vadd.f32 0.0, %v6071
  %v6073 = vpop.f32.mrf.mxu0
  %v6074 = vadd.f32 0.0, %v6073
  %6075 = vmatmul.bf16.gmra.mxu0 %v5658
  %v6076 = vpop.f32.mrf.mxu0
  %v6077 = vadd.f32 0.0, %v6076
  %v6078 = vpop.f32.mrf.mxu0
  %v6079 = vadd.f32 0.0, %v6078
  %6080 = vmatmul.bf16.gmra.mxu0 %v5661
  %v6081 = vpop.f32.mrf.mxu0
  %v6082 = vadd.f32 0.0, %v6081
  %v6083 = vpop.f32.mrf.mxu0
  %v6084 = vadd.f32 0.0, %v6083
  %6085 = vmatmul.bf16.gmra.mxu0 %v5664
  %v6086 = vpop.f32.mrf.mxu0
  %v6087 = vadd.f32 0.0, %v6086
  %v6088 = vpop.f32.mrf.mxu0
  %v6089 = vadd.f32 0.0, %v6088
  %6090 = vmatmul.bf16.gmra.mxu0 %v5667
  %v6091 = vpop.f32.mrf.mxu0
  %v6092 = vadd.f32 0.0, %v6091
  %v6093 = vpop.f32.mrf.mxu0
  %v6094 = vadd.f32 0.0, %v6093
  %6095 = vmatmul.bf16.gmra.mxu0 %v5670
  %v6096 = vpop.f32.mrf.mxu0
  %v6097 = vadd.f32 0.0, %v6096
  %v6098 = vpop.f32.mrf.mxu0
  %v6099 = vadd.f32 0.0, %v6098
  %6100 = vmatmul.bf16.gmra.mxu0 %v5673
  %v6101 = vpop.f32.mrf.mxu0
  %v6102 = vadd.f32 0.0, %v6101
  %v6103 = vpop.f32.mrf.mxu0
  %v6104 = vadd.f32 0.0, %v6103
  %6105 = vmatmul.bf16.gmra.mxu0 %v5676
  %v6106 = vpop.f32.mrf.mxu0
  %v6107 = vadd.f32 0.0, %v6106
  %v6108 = vpop.f32.mrf.mxu0
  %v6109 = vadd.f32 0.0, %v6108
  %6110 = vmatmul.bf16.gmra.mxu0 %v5679
  %v6111 = vpop.f32.mrf.mxu0
  %v6112 = vadd.f32 0.0, %v6111
  %v6113 = vpop.f32.mrf.mxu0
  %v6114 = vadd.f32 0.0, %v6113
  %6115 = vmatmul.bf16.gmra.mxu0 %v5682
  %v6116 = vpop.f32.mrf.mxu0
  %v6117 = vadd.f32 0.0, %v6116
  %v6118 = vpop.f32.mrf.mxu0
  %v6119 = vadd.f32 0.0, %v6118
  %6120 = vmatmul.bf16.gmra.mxu0 %v5685
  %v6121 = vpop.f32.mrf.mxu0
  %v6122 = vadd.f32 0.0, %v6121
  %v6123 = vpop.f32.mrf.mxu0
  %v6124 = vadd.f32 0.0, %v6123
  %6125 = vmatmul.bf16.gmra.mxu0 %v5688
  %v6126 = vpop.f32.mrf.mxu0
  %v6127 = vadd.f32 0.0, %v6126
  %v6128 = vpop.f32.mrf.mxu0
  %v6129 = vadd.f32 0.0, %v6128
  %6130 = vmatmul.bf16.gmra.mxu0 %v5691
  %v6131 = vpop.f32.mrf.mxu0
  %v6132 = vadd.f32 0.0, %v6131
  %v6133 = vpop.f32.mrf.mxu0
  %v6134 = vadd.f32 0.0, %v6133
  %6135 = vmatmul.bf16.gmra.mxu0 %v5694
  %v6136 = vpop.f32.mrf.mxu0
  %v6137 = vadd.f32 0.0, %v6136
  %v6138 = vpop.f32.mrf.mxu0
  %v6139 = vadd.f32 0.0, %v6138
  %6140 = vmatmul.bf16.gmra.mxu0 %v5697
  %v6141 = vpop.f32.mrf.mxu0
  %v6142 = vadd.f32 0.0, %v6141
  %v6143 = vpop.f32.mrf.mxu0
  %v6144 = vadd.f32 0.0, %v6143
  %6145 = vmatmul.bf16.gmra.mxu0 %v5700
  %v6146 = vpop.f32.mrf.mxu0
  %v6147 = vadd.f32 0.0, %v6146
  %v6148 = vpop.f32.mrf.mxu0
  %v6149 = vadd.f32 0.0, %v6148
  %6150 = vmatmul.bf16.gmra.mxu0 %v5703
  %v6151 = vpop.f32.mrf.mxu0
  %v6152 = vadd.f32 0.0, %v6151
  %v6153 = vpop.f32.mrf.mxu0
  %v6154 = vadd.f32 0.0, %v6153
  %6155 = vmatmul.bf16.gmra.mxu0 %v5706
  %v6156 = vpop.f32.mrf.mxu0
  %v6157 = vadd.f32 0.0, %v6156
  %v6158 = vpop.f32.mrf.mxu0
  %v6159 = vadd.f32 0.0, %v6158
  %6160 = vmatmul.bf16.gmra.mxu0 %v5709
  %v6161 = vpop.f32.mrf.mxu0
  %v6162 = vadd.f32 0.0, %v6161
  %v6163 = vpop.f32.mrf.mxu0
  %v6164 = vadd.f32 0.0, %v6163
  %6165 = vmatmul.bf16.gmra.mxu0 %v5712
  %v6166 = vpop.f32.mrf.mxu0
  %v6167 = vadd.f32 0.0, %v6166
  %v6168 = vpop.f32.mrf.mxu0
  %v6169 = vadd.f32 0.0, %v6168
  %6170 = vmatmul.bf16.gmra.mxu0 %v5715
  %v6171 = vpop.f32.mrf.mxu0
  %v6172 = vadd.f32 0.0, %v6171
  %v6173 = vpop.f32.mrf.mxu0
  %v6174 = vadd.f32 0.0, %v6173
  %6175 = vmatmul.bf16.gmra.mxu0 %v5718
  %v6176 = vpop.f32.mrf.mxu0
  %v6177 = vadd.f32 0.0, %v6176
  %v6178 = vpop.f32.mrf.mxu0
  %v6179 = vadd.f32 0.0, %v6178
  %6180 = vmatmul.bf16.gmra.mxu0 %v5721
  %v6181 = vpop.f32.mrf.mxu0
  %v6182 = vadd.f32 0.0, %v6181
  %v6183 = vpop.f32.mrf.mxu0
  %v6184 = vadd.f32 0.0, %v6183
  %6185 = vmatmul.bf16.gmra.mxu0 %v5724
  %v6186 = vpop.f32.mrf.mxu0
  %v6187 = vadd.f32 0.0, %v6186
  %v6188 = vpop.f32.mrf.mxu0
  %v6189 = vadd.f32 0.0, %v6188
  %6190 = vmatmul.bf16.gmra.mxu0 %v5727
  %v6191 = vpop.f32.mrf.mxu0
  %v6192 = vadd.f32 0.0, %v6191
  %v6193 = vpop.f32.mrf.mxu0
  %v6194 = vadd.f32 0.0, %v6193
  %6195 = vmatmul.bf16.gmra.mxu0 %v5730
  %v6196 = vpop.f32.mrf.mxu0
  %v6197 = vadd.f32 0.0, %v6196
  %v6198 = vpop.f32.mrf.mxu0
  %v6199 = vadd.f32 0.0, %v6198
  %6200 = vmatmul.bf16.gmra.mxu0 %v5733
  %v6201 = vpop.f32.mrf.mxu0
  %v6202 = vadd.f32 0.0, %v6201
  %v6203 = vpop.f32.mrf.mxu0
  %v6204 = vadd.f32 0.0, %v6203
  %6205 = vmatmul.bf16.gmra.mxu0 %v5736
  %v6206 = vpop.f32.mrf.mxu0
  %v6207 = vadd.f32 0.0, %v6206
  %v6208 = vpop.f32.mrf.mxu0
  %v6209 = vadd.f32 0.0, %v6208
  %6210 = vmatmul.bf16.gmra.mxu0 %v5739
  %v6211 = vpop.f32.mrf.mxu0
  %v6212 = vadd.f32 0.0, %v6211
  %v6213 = vpop.f32.mrf.mxu0
  %v6214 = vadd.f32 0.0, %v6213
  %6215 = vmatmul.bf16.gmra.mxu0 %v5742
  %v6216 = vpop.f32.mrf.mxu0
  %v6217 = vadd.f32 0.0, %v6216
  %v6218 = vpop.f32.mrf.mxu0
  %v6219 = vadd.f32 0.0, %v6218
  %6220 = vmatmul.bf16.gmra.mxu0 %v5745
  %v6221 = vpop.f32.mrf.mxu0
  %v6222 = vadd.f32 0.0, %v6221
  %v6223 = vpop.f32.mrf.mxu0
  %v6224 = vadd.f32 0.0, %v6223
  %6225 = vmatmul.bf16.gmra.mxu0 %v5748
  %v6226 = vpop.f32.mrf.mxu0
  %v6227 = vadd.f32 0.0, %v6226
  %v6228 = vpop.f32.mrf.mxu0
  %v6229 = vadd.f32 0.0, %v6228
  %6230 = vmatmul.bf16.gmra.mxu0 %v5751
  %v6231 = vpop.f32.mrf.mxu0
  %v6232 = vadd.f32 0.0, %v6231
  %v6233 = vpop.f32.mrf.mxu0
  %v6234 = vadd.f32 0.0, %v6233
  %6235 = vmatmul.bf16.gmra.mxu0 %v5754
  %v6236 = vpop.f32.mrf.mxu0
  %v6237 = vadd.f32 0.0, %v6236
  %v6238 = vpop.f32.mrf.mxu0
  %v6239 = vadd.f32 0.0, %v6238
  %6240 = vmatmul.bf16.gmra.mxu0 %v5757
  %v6241 = vpop.f32.mrf.mxu0
  %v6242 = vadd.f32 0.0, %v6241
  %v6243 = vpop.f32.mrf.mxu0
  %v6244 = vadd.f32 0.0, %v6243
  %6245 = vmatmul.bf16.gmra.mxu0 %v5760
  %v6246 = vpop.f32.mrf.mxu0
  %v6247 = vadd.f32 0.0, %v6246
  %v6248 = vpop.f32.mrf.mxu0
  %v6249 = vadd.f32 0.0, %v6248
  %6250 = vmatmul.bf16.gmra.mxu0 %v5763
  %v6251 = vpop.f32.mrf.mxu0
  %v6252 = vadd.f32 0.0, %v6251
  %v6253 = vpop.f32.mrf.mxu0
  %v6254 = vadd.f32 0.0, %v6253
  %6255 = vmatmul.bf16.gmra.mxu0 %v5766
  %v6256 = vpop.f32.mrf.mxu0
  %v6257 = vadd.f32 0.0, %v6256
  %v6258 = vpop.f32.mrf.mxu0
  %v6259 = vadd.f32 0.0, %v6258
  %6260 = vmatmul.bf16.gmra.mxu0 %v5769
  %v6261 = vpop.f32.mrf.mxu0
  %v6262 = vadd.f32 0.0, %v6261
  %v6263 = vpop.f32.mrf.mxu0
  %v6264 = vadd.f32 0.0, %v6263
  %6265 = vmatmul.bf16.gmra.mxu0 %v5772
  %v6266 = vpop.f32.mrf.mxu0
  %v6267 = vadd.f32 0.0, %v6266
  %v6268 = vpop.f32.mrf.mxu0
  %v6269 = vadd.f32 0.0, %v6268
  %6270 = vmatmul.bf16.gmra.mxu0 %v5775
  %v6271 = vpop.f32.mrf.mxu0
  %v6272 = vadd.f32 0.0, %v6271
  %v6273 = vpop.f32.mrf.mxu0
  %v6274 = vadd.f32 0.0, %v6273
  %6275 = vmatmul.bf16.gmra.mxu0 %v5778
  %v6276 = vpop.f32.mrf.mxu0
  %v6277 = vadd.f32 0.0, %v6276
  %v6278 = vpop.f32.mrf.mxu0
  %v6279 = vadd.f32 0.0, %v6278
  %6280 = vmatmul.bf16.gmra.mxu0 %v5781
  %v6281 = vpop.f32.mrf.mxu0
  %v6282 = vadd.f32 0.0, %v6281
  %v6283 = vpop.f32.mrf.mxu0
  %v6284 = vadd.f32 0.0, %v6283
  %6285 = vmatmul.bf16.gmra.mxu0 %v5784
  %v6286 = vpop.f32.mrf.mxu0
  %v6287 = vadd.f32 0.0, %v6286
  %v6288 = vpop.f32.mrf.mxu0
  %v6289 = vadd.f32 0.0, %v6288
  %6290 = vmatmul.bf16.gmra.mxu0 %v5787
  %v6291 = vpop.f32.mrf.mxu0
  %v6292 = vadd.f32 0.0, %v6291
  %v6293 = vpop.f32.mrf.mxu0
  %v6294 = vadd.f32 0.0, %v6293
  %6295 = vmatmul.bf16.gmra.mxu0 %v5790
  %v6296 = vpop.f32.mrf.mxu0
  %v6297 = vadd.f32 0.0, %v6296
  %v6298 = vpop.f32.mrf.mxu0
  %v6299 = vadd.f32 0.0, %v6298
  %6300 = vdwg.mxu0
  %v6301 = vmax.f32 %v4292, %v5802
  %v6302 = vmax.f32 %v4294, %v5804
  %v6303 = vmax.f32 %v4297, %v5807
  %v6304 = vmax.f32 %v4299, %v5809
  %v6305 = vmax.f32 %v4302, %v5812
  %v6306 = vmax.f32 %v4304, %v5814
  %v6307 = vmax.f32 %v4307, %v5817
  %v6308 = vmax.f32 %v4309, %v5819
  %v6309 = vmax.f32 %v4312, %v5822
  %v6310 = vmax.f32 %v4314, %v5824
  %v6311 = vmax.f32 %v4317, %v5827
  %v6312 = vmax.f32 %v4319, %v5829
  %v6313 = vmax.f32 %v4322, %v5832
  %v6314 = vmax.f32 %v4324, %v5834
  %v6315 = vmax.f32 %v4327, %v5837
  %v6316 = vmax.f32 %v4329, %v5839
  %v6317 = vmax.f32 %v4332, %v5842
  %v6318 = vmax.f32 %v4334, %v5844
  %v6319 = vmax.f32 %v4337, %v5847
  %v6320 = vmax.f32 %v4339, %v5849
  %v6321 = vmax.f32 %v4342, %v5852
  %v6322 = vmax.f32 %v4344, %v5854
  %v6323 = vmax.f32 %v4347, %v5857
  %v6324 = vmax.f32 %v4349, %v5859
  %v6325 = vmax.f32 %v4352, %v5862
  %v6326 = vmax.f32 %v4354, %v5864
  %v6327 = vmax.f32 %v4357, %v5867
  %v6328 = vmax.f32 %v4359, %v5869
  %v6329 = vmax.f32 %v4362, %v5872
  %v6330 = vmax.f32 %v4364, %v5874
  %v6331 = vmax.f32 %v4367, %v5877
  %v6332 = vmax.f32 %v4369, %v5879
  %v6333 = vmax.f32 %v4372, %v5882
  %v6334 = vmax.f32 %v4374, %v5884
  %v6335 = vmax.f32 %v4377, %v5887
  %v6336 = vmax.f32 %v4379, %v5889
  %v6337 = vmax.f32 %v4382, %v5892
  %v6338 = vmax.f32 %v4384, %v5894
  %v6339 = vmax.f32 %v4387, %v5897
  %v6340 = vmax.f32 %v4389, %v5899
  %v6341 = vmax.f32 %v4392, %v5902
  %v6342 = vmax.f32 %v4394, %v5904
  %v6343 = vmax.f32 %v4397, %v5907
  %v6344 = vmax.f32 %v4399, %v5909
  %v6345 = vmax.f32 %v4402, %v5912
  %v6346 = vmax.f32 %v4404, %v5914
  %v6347 = vmax.f32 %v4407, %v5917
  %v6348 = vmax.f32 %v4409, %v5919
  %v6349 = vmax.f32 %v4412, %v5922
  %v6350 = vmax.f32 %v4414, %v5924
  %v6351 = vmax.f32 %v4417, %v5927
  %v6352 = vmax.f32 %v4419, %v5929
  %v6353 = vmax.f32 %v4422, %v5932
  %v6354 = vmax.f32 %v4424, %v5934
  %v6355 = vmax.f32 %v4427, %v5937
  %v6356 = vmax.f32 %v4429, %v5939
  %v6357 = vmax.f32 %v4432, %v5942
  %v6358 = vmax.f32 %v4434, %v5944
  %v6359 = vmax.f32 %v4437, %v5947
  %v6360 = vmax.f32 %v4439, %v5949
  %v6361 = vmax.f32 %v4442, %v5952
  %v6362 = vmax.f32 %v4444, %v5954
  %v6363 = vmax.f32 %v4447, %v5957
  %v6364 = vmax.f32 %v4449, %v5959
  %v6365 = vmax.f32 %v4452, %v5962
  %v6366 = vmax.f32 %v4454, %v5964
  %v6367 = vmax.f32 %v4457, %v5967
  %v6368 = vmax.f32 %v4459, %v5969
  %v6369 = vmax.f32 %v4462, %v5972
  %v6370 = vmax.f32 %v4464, %v5974
  %v6371 = vmax.f32 %v4467, %v5977
  %v6372 = vmax.f32 %v4469, %v5979
  %v6373 = vmax.f32 %v4472, %v5982
  %v6374 = vmax.f32 %v4474, %v5984
  %v6375 = vmax.f32 %v4477, %v5987
  %v6376 = vmax.f32 %v4479, %v5989
  %v6377 = vmax.f32 %v4482, %v5992
  %v6378 = vmax.f32 %v4484, %v5994
  %v6379 = vmax.f32 %v4487, %v5997
  %v6380 = vmax.f32 %v4489, %v5999
  %v6381 = vmax.f32 %v4492, %v6002
  %v6382 = vmax.f32 %v4494, %v6004
  %v6383 = vmax.f32 %v4497, %v6007
  %v6384 = vmax.f32 %v4499, %v6009
  %v6385 = vmax.f32 %v4502, %v6012
  %v6386 = vmax.f32 %v4504, %v6014
  %v6387 = vmax.f32 %v4507, %v6017
  %v6388 = vmax.f32 %v4509, %v6019
  %v6389 = vmax.f32 %v4512, %v6022
  %v6390 = vmax.f32 %v4514, %v6024
  %v6391 = vmax.f32 %v4517, %v6027
  %v6392 = vmax.f32 %v4519, %v6029
  %v6393 = vmax.f32 %v4522, %v6032
  %v6394 = vmax.f32 %v4524, %v6034
  %v6395 = vmax.f32 %v4527, %v6037
  %v6396 = vmax.f32 %v4529, %v6039
  %v6397 = vmax.f32 %v4532, %v6042
  %v6398 = vmax.f32 %v4534, %v6044
  %v6399 = vmax.f32 %v4537, %v6047
  %v6400 = vmax.f32 %v4539, %v6049
  %v6401 = vmax.f32 %v4542, %v6052
  %v6402 = vmax.f32 %v4544, %v6054
  %v6403 = vmax.f32 %v4547, %v6057
  %v6404 = vmax.f32 %v4549, %v6059
  %v6405 = vmax.f32 %v4552, %v6062
  %v6406 = vmax.f32 %v4554, %v6064
  %v6407 = vmax.f32 %v4557, %v6067
  %v6408 = vmax.f32 %v4559, %v6069
  %v6409 = vmax.f32 %v4562, %v6072
  %v6410 = vmax.f32 %v4564, %v6074
  %v6411 = vmax.f32 %v4567, %v6077
  %v6412 = vmax.f32 %v4569, %v6079
  %v6413 = vmax.f32 %v4572, %v6082
  %v6414 = vmax.f32 %v4574, %v6084
  %v6415 = vmax.f32 %v4577, %v6087
  %v6416 = vmax.f32 %v4579, %v6089
  %v6417 = vmax.f32 %v4582, %v6092
  %v6418 = vmax.f32 %v4584, %v6094
  %v6419 = vmax.f32 %v4587, %v6097
  %v6420 = vmax.f32 %v4589, %v6099
  %v6421 = vmax.f32 %v4592, %v6102
  %v6422 = vmax.f32 %v4594, %v6104
  %v6423 = vmax.f32 %v4597, %v6107
  %v6424 = vmax.f32 %v4599, %v6109
  %v6425 = vmax.f32 %v4602, %v6112
  %v6426 = vmax.f32 %v4604, %v6114
  %v6427 = vmax.f32 %v4607, %v6117
  %v6428 = vmax.f32 %v4609, %v6119
  %v6429 = vmax.f32 %v4612, %v6122
  %v6430 = vmax.f32 %v4614, %v6124
  %v6431 = vmax.f32 %v4617, %v6127
  %v6432 = vmax.f32 %v4619, %v6129
  %v6433 = vmax.f32 %v4622, %v6132
  %v6434 = vmax.f32 %v4624, %v6134
  %v6435 = vmax.f32 %v4627, %v6137
  %v6436 = vmax.f32 %v4629, %v6139
  %v6437 = vmax.f32 %v4632, %v6142
  %v6438 = vmax.f32 %v4634, %v6144
  %v6439 = vmax.f32 %v4637, %v6147
  %v6440 = vmax.f32 %v4639, %v6149
  %v6441 = vmax.f32 %v4642, %v6152
  %v6442 = vmax.f32 %v4644, %v6154
  %v6443 = vmax.f32 %v4647, %v6157
  %v6444 = vmax.f32 %v4649, %v6159
  %v6445 = vmax.f32 %v4652, %v6162
  %v6446 = vmax.f32 %v4654, %v6164
  %v6447 = vmax.f32 %v4657, %v6167
  %v6448 = vmax.f32 %v4659, %v6169
  %v6449 = vmax.f32 %v4662, %v6172
  %v6450 = vmax.f32 %v4664, %v6174
  %v6451 = vmax.f32 %v4667, %v6177
  %v6452 = vmax.f32 %v4669, %v6179
  %v6453 = vmax.f32 %v4672, %v6182
  %v6454 = vmax.f32 %v4674, %v6184
  %v6455 = vmax.f32 %v4677, %v6187
  %v6456 = vmax.f32 %v4679, %v6189
  %v6457 = vmax.f32 %v4682, %v6192
  %v6458 = vmax.f32 %v4684, %v6194
  %v6459 = vmax.f32 %v4687, %v6197
  %v6460 = vmax.f32 %v4689, %v6199
  %v6461 = vmax.f32 %v4692, %v6202
  %v6462 = vmax.f32 %v4694, %v6204
  %v6463 = vmax.f32 %v4697, %v6207
  %v6464 = vmax.f32 %v4699, %v6209
  %v6465 = vmax.f32 %v4702, %v6212
  %v6466 = vmax.f32 %v4704, %v6214
  %v6467 = vmax.f32 %v4707, %v6217
  %v6468 = vmax.f32 %v4709, %v6219
  %v6469 = vmax.f32 %v4712, %v6222
  %v6470 = vmax.f32 %v4714, %v6224
  %v6471 = vmax.f32 %v4717, %v6227
  %v6472 = vmax.f32 %v4719, %v6229
  %v6473 = vmax.f32 %v4722, %v6232
  %v6474 = vmax.f32 %v4724, %v6234
  %v6475 = vmax.f32 %v4727, %v6237
  %v6476 = vmax.f32 %v4729, %v6239
  %v6477 = vmax.f32 %v4732, %v6242
  %v6478 = vmax.f32 %v4734, %v6244
  %v6479 = vmax.f32 %v4737, %v6247
  %v6480 = vmax.f32 %v4739, %v6249
  %v6481 = vmax.f32 %v4742, %v6252
  %v6482 = vmax.f32 %v4744, %v6254
  %v6483 = vmax.f32 %v4747, %v6257
  %v6484 = vmax.f32 %v4749, %v6259
  %v6485 = vmax.f32 %v4752, %v6262
  %v6486 = vmax.f32 %v4754, %v6264
  %v6487 = vmax.f32 %v4757, %v6267
  %v6488 = vmax.f32 %v4759, %v6269
  %v6489 = vmax.f32 %v4762, %v6272
  %v6490 = vmax.f32 %v4764, %v6274
  %v6491 = vmax.f32 %v4767, %v6277
  %v6492 = vmax.f32 %v4769, %v6279
  %v6493 = vmax.f32 %v4772, %v6282
  %v6494 = vmax.f32 %v4774, %v6284
  %v6495 = vmax.f32 %v4777, %v6287
  %v6496 = vmax.f32 %v4779, %v6289
  %v6497 = vmax.f32 %v4782, %v6292
  %v6498 = vmax.f32 %v4784, %v6294
  %v6499 = vmax.f32 %v4787, %v6297
  %v6500 = vmax.f32 %v4789, %v6299
  %v6501 = vmax.f32 %v3081, %v6301
  %v6502 = vmax.f32 %v3082, %v6302
  %v6503 = vmax.f32 %v3083, %v6303
  %v6504 = vmax.f32 %v3084, %v6304
  %v6505 = vmax.f32 %v3085, %v6305
  %v6506 = vmax.f32 %v3086, %v6306
  %v6507 = vmax.f32 %v3087, %v6307
  %v6508 = vmax.f32 %v3088, %v6308
  %v6509 = vmax.f32 %v3089, %v6309
  %v6510 = vmax.f32 %v3090, %v6310
  %v6511 = vmax.f32 %v3091, %v6311
  %v6512 = vmax.f32 %v3092, %v6312
  %v6513 = vmax.f32 %v3093, %v6313
  %v6514 = vmax.f32 %v3094, %v6314
  %v6515 = vmax.f32 %v3095, %v6315
  %v6516 = vmax.f32 %v3096, %v6316
  %v6517 = vmax.f32 %v3097, %v6317
  %v6518 = vmax.f32 %v3098, %v6318
  %v6519 = vmax.f32 %v3099, %v6319
  %v6520 = vmax.f32 %v3100, %v6320
  %v6521 = vmax.f32 %v3101, %v6321
  %v6522 = vmax.f32 %v3102, %v6322
  %v6523 = vmax.f32 %v3103, %v6323
  %v6524 = vmax.f32 %v3104, %v6324
  %v6525 = vmax.f32 %v3105, %v6325
  %v6526 = vmax.f32 %v3106, %v6326
  %v6527 = vmax.f32 %v3107, %v6327
  %v6528 = vmax.f32 %v3108, %v6328
  %v6529 = vmax.f32 %v3109, %v6329
  %v6530 = vmax.f32 %v3110, %v6330
  %v6531 = vmax.f32 %v3111, %v6331
  %v6532 = vmax.f32 %v3112, %v6332
  %v6533 = vmax.f32 %v3113, %v6333
  %v6534 = vmax.f32 %v3114, %v6334
  %v6535 = vmax.f32 %v3115, %v6335
  %v6536 = vmax.f32 %v3116, %v6336
  %v6537 = vmax.f32 %v3117, %v6337
  %v6538 = vmax.f32 %v3118, %v6338
  %v6539 = vmax.f32 %v3119, %v6339
  %v6540 = vmax.f32 %v3120, %v6340
  %v6541 = vmax.f32 %v3121, %v6341
  %v6542 = vmax.f32 %v3122, %v6342
  %v6543 = vmax.f32 %v3123, %v6343
  %v6544 = vmax.f32 %v3124, %v6344
  %v6545 = vmax.f32 %v3125, %v6345
  %v6546 = vmax.f32 %v3126, %v6346
  %v6547 = vmax.f32 %v3127, %v6347
  %v6548 = vmax.f32 %v3128, %v6348
  %v6549 = vmax.f32 %v3129, %v6349
  %v6550 = vmax.f32 %v3130, %v6350
  %v6551 = vmax.f32 %v3131, %v6351
  %v6552 = vmax.f32 %v3132, %v6352
  %v6553 = vmax.f32 %v3133, %v6353
  %v6554 = vmax.f32 %v3134, %v6354
  %v6555 = vmax.f32 %v3135, %v6355
  %v6556 = vmax.f32 %v3136, %v6356
  %v6557 = vmax.f32 %v3137, %v6357
  %v6558 = vmax.f32 %v3138, %v6358
  %v6559 = vmax.f32 %v3139, %v6359
  %v6560 = vmax.f32 %v3140, %v6360
  %v6561 = vmax.f32 %v3141, %v6361
  %v6562 = vmax.f32 %v3142, %v6362
  %v6563 = vmax.f32 %v3143, %v6363
  %v6564 = vmax.f32 %v3144, %v6364
  %v6565 = vmax.f32 %v3145, %v6365
  %v6566 = vmax.f32 %v3146, %v6366
  %v6567 = vmax.f32 %v3147, %v6367
  %v6568 = vmax.f32 %v3148, %v6368
  %v6569 = vmax.f32 %v3149, %v6369
  %v6570 = vmax.f32 %v3150, %v6370
  %v6571 = vmax.f32 %v3151, %v6371
  %v6572 = vmax.f32 %v3152, %v6372
  %v6573 = vmax.f32 %v3153, %v6373
  %v6574 = vmax.f32 %v3154, %v6374
  %v6575 = vmax.f32 %v3155, %v6375
  %v6576 = vmax.f32 %v3156, %v6376
  %v6577 = vmax.f32 %v3157, %v6377
  %v6578 = vmax.f32 %v3158, %v6378
  %v6579 = vmax.f32 %v3159, %v6379
  %v6580 = vmax.f32 %v3160, %v6380
  %v6581 = vmax.f32 %v3161, %v6381
  %v6582 = vmax.f32 %v3162, %v6382
  %v6583 = vmax.f32 %v3163, %v6383
  %v6584 = vmax.f32 %v3164, %v6384
  %v6585 = vmax.f32 %v3165, %v6385
  %v6586 = vmax.f32 %v3166, %v6386
  %v6587 = vmax.f32 %v3167, %v6387
  %v6588 = vmax.f32 %v3168, %v6388
  %v6589 = vmax.f32 %v3169, %v6389
  %v6590 = vmax.f32 %v3170, %v6390
  %v6591 = vmax.f32 %v3171, %v6391
  %v6592 = vmax.f32 %v3172, %v6392
  %v6593 = vmax.f32 %v3173, %v6393
  %v6594 = vmax.f32 %v3174, %v6394
  %v6595 = vmax.f32 %v3175, %v6395
  %v6596 = vmax.f32 %v3176, %v6396
  %v6597 = vmax.f32 %v3177, %v6397
  %v6598 = vmax.f32 %v3178, %v6398
  %v6599 = vmax.f32 %v3179, %v6399
  %v6600 = vmax.f32 %v3180, %v6400
  %v6601 = vmax.f32 %v3181, %v6401
  %v6602 = vmax.f32 %v3182, %v6402
  %v6603 = vmax.f32 %v3183, %v6403
  %v6604 = vmax.f32 %v3184, %v6404
  %v6605 = vmax.f32 %v3185, %v6405
  %v6606 = vmax.f32 %v3186, %v6406
  %v6607 = vmax.f32 %v3187, %v6407
  %v6608 = vmax.f32 %v3188, %v6408
  %v6609 = vmax.f32 %v3189, %v6409
  %v6610 = vmax.f32 %v3190, %v6410
  %v6611 = vmax.f32 %v3191, %v6411
  %v6612 = vmax.f32 %v3192, %v6412
  %v6613 = vmax.f32 %v3193, %v6413
  %v6614 = vmax.f32 %v3194, %v6414
  %v6615 = vmax.f32 %v3195, %v6415
  %v6616 = vmax.f32 %v3196, %v6416
  %v6617 = vmax.f32 %v3197, %v6417
  %v6618 = vmax.f32 %v3198, %v6418
  %v6619 = vmax.f32 %v3199, %v6419
  %v6620 = vmax.f32 %v3200, %v6420
  %v6621 = vmax.f32 %v3201, %v6421
  %v6622 = vmax.f32 %v3202, %v6422
  %v6623 = vmax.f32 %v3203, %v6423
  %v6624 = vmax.f32 %v3204, %v6424
  %v6625 = vmax.f32 %v3205, %v6425
  %v6626 = vmax.f32 %v3206, %v6426
  %v6627 = vmax.f32 %v3207, %v6427
  %v6628 = vmax.f32 %v3208, %v6428
  %v6629 = vmax.f32 %v3209, %v6429
  %v6630 = vmax.f32 %v3210, %v6430
  %v6631 = vmax.f32 %v3211, %v6431
  %v6632 = vmax.f32 %v3212, %v6432
  %v6633 = vmax.f32 %v3213, %v6433
  %v6634 = vmax.f32 %v3214, %v6434
  %v6635 = vmax.f32 %v3215, %v6435
  %v6636 = vmax.f32 %v3216, %v6436
  %v6637 = vmax.f32 %v3217, %v6437
  %v6638 = vmax.f32 %v3218, %v6438
  %v6639 = vmax.f32 %v3219, %v6439
  %v6640 = vmax.f32 %v3220, %v6440
  %v6641 = vmax.f32 %v3221, %v6441
  %v6642 = vmax.f32 %v3222, %v6442
  %v6643 = vmax.f32 %v3223, %v6443
  %v6644 = vmax.f32 %v3224, %v6444
  %v6645 = vmax.f32 %v3225, %v6445
  %v6646 = vmax.f32 %v3226, %v6446
  %v6647 = vmax.f32 %v3227, %v6447
  %v6648 = vmax.f32 %v3228, %v6448
  %v6649 = vmax.f32 %v3229, %v6449
  %v6650 = vmax.f32 %v3230, %v6450
  %v6651 = vmax.f32 %v3231, %v6451
  %v6652 = vmax.f32 %v3232, %v6452
  %v6653 = vmax.f32 %v3233, %v6453
  %v6654 = vmax.f32 %v3234, %v6454
  %v6655 = vmax.f32 %v3235, %v6455
  %v6656 = vmax.f32 %v3236, %v6456
  %v6657 = vmax.f32 %v3237, %v6457
  %v6658 = vmax.f32 %v3238, %v6458
  %v6659 = vmax.f32 %v3239, %v6459
  %v6660 = vmax.f32 %v3240, %v6460
  %v6661 = vmax.f32 %v3241, %v6461
  %v6662 = vmax.f32 %v3242, %v6462
  %v6663 = vmax.f32 %v3243, %v6463
  %v6664 = vmax.f32 %v3244, %v6464
  %v6665 = vmax.f32 %v3245, %v6465
  %v6666 = vmax.f32 %v3246, %v6466
  %v6667 = vmax.f32 %v3247, %v6467
  %v6668 = vmax.f32 %v3248, %v6468
  %v6669 = vmax.f32 %v3249, %v6469
  %v6670 = vmax.f32 %v3250, %v6470
  %v6671 = vmax.f32 %v3251, %v6471
  %v6672 = vmax.f32 %v3252, %v6472
  %v6673 = vmax.f32 %v3253, %v6473
  %v6674 = vmax.f32 %v3254, %v6474
  %v6675 = vmax.f32 %v3255, %v6475
  %v6676 = vmax.f32 %v3256, %v6476
  %v6677 = vmax.f32 %v3257, %v6477
  %v6678 = vmax.f32 %v3258, %v6478
  %v6679 = vmax.f32 %v3259, %v6479
  %v6680 = vmax.f32 %v3260, %v6480
  %v6681 = vmax.f32 %v3261, %v6481
  %v6682 = vmax.f32 %v3262, %v6482
  %v6683 = vmax.f32 %v3263, %v6483
  %v6684 = vmax.f32 %v3264, %v6484
  %v6685 = vmax.f32 %v3265, %v6485
  %v6686 = vmax.f32 %v3266, %v6486
  %v6687 = vmax.f32 %v3267, %v6487
  %v6688 = vmax.f32 %v3268, %v6488
  %v6689 = vmax.f32 %v3269, %v6489
  %v6690 = vmax.f32 %v3270, %v6490
  %v6691 = vmax.f32 %v3271, %v6491
  %v6692 = vmax.f32 %v3272, %v6492
  %v6693 = vmax.f32 %v3273, %v6493
  %v6694 = vmax.f32 %v3274, %v6494
  %v6695 = vmax.f32 %v3275, %v6495
  %v6696 = vmax.f32 %v3276, %v6496
  %v6697 = vmax.f32 %v3277, %v6497
  %v6698 = vmax.f32 %v3278, %v6498
  %v6699 = vmax.f32 %v3279, %v6499
  %v6700 = vmax.f32 %v3280, %v6500
  %v6701 = vld [vmem:[%s2] sm:$0x1]
  %v6703 = vperm.slane %v6701, 0
  %v6705 = vadd.f32 %v6501, %v6703
  %v6706 = vadd.f32 %v6502, %v6703
  %v6707 = vadd.f32 %v6503, %v6703
  %v6708 = vadd.f32 %v6504, %v6703
  %v6709 = vadd.f32 %v6505, %v6703
  %v6710 = vadd.f32 %v6506, %v6703
  %v6711 = vadd.f32 %v6507, %v6703
  %v6712 = vadd.f32 %v6508, %v6703
  %v6713 = vadd.f32 %v6509, %v6703
  %v6714 = vadd.f32 %v6510, %v6703
  %v6715 = vadd.f32 %v6511, %v6703
  %v6716 = vadd.f32 %v6512, %v6703
  %v6717 = vadd.f32 %v6513, %v6703
  %v6718 = vadd.f32 %v6514, %v6703
  %v6719 = vadd.f32 %v6515, %v6703
  %v6720 = vadd.f32 %v6516, %v6703
  %v6721 = vadd.f32 %v6517, %v6703
  %v6722 = vadd.f32 %v6518, %v6703
  %v6723 = vadd.f32 %v6519, %v6703
  %v6724 = vadd.f32 %v6520, %v6703
  %v6725 = vadd.f32 %v6521, %v6703
  %v6726 = vadd.f32 %v6522, %v6703
  %v6727 = vadd.f32 %v6523, %v6703
  %v6728 = vadd.f32 %v6524, %v6703
  %v6729 = vadd.f32 %v6525, %v6703
  %v6730 = vadd.f32 %v6526, %v6703
  %v6731 = vadd.f32 %v6527, %v6703
  %v6732 = vadd.f32 %v6528, %v6703
  %v6733 = vadd.f32 %v6529, %v6703
  %v6734 = vadd.f32 %v6530, %v6703
  %v6735 = vadd.f32 %v6531, %v6703
  %v6736 = vadd.f32 %v6532, %v6703
  %v6737 = vadd.f32 %v6533, %v6703
  %v6738 = vadd.f32 %v6534, %v6703
  %v6739 = vadd.f32 %v6535, %v6703
  %v6740 = vadd.f32 %v6536, %v6703
  %v6741 = vadd.f32 %v6537, %v6703
  %v6742 = vadd.f32 %v6538, %v6703
  %v6743 = vadd.f32 %v6539, %v6703
  %v6744 = vadd.f32 %v6540, %v6703
  %v6745 = vadd.f32 %v6541, %v6703
  %v6746 = vadd.f32 %v6542, %v6703
  %v6747 = vadd.f32 %v6543, %v6703
  %v6748 = vadd.f32 %v6544, %v6703
  %v6749 = vadd.f32 %v6545, %v6703
  %v6750 = vadd.f32 %v6546, %v6703
  %v6751 = vadd.f32 %v6547, %v6703
  %v6752 = vadd.f32 %v6548, %v6703
  %v6753 = vadd.f32 %v6549, %v6703
  %v6754 = vadd.f32 %v6550, %v6703
  %v6755 = vadd.f32 %v6551, %v6703
  %v6756 = vadd.f32 %v6552, %v6703
  %v6757 = vadd.f32 %v6553, %v6703
  %v6758 = vadd.f32 %v6554, %v6703
  %v6759 = vadd.f32 %v6555, %v6703
  %v6760 = vadd.f32 %v6556, %v6703
  %v6761 = vadd.f32 %v6557, %v6703
  %v6762 = vadd.f32 %v6558, %v6703
  %v6763 = vadd.f32 %v6559, %v6703
  %v6764 = vadd.f32 %v6560, %v6703
  %v6765 = vadd.f32 %v6561, %v6703
  %v6766 = vadd.f32 %v6562, %v6703
  %v6767 = vadd.f32 %v6563, %v6703
  %v6768 = vadd.f32 %v6564, %v6703
  %v6769 = vadd.f32 %v6565, %v6703
  %v6770 = vadd.f32 %v6566, %v6703
  %v6771 = vadd.f32 %v6567, %v6703
  %v6772 = vadd.f32 %v6568, %v6703
  %v6773 = vadd.f32 %v6569, %v6703
  %v6774 = vadd.f32 %v6570, %v6703
  %v6775 = vadd.f32 %v6571, %v6703
  %v6776 = vadd.f32 %v6572, %v6703
  %v6777 = vadd.f32 %v6573, %v6703
  %v6778 = vadd.f32 %v6574, %v6703
  %v6779 = vadd.f32 %v6575, %v6703
  %v6780 = vadd.f32 %v6576, %v6703
  %v6781 = vadd.f32 %v6577, %v6703
  %v6782 = vadd.f32 %v6578, %v6703
  %v6783 = vadd.f32 %v6579, %v6703
  %v6784 = vadd.f32 %v6580, %v6703
  %v6785 = vadd.f32 %v6581, %v6703
  %v6786 = vadd.f32 %v6582, %v6703
  %v6787 = vadd.f32 %v6583, %v6703
  %v6788 = vadd.f32 %v6584, %v6703
  %v6789 = vadd.f32 %v6585, %v6703
  %v6790 = vadd.f32 %v6586, %v6703
  %v6791 = vadd.f32 %v6587, %v6703
  %v6792 = vadd.f32 %v6588, %v6703
  %v6793 = vadd.f32 %v6589, %v6703
  %v6794 = vadd.f32 %v6590, %v6703
  %v6795 = vadd.f32 %v6591, %v6703
  %v6796 = vadd.f32 %v6592, %v6703
  %v6797 = vadd.f32 %v6593, %v6703
  %v6798 = vadd.f32 %v6594, %v6703
  %v6799 = vadd.f32 %v6595, %v6703
  %v6800 = vadd.f32 %v6596, %v6703
  %v6801 = vadd.f32 %v6597, %v6703
  %v6802 = vadd.f32 %v6598, %v6703
  %v6803 = vadd.f32 %v6599, %v6703
  %v6804 = vadd.f32 %v6600, %v6703
  %v6805 = vadd.f32 %v6601, %v6703
  %v6806 = vadd.f32 %v6602, %v6703
  %v6807 = vadd.f32 %v6603, %v6703
  %v6808 = vadd.f32 %v6604, %v6703
  %v6809 = vadd.f32 %v6605, %v6703
  %v6810 = vadd.f32 %v6606, %v6703
  %v6811 = vadd.f32 %v6607, %v6703
  %v6812 = vadd.f32 %v6608, %v6703
  %v6813 = vadd.f32 %v6609, %v6703
  %v6814 = vadd.f32 %v6610, %v6703
  %v6815 = vadd.f32 %v6611, %v6703
  %v6816 = vadd.f32 %v6612, %v6703
  %v6817 = vadd.f32 %v6613, %v6703
  %v6818 = vadd.f32 %v6614, %v6703
  %v6819 = vadd.f32 %v6615, %v6703
  %v6820 = vadd.f32 %v6616, %v6703
  %v6821 = vadd.f32 %v6617, %v6703
  %v6822 = vadd.f32 %v6618, %v6703
  %v6823 = vadd.f32 %v6619, %v6703
  %v6824 = vadd.f32 %v6620, %v6703
  %v6825 = vadd.f32 %v6621, %v6703
  %v6826 = vadd.f32 %v6622, %v6703
  %v6827 = vadd.f32 %v6623, %v6703
  %v6828 = vadd.f32 %v6624, %v6703
  %v6829 = vadd.f32 %v6625, %v6703
  %v6830 = vadd.f32 %v6626, %v6703
  %v6831 = vadd.f32 %v6627, %v6703
  %v6832 = vadd.f32 %v6628, %v6703
  %v6833 = vadd.f32 %v6629, %v6703
  %v6834 = vadd.f32 %v6630, %v6703
  %v6835 = vadd.f32 %v6631, %v6703
  %v6836 = vadd.f32 %v6632, %v6703
  %v6837 = vadd.f32 %v6633, %v6703
  %v6838 = vadd.f32 %v6634, %v6703
  %v6839 = vadd.f32 %v6635, %v6703
  %v6840 = vadd.f32 %v6636, %v6703
  %v6841 = vadd.f32 %v6637, %v6703
  %v6842 = vadd.f32 %v6638, %v6703
  %v6843 = vadd.f32 %v6639, %v6703
  %v6844 = vadd.f32 %v6640, %v6703
  %v6845 = vadd.f32 %v6641, %v6703
  %v6846 = vadd.f32 %v6642, %v6703
  %v6847 = vadd.f32 %v6643, %v6703
  %v6848 = vadd.f32 %v6644, %v6703
  %v6849 = vadd.f32 %v6645, %v6703
  %v6850 = vadd.f32 %v6646, %v6703
  %v6851 = vadd.f32 %v6647, %v6703
  %v6852 = vadd.f32 %v6648, %v6703
  %v6853 = vadd.f32 %v6649, %v6703
  %v6854 = vadd.f32 %v6650, %v6703
  %v6855 = vadd.f32 %v6651, %v6703
  %v6856 = vadd.f32 %v6652, %v6703
  %v6857 = vadd.f32 %v6653, %v6703
  %v6858 = vadd.f32 %v6654, %v6703
  %v6859 = vadd.f32 %v6655, %v6703
  %v6860 = vadd.f32 %v6656, %v6703
  %v6861 = vadd.f32 %v6657, %v6703
  %v6862 = vadd.f32 %v6658, %v6703
  %v6863 = vadd.f32 %v6659, %v6703
  %v6864 = vadd.f32 %v6660, %v6703
  %v6865 = vadd.f32 %v6661, %v6703
  %v6866 = vadd.f32 %v6662, %v6703
  %v6867 = vadd.f32 %v6663, %v6703
  %v6868 = vadd.f32 %v6664, %v6703
  %v6869 = vadd.f32 %v6665, %v6703
  %v6870 = vadd.f32 %v6666, %v6703
  %v6871 = vadd.f32 %v6667, %v6703
  %v6872 = vadd.f32 %v6668, %v6703
  %v6873 = vadd.f32 %v6669, %v6703
  %v6874 = vadd.f32 %v6670, %v6703
  %v6875 = vadd.f32 %v6671, %v6703
  %v6876 = vadd.f32 %v6672, %v6703
  %v6877 = vadd.f32 %v6673, %v6703
  %v6878 = vadd.f32 %v6674, %v6703
  %v6879 = vadd.f32 %v6675, %v6703
  %v6880 = vadd.f32 %v6676, %v6703
  %v6881 = vadd.f32 %v6677, %v6703
  %v6882 = vadd.f32 %v6678, %v6703
  %v6883 = vadd.f32 %v6679, %v6703
  %v6884 = vadd.f32 %v6680, %v6703
  %v6885 = vadd.f32 %v6681, %v6703
  %v6886 = vadd.f32 %v6682, %v6703
  %v6887 = vadd.f32 %v6683, %v6703
  %v6888 = vadd.f32 %v6684, %v6703
  %v6889 = vadd.f32 %v6685, %v6703
  %v6890 = vadd.f32 %v6686, %v6703
  %v6891 = vadd.f32 %v6687, %v6703
  %v6892 = vadd.f32 %v6688, %v6703
  %v6893 = vadd.f32 %v6689, %v6703
  %v6894 = vadd.f32 %v6690, %v6703
  %v6895 = vadd.f32 %v6691, %v6703
  %v6896 = vadd.f32 %v6692, %v6703
  %v6897 = vadd.f32 %v6693, %v6703
  %v6898 = vadd.f32 %v6694, %v6703
  %v6899 = vadd.f32 %v6695, %v6703
  %v6900 = vadd.f32 %v6696, %v6703
  %v6901 = vadd.f32 %v6697, %v6703
  %v6902 = vadd.f32 %v6698, %v6703
  %v6903 = vadd.f32 %v6699, %v6703
  %v6904 = vadd.f32 %v6700, %v6703
  %v6905 = vmax.f32 %v6705, 0.0
  %v6906 = vmax.f32 %v6706, 0.0
  %v6907 = vmax.f32 %v6707, 0.0
  %v6908 = vmax.f32 %v6708, 0.0
  %v6909 = vmax.f32 %v6709, 0.0
  %v6910 = vmax.f32 %v6710, 0.0
  %v6911 = vmax.f32 %v6711, 0.0
  %v6912 = vmax.f32 %v6712, 0.0
  %v6913 = vmax.f32 %v6713, 0.0
  %v6914 = vmax.f32 %v6714, 0.0
  %v6915 = vmax.f32 %v6715, 0.0
  %v6916 = vmax.f32 %v6716, 0.0
  %v6917 = vmax.f32 %v6717, 0.0
  %v6918 = vmax.f32 %v6718, 0.0
  %v6919 = vmax.f32 %v6719, 0.0
  %v6920 = vmax.f32 %v6720, 0.0
  %v6921 = vmax.f32 %v6721, 0.0
  %v6922 = vmax.f32 %v6722, 0.0
  %v6923 = vmax.f32 %v6723, 0.0
  %v6924 = vmax.f32 %v6724, 0.0
  %v6925 = vmax.f32 %v6725, 0.0
  %v6926 = vmax.f32 %v6726, 0.0
  %v6927 = vmax.f32 %v6727, 0.0
  %v6928 = vmax.f32 %v6728, 0.0
  %v6929 = vmax.f32 %v6729, 0.0
  %v6930 = vmax.f32 %v6730, 0.0
  %v6931 = vmax.f32 %v6731, 0.0
  %v6932 = vmax.f32 %v6732, 0.0
  %v6933 = vmax.f32 %v6733, 0.0
  %v6934 = vmax.f32 %v6734, 0.0
  %v6935 = vmax.f32 %v6735, 0.0
  %v6936 = vmax.f32 %v6736, 0.0
  %v6937 = vmax.f32 %v6737, 0.0
  %v6938 = vmax.f32 %v6738, 0.0
  %v6939 = vmax.f32 %v6739, 0.0
  %v6940 = vmax.f32 %v6740, 0.0
  %v6941 = vmax.f32 %v6741, 0.0
  %v6942 = vmax.f32 %v6742, 0.0
  %v6943 = vmax.f32 %v6743, 0.0
  %v6944 = vmax.f32 %v6744, 0.0
  %v6945 = vmax.f32 %v6745, 0.0
  %v6946 = vmax.f32 %v6746, 0.0
  %v6947 = vmax.f32 %v6747, 0.0
  %v6948 = vmax.f32 %v6748, 0.0
  %v6949 = vmax.f32 %v6749, 0.0
  %v6950 = vmax.f32 %v6750, 0.0
  %v6951 = vmax.f32 %v6751, 0.0
  %v6952 = vmax.f32 %v6752, 0.0
  %v6953 = vmax.f32 %v6753, 0.0
  %v6954 = vmax.f32 %v6754, 0.0
  %v6955 = vmax.f32 %v6755, 0.0
  %v6956 = vmax.f32 %v6756, 0.0
  %v6957 = vmax.f32 %v6757, 0.0
  %v6958 = vmax.f32 %v6758, 0.0
  %v6959 = vmax.f32 %v6759, 0.0
  %v6960 = vmax.f32 %v6760, 0.0
  %v6961 = vmax.f32 %v6761, 0.0
  %v6962 = vmax.f32 %v6762, 0.0
  %v6963 = vmax.f32 %v6763, 0.0
  %v6964 = vmax.f32 %v6764, 0.0
  %v6965 = vmax.f32 %v6765, 0.0
  %v6966 = vmax.f32 %v6766, 0.0
  %v6967 = vmax.f32 %v6767, 0.0
  %v6968 = vmax.f32 %v6768, 0.0
  %v6969 = vmax.f32 %v6769, 0.0
  %v6970 = vmax.f32 %v6770, 0.0
  %v6971 = vmax.f32 %v6771, 0.0
  %v6972 = vmax.f32 %v6772, 0.0
  %v6973 = vmax.f32 %v6773, 0.0
  %v6974 = vmax.f32 %v6774, 0.0
  %v6975 = vmax.f32 %v6775, 0.0
  %v6976 = vmax.f32 %v6776, 0.0
  %v6977 = vmax.f32 %v6777, 0.0
  %v6978 = vmax.f32 %v6778, 0.0
  %v6979 = vmax.f32 %v6779, 0.0
  %v6980 = vmax.f32 %v6780, 0.0
  %v6981 = vmax.f32 %v6781, 0.0
  %v6982 = vmax.f32 %v6782, 0.0
  %v6983 = vmax.f32 %v6783, 0.0
  %v6984 = vmax.f32 %v6784, 0.0
  %v6985 = vmax.f32 %v6785, 0.0
  %v6986 = vmax.f32 %v6786, 0.0
  %v6987 = vmax.f32 %v6787, 0.0
  %v6988 = vmax.f32 %v6788, 0.0
  %v6989 = vmax.f32 %v6789, 0.0
  %v6990 = vmax.f32 %v6790, 0.0
  %v6991 = vmax.f32 %v6791, 0.0
  %v6992 = vmax.f32 %v6792, 0.0
  %v6993 = vmax.f32 %v6793, 0.0
  %v6994 = vmax.f32 %v6794, 0.0
  %v6995 = vmax.f32 %v6795, 0.0
  %v6996 = vmax.f32 %v6796, 0.0
  %v6997 = vmax.f32 %v6797, 0.0
  %v6998 = vmax.f32 %v6798, 0.0
  %v6999 = vmax.f32 %v6799, 0.0
  %v7000 = vmax.f32 %v6800, 0.0
  %v7001 = vmax.f32 %v6801, 0.0
  %v7002 = vmax.f32 %v6802, 0.0
  %v7003 = vmax.f32 %v6803, 0.0
  %v7004 = vmax.f32 %v6804, 0.0
  %v7005 = vmax.f32 %v6805, 0.0
  %v7006 = vmax.f32 %v6806, 0.0
  %v7007 = vmax.f32 %v6807, 0.0
  %v7008 = vmax.f32 %v6808, 0.0
  %v7009 = vmax.f32 %v6809, 0.0
  %v7010 = vmax.f32 %v6810, 0.0
  %v7011 = vmax.f32 %v6811, 0.0
  %v7012 = vmax.f32 %v6812, 0.0
  %v7013 = vmax.f32 %v6813, 0.0
  %v7014 = vmax.f32 %v6814, 0.0
  %v7015 = vmax.f32 %v6815, 0.0
  %v7016 = vmax.f32 %v6816, 0.0
  %v7017 = vmax.f32 %v6817, 0.0
  %v7018 = vmax.f32 %v6818, 0.0
  %v7019 = vmax.f32 %v6819, 0.0
  %v7020 = vmax.f32 %v6820, 0.0
  %v7021 = vmax.f32 %v6821, 0.0
  %v7022 = vmax.f32 %v6822, 0.0
  %v7023 = vmax.f32 %v6823, 0.0
  %v7024 = vmax.f32 %v6824, 0.0
  %v7025 = vmax.f32 %v6825, 0.0
  %v7026 = vmax.f32 %v6826, 0.0
  %v7027 = vmax.f32 %v6827, 0.0
  %v7028 = vmax.f32 %v6828, 0.0
  %v7029 = vmax.f32 %v6829, 0.0
  %v7030 = vmax.f32 %v6830, 0.0
  %v7031 = vmax.f32 %v6831, 0.0
  %v7032 = vmax.f32 %v6832, 0.0
  %v7033 = vmax.f32 %v6833, 0.0
  %v7034 = vmax.f32 %v6834, 0.0
  %v7035 = vmax.f32 %v6835, 0.0
  %v7036 = vmax.f32 %v6836, 0.0
  %v7037 = vmax.f32 %v6837, 0.0
  %v7038 = vmax.f32 %v6838, 0.0
  %v7039 = vmax.f32 %v6839, 0.0
  %v7040 = vmax.f32 %v6840, 0.0
  %v7041 = vmax.f32 %v6841, 0.0
  %v7042 = vmax.f32 %v6842, 0.0
  %v7043 = vmax.f32 %v6843, 0.0
  %v7044 = vmax.f32 %v6844, 0.0
  %v7045 = vmax.f32 %v6845, 0.0
  %v7046 = vmax.f32 %v6846, 0.0
  %v7047 = vmax.f32 %v6847, 0.0
  %v7048 = vmax.f32 %v6848, 0.0
  %v7049 = vmax.f32 %v6849, 0.0
  %v7050 = vmax.f32 %v6850, 0.0
  %v7051 = vmax.f32 %v6851, 0.0
  %v7052 = vmax.f32 %v6852, 0.0
  %v7053 = vmax.f32 %v6853, 0.0
  %v7054 = vmax.f32 %v6854, 0.0
  %v7055 = vmax.f32 %v6855, 0.0
  %v7056 = vmax.f32 %v6856, 0.0
  %v7057 = vmax.f32 %v6857, 0.0
  %v7058 = vmax.f32 %v6858, 0.0
  %v7059 = vmax.f32 %v6859, 0.0
  %v7060 = vmax.f32 %v6860, 0.0
  %v7061 = vmax.f32 %v6861, 0.0
  %v7062 = vmax.f32 %v6862, 0.0
  %v7063 = vmax.f32 %v6863, 0.0
  %v7064 = vmax.f32 %v6864, 0.0
  %v7065 = vmax.f32 %v6865, 0.0
  %v7066 = vmax.f32 %v6866, 0.0
  %v7067 = vmax.f32 %v6867, 0.0
  %v7068 = vmax.f32 %v6868, 0.0
  %v7069 = vmax.f32 %v6869, 0.0
  %v7070 = vmax.f32 %v6870, 0.0
  %v7071 = vmax.f32 %v6871, 0.0
  %v7072 = vmax.f32 %v6872, 0.0
  %v7073 = vmax.f32 %v6873, 0.0
  %v7074 = vmax.f32 %v6874, 0.0
  %v7075 = vmax.f32 %v6875, 0.0
  %v7076 = vmax.f32 %v6876, 0.0
  %v7077 = vmax.f32 %v6877, 0.0
  %v7078 = vmax.f32 %v6878, 0.0
  %v7079 = vmax.f32 %v6879, 0.0
  %v7080 = vmax.f32 %v6880, 0.0
  %v7081 = vmax.f32 %v6881, 0.0
  %v7082 = vmax.f32 %v6882, 0.0
  %v7083 = vmax.f32 %v6883, 0.0
  %v7084 = vmax.f32 %v6884, 0.0
  %v7085 = vmax.f32 %v6885, 0.0
  %v7086 = vmax.f32 %v6886, 0.0
  %v7087 = vmax.f32 %v6887, 0.0
  %v7088 = vmax.f32 %v6888, 0.0
  %v7089 = vmax.f32 %v6889, 0.0
  %v7090 = vmax.f32 %v6890, 0.0
  %v7091 = vmax.f32 %v6891, 0.0
  %v7092 = vmax.f32 %v6892, 0.0
  %v7093 = vmax.f32 %v6893, 0.0
  %v7094 = vmax.f32 %v6894, 0.0
  %v7095 = vmax.f32 %v6895, 0.0
  %v7096 = vmax.f32 %v6896, 0.0
  %v7097 = vmax.f32 %v6897, 0.0
  %v7098 = vmax.f32 %v6898, 0.0
  %v7099 = vmax.f32 %v6899, 0.0
  %v7100 = vmax.f32 %v6900, 0.0
  %v7101 = vmax.f32 %v6901, 0.0
  %v7102 = vmax.f32 %v6902, 0.0
  %v7103 = vmax.f32 %v6903, 0.0
  %v7104 = vmax.f32 %v6904, 0.0
  %v7105 = vpack.c.bf16 %v6905, %v6905
  %v7106 = vpack.c.bf16 %v6906, %v6906
  %v7107 = vpack.c.bf16 %v6907, %v6907
  %v7108 = vpack.c.bf16 %v6908, %v6908
  %v7109 = vpack.c.bf16 %v6909, %v6909
  %v7110 = vpack.c.bf16 %v6910, %v6910
  %v7111 = vpack.c.bf16 %v6911, %v6911
  %v7112 = vpack.c.bf16 %v6912, %v6912
  %v7113 = vpack.c.bf16 %v6913, %v6913
  %v7114 = vpack.c.bf16 %v6914, %v6914
  %v7115 = vpack.c.bf16 %v6915, %v6915
  %v7116 = vpack.c.bf16 %v6916, %v6916
  %v7117 = vpack.c.bf16 %v6917, %v6917
  %v7118 = vpack.c.bf16 %v6918, %v6918
  %v7119 = vpack.c.bf16 %v6919, %v6919
  %v7120 = vpack.c.bf16 %v6920, %v6920
  %v7121 = vpack.c.bf16 %v6921, %v6921
  %v7122 = vpack.c.bf16 %v6922, %v6922
  %v7123 = vpack.c.bf16 %v6923, %v6923
  %v7124 = vpack.c.bf16 %v6924, %v6924
  %v7125 = vpack.c.bf16 %v6925, %v6925
  %v7126 = vpack.c.bf16 %v6926, %v6926
  %v7127 = vpack.c.bf16 %v6927, %v6927
  %v7128 = vpack.c.bf16 %v6928, %v6928
  %v7129 = vpack.c.bf16 %v6929, %v6929
  %v7130 = vpack.c.bf16 %v6930, %v6930
  %v7131 = vpack.c.bf16 %v6931, %v6931
  %v7132 = vpack.c.bf16 %v6932, %v6932
  %v7133 = vpack.c.bf16 %v6933, %v6933
  %v7134 = vpack.c.bf16 %v6934, %v6934
  %v7135 = vpack.c.bf16 %v6935, %v6935
  %v7136 = vpack.c.bf16 %v6936, %v6936
  %v7137 = vpack.c.bf16 %v6937, %v6937
  %v7138 = vpack.c.bf16 %v6938, %v6938
  %v7139 = vpack.c.bf16 %v6939, %v6939
  %v7140 = vpack.c.bf16 %v6940, %v6940
  %v7141 = vpack.c.bf16 %v6941, %v6941
  %v7142 = vpack.c.bf16 %v6942, %v6942
  %v7143 = vpack.c.bf16 %v6943, %v6943
  %v7144 = vpack.c.bf16 %v6944, %v6944
  %v7145 = vpack.c.bf16 %v6945, %v6945
  %v7146 = vpack.c.bf16 %v6946, %v6946
  %v7147 = vpack.c.bf16 %v6947, %v6947
  %v7148 = vpack.c.bf16 %v6948, %v6948
  %v7149 = vpack.c.bf16 %v6949, %v6949
  %v7150 = vpack.c.bf16 %v6950, %v6950
  %v7151 = vpack.c.bf16 %v6951, %v6951
  %v7152 = vpack.c.bf16 %v6952, %v6952
  %v7153 = vpack.c.bf16 %v6953, %v6953
  %v7154 = vpack.c.bf16 %v6954, %v6954
  %v7155 = vpack.c.bf16 %v6955, %v6955
  %v7156 = vpack.c.bf16 %v6956, %v6956
  %v7157 = vpack.c.bf16 %v6957, %v6957
  %v7158 = vpack.c.bf16 %v6958, %v6958
  %v7159 = vpack.c.bf16 %v6959, %v6959
  %v7160 = vpack.c.bf16 %v6960, %v6960
  %v7161 = vpack.c.bf16 %v6961, %v6961
  %v7162 = vpack.c.bf16 %v6962, %v6962
  %v7163 = vpack.c.bf16 %v6963, %v6963
  %v7164 = vpack.c.bf16 %v6964, %v6964
  %v7165 = vpack.c.bf16 %v6965, %v6965
  %v7166 = vpack.c.bf16 %v6966, %v6966
  %v7167 = vpack.c.bf16 %v6967, %v6967
  %v7168 = vpack.c.bf16 %v6968, %v6968
  %v7169 = vpack.c.bf16 %v6969, %v6969
  %v7170 = vpack.c.bf16 %v6970, %v6970
  %v7171 = vpack.c.bf16 %v6971, %v6971
  %v7172 = vpack.c.bf16 %v6972, %v6972
  %v7173 = vpack.c.bf16 %v6973, %v6973
  %v7174 = vpack.c.bf16 %v6974, %v6974
  %v7175 = vpack.c.bf16 %v6975, %v6975
  %v7176 = vpack.c.bf16 %v6976, %v6976
  %v7177 = vpack.c.bf16 %v6977, %v6977
  %v7178 = vpack.c.bf16 %v6978, %v6978
  %v7179 = vpack.c.bf16 %v6979, %v6979
  %v7180 = vpack.c.bf16 %v6980, %v6980
  %v7181 = vpack.c.bf16 %v6981, %v6981
  %v7182 = vpack.c.bf16 %v6982, %v6982
  %v7183 = vpack.c.bf16 %v6983, %v6983
  %v7184 = vpack.c.bf16 %v6984, %v6984
  %v7185 = vpack.c.bf16 %v6985, %v6985
  %v7186 = vpack.c.bf16 %v6986, %v6986
  %v7187 = vpack.c.bf16 %v6987, %v6987
  %v7188 = vpack.c.bf16 %v6988, %v6988
  %v7189 = vpack.c.bf16 %v6989, %v6989
  %v7190 = vpack.c.bf16 %v6990, %v6990
  %v7191 = vpack.c.bf16 %v6991, %v6991
  %v7192 = vpack.c.bf16 %v6992, %v6992
  %v7193 = vpack.c.bf16 %v6993, %v6993
  %v7194 = vpack.c.bf16 %v6994, %v6994
  %v7195 = vpack.c.bf16 %v6995, %v6995
  %v7196 = vpack.c.bf16 %v6996, %v6996
  %v7197 = vpack.c.bf16 %v6997, %v6997
  %v7198 = vpack.c.bf16 %v6998, %v6998
  %v7199 = vpack.c.bf16 %v6999, %v6999
  %v7200 = vpack.c.bf16 %v7000, %v7000
  %v7201 = vpack.c.bf16 %v7001, %v7001
  %v7202 = vpack.c.bf16 %v7002, %v7002
  %v7203 = vpack.c.bf16 %v7003, %v7003
  %v7204 = vpack.c.bf16 %v7004, %v7004
  %v7205 = vpack.c.bf16 %v7005, %v7005
  %v7206 = vpack.c.bf16 %v7006, %v7006
  %v7207 = vpack.c.bf16 %v7007, %v7007
  %v7208 = vpack.c.bf16 %v7008, %v7008
  %v7209 = vpack.c.bf16 %v7009, %v7009
  %v7210 = vpack.c.bf16 %v7010, %v7010
  %v7211 = vpack.c.bf16 %v7011, %v7011
  %v7212 = vpack.c.bf16 %v7012, %v7012
  %v7213 = vpack.c.bf16 %v7013, %v7013
  %v7214 = vpack.c.bf16 %v7014, %v7014
  %v7215 = vpack.c.bf16 %v7015, %v7015
  %v7216 = vpack.c.bf16 %v7016, %v7016
  %v7217 = vpack.c.bf16 %v7017, %v7017
  %v7218 = vpack.c.bf16 %v7018, %v7018
  %v7219 = vpack.c.bf16 %v7019, %v7019
  %v7220 = vpack.c.bf16 %v7020, %v7020
  %v7221 = vpack.c.bf16 %v7021, %v7021
  %v7222 = vpack.c.bf16 %v7022, %v7022
  %v7223 = vpack.c.bf16 %v7023, %v7023
  %v7224 = vpack.c.bf16 %v7024, %v7024
  %v7225 = vpack.c.bf16 %v7025, %v7025
  %v7226 = vpack.c.bf16 %v7026, %v7026
  %v7227 = vpack.c.bf16 %v7027, %v7027
  %v7228 = vpack.c.bf16 %v7028, %v7028
  %v7229 = vpack.c.bf16 %v7029, %v7029
  %v7230 = vpack.c.bf16 %v7030, %v7030
  %v7231 = vpack.c.bf16 %v7031, %v7031
  %v7232 = vpack.c.bf16 %v7032, %v7032
  %v7233 = vpack.c.bf16 %v7033, %v7033
  %v7234 = vpack.c.bf16 %v7034, %v7034
  %v7235 = vpack.c.bf16 %v7035, %v7035
  %v7236 = vpack.c.bf16 %v7036, %v7036
  %v7237 = vpack.c.bf16 %v7037, %v7037
  %v7238 = vpack.c.bf16 %v7038, %v7038
  %v7239 = vpack.c.bf16 %v7039, %v7039
  %v7240 = vpack.c.bf16 %v7040, %v7040
  %v7241 = vpack.c.bf16 %v7041, %v7041
  %v7242 = vpack.c.bf16 %v7042, %v7042
  %v7243 = vpack.c.bf16 %v7043, %v7043
  %v7244 = vpack.c.bf16 %v7044, %v7044
  %v7245 = vpack.c.bf16 %v7045, %v7045
  %v7246 = vpack.c.bf16 %v7046, %v7046
  %v7247 = vpack.c.bf16 %v7047, %v7047
  %v7248 = vpack.c.bf16 %v7048, %v7048
  %v7249 = vpack.c.bf16 %v7049, %v7049
  %v7250 = vpack.c.bf16 %v7050, %v7050
  %v7251 = vpack.c.bf16 %v7051, %v7051
  %v7252 = vpack.c.bf16 %v7052, %v7052
  %v7253 = vpack.c.bf16 %v7053, %v7053
  %v7254 = vpack.c.bf16 %v7054, %v7054
  %v7255 = vpack.c.bf16 %v7055, %v7055
  %v7256 = vpack.c.bf16 %v7056, %v7056
  %v7257 = vpack.c.bf16 %v7057, %v7057
  %v7258 = vpack.c.bf16 %v7058, %v7058
  %v7259 = vpack.c.bf16 %v7059, %v7059
  %v7260 = vpack.c.bf16 %v7060, %v7060
  %v7261 = vpack.c.bf16 %v7061, %v7061
  %v7262 = vpack.c.bf16 %v7062, %v7062
  %v7263 = vpack.c.bf16 %v7063, %v7063
  %v7264 = vpack.c.bf16 %v7064, %v7064
  %v7265 = vpack.c.bf16 %v7065, %v7065
  %v7266 = vpack.c.bf16 %v7066, %v7066
  %v7267 = vpack.c.bf16 %v7067, %v7067
  %v7268 = vpack.c.bf16 %v7068, %v7068
  %v7269 = vpack.c.bf16 %v7069, %v7069
  %v7270 = vpack.c.bf16 %v7070, %v7070
  %v7271 = vpack.c.bf16 %v7071, %v7071
  %v7272 = vpack.c.bf16 %v7072, %v7072
  %v7273 = vpack.c.bf16 %v7073, %v7073
  %v7274 = vpack.c.bf16 %v7074, %v7074
  %v7275 = vpack.c.bf16 %v7075, %v7075
  %v7276 = vpack.c.bf16 %v7076, %v7076
  %v7277 = vpack.c.bf16 %v7077, %v7077
  %v7278 = vpack.c.bf16 %v7078, %v7078
  %v7279 = vpack.c.bf16 %v7079, %v7079
  %v7280 = vpack.c.bf16 %v7080, %v7080
  %v7281 = vpack.c.bf16 %v7081, %v7081
  %v7282 = vpack.c.bf16 %v7082, %v7082
  %v7283 = vpack.c.bf16 %v7083, %v7083
  %v7284 = vpack.c.bf16 %v7084, %v7084
  %v7285 = vpack.c.bf16 %v7085, %v7085
  %v7286 = vpack.c.bf16 %v7086, %v7086
  %v7287 = vpack.c.bf16 %v7087, %v7087
  %v7288 = vpack.c.bf16 %v7088, %v7088
  %v7289 = vpack.c.bf16 %v7089, %v7089
  %v7290 = vpack.c.bf16 %v7090, %v7090
  %v7291 = vpack.c.bf16 %v7091, %v7091
  %v7292 = vpack.c.bf16 %v7092, %v7092
  %v7293 = vpack.c.bf16 %v7093, %v7093
  %v7294 = vpack.c.bf16 %v7094, %v7094
  %v7295 = vpack.c.bf16 %v7095, %v7095
  %v7296 = vpack.c.bf16 %v7096, %v7096
  %v7297 = vpack.c.bf16 %v7097, %v7097
  %v7298 = vpack.c.bf16 %v7098, %v7098
  %v7299 = vpack.c.bf16 %v7099, %v7099
  %v7300 = vpack.c.bf16 %v7100, %v7100
  %v7301 = vpack.c.bf16 %v7101, %v7101
  %v7302 = vpack.c.bf16 %v7102, %v7102
  %v7303 = vpack.c.bf16 %v7103, %v7103
  %v7304 = vpack.c.bf16 %v7104, %v7104
  %vm7305 = vcmask 44032
  %7306 = vst.msk [vmem:[%s3] sm:$0xf] %vm7305, %v7105
  %7307 = vst.msk [vmem:[%s3 + $0x4] sm:$0xf] %vm7305, %v7106
  %7308 = vst.msk [vmem:[%s3 + $0x8] sm:$0xf] %vm7305, %v7107
  %7309 = vst.msk [vmem:[%s3 + $0xc] sm:$0xf] %vm7305, %v7108
  %7310 = vst.msk [vmem:[%s3 + $0x10] sm:$0xf] %vm7305, %v7109
  %7311 = vst.msk [vmem:[%s3 + $0x14] sm:$0xf] %vm7305, %v7110
  %7312 = vst.msk [vmem:[%s3 + $0x18] sm:$0xf] %vm7305, %v7111
  %7313 = vst.msk [vmem:[%s3 + $0x1c] sm:$0xf] %vm7305, %v7112
  %7314 = vst.msk [vmem:[%s3 + $0x20] sm:$0xf] %vm7305, %v7113
  %7315 = vst.msk [vmem:[%s3 + $0x24] sm:$0xf] %vm7305, %v7114
  %7316 = vst.msk [vmem:[%s3 + $0x28] sm:$0xf] %vm7305, %v7115
  %7317 = vst.msk [vmem:[%s3 + $0x2c] sm:$0xf] %vm7305, %v7116
  %7318 = vst.msk [vmem:[%s3 + $0x30] sm:$0xf] %vm7305, %v7117
  %7319 = vst.msk [vmem:[%s3 + $0x34] sm:$0xf] %vm7305, %v7118
  %7320 = vst.msk [vmem:[%s3 + $0x38] sm:$0xf] %vm7305, %v7119
  %7321 = vst.msk [vmem:[%s3 + $0x3c] sm:$0xf] %vm7305, %v7120
  %7322 = vst.msk [vmem:[%s3 + $0x40] sm:$0xf] %vm7305, %v7121
  %7323 = vst.msk [vmem:[%s3 + $0x44] sm:$0xf] %vm7305, %v7122
  %7324 = vst.msk [vmem:[%s3 + $0x48] sm:$0xf] %vm7305, %v7123
  %7325 = vst.msk [vmem:[%s3 + $0x4c] sm:$0xf] %vm7305, %v7124
  %7326 = vst.msk [vmem:[%s3 + $0x50] sm:$0xf] %vm7305, %v7125
  %7327 = vst.msk [vmem:[%s3 + $0x54] sm:$0xf] %vm7305, %v7126
  %7328 = vst.msk [vmem:[%s3 + $0x58] sm:$0xf] %vm7305, %v7127
  %7329 = vst.msk [vmem:[%s3 + $0x5c] sm:$0xf] %vm7305, %v7128
  %7330 = vst.msk [vmem:[%s3 + $0x60] sm:$0xf] %vm7305, %v7129
  %7331 = vst.msk [vmem:[%s3 + $0x64] sm:$0xf] %vm7305, %v7130
  %7332 = vst.msk [vmem:[%s3 + $0x68] sm:$0xf] %vm7305, %v7131
  %7333 = vst.msk [vmem:[%s3 + $0x6c] sm:$0xf] %vm7305, %v7132
  %7334 = vst.msk [vmem:[%s3 + $0x70] sm:$0xf] %vm7305, %v7133
  %7335 = vst.msk [vmem:[%s3 + $0x74] sm:$0xf] %vm7305, %v7134
  %7336 = vst.msk [vmem:[%s3 + $0x78] sm:$0xf] %vm7305, %v7135
  %7337 = vst.msk [vmem:[%s3 + $0x7c] sm:$0xf] %vm7305, %v7136
  %7338 = vst.msk [vmem:[%s3 + $0x80] sm:$0xf] %vm7305, %v7137
  %7339 = vst.msk [vmem:[%s3 + $0x84] sm:$0xf] %vm7305, %v7138
  %7340 = vst.msk [vmem:[%s3 + $0x88] sm:$0xf] %vm7305, %v7139
  %7341 = vst.msk [vmem:[%s3 + $0x8c] sm:$0xf] %vm7305, %v7140
  %7342 = vst.msk [vmem:[%s3 + $0x90] sm:$0xf] %vm7305, %v7141
  %7343 = vst.msk [vmem:[%s3 + $0x94] sm:$0xf] %vm7305, %v7142
  %7344 = vst.msk [vmem:[%s3 + $0x98] sm:$0xf] %vm7305, %v7143
  %7345 = vst.msk [vmem:[%s3 + $0x9c] sm:$0xf] %vm7305, %v7144
  %7346 = vst.msk [vmem:[%s3 + $0xa0] sm:$0xf] %vm7305, %v7145
  %7347 = vst.msk [vmem:[%s3 + $0xa4] sm:$0xf] %vm7305, %v7146
  %7348 = vst.msk [vmem:[%s3 + $0xa8] sm:$0xf] %vm7305, %v7147
  %7349 = vst.msk [vmem:[%s3 + $0xac] sm:$0xf] %vm7305, %v7148
  %7350 = vst.msk [vmem:[%s3 + $0xb0] sm:$0xf] %vm7305, %v7149
  %7351 = vst.msk [vmem:[%s3 + $0xb4] sm:$0xf] %vm7305, %v7150
  %7352 = vst.msk [vmem:[%s3 + $0xb8] sm:$0xf] %vm7305, %v7151
  %7353 = vst.msk [vmem:[%s3 + $0xbc] sm:$0xf] %vm7305, %v7152
  %7354 = vst.msk [vmem:[%s3 + $0xc0] sm:$0xf] %vm7305, %v7153
  %7355 = vst.msk [vmem:[%s3 + $0xc4] sm:$0xf] %vm7305, %v7154
  %7356 = vst.msk [vmem:[%s3 + $0xc8] sm:$0xf] %vm7305, %v7155
  %7357 = vst.msk [vmem:[%s3 + $0xcc] sm:$0xf] %vm7305, %v7156
  %7358 = vst.msk [vmem:[%s3 + $0xd0] sm:$0xf] %vm7305, %v7157
  %7359 = vst.msk [vmem:[%s3 + $0xd4] sm:$0xf] %vm7305, %v7158
  %7360 = vst.msk [vmem:[%s3 + $0xd8] sm:$0xf] %vm7305, %v7159
  %7361 = vst.msk [vmem:[%s3 + $0xdc] sm:$0xf] %vm7305, %v7160
  %7362 = vst.msk [vmem:[%s3 + $0xe0] sm:$0xf] %vm7305, %v7161
  %7363 = vst.msk [vmem:[%s3 + $0xe4] sm:$0xf] %vm7305, %v7162
  %7364 = vst.msk [vmem:[%s3 + $0xe8] sm:$0xf] %vm7305, %v7163
  %7365 = vst.msk [vmem:[%s3 + $0xec] sm:$0xf] %vm7305, %v7164
  %7366 = vst.msk [vmem:[%s3 + $0xf0] sm:$0xf] %vm7305, %v7165
  %7367 = vst.msk [vmem:[%s3 + $0xf4] sm:$0xf] %vm7305, %v7166
  %7368 = vst.msk [vmem:[%s3 + $0xf8] sm:$0xf] %vm7305, %v7167
  %7369 = vst.msk [vmem:[%s3 + $0xfc] sm:$0xf] %vm7305, %v7168
  %7370 = vst.msk [vmem:[%s3 + $0x100] sm:$0xf] %vm7305, %v7169
  %7371 = vst.msk [vmem:[%s3 + $0x104] sm:$0xf] %vm7305, %v7170
  %7372 = vst.msk [vmem:[%s3 + $0x108] sm:$0xf] %vm7305, %v7171
  %7373 = vst.msk [vmem:[%s3 + $0x10c] sm:$0xf] %vm7305, %v7172
  %7374 = vst.msk [vmem:[%s3 + $0x110] sm:$0xf] %vm7305, %v7173
  %7375 = vst.msk [vmem:[%s3 + $0x114] sm:$0xf] %vm7305, %v7174
  %7376 = vst.msk [vmem:[%s3 + $0x118] sm:$0xf] %vm7305, %v7175
  %7377 = vst.msk [vmem:[%s3 + $0x11c] sm:$0xf] %vm7305, %v7176
  %7378 = vst.msk [vmem:[%s3 + $0x120] sm:$0xf] %vm7305, %v7177
  %7379 = vst.msk [vmem:[%s3 + $0x124] sm:$0xf] %vm7305, %v7178
  %7380 = vst.msk [vmem:[%s3 + $0x128] sm:$0xf] %vm7305, %v7179
  %7381 = vst.msk [vmem:[%s3 + $0x12c] sm:$0xf] %vm7305, %v7180
  %7382 = vst.msk [vmem:[%s3 + $0x130] sm:$0xf] %vm7305, %v7181
  %7383 = vst.msk [vmem:[%s3 + $0x134] sm:$0xf] %vm7305, %v7182
  %7384 = vst.msk [vmem:[%s3 + $0x138] sm:$0xf] %vm7305, %v7183
  %7385 = vst.msk [vmem:[%s3 + $0x13c] sm:$0xf] %vm7305, %v7184
  %7386 = vst.msk [vmem:[%s3 + $0x140] sm:$0xf] %vm7305, %v7185
  %7387 = vst.msk [vmem:[%s3 + $0x144] sm:$0xf] %vm7305, %v7186
  %7388 = vst.msk [vmem:[%s3 + $0x148] sm:$0xf] %vm7305, %v7187
  %7389 = vst.msk [vmem:[%s3 + $0x14c] sm:$0xf] %vm7305, %v7188
  %7390 = vst.msk [vmem:[%s3 + $0x150] sm:$0xf] %vm7305, %v7189
  %7391 = vst.msk [vmem:[%s3 + $0x154] sm:$0xf] %vm7305, %v7190
  %7392 = vst.msk [vmem:[%s3 + $0x158] sm:$0xf] %vm7305, %v7191
  %7393 = vst.msk [vmem:[%s3 + $0x15c] sm:$0xf] %vm7305, %v7192
  %7394 = vst.msk [vmem:[%s3 + $0x160] sm:$0xf] %vm7305, %v7193
  %7395 = vst.msk [vmem:[%s3 + $0x164] sm:$0xf] %vm7305, %v7194
  %7396 = vst.msk [vmem:[%s3 + $0x168] sm:$0xf] %vm7305, %v7195
  %7397 = vst.msk [vmem:[%s3 + $0x16c] sm:$0xf] %vm7305, %v7196
  %7398 = vst.msk [vmem:[%s3 + $0x170] sm:$0xf] %vm7305, %v7197
  %7399 = vst.msk [vmem:[%s3 + $0x174] sm:$0xf] %vm7305, %v7198
  %7400 = vst.msk [vmem:[%s3 + $0x178] sm:$0xf] %vm7305, %v7199
  %7401 = vst.msk [vmem:[%s3 + $0x17c] sm:$0xf] %vm7305, %v7200
  %7402 = vst.msk [vmem:[%s3 + $0x180] sm:$0xf] %vm7305, %v7201
  %7403 = vst.msk [vmem:[%s3 + $0x184] sm:$0xf] %vm7305, %v7202
  %7404 = vst.msk [vmem:[%s3 + $0x188] sm:$0xf] %vm7305, %v7203
  %7405 = vst.msk [vmem:[%s3 + $0x18c] sm:$0xf] %vm7305, %v7204
  %7406 = vst.msk [vmem:[%s3 + $0x190] sm:$0xf] %vm7305, %v7205
  %7407 = vst.msk [vmem:[%s3 + $0x194] sm:$0xf] %vm7305, %v7206
  %7408 = vst.msk [vmem:[%s3 + $0x198] sm:$0xf] %vm7305, %v7207
  %7409 = vst.msk [vmem:[%s3 + $0x19c] sm:$0xf] %vm7305, %v7208
  %7410 = vst.msk [vmem:[%s3 + $0x1a0] sm:$0xf] %vm7305, %v7209
  %7411 = vst.msk [vmem:[%s3 + $0x1a4] sm:$0xf] %vm7305, %v7210
  %7412 = vst.msk [vmem:[%s3 + $0x1a8] sm:$0xf] %vm7305, %v7211
  %7413 = vst.msk [vmem:[%s3 + $0x1ac] sm:$0xf] %vm7305, %v7212
  %7414 = vst.msk [vmem:[%s3 + $0x1b0] sm:$0xf] %vm7305, %v7213
  %7415 = vst.msk [vmem:[%s3 + $0x1b4] sm:$0xf] %vm7305, %v7214
  %7416 = vst.msk [vmem:[%s3 + $0x1b8] sm:$0xf] %vm7305, %v7215
  %7417 = vst.msk [vmem:[%s3 + $0x1bc] sm:$0xf] %vm7305, %v7216
  %7418 = vst.msk [vmem:[%s3 + $0x1c0] sm:$0xf] %vm7305, %v7217
  %7419 = vst.msk [vmem:[%s3 + $0x1c4] sm:$0xf] %vm7305, %v7218
  %7420 = vst.msk [vmem:[%s3 + $0x1c8] sm:$0xf] %vm7305, %v7219
  %7421 = vst.msk [vmem:[%s3 + $0x1cc] sm:$0xf] %vm7305, %v7220
  %7422 = vst.msk [vmem:[%s3 + $0x1d0] sm:$0xf] %vm7305, %v7221
  %7423 = vst.msk [vmem:[%s3 + $0x1d4] sm:$0xf] %vm7305, %v7222
  %7424 = vst.msk [vmem:[%s3 + $0x1d8] sm:$0xf] %vm7305, %v7223
  %7425 = vst.msk [vmem:[%s3 + $0x1dc] sm:$0xf] %vm7305, %v7224
  %7426 = vst.msk [vmem:[%s3 + $0x1e0] sm:$0xf] %vm7305, %v7225
  %7427 = vst.msk [vmem:[%s3 + $0x1e4] sm:$0xf] %vm7305, %v7226
  %7428 = vst.msk [vmem:[%s3 + $0x1e8] sm:$0xf] %vm7305, %v7227
  %7429 = vst.msk [vmem:[%s3 + $0x1ec] sm:$0xf] %vm7305, %v7228
  %7430 = vst.msk [vmem:[%s3 + $0x1f0] sm:$0xf] %vm7305, %v7229
  %7431 = vst.msk [vmem:[%s3 + $0x1f4] sm:$0xf] %vm7305, %v7230
  %7432 = vst.msk [vmem:[%s3 + $0x1f8] sm:$0xf] %vm7305, %v7231
  %7433 = vst.msk [vmem:[%s3 + $0x1fc] sm:$0xf] %vm7305, %v7232
  %7434 = vst.msk [vmem:[%s3 + $0x200] sm:$0xf] %vm7305, %v7233
  %7435 = vst.msk [vmem:[%s3 + $0x204] sm:$0xf] %vm7305, %v7234
  %7436 = vst.msk [vmem:[%s3 + $0x208] sm:$0xf] %vm7305, %v7235
  %7437 = vst.msk [vmem:[%s3 + $0x20c] sm:$0xf] %vm7305, %v7236
  %7438 = vst.msk [vmem:[%s3 + $0x210] sm:$0xf] %vm7305, %v7237
  %7439 = vst.msk [vmem:[%s3 + $0x214] sm:$0xf] %vm7305, %v7238
  %7440 = vst.msk [vmem:[%s3 + $0x218] sm:$0xf] %vm7305, %v7239
  %7441 = vst.msk [vmem:[%s3 + $0x21c] sm:$0xf] %vm7305, %v7240
  %7442 = vst.msk [vmem:[%s3 + $0x220] sm:$0xf] %vm7305, %v7241
  %7443 = vst.msk [vmem:[%s3 + $0x224] sm:$0xf] %vm7305, %v7242
  %7444 = vst.msk [vmem:[%s3 + $0x228] sm:$0xf] %vm7305, %v7243
  %7445 = vst.msk [vmem:[%s3 + $0x22c] sm:$0xf] %vm7305, %v7244
  %7446 = vst.msk [vmem:[%s3 + $0x230] sm:$0xf] %vm7305, %v7245
  %7447 = vst.msk [vmem:[%s3 + $0x234] sm:$0xf] %vm7305, %v7246
  %7448 = vst.msk [vmem:[%s3 + $0x238] sm:$0xf] %vm7305, %v7247
  %7449 = vst.msk [vmem:[%s3 + $0x23c] sm:$0xf] %vm7305, %v7248
  %7450 = vst.msk [vmem:[%s3 + $0x240] sm:$0xf] %vm7305, %v7249
  %7451 = vst.msk [vmem:[%s3 + $0x244] sm:$0xf] %vm7305, %v7250
  %7452 = vst.msk [vmem:[%s3 + $0x248] sm:$0xf] %vm7305, %v7251
  %7453 = vst.msk [vmem:[%s3 + $0x24c] sm:$0xf] %vm7305, %v7252
  %7454 = vst.msk [vmem:[%s3 + $0x250] sm:$0xf] %vm7305, %v7253
  %7455 = vst.msk [vmem:[%s3 + $0x254] sm:$0xf] %vm7305, %v7254
  %7456 = vst.msk [vmem:[%s3 + $0x258] sm:$0xf] %vm7305, %v7255
  %7457 = vst.msk [vmem:[%s3 + $0x25c] sm:$0xf] %vm7305, %v7256
  %7458 = vst.msk [vmem:[%s3 + $0x260] sm:$0xf] %vm7305, %v7257
  %7459 = vst.msk [vmem:[%s3 + $0x264] sm:$0xf] %vm7305, %v7258
  %7460 = vst.msk [vmem:[%s3 + $0x268] sm:$0xf] %vm7305, %v7259
  %7461 = vst.msk [vmem:[%s3 + $0x26c] sm:$0xf] %vm7305, %v7260
  %7462 = vst.msk [vmem:[%s3 + $0x270] sm:$0xf] %vm7305, %v7261
  %7463 = vst.msk [vmem:[%s3 + $0x274] sm:$0xf] %vm7305, %v7262
  %7464 = vst.msk [vmem:[%s3 + $0x278] sm:$0xf] %vm7305, %v7263
  %7465 = vst.msk [vmem:[%s3 + $0x27c] sm:$0xf] %vm7305, %v7264
  %7466 = vst.msk [vmem:[%s3 + $0x280] sm:$0xf] %vm7305, %v7265
  %7467 = vst.msk [vmem:[%s3 + $0x284] sm:$0xf] %vm7305, %v7266
  %7468 = vst.msk [vmem:[%s3 + $0x288] sm:$0xf] %vm7305, %v7267
  %7469 = vst.msk [vmem:[%s3 + $0x28c] sm:$0xf] %vm7305, %v7268
  %7470 = vst.msk [vmem:[%s3 + $0x290] sm:$0xf] %vm7305, %v7269
  %7471 = vst.msk [vmem:[%s3 + $0x294] sm:$0xf] %vm7305, %v7270
  %7472 = vst.msk [vmem:[%s3 + $0x298] sm:$0xf] %vm7305, %v7271
  %7473 = vst.msk [vmem:[%s3 + $0x29c] sm:$0xf] %vm7305, %v7272
  %7474 = vst.msk [vmem:[%s3 + $0x2a0] sm:$0xf] %vm7305, %v7273
  %7475 = vst.msk [vmem:[%s3 + $0x2a4] sm:$0xf] %vm7305, %v7274
  %7476 = vst.msk [vmem:[%s3 + $0x2a8] sm:$0xf] %vm7305, %v7275
  %7477 = vst.msk [vmem:[%s3 + $0x2ac] sm:$0xf] %vm7305, %v7276
  %7478 = vst.msk [vmem:[%s3 + $0x2b0] sm:$0xf] %vm7305, %v7277
  %7479 = vst.msk [vmem:[%s3 + $0x2b4] sm:$0xf] %vm7305, %v7278
  %7480 = vst.msk [vmem:[%s3 + $0x2b8] sm:$0xf] %vm7305, %v7279
  %7481 = vst.msk [vmem:[%s3 + $0x2bc] sm:$0xf] %vm7305, %v7280
  %7482 = vst.msk [vmem:[%s3 + $0x2c0] sm:$0xf] %vm7305, %v7281
  %7483 = vst.msk [vmem:[%s3 + $0x2c4] sm:$0xf] %vm7305, %v7282
  %7484 = vst.msk [vmem:[%s3 + $0x2c8] sm:$0xf] %vm7305, %v7283
  %7485 = vst.msk [vmem:[%s3 + $0x2cc] sm:$0xf] %vm7305, %v7284
  %7486 = vst.msk [vmem:[%s3 + $0x2d0] sm:$0xf] %vm7305, %v7285
  %7487 = vst.msk [vmem:[%s3 + $0x2d4] sm:$0xf] %vm7305, %v7286
  %7488 = vst.msk [vmem:[%s3 + $0x2d8] sm:$0xf] %vm7305, %v7287
  %7489 = vst.msk [vmem:[%s3 + $0x2dc] sm:$0xf] %vm7305, %v7288
  %7490 = vst.msk [vmem:[%s3 + $0x2e0] sm:$0xf] %vm7305, %v7289
  %7491 = vst.msk [vmem:[%s3 + $0x2e4] sm:$0xf] %vm7305, %v7290
  %7492 = vst.msk [vmem:[%s3 + $0x2e8] sm:$0xf] %vm7305, %v7291
  %7493 = vst.msk [vmem:[%s3 + $0x2ec] sm:$0xf] %vm7305, %v7292
  %7494 = vst.msk [vmem:[%s3 + $0x2f0] sm:$0xf] %vm7305, %v7293
  %7495 = vst.msk [vmem:[%s3 + $0x2f4] sm:$0xf] %vm7305, %v7294
  %7496 = vst.msk [vmem:[%s3 + $0x2f8] sm:$0xf] %vm7305, %v7295
  %7497 = vst.msk [vmem:[%s3 + $0x2fc] sm:$0xf] %vm7305, %v7296
  %7498 = vst.msk [vmem:[%s3 + $0x300] sm:$0xf] %vm7305, %v7297
  %7499 = vst.msk [vmem:[%s3 + $0x304] sm:$0xf] %vm7305, %v7298
  %7500 = vst.msk [vmem:[%s3 + $0x308] sm:$0xf] %vm7305, %v7299
  %7501 = vst.msk [vmem:[%s3 + $0x30c] sm:$0xf] %vm7305, %v7300
  %7502 = vst.msk [vmem:[%s3 + $0x310] sm:$0xf] %vm7305, %v7301
  %7503 = vst.msk [vmem:[%s3 + $0x314] sm:$0xf] %vm7305, %v7302
  %7504 = vst.msk [vmem:[%s3 + $0x318] sm:$0xf] %vm7305, %v7303
  %7505 = vst.msk [vmem:[%s3 + $0x31c] sm:$0xf] %vm7305, %v7304
  // Predicated region
  $region14: #{net_forward.3} parent=0 // pred_check
    _
  $region15: #{net_forward.3} parent=0 // pred_check_branch
    %7507 = sbr.rel (0) target = $region17
  $region16: #{net_forward.3} parent=0 // pred_region
    _
  $region17: #{net_forward.3} parent=0 // pred_fallthru
    _
  // Predicated region
  $region18: #{net_forward.3} parent=0 // pred_check
    _
  $region19: #{net_forward.3} parent=0 // pred_check_branch
    %7509 = sbr.rel (0) target = $region21
  $region20: #{net_forward.3} parent=0 // pred_region
    _
  $region21: #{net_forward.3} parent=0 // pred_fallthru
    _

// kernel: net_forward.5
$region0: #{net_forward.5}
  #allocation0 [shape = 'u32[]', space=smem, size = 0x4, offset = 0x4, fixed_abs, tag = 'smem constant byte address 0x4 - core index']
  #allocation1 [shape = 'u32[72,128]{1,0:T(1,128)}', space=vmem, size = 0x9000, scoped, tag = 'internal scratch']
  %s0 = inlined_call_operand.vmem [shape: bf16[8,400], index: 0, kind: input, shape index: {}]
  %s1 = inlined_call_operand.vmem [shape: bf16[400,120], index: 1, kind: input, shape index: {}]
  %s2 = inlined_call_operand.vmem [shape: f32[1,120], index: 2, kind: input, shape index: {}]
  %s3 = inlined_call_operand.vmem [shape: bf16[120,84], index: 3, kind: input, shape index: {}]
  %s4 = inlined_call_operand.vmem [shape: f32[1,84], index: 4, kind: input, shape index: {}]
  %s5 = inlined_call_operand.vmem [shape: bf16[84,10], index: 5, kind: input, shape index: {}]
  %s6 = inlined_call_operand.vmem [shape: f32[1,10], index: 6, kind: input, shape index: {}]
  %s7 = inlined_call_operand.hbm [shape: f32[8,10], index: 7, kind: output, shape index: {}]
  %s8 = sld [smem:[#allocation0]]
  $region38: #{net_forward.5} parent=0
    _
  %s10 = ssub.s32 1, %s8
  %s11 = scalar_select 0, %s10, %s8
  $region1: #{net_forward.5} parent=0
    #allocation2 [shape = 'u8[4096]{0}', space=vmem, size = 0x1000, scoped, tag = 'output window, operand 0, single buffered']
    #allocation3 [shape = 's32[1]{0}', space=sflag, size = 0x4, scoped, tag = 'scoped memory for net_forward.5']
    %12 = vsyncpa [#allocation3], 0
    // Predicated region
    $region2: #{net_forward.5} parent=1 // pred_check
      _
    $region3: #{net_forward.5} parent=1 // pred_check_branch
      %14 = sbr.rel (0) target = $region5
    $region4: #{net_forward.5} parent=1 // pred_region
      _
    $region5: #{net_forward.5} parent=1 // pred_fallthru
      _
    // Predicated region
    $region6: #{net_forward.5} parent=1 // pred_check
      _
    $region7: #{net_forward.5} parent=1 // pred_check_branch
      %16 = sbr.rel (0) target = $region9
    $region8: #{net_forward.5} parent=1 // pred_region
      _
    $region9: #{net_forward.5} parent=1 // pred_fallthru
      _
    // Predicated region
    $region10: #{net_forward.5} parent=1 // pred_check
      _
    $region11: #{net_forward.5} parent=1 // pred_check_branch
      %18 = sbr.rel (0) target = $region13
    $region12: #{net_forward.5} parent=1 // pred_region
      _
    $region13: #{net_forward.5} parent=1 // pred_fallthru
      _
    // Predicated region
    $region14: #{net_forward.5} parent=1 // pred_check
      _
    $region15: #{net_forward.5} parent=1 // pred_check_branch
      %20 = sbr.rel (0) target = $region17
    $region16: #{net_forward.5} parent=1 // pred_region
      _
    $region17: #{net_forward.5} parent=1 // pred_fallthru
      _
    // Predicated region
    $region18: #{net_forward.5} parent=1 // pred_check
      _
    $region19: #{net_forward.5} parent=1 // pred_check_branch
      %22 = sbr.rel (0) target = $region21
    $region20: #{net_forward.5} parent=1 // pred_region
      _
    $region21: #{net_forward.5} parent=1 // pred_fallthru
      _
    // Predicated region
    $region22: #{net_forward.5} parent=1 // pred_check
      _
    $region23: #{net_forward.5} parent=1 // pred_check_branch
      %24 = sbr.rel (0) target = $region25
    $region24: #{net_forward.5} parent=1 // pred_region
      _
    $region25: #{net_forward.5} parent=1 // pred_fallthru
      _
    // Predicated region
    $region26: #{net_forward.5} parent=1 // pred_check
      _
    $region27: #{net_forward.5} parent=1 // pred_check_branch
      %26 = sbr.rel (0) target = $region29
    $region28: #{net_forward.5} parent=1 // pred_region
      _
    $region29: #{net_forward.5} parent=1 // pred_fallthru
      _
    %v28 = vld [vmem:[%s0] sm:$0xff]
    %v29 = vld [vmem:[%s0 + $0x8] sm:$0xff]
    %v30 = vld [vmem:[%s1] sm:$0xf]
    %v31 = vld [vmem:[%s1 + $0x4] sm:$0xf]
    %v32 = vld [vmem:[%s1 + $0x8] sm:$0xf]
    %v33 = vld [vmem:[%s1 + $0xc] sm:$0xf]
    %v34 = vld [vmem:[%s1 + $0x10] sm:$0xf]
    %v35 = vld [vmem:[%s1 + $0x14] sm:$0xf]
    %v36 = vld [vmem:[%s1 + $0x18] sm:$0xf]
    %v37 = vld [vmem:[%s1 + $0x1c] sm:$0xf]
    %v38 = vld [vmem:[%s1 + $0x20] sm:$0xf]
    %v39 = vld [vmem:[%s1 + $0x24] sm:$0xf]
    %v40 = vld [vmem:[%s1 + $0x28] sm:$0xf]
    %v41 = vld [vmem:[%s1 + $0x2c] sm:$0xf]
    %v42 = vld [vmem:[%s1 + $0x30] sm:$0xf]
    %v43 = vld [vmem:[%s1 + $0x34] sm:$0xf]
    %v44 = vld [vmem:[%s1 + $0x38] sm:$0xf]
    %v45 = vld [vmem:[%s1 + $0x3c] sm:$0xf]
    %v46 = vld [vmem:[%s1 + $0x40] sm:$0xf]
    %v47 = vld [vmem:[%s1 + $0x44] sm:$0xf]
    %v48 = vld [vmem:[%s1 + $0x48] sm:$0xf]
    %v49 = vld [vmem:[%s1 + $0x4c] sm:$0xf]
    %v50 = vld [vmem:[%s1 + $0x50] sm:$0xf]
    %v51 = vld [vmem:[%s1 + $0x54] sm:$0xf]
    %v52 = vld [vmem:[%s1 + $0x58] sm:$0xf]
    %v53 = vld [vmem:[%s1 + $0x5c] sm:$0xf]
    %v54 = vld [vmem:[%s1 + $0x60] sm:$0xf]
    %v55 = vld [vmem:[%s1 + $0x64] sm:$0xf]
    %v56 = vld [vmem:[%s1 + $0x68] sm:$0xf]
    %v57 = vld [vmem:[%s1 + $0x6c] sm:$0xf]
    %v58 = vld [vmem:[%s1 + $0x70] sm:$0xf]
    %v59 = vld [vmem:[%s1 + $0x74] sm:$0xf]
    %v60 = vld [vmem:[%s1 + $0x78] sm:$0xf]
    %v61 = vld [vmem:[%s1 + $0x7c] sm:$0xf]
    %v62 = vld [vmem:[%s1 + $0x80] sm:$0xf]
    %v63 = vld [vmem:[%s1 + $0x84] sm:$0xf]
    %v64 = vld [vmem:[%s1 + $0x88] sm:$0xf]
    %v65 = vld [vmem:[%s1 + $0x8c] sm:$0xf]
    %v66 = vld [vmem:[%s1 + $0x90] sm:$0xf]
    %v67 = vld [vmem:[%s1 + $0x94] sm:$0xf]
    %v68 = vld [vmem:[%s1 + $0x98] sm:$0xf]
    %v69 = vld [vmem:[%s1 + $0x9c] sm:$0xf]
    %v70 = vld [vmem:[%s1 + $0xa0] sm:$0xf]
    %v71 = vld [vmem:[%s1 + $0xa4] sm:$0xf]
    %v72 = vld [vmem:[%s1 + $0xa8] sm:$0xf]
    %v73 = vld [vmem:[%s1 + $0xac] sm:$0xf]
    %v74 = vld [vmem:[%s1 + $0xb0] sm:$0xf]
    %v75 = vld [vmem:[%s1 + $0xb4] sm:$0xf]
    %v76 = vld [vmem:[%s1 + $0xb8] sm:$0xf]
    %v77 = vld [vmem:[%s1 + $0xbc] sm:$0xf]
    %v78 = vld [vmem:[%s1 + $0xc0] sm:$0xf]
    %v79 = vld [vmem:[%s1 + $0xc4] sm:$0xf]
    %v80 = vld [vmem:[%s2] sm:$0x1]
    %v82 = vperm.slane %v80, 0
    %v86 = vunpack.c.l.b16 %v28
    %v87 = vunpack.c.h.b16 %v28
    %v88 = vunpack.c.l.b16 %v29
    %v89 = vunpack.c.h.b16 %v29
    %v90 = vpack.c.b16 %v86, %v86
    %v91 = vpack.c.b16 %v87, %v87
    %v92 = vpack.c.b16 %v88, %v88
    %v93 = vpack.c.b16 %v89, %v89
    %v147 = vunpack.c.l.b16 %v30
    %v148 = vunpack.c.l.b16 %v31
    %v149 = vunpack.c.l.b16 %v32
    %v150 = vunpack.c.l.b16 %v33
    %v151 = vunpack.c.l.b16 %v34
    %v152 = vunpack.c.l.b16 %v35
    %v153 = vunpack.c.l.b16 %v36
    %v154 = vunpack.c.l.b16 %v37
    %v155 = vunpack.c.l.b16 %v38
    %v156 = vunpack.c.l.b16 %v39
    %v157 = vunpack.c.l.b16 %v40
    %v158 = vunpack.c.l.b16 %v41
    %v159 = vunpack.c.l.b16 %v42
    %v160 = vunpack.c.l.b16 %v43
    %v161 = vunpack.c.l.b16 %v44
    %v162 = vunpack.c.l.b16 %v45
    %v163 = vunpack.c.l.b16 %v46
    %v164 = vunpack.c.l.b16 %v47
    %v165 = vunpack.c.l.b16 %v48
    %v166 = vunpack.c.l.b16 %v49
    %v167 = vunpack.c.l.b16 %v50
    %v168 = vunpack.c.l.b16 %v51
    %v169 = vunpack.c.l.b16 %v52
    %v170 = vunpack.c.l.b16 %v53
    %v171 = vunpack.c.l.b16 %v54
    %v172 = vunpack.c.l.b16 %v55
    %v173 = vunpack.c.l.b16 %v56
    %v174 = vunpack.c.l.b16 %v57
    %v175 = vunpack.c.l.b16 %v58
    %v176 = vunpack.c.l.b16 %v59
    %v177 = vunpack.c.l.b16 %v60
    %v178 = vunpack.c.l.b16 %v61
    %v179 = vunpack.c.l.b16 %v62
    %v180 = vunpack.c.l.b16 %v63
    %v181 = vunpack.c.l.b16 %v64
    %v182 = vunpack.c.l.b16 %v65
    %v183 = vunpack.c.l.b16 %v66
    %v184 = vunpack.c.l.b16 %v67
    %v185 = vunpack.c.l.b16 %v68
    %v186 = vunpack.c.l.b16 %v69
    %v187 = vunpack.c.l.b16 %v70
    %v188 = vunpack.c.l.b16 %v71
    %v189 = vunpack.c.l.b16 %v72
    %v190 = vunpack.c.l.b16 %v73
    %v191 = vunpack.c.l.b16 %v74
    %v192 = vunpack.c.l.b16 %v75
    %v193 = vunpack.c.l.b16 %v76
    %v194 = vunpack.c.l.b16 %v77
    %v195 = vunpack.c.l.b16 %v78
    %v196 = vunpack.c.l.b16 %v79
    %v197 = vpack.c.b16 %v148, %v147
    %v198 = vpack.c.b16 %v150, %v149
    %v199 = vpack.c.b16 %v152, %v151
    %v200 = vpack.c.b16 %v154, %v153
    %v201 = vpack.c.b16 %v156, %v155
    %v202 = vpack.c.b16 %v158, %v157
    %v203 = vpack.c.b16 %v160, %v159
    %v204 = vpack.c.b16 %v162, %v161
    %v205 = vpack.c.b16 %v164, %v163
    %v206 = vpack.c.b16 %v166, %v165
    %v207 = vpack.c.b16 %v168, %v167
    %v208 = vpack.c.b16 %v170, %v169
    %v209 = vpack.c.b16 %v172, %v171
    %v210 = vpack.c.b16 %v174, %v173
    %v211 = vpack.c.b16 %v176, %v175
    %v212 = vpack.c.b16 %v178, %v177
    %v213 = vpack.c.b16 %v180, %v179
    %v214 = vpack.c.b16 %v182, %v181
    %v215 = vpack.c.b16 %v184, %v183
    %v216 = vpack.c.b16 %v186, %v185
    %v217 = vpack.c.b16 %v188, %v187
    %v218 = vpack.c.b16 %v190, %v189
    %v219 = vpack.c.b16 %v192, %v191
    %v220 = vpack.c.b16 %v194, %v193
    %v221 = vpack.c.b16 %v196, %v195
    %vm247 = vcmask 130048
    %v249 = vsel %vm247, %v93, 0
    %251 = vmatpush.bf16.msra.mxu0 %v204
    %252 = vmatpush.bf16.msra.mxu0 %v203
    %253 = vmatpush.bf16.msra.mxu0 %v202
    %254 = vmatpush.bf16.msra.mxu0 %v201
    %255 = vmatpush.bf16.msra.mxu0 %v200
    %256 = vmatpush.bf16.msra.mxu0 %v199
    %257 = vmatpush.bf16.msra.mxu0 %v198
    %258 = vmatpush.bf16.msra.mxu0 %v197
    %259 = vmatmul.bf16.gmra.mxu0 %v90
    %v260 = vpop.f32.mrf.mxu0
    %v261 = vadd.f32 %v82, %v260
    %v262 = vpop.f32.mrf.mxu0
    %263 = vdwg.mxu0
    %264 = vmatpush.bf16.msra.mxu0 %v212
    %265 = vmatpush.bf16.msra.mxu0 %v211
    %266 = vmatpush.bf16.msra.mxu0 %v210
    %267 = vmatpush.bf16.msra.mxu0 %v209
    %268 = vmatpush.bf16.msra.mxu0 %v208
    %269 = vmatpush.bf16.msra.mxu0 %v207
    %270 = vmatpush.bf16.msra.mxu0 %v206
    %271 = vmatpush.bf16.msra.mxu0 %v205
    %272 = vmatmul.bf16.gmra.mxu0 %v91
    %v273 = vpop.f32.mrf.mxu0
    %v274 = vadd.f32 %v261, %v273
    %v275 = vpop.f32.mrf.mxu0
    %276 = vdwg.mxu0
    %277 = vmatpush.bf16.msra.mxu0 %v220
    %278 = vmatpush.bf16.msra.mxu0 %v219
    %279 = vmatpush.bf16.msra.mxu0 %v218
    %280 = vmatpush.bf16.msra.mxu0 %v217
    %281 = vmatpush.bf16.msra.mxu0 %v216
    %282 = vmatpush.bf16.msra.mxu0 %v215
    %283 = vmatpush.bf16.msra.mxu0 %v214
    %284 = vmatpush.bf16.msra.mxu0 %v213
    %285 = vmatmul.bf16.gmra.mxu0 %v92
    %v286 = vpop.f32.mrf.mxu0
    %v287 = vadd.f32 %v274, %v286
    %v288 = vpop.f32.mrf.mxu0
    %289 = vdwg.mxu0
    %290 = vmatpush.bf16.msra.mxu0 0
    %291 = vmatpush.bf16.msra.mxu0 0
    %292 = vmatpush.bf16.msra.mxu0 0
    %293 = vmatpush.bf16.msra.mxu0 0
    %294 = vmatpush.bf16.msra.mxu0 0
    %295 = vmatpush.bf16.msra.mxu0 0
    %296 = vmatpush.bf16.msra.mxu0 0
    %297 = vmatpush.bf16.msra.mxu0 %v221
    %298 = vmatmul.bf16.gmra.mxu0 %v249
    %v299 = vpop.f32.mrf.mxu0
    %v300 = vadd.f32 %v287, %v299
    %v301 = vpop.f32.mrf.mxu0
    %302 = vdwg.mxu0
    %v303 = vmax.f32 %v300, 0.0
    %v304 = vpack.c.bf16 %v303, %v303
    %v305 = vld [vmem:[%s3] sm:$0xf]
    %v306 = vld [vmem:[%s3 + $0x4] sm:$0xf]
    %v307 = vld [vmem:[%s3 + $0x8] sm:$0xf]
    %v308 = vld [vmem:[%s3 + $0xc] sm:$0xf]
    %v309 = vld [vmem:[%s3 + $0x10] sm:$0xf]
    %v310 = vld [vmem:[%s3 + $0x14] sm:$0xf]
    %v311 = vld [vmem:[%s3 + $0x18] sm:$0xf]
    %v312 = vld [vmem:[%s3 + $0x1c] sm:$0xf]
    %v313 = vld [vmem:[%s3 + $0x20] sm:$0xf]
    %v314 = vld [vmem:[%s3 + $0x24] sm:$0xf]
    %v315 = vld [vmem:[%s3 + $0x28] sm:$0xf]
    %v316 = vld [vmem:[%s3 + $0x2c] sm:$0xf]
    %v317 = vld [vmem:[%s3 + $0x30] sm:$0xf]
    %v318 = vld [vmem:[%s3 + $0x34] sm:$0xf]
    %v319 = vld [vmem:[%s3 + $0x38] sm:$0xf]
    %v320 = vld [vmem:[%s4] sm:$0x1]
    %v322 = vperm.slane %v320, 0
    %v339 = vunpack.c.l.b16 %v305
    %v340 = vunpack.c.l.b16 %v306
    %v341 = vunpack.c.l.b16 %v307
    %v342 = vunpack.c.l.b16 %v308
    %v343 = vunpack.c.l.b16 %v309
    %v344 = vunpack.c.l.b16 %v310
    %v345 = vunpack.c.l.b16 %v311
    %v346 = vunpack.c.l.b16 %v312
    %v347 = vunpack.c.l.b16 %v313
    %v348 = vunpack.c.l.b16 %v314
    %v349 = vunpack.c.l.b16 %v315
    %v350 = vunpack.c.l.b16 %v316
    %v351 = vunpack.c.l.b16 %v317
    %v352 = vunpack.c.l.b16 %v318
    %v353 = vunpack.c.l.b16 %v319
    %v354 = vpack.c.b16 %v340, %v339
    %v355 = vpack.c.b16 %v342, %v341
    %v356 = vpack.c.b16 %v344, %v343
    %v357 = vpack.c.b16 %v346, %v345
    %v358 = vpack.c.b16 %v348, %v347
    %v359 = vpack.c.b16 %v350, %v349
    %v360 = vpack.c.b16 %v352, %v351
    %v361 = vpack.c.b16 %v353, %v353
    %vm369 = vcmask 982016
    %v371 = vsel %vm369, %v304, 0
    %vm373 = vcmask 1043456
    %v375 = vsel %vm373, %v361, 0
    %377 = vmatpush.bf16.msra.mxu0 %v375
    %378 = vmatpush.bf16.msra.mxu0 %v360
    %379 = vmatpush.bf16.msra.mxu0 %v359
    %380 = vmatpush.bf16.msra.mxu0 %v358
    %381 = vmatpush.bf16.msra.mxu0 %v357
    %382 = vmatpush.bf16.msra.mxu0 %v356
    %383 = vmatpush.bf16.msra.mxu0 %v355
    %384 = vmatpush.bf16.msra.mxu0 %v354
    %385 = vmatmul.bf16.gmra.mxu0 %v371
    %v386 = vpop.f32.mrf.mxu0
    %v387 = vadd.f32 %v322, %v386
    %v388 = vpop.f32.mrf.mxu0
    %389 = vdwg.mxu0
    %v390 = vmax.f32 %v387, 0.0
    %v391 = vpack.c.bf16 %v390, %v390
    %v392 = vld [vmem:[%s5] sm:$0xf]
    %v393 = vld [vmem:[%s5 + $0x4] sm:$0xf]
    %v394 = vld [vmem:[%s5 + $0x8] sm:$0xf]
    %v395 = vld [vmem:[%s5 + $0xc] sm:$0xf]
    %v396 = vld [vmem:[%s5 + $0x10] sm:$0xf]
    %v397 = vld [vmem:[%s5 + $0x14] sm:$0xf]
    %v398 = vld [vmem:[%s5 + $0x18] sm:$0xf]
    %v399 = vld [vmem:[%s5 + $0x1c] sm:$0xf]
    %v400 = vld [vmem:[%s5 + $0x20] sm:$0xf]
    %v401 = vld [vmem:[%s5 + $0x24] sm:$0xf]
    %v402 = vld [vmem:[%s5 + $0x28] sm:$0x3]
    %v403 = vld [vmem:[%s6] sm:$0x1]
    %v405 = vperm.slane %v403, 0
    %v418 = vunpack.c.l.b16 %v392
    %v419 = vunpack.c.l.b16 %v393
    %v420 = vunpack.c.l.b16 %v394
    %v421 = vunpack.c.l.b16 %v395
    %v422 = vunpack.c.l.b16 %v396
    %v423 = vunpack.c.l.b16 %v397
    %v424 = vunpack.c.l.b16 %v398
    %v425 = vunpack.c.l.b16 %v399
    %v426 = vunpack.c.l.b16 %v400
    %v427 = vunpack.c.l.b16 %v401
    %v428 = vunpack.c.l.b16 %v402
    %v429 = vpack.c.b16 %v419, %v418
    %v430 = vpack.c.b16 %v421, %v420
    %v431 = vpack.c.b16 %v423, %v422
    %v432 = vpack.c.b16 %v425, %v424
    %v433 = vpack.c.b16 %v427, %v426
    %v434 = vpack.c.b16 %v428, %v428
    %vm440 = vcmask 687104
    %v442 = vsel %vm440, %v391, 0
    %vm444 = vcmask 1041408
    %v446 = vsel %vm444, %v434, 0
    %448 = vmatpush.bf16.msra.mxu0 0
    %449 = vmatpush.bf16.msra.mxu0 0
    %450 = vmatpush.bf16.msra.mxu0 %v446
    %451 = vmatpush.bf16.msra.mxu0 %v433
    %452 = vmatpush.bf16.msra.mxu0 %v432
    %453 = vmatpush.bf16.msra.mxu0 %v431
    %454 = vmatpush.bf16.msra.mxu0 %v430
    %455 = vmatpush.bf16.msra.mxu0 %v429
    %456 = vmatmul.bf16.gmra.mxu0 %v442
    %v457 = vpop.f32.mrf.mxu0
    %v458 = vadd.f32 %v405, %v457
    %v459 = vpop.f32.mrf.mxu0
    %460 = vdwg.mxu0
    %vm461 = vcmask 80896
    %462 = vst.msk [vmem:[#allocation2] sm:$0xff] %vm461, %v458
    // Predicated region
    $region30: #{net_forward.5} parent=1 // pred_check
      _
    $region31: #{net_forward.5} parent=1 // pred_check_branch
      %464 = sbr.rel (0) target = $region33
    $region32: #{net_forward.5} parent=1 // pred_region
      %466 = vsyncadd [#allocation3], 0
      %s468 = sshll.u32 [#allocation2], 4
      %s469 = int_to_ptr.vmem [resolvable:$true] %s468
      %s470 = sshll.u32 %s7, 4
      %s471 = int_to_ptr.hbm [resolvable:$true] %s470
      %473 = dma.vmem_to_hbm [thread:$0]  %s469, 128, %s471, [#allocation3]
    $region33: #{net_forward.5} parent=1 // pred_fallthru
      _
    // Predicated region
    $region34: #{net_forward.5} parent=1 // pred_check
      _
    $region35: #{net_forward.5} parent=1 // pred_check_branch
      %475 = sbr.rel (0) target = $region37
    $region36: #{net_forward.5} parent=1 // pred_region
      %477 = dma.done [#allocation3], 128
    $region37: #{net_forward.5} parent=1 // pred_fallthru
      _
    %478 = vsyncpa [#allocation3], 1

// kernel: net_forward.4
$region0: #{net_forward.4}
  #allocation0 [shape = 'u32[]', space=smem, size = 0x4, offset = 0x4, fixed_abs, tag = 'smem constant byte address 0x4 - core index']
  #allocation1 [shape = 'u32[72,128]{1,0:T(1,128)}', space=vmem, size = 0x9000, scoped, tag = 'internal scratch']
  %s0 = inlined_call_operand.vmem [shape: bf16[4,256,150], index: 0, kind: input, shape index: {}]
  %s1 = inlined_call_operand.vmem [shape: bf16[150,16], index: 1, kind: input, shape index: {}]
  %s2 = inlined_call_operand.vmem [shape: f32[1,16], index: 2, kind: input, shape index: {}]
  %s3 = inlined_call_operand.vmem [shape: bf16[256,16], index: 3, kind: output, shape index: {}]
  %s4 = sld [smem:[#allocation0]]
  $region22: #{net_forward.4} parent=0
    _
  %s6 = ssub.s32 1, %s4
  %s7 = scalar_select 0, %s6, %s4
  // Predicated region
  $region2: #{net_forward.4} parent=0 // pred_check
    _
  $region3: #{net_forward.4} parent=0 // pred_check_branch
    %9 = sbr.rel (0) target = $region5
  $region4: #{net_forward.4} parent=0 // pred_region
    _
  $region5: #{net_forward.4} parent=0 // pred_fallthru
    _
  // Predicated region
  $region6: #{net_forward.4} parent=0 // pred_check
    _
  $region7: #{net_forward.4} parent=0 // pred_check_branch
    %11 = sbr.rel (0) target = $region9
  $region8: #{net_forward.4} parent=0 // pred_region
    _
  $region9: #{net_forward.4} parent=0 // pred_fallthru
    _
  // Predicated region
  $region10: #{net_forward.4} parent=0 // pred_check
    _
  $region11: #{net_forward.4} parent=0 // pred_check_branch
    %13 = sbr.rel (0) target = $region13
  $region12: #{net_forward.4} parent=0 // pred_region
    _
  $region13: #{net_forward.4} parent=0 // pred_fallthru
    _
  %v15 = vld [vmem:[%s1] sm:$0xf]
  %v16 = vld [vmem:[%s1 + $0x4] sm:$0xf]
  %v17 = vld [vmem:[%s1 + $0x8] sm:$0xf]
  %v18 = vld [vmem:[%s1 + $0xc] sm:$0xf]
  %v19 = vld [vmem:[%s1 + $0x10] sm:$0xf]
  %v20 = vld [vmem:[%s1 + $0x14] sm:$0xf]
  %v21 = vld [vmem:[%s1 + $0x18] sm:$0xf]
  %v22 = vld [vmem:[%s1 + $0x1c] sm:$0xf]
  %v23 = vld [vmem:[%s1 + $0x20] sm:$0xf]
  %v24 = vld [vmem:[%s1 + $0x24] sm:$0xf]
  %v25 = vld [vmem:[%s1 + $0x28] sm:$0xf]
  %v26 = vld [vmem:[%s1 + $0x2c] sm:$0xf]
  %v27 = vld [vmem:[%s1 + $0x30] sm:$0xf]
  %v28 = vld [vmem:[%s1 + $0x34] sm:$0xf]
  %v29 = vld [vmem:[%s1 + $0x38] sm:$0xf]
  %v30 = vld [vmem:[%s1 + $0x3c] sm:$0xf]
  %v31 = vld [vmem:[%s1 + $0x40] sm:$0xf]
  %v32 = vld [vmem:[%s1 + $0x44] sm:$0xf]
  %v33 = vld [vmem:[%s1 + $0x48] sm:$0x7]
  %v34 = vld [vmem:[%s0] sm:$0xff]
  %v35 = vld [vmem:[%s0 + $0x8] sm:$0xff]
  %v36 = vld [vmem:[%s0 + $0x10] sm:$0xff]
  %v37 = vld [vmem:[%s0 + $0x18] sm:$0xff]
  %v38 = vld [vmem:[%s0 + $0x20] sm:$0xff]
  %v39 = vld [vmem:[%s0 + $0x28] sm:$0xff]
  %v40 = vld [vmem:[%s0 + $0x30] sm:$0xff]
  %v41 = vld [vmem:[%s0 + $0x38] sm:$0xff]
  %v42 = vld [vmem:[%s0 + $0x40] sm:$0xff]
  %v43 = vld [vmem:[%s0 + $0x48] sm:$0xff]
  %v44 = vld [vmem:[%s0 + $0x50] sm:$0xff]
  %v45 = vld [vmem:[%s0 + $0x58] sm:$0xff]
  %v46 = vld [vmem:[%s0 + $0x60] sm:$0xff]
  %v47 = vld [vmem:[%s0 + $0x68] sm:$0xff]
  %v48 = vld [vmem:[%s0 + $0x70] sm:$0xff]
  %v49 = vld [vmem:[%s0 + $0x78] sm:$0xff]
  %v50 = vld [vmem:[%s0 + $0x80] sm:$0xff]
  %v51 = vld [vmem:[%s0 + $0x88] sm:$0xff]
  %v52 = vld [vmem:[%s0 + $0x90] sm:$0xff]
  %v53 = vld [vmem:[%s0 + $0x98] sm:$0xff]
  %v54 = vld [vmem:[%s0 + $0xa0] sm:$0xff]
  %v55 = vld [vmem:[%s0 + $0xa8] sm:$0xff]
  %v56 = vld [vmem:[%s0 + $0xb0] sm:$0xff]
  %v57 = vld [vmem:[%s0 + $0xb8] sm:$0xff]
  %v58 = vld [vmem:[%s0 + $0xc0] sm:$0xff]
  %v59 = vld [vmem:[%s0 + $0xc8] sm:$0xff]
  %v60 = vld [vmem:[%s0 + $0xd0] sm:$0xff]
  %v61 = vld [vmem:[%s0 + $0xd8] sm:$0xff]
  %v62 = vld [vmem:[%s0 + $0xe0] sm:$0xff]
  %v63 = vld [vmem:[%s0 + $0xe8] sm:$0xff]
  %v64 = vld [vmem:[%s0 + $0xf0] sm:$0xff]
  %v65 = vld [vmem:[%s0 + $0xf8] sm:$0xff]
  %v98 = vunpack.c.l.b16 %v34
  %v99 = vunpack.c.h.b16 %v34
  %v100 = vunpack.c.l.b16 %v35
  %v101 = vunpack.c.h.b16 %v35
  %v102 = vunpack.c.l.b16 %v36
  %v103 = vunpack.c.h.b16 %v36
  %v104 = vunpack.c.l.b16 %v37
  %v105 = vunpack.c.h.b16 %v37
  %v106 = vunpack.c.l.b16 %v38
  %v107 = vunpack.c.h.b16 %v38
  %v108 = vunpack.c.l.b16 %v39
  %v109 = vunpack.c.h.b16 %v39
  %v110 = vunpack.c.l.b16 %v40
  %v111 = vunpack.c.h.b16 %v40
  %v112 = vunpack.c.l.b16 %v41
  %v113 = vunpack.c.h.b16 %v41
  %v114 = vunpack.c.l.b16 %v42
  %v115 = vunpack.c.h.b16 %v42
  %v116 = vunpack.c.l.b16 %v43
  %v117 = vunpack.c.h.b16 %v43
  %v118 = vunpack.c.l.b16 %v44
  %v119 = vunpack.c.h.b16 %v44
  %v120 = vunpack.c.l.b16 %v45
  %v121 = vunpack.c.h.b16 %v45
  %v122 = vunpack.c.l.b16 %v46
  %v123 = vunpack.c.h.b16 %v46
  %v124 = vunpack.c.l.b16 %v47
  %v125 = vunpack.c.h.b16 %v47
  %v126 = vunpack.c.l.b16 %v48
  %v127 = vunpack.c.h.b16 %v48
  %v128 = vunpack.c.l.b16 %v49
  %v129 = vunpack.c.h.b16 %v49
  %v130 = vunpack.c.l.b16 %v50
  %v131 = vunpack.c.h.b16 %v50
  %v132 = vunpack.c.l.b16 %v51
  %v133 = vunpack.c.h.b16 %v51
  %v134 = vunpack.c.l.b16 %v52
  %v135 = vunpack.c.h.b16 %v52
  %v136 = vunpack.c.l.b16 %v53
  %v137 = vunpack.c.h.b16 %v53
  %v138 = vunpack.c.l.b16 %v54
  %v139 = vunpack.c.h.b16 %v54
  %v140 = vunpack.c.l.b16 %v55
  %v141 = vunpack.c.h.b16 %v55
  %v142 = vunpack.c.l.b16 %v56
  %v143 = vunpack.c.h.b16 %v56
  %v144 = vunpack.c.l.b16 %v57
  %v145 = vunpack.c.h.b16 %v57
  %v146 = vunpack.c.l.b16 %v58
  %v147 = vunpack.c.h.b16 %v58
  %v148 = vunpack.c.l.b16 %v59
  %v149 = vunpack.c.h.b16 %v59
  %v150 = vunpack.c.l.b16 %v60
  %v151 = vunpack.c.h.b16 %v60
  %v152 = vunpack.c.l.b16 %v61
  %v153 = vunpack.c.h.b16 %v61
  %v154 = vunpack.c.l.b16 %v62
  %v155 = vunpack.c.h.b16 %v62
  %v156 = vunpack.c.l.b16 %v63
  %v157 = vunpack.c.h.b16 %v63
  %v158 = vunpack.c.l.b16 %v64
  %v159 = vunpack.c.h.b16 %v64
  %v160 = vunpack.c.l.b16 %v65
  %v161 = vunpack.c.h.b16 %v65
  %v162 = vpack.c.b16 %v100, %v98
  %v163 = vpack.c.b16 %v101, %v99
  %v164 = vpack.c.b16 %v104, %v102
  %v165 = vpack.c.b16 %v105, %v103
  %v166 = vpack.c.b16 %v108, %v106
  %v167 = vpack.c.b16 %v109, %v107
  %v168 = vpack.c.b16 %v112, %v110
  %v169 = vpack.c.b16 %v113, %v111
  %v170 = vpack.c.b16 %v116, %v114
  %v171 = vpack.c.b16 %v117, %v115
  %v172 = vpack.c.b16 %v120, %v118
  %v173 = vpack.c.b16 %v121, %v119
  %v174 = vpack.c.b16 %v124, %v122
  %v175 = vpack.c.b16 %v125, %v123
  %v176 = vpack.c.b16 %v128, %v126
  %v177 = vpack.c.b16 %v129, %v127
  %v178 = vpack.c.b16 %v132, %v130
  %v179 = vpack.c.b16 %v133, %v131
  %v180 = vpack.c.b16 %v136, %v134
  %v181 = vpack.c.b16 %v137, %v135
  %v182 = vpack.c.b16 %v140, %v138
  %v183 = vpack.c.b16 %v141, %v139
  %v184 = vpack.c.b16 %v144, %v142
  %v185 = vpack.c.b16 %v145, %v143
  %v186 = vpack.c.b16 %v148, %v146
  %v187 = vpack.c.b16 %v149, %v147
  %v188 = vpack.c.b16 %v152, %v150
  %v189 = vpack.c.b16 %v153, %v151
  %v190 = vpack.c.b16 %v156, %v154
  %v191 = vpack.c.b16 %v157, %v155
  %v192 = vpack.c.b16 %v160, %v158
  %v193 = vpack.c.b16 %v161, %v159
  %v229 = vunpack.c.l.b16 %v15
  %v230 = vunpack.c.l.b16 %v16
  %v231 = vunpack.c.l.b16 %v17
  %v232 = vunpack.c.l.b16 %v18
  %v233 = vunpack.c.l.b16 %v19
  %v234 = vunpack.c.l.b16 %v20
  %v235 = vunpack.c.l.b16 %v21
  %v236 = vunpack.c.l.b16 %v22
  %v237 = vunpack.c.l.b16 %v23
  %v238 = vunpack.c.l.b16 %v24
  %v239 = vunpack.c.l.b16 %v25
  %v240 = vunpack.c.l.b16 %v26
  %v241 = vunpack.c.l.b16 %v27
  %v242 = vunpack.c.l.b16 %v28
  %v243 = vunpack.c.l.b16 %v29
  %v244 = vunpack.c.l.b16 %v30
  %v245 = vunpack.c.l.b16 %v31
  %v246 = vunpack.c.l.b16 %v32
  %v247 = vunpack.c.l.b16 %v33
  %v248 = vpack.c.b16 %v230, %v229
  %v249 = vpack.c.b16 %v232, %v231
  %v250 = vpack.c.b16 %v234, %v233
  %v251 = vpack.c.b16 %v236, %v235
  %v252 = vpack.c.b16 %v238, %v237
  %v253 = vpack.c.b16 %v240, %v239
  %v254 = vpack.c.b16 %v242, %v241
  %v255 = vpack.c.b16 %v244, %v243
  %v256 = vpack.c.b16 %v246, %v245
  %v257 = vpack.c.b16 %v247, %v247
  %vm267 = vcmask 179200
  %v269 = vsel %vm267, %v163, 0
  %v272 = vsel %vm267, %v165, 0
  %v275 = vsel %vm267, %v167, 0
  %v278 = vsel %vm267, %v169, 0
  %v281 = vsel %vm267, %v171, 0
  %v284 = vsel %vm267, %v173, 0
  %v287 = vsel %vm267, %v175, 0
  %v290 = vsel %vm267, %v177, 0
  %v293 = vsel %vm267, %v179, 0
  %v296 = vsel %vm267, %v181, 0
  %v299 = vsel %vm267, %v183, 0
  %v302 = vsel %vm267, %v185, 0
  %v305 = vsel %vm267, %v187, 0
  %v308 = vsel %vm267, %v189, 0
  %v311 = vsel %vm267, %v191, 0
  %v314 = vsel %vm267, %v193, 0
  %vm316 = vcmask 1042432
  %v318 = vsel %vm316, %v257, 0
  %320 = vmatpush.bf16.msra.mxu0 %v255
  %321 = vmatpush.bf16.msra.mxu0 %v254
  %322 = vmatpush.bf16.msra.mxu0 %v253
  %323 = vmatpush.bf16.msra.mxu0 %v252
  %324 = vmatpush.bf16.msra.mxu0 %v251
  %325 = vmatpush.bf16.msra.mxu0 %v250
  %326 = vmatpush.bf16.msra.mxu0 %v249
  %327 = vmatpush.bf16.msra.mxu0 %v248
  %328 = vmatmul.bf16.gmra.mxu0 %v162
  %v329 = vpop.f32.mrf.mxu0
  %v330 = vadd.f32 0.0, %v329
  %v331 = vpop.f32.mrf.mxu0
  %v332 = vadd.f32 0.0, %v331
  %333 = vmatmul.bf16.gmra.mxu0 %v164
  %v334 = vpop.f32.mrf.mxu0
  %v335 = vadd.f32 0.0, %v334
  %v336 = vpop.f32.mrf.mxu0
  %v337 = vadd.f32 0.0, %v336
  %338 = vmatmul.bf16.gmra.mxu0 %v166
  %v339 = vpop.f32.mrf.mxu0
  %v340 = vadd.f32 0.0, %v339
  %v341 = vpop.f32.mrf.mxu0
  %v342 = vadd.f32 0.0, %v341
  %343 = vmatmul.bf16.gmra.mxu0 %v168
  %v344 = vpop.f32.mrf.mxu0
  %v345 = vadd.f32 0.0, %v344
  %v346 = vpop.f32.mrf.mxu0
  %v347 = vadd.f32 0.0, %v346
  %348 = vmatmul.bf16.gmra.mxu0 %v170
  %v349 = vpop.f32.mrf.mxu0
  %v350 = vadd.f32 0.0, %v349
  %v351 = vpop.f32.mrf.mxu0
  %v352 = vadd.f32 0.0, %v351
  %353 = vmatmul.bf16.gmra.mxu0 %v172
  %v354 = vpop.f32.mrf.mxu0
  %v355 = vadd.f32 0.0, %v354
  %v356 = vpop.f32.mrf.mxu0
  %v357 = vadd.f32 0.0, %v356
  %358 = vmatmul.bf16.gmra.mxu0 %v174
  %v359 = vpop.f32.mrf.mxu0
  %v360 = vadd.f32 0.0, %v359
  %v361 = vpop.f32.mrf.mxu0
  %v362 = vadd.f32 0.0, %v361
  %363 = vmatmul.bf16.gmra.mxu0 %v176
  %v364 = vpop.f32.mrf.mxu0
  %v365 = vadd.f32 0.0, %v364
  %v366 = vpop.f32.mrf.mxu0
  %v367 = vadd.f32 0.0, %v366
  %368 = vmatmul.bf16.gmra.mxu0 %v178
  %v369 = vpop.f32.mrf.mxu0
  %v370 = vadd.f32 0.0, %v369
  %v371 = vpop.f32.mrf.mxu0
  %v372 = vadd.f32 0.0, %v371
  %373 = vmatmul.bf16.gmra.mxu0 %v180
  %v374 = vpop.f32.mrf.mxu0
  %v375 = vadd.f32 0.0, %v374
  %v376 = vpop.f32.mrf.mxu0
  %v377 = vadd.f32 0.0, %v376
  %378 = vmatmul.bf16.gmra.mxu0 %v182
  %v379 = vpop.f32.mrf.mxu0
  %v380 = vadd.f32 0.0, %v379
  %v381 = vpop.f32.mrf.mxu0
  %v382 = vadd.f32 0.0, %v381
  %383 = vmatmul.bf16.gmra.mxu0 %v184
  %v384 = vpop.f32.mrf.mxu0
  %v385 = vadd.f32 0.0, %v384
  %v386 = vpop.f32.mrf.mxu0
  %v387 = vadd.f32 0.0, %v386
  %388 = vmatmul.bf16.gmra.mxu0 %v186
  %v389 = vpop.f32.mrf.mxu0
  %v390 = vadd.f32 0.0, %v389
  %v391 = vpop.f32.mrf.mxu0
  %v392 = vadd.f32 0.0, %v391
  %393 = vmatmul.bf16.gmra.mxu0 %v188
  %v394 = vpop.f32.mrf.mxu0
  %v395 = vadd.f32 0.0, %v394
  %v396 = vpop.f32.mrf.mxu0
  %v397 = vadd.f32 0.0, %v396
  %398 = vmatmul.bf16.gmra.mxu0 %v190
  %v399 = vpop.f32.mrf.mxu0
  %v400 = vadd.f32 0.0, %v399
  %v401 = vpop.f32.mrf.mxu0
  %v402 = vadd.f32 0.0, %v401
  %403 = vmatmul.bf16.gmra.mxu0 %v192
  %v404 = vpop.f32.mrf.mxu0
  %v405 = vadd.f32 0.0, %v404
  %v406 = vpop.f32.mrf.mxu0
  %v407 = vadd.f32 0.0, %v406
  %408 = vdwg.mxu0
  %409 = vmatpush.bf16.msra.mxu0 0
  %410 = vmatpush.bf16.msra.mxu0 0
  %411 = vmatpush.bf16.msra.mxu0 0
  %412 = vmatpush.bf16.msra.mxu0 0
  %413 = vmatpush.bf16.msra.mxu0 0
  %414 = vmatpush.bf16.msra.mxu0 0
  %415 = vmatpush.bf16.msra.mxu0 %v318
  %416 = vmatpush.bf16.msra.mxu0 %v256
  %417 = vmatmul.bf16.gmra.mxu0 %v269
  %v418 = vpop.f32.mrf.mxu0
  %v419 = vadd.f32 %v330, %v418
  %v420 = vpop.f32.mrf.mxu0
  %v421 = vadd.f32 %v332, %v420
  %422 = vmatmul.bf16.gmra.mxu0 %v272
  %v423 = vpop.f32.mrf.mxu0
  %v424 = vadd.f32 %v335, %v423
  %v425 = vpop.f32.mrf.mxu0
  %v426 = vadd.f32 %v337, %v425
  %427 = vmatmul.bf16.gmra.mxu0 %v275
  %v428 = vpop.f32.mrf.mxu0
  %v429 = vadd.f32 %v340, %v428
  %v430 = vpop.f32.mrf.mxu0
  %v431 = vadd.f32 %v342, %v430
  %432 = vmatmul.bf16.gmra.mxu0 %v278
  %v433 = vpop.f32.mrf.mxu0
  %v434 = vadd.f32 %v345, %v433
  %v435 = vpop.f32.mrf.mxu0
  %v436 = vadd.f32 %v347, %v435
  %437 = vmatmul.bf16.gmra.mxu0 %v281
  %v438 = vpop.f32.mrf.mxu0
  %v439 = vadd.f32 %v350, %v438
  %v440 = vpop.f32.mrf.mxu0
  %v441 = vadd.f32 %v352, %v440
  %442 = vmatmul.bf16.gmra.mxu0 %v284
  %v443 = vpop.f32.mrf.mxu0
  %v444 = vadd.f32 %v355, %v443
  %v445 = vpop.f32.mrf.mxu0
  %v446 = vadd.f32 %v357, %v445
  %447 = vmatmul.bf16.gmra.mxu0 %v287
  %v448 = vpop.f32.mrf.mxu0
  %v449 = vadd.f32 %v360, %v448
  %v450 = vpop.f32.mrf.mxu0
  %v451 = vadd.f32 %v362, %v450
  %452 = vmatmul.bf16.gmra.mxu0 %v290
  %v453 = vpop.f32.mrf.mxu0
  %v454 = vadd.f32 %v365, %v453
  %v455 = vpop.f32.mrf.mxu0
  %v456 = vadd.f32 %v367, %v455
  %457 = vmatmul.bf16.gmra.mxu0 %v293
  %v458 = vpop.f32.mrf.mxu0
  %v459 = vadd.f32 %v370, %v458
  %v460 = vpop.f32.mrf.mxu0
  %v461 = vadd.f32 %v372, %v460
  %462 = vmatmul.bf16.gmra.mxu0 %v296
  %v463 = vpop.f32.mrf.mxu0
  %v464 = vadd.f32 %v375, %v463
  %v465 = vpop.f32.mrf.mxu0
  %v466 = vadd.f32 %v377, %v465
  %467 = vmatmul.bf16.gmra.mxu0 %v299
  %v468 = vpop.f32.mrf.mxu0
  %v469 = vadd.f32 %v380, %v468
  %v470 = vpop.f32.mrf.mxu0
  %v471 = vadd.f32 %v382, %v470
  %472 = vmatmul.bf16.gmra.mxu0 %v302
  %v473 = vpop.f32.mrf.mxu0
  %v474 = vadd.f32 %v385, %v473
  %v475 = vpop.f32.mrf.mxu0
  %v476 = vadd.f32 %v387, %v475
  %477 = vmatmul.bf16.gmra.mxu0 %v305
  %v478 = vpop.f32.mrf.mxu0
  %v479 = vadd.f32 %v390, %v478
  %v480 = vpop.f32.mrf.mxu0
  %v481 = vadd.f32 %v392, %v480
  %482 = vmatmul.bf16.gmra.mxu0 %v308
  %v483 = vpop.f32.mrf.mxu0
  %v484 = vadd.f32 %v395, %v483
  %v485 = vpop.f32.mrf.mxu0
  %v486 = vadd.f32 %v397, %v485
  %487 = vmatmul.bf16.gmra.mxu0 %v311
  %v488 = vpop.f32.mrf.mxu0
  %v489 = vadd.f32 %v400, %v488
  %v490 = vpop.f32.mrf.mxu0
  %v491 = vadd.f32 %v402, %v490
  %492 = vmatmul.bf16.gmra.mxu0 %v314
  %v493 = vpop.f32.mrf.mxu0
  %v494 = vadd.f32 %v405, %v493
  %v495 = vpop.f32.mrf.mxu0
  %v496 = vadd.f32 %v407, %v495
  %497 = vdwg.mxu0
  %s498 = scalar_lea.vmem %s0, 256
  %v499 = vld [vmem:[%s498] sm:$0xff]
  %v500 = vld [vmem:[%s498 + $0x8] sm:$0xff]
  %v501 = vld [vmem:[%s498 + $0x10] sm:$0xff]
  %v502 = vld [vmem:[%s498 + $0x18] sm:$0xff]
  %v503 = vld [vmem:[%s498 + $0x20] sm:$0xff]
  %v504 = vld [vmem:[%s498 + $0x28] sm:$0xff]
  %v505 = vld [vmem:[%s498 + $0x30] sm:$0xff]
  %v506 = vld [vmem:[%s498 + $0x38] sm:$0xff]
  %v507 = vld [vmem:[%s498 + $0x40] sm:$0xff]
  %v508 = vld [vmem:[%s498 + $0x48] sm:$0xff]
  %v509 = vld [vmem:[%s498 + $0x50] sm:$0xff]
  %v510 = vld [vmem:[%s498 + $0x58] sm:$0xff]
  %v511 = vld [vmem:[%s498 + $0x60] sm:$0xff]
  %v512 = vld [vmem:[%s498 + $0x68] sm:$0xff]
  %v513 = vld [vmem:[%s498 + $0x70] sm:$0xff]
  %v514 = vld [vmem:[%s498 + $0x78] sm:$0xff]
  %v515 = vld [vmem:[%s498 + $0x80] sm:$0xff]
  %v516 = vld [vmem:[%s498 + $0x88] sm:$0xff]
  %v517 = vld [vmem:[%s498 + $0x90] sm:$0xff]
  %v518 = vld [vmem:[%s498 + $0x98] sm:$0xff]
  %v519 = vld [vmem:[%s498 + $0xa0] sm:$0xff]
  %v520 = vld [vmem:[%s498 + $0xa8] sm:$0xff]
  %v521 = vld [vmem:[%s498 + $0xb0] sm:$0xff]
  %v522 = vld [vmem:[%s498 + $0xb8] sm:$0xff]
  %v523 = vld [vmem:[%s498 + $0xc0] sm:$0xff]
  %v524 = vld [vmem:[%s498 + $0xc8] sm:$0xff]
  %v525 = vld [vmem:[%s498 + $0xd0] sm:$0xff]
  %v526 = vld [vmem:[%s498 + $0xd8] sm:$0xff]
  %v527 = vld [vmem:[%s498 + $0xe0] sm:$0xff]
  %v528 = vld [vmem:[%s498 + $0xe8] sm:$0xff]
  %v529 = vld [vmem:[%s498 + $0xf0] sm:$0xff]
  %v530 = vld [vmem:[%s498 + $0xf8] sm:$0xff]
  %v563 = vunpack.c.l.b16 %v499
  %v564 = vunpack.c.h.b16 %v499
  %v565 = vunpack.c.l.b16 %v500
  %v566 = vunpack.c.h.b16 %v500
  %v567 = vunpack.c.l.b16 %v501
  %v568 = vunpack.c.h.b16 %v501
  %v569 = vunpack.c.l.b16 %v502
  %v570 = vunpack.c.h.b16 %v502
  %v571 = vunpack.c.l.b16 %v503
  %v572 = vunpack.c.h.b16 %v503
  %v573 = vunpack.c.l.b16 %v504
  %v574 = vunpack.c.h.b16 %v504
  %v575 = vunpack.c.l.b16 %v505
  %v576 = vunpack.c.h.b16 %v505
  %v577 = vunpack.c.l.b16 %v506
  %v578 = vunpack.c.h.b16 %v506
  %v579 = vunpack.c.l.b16 %v507
  %v580 = vunpack.c.h.b16 %v507
  %v581 = vunpack.c.l.b16 %v508
  %v582 = vunpack.c.h.b16 %v508
  %v583 = vunpack.c.l.b16 %v509
  %v584 = vunpack.c.h.b16 %v509
  %v585 = vunpack.c.l.b16 %v510
  %v586 = vunpack.c.h.b16 %v510
  %v587 = vunpack.c.l.b16 %v511
  %v588 = vunpack.c.h.b16 %v511
  %v589 = vunpack.c.l.b16 %v512
  %v590 = vunpack.c.h.b16 %v512
  %v591 = vunpack.c.l.b16 %v513
  %v592 = vunpack.c.h.b16 %v513
  %v593 = vunpack.c.l.b16 %v514
  %v594 = vunpack.c.h.b16 %v514
  %v595 = vunpack.c.l.b16 %v515
  %v596 = vunpack.c.h.b16 %v515
  %v597 = vunpack.c.l.b16 %v516
  %v598 = vunpack.c.h.b16 %v516
  %v599 = vunpack.c.l.b16 %v517
  %v600 = vunpack.c.h.b16 %v517
  %v601 = vunpack.c.l.b16 %v518
  %v602 = vunpack.c.h.b16 %v518
  %v603 = vunpack.c.l.b16 %v519
  %v604 = vunpack.c.h.b16 %v519
  %v605 = vunpack.c.l.b16 %v520
  %v606 = vunpack.c.h.b16 %v520
  %v607 = vunpack.c.l.b16 %v521
  %v608 = vunpack.c.h.b16 %v521
  %v609 = vunpack.c.l.b16 %v522
  %v610 = vunpack.c.h.b16 %v522
  %v611 = vunpack.c.l.b16 %v523
  %v612 = vunpack.c.h.b16 %v523
  %v613 = vunpack.c.l.b16 %v524
  %v614 = vunpack.c.h.b16 %v524
  %v615 = vunpack.c.l.b16 %v525
  %v616 = vunpack.c.h.b16 %v525
  %v617 = vunpack.c.l.b16 %v526
  %v618 = vunpack.c.h.b16 %v526
  %v619 = vunpack.c.l.b16 %v527
  %v620 = vunpack.c.h.b16 %v527
  %v621 = vunpack.c.l.b16 %v528
  %v622 = vunpack.c.h.b16 %v528
  %v623 = vunpack.c.l.b16 %v529
  %v624 = vunpack.c.h.b16 %v529
  %v625 = vunpack.c.l.b16 %v530
  %v626 = vunpack.c.h.b16 %v530
  %v627 = vpack.c.b16 %v565, %v563
  %v628 = vpack.c.b16 %v566, %v564
  %v629 = vpack.c.b16 %v569, %v567
  %v630 = vpack.c.b16 %v570, %v568
  %v631 = vpack.c.b16 %v573, %v571
  %v632 = vpack.c.b16 %v574, %v572
  %v633 = vpack.c.b16 %v577, %v575
  %v634 = vpack.c.b16 %v578, %v576
  %v635 = vpack.c.b16 %v581, %v579
  %v636 = vpack.c.b16 %v582, %v580
  %v637 = vpack.c.b16 %v585, %v583
  %v638 = vpack.c.b16 %v586, %v584
  %v639 = vpack.c.b16 %v589, %v587
  %v640 = vpack.c.b16 %v590, %v588
  %v641 = vpack.c.b16 %v593, %v591
  %v642 = vpack.c.b16 %v594, %v592
  %v643 = vpack.c.b16 %v597, %v595
  %v644 = vpack.c.b16 %v598, %v596
  %v645 = vpack.c.b16 %v601, %v599
  %v646 = vpack.c.b16 %v602, %v600
  %v647 = vpack.c.b16 %v605, %v603
  %v648 = vpack.c.b16 %v606, %v604
  %v649 = vpack.c.b16 %v609, %v607
  %v650 = vpack.c.b16 %v610, %v608
  %v651 = vpack.c.b16 %v613, %v611
  %v652 = vpack.c.b16 %v614, %v612
  %v653 = vpack.c.b16 %v617, %v615
  %v654 = vpack.c.b16 %v618, %v616
  %v655 = vpack.c.b16 %v621, %v619
  %v656 = vpack.c.b16 %v622, %v620
  %v657 = vpack.c.b16 %v625, %v623
  %v658 = vpack.c.b16 %v626, %v624
  %v676 = vsel %vm267, %v628, 0
  %v679 = vsel %vm267, %v630, 0
  %v682 = vsel %vm267, %v632, 0
  %v685 = vsel %vm267, %v634, 0
  %v688 = vsel %vm267, %v636, 0
  %v691 = vsel %vm267, %v638, 0
  %v694 = vsel %vm267, %v640, 0
  %v697 = vsel %vm267, %v642, 0
  %v700 = vsel %vm267, %v644, 0
  %v703 = vsel %vm267, %v646, 0
  %v706 = vsel %vm267, %v648, 0
  %v709 = vsel %vm267, %v650, 0
  %v712 = vsel %vm267, %v652, 0
  %v715 = vsel %vm267, %v654, 0
  %v718 = vsel %vm267, %v656, 0
  %v721 = vsel %vm267, %v658, 0
  %723 = vmatpush.bf16.msra.mxu0 %v255
  %724 = vmatpush.bf16.msra.mxu0 %v254
  %725 = vmatpush.bf16.msra.mxu0 %v253
  %726 = vmatpush.bf16.msra.mxu0 %v252
  %727 = vmatpush.bf16.msra.mxu0 %v251
  %728 = vmatpush.bf16.msra.mxu0 %v250
  %729 = vmatpush.bf16.msra.mxu0 %v249
  %730 = vmatpush.bf16.msra.mxu0 %v248
  %731 = vmatmul.bf16.gmra.mxu0 %v627
  %v732 = vpop.f32.mrf.mxu0
  %v733 = vadd.f32 0.0, %v732
  %v734 = vpop.f32.mrf.mxu0
  %v735 = vadd.f32 0.0, %v734
  %736 = vmatmul.bf16.gmra.mxu0 %v629
  %v737 = vpop.f32.mrf.mxu0
  %v738 = vadd.f32 0.0, %v737
  %v739 = vpop.f32.mrf.mxu0
  %v740 = vadd.f32 0.0, %v739
  %741 = vmatmul.bf16.gmra.mxu0 %v631
  %v742 = vpop.f32.mrf.mxu0
  %v743 = vadd.f32 0.0, %v742
  %v744 = vpop.f32.mrf.mxu0
  %v745 = vadd.f32 0.0, %v744
  %746 = vmatmul.bf16.gmra.mxu0 %v633
  %v747 = vpop.f32.mrf.mxu0
  %v748 = vadd.f32 0.0, %v747
  %v749 = vpop.f32.mrf.mxu0
  %v750 = vadd.f32 0.0, %v749
  %751 = vmatmul.bf16.gmra.mxu0 %v635
  %v752 = vpop.f32.mrf.mxu0
  %v753 = vadd.f32 0.0, %v752
  %v754 = vpop.f32.mrf.mxu0
  %v755 = vadd.f32 0.0, %v754
  %756 = vmatmul.bf16.gmra.mxu0 %v637
  %v757 = vpop.f32.mrf.mxu0
  %v758 = vadd.f32 0.0, %v757
  %v759 = vpop.f32.mrf.mxu0
  %v760 = vadd.f32 0.0, %v759
  %761 = vmatmul.bf16.gmra.mxu0 %v639
  %v762 = vpop.f32.mrf.mxu0
  %v763 = vadd.f32 0.0, %v762
  %v764 = vpop.f32.mrf.mxu0
  %v765 = vadd.f32 0.0, %v764
  %766 = vmatmul.bf16.gmra.mxu0 %v641
  %v767 = vpop.f32.mrf.mxu0
  %v768 = vadd.f32 0.0, %v767
  %v769 = vpop.f32.mrf.mxu0
  %v770 = vadd.f32 0.0, %v769
  %771 = vmatmul.bf16.gmra.mxu0 %v643
  %v772 = vpop.f32.mrf.mxu0
  %v773 = vadd.f32 0.0, %v772
  %v774 = vpop.f32.mrf.mxu0
  %v775 = vadd.f32 0.0, %v774
  %776 = vmatmul.bf16.gmra.mxu0 %v645
  %v777 = vpop.f32.mrf.mxu0
  %v778 = vadd.f32 0.0, %v777
  %v779 = vpop.f32.mrf.mxu0
  %v780 = vadd.f32 0.0, %v779
  %781 = vmatmul.bf16.gmra.mxu0 %v647
  %v782 = vpop.f32.mrf.mxu0
  %v783 = vadd.f32 0.0, %v782
  %v784 = vpop.f32.mrf.mxu0
  %v785 = vadd.f32 0.0, %v784
  %786 = vmatmul.bf16.gmra.mxu0 %v649
  %v787 = vpop.f32.mrf.mxu0
  %v788 = vadd.f32 0.0, %v787
  %v789 = vpop.f32.mrf.mxu0
  %v790 = vadd.f32 0.0, %v789
  %791 = vmatmul.bf16.gmra.mxu0 %v651
  %v792 = vpop.f32.mrf.mxu0
  %v793 = vadd.f32 0.0, %v792
  %v794 = vpop.f32.mrf.mxu0
  %v795 = vadd.f32 0.0, %v794
  %796 = vmatmul.bf16.gmra.mxu0 %v653
  %v797 = vpop.f32.mrf.mxu0
  %v798 = vadd.f32 0.0, %v797
  %v799 = vpop.f32.mrf.mxu0
  %v800 = vadd.f32 0.0, %v799
  %801 = vmatmul.bf16.gmra.mxu0 %v655
  %v802 = vpop.f32.mrf.mxu0
  %v803 = vadd.f32 0.0, %v802
  %v804 = vpop.f32.mrf.mxu0
  %v805 = vadd.f32 0.0, %v804
  %806 = vmatmul.bf16.gmra.mxu0 %v657
  %v807 = vpop.f32.mrf.mxu0
  %v808 = vadd.f32 0.0, %v807
  %v809 = vpop.f32.mrf.mxu0
  %v810 = vadd.f32 0.0, %v809
  %811 = vdwg.mxu0
  %812 = vmatpush.bf16.msra.mxu0 0
  %813 = vmatpush.bf16.msra.mxu0 0
  %814 = vmatpush.bf16.msra.mxu0 0
  %815 = vmatpush.bf16.msra.mxu0 0
  %816 = vmatpush.bf16.msra.mxu0 0
  %817 = vmatpush.bf16.msra.mxu0 0
  %818 = vmatpush.bf16.msra.mxu0 %v318
  %819 = vmatpush.bf16.msra.mxu0 %v256
  %820 = vmatmul.bf16.gmra.mxu0 %v676
  %v821 = vpop.f32.mrf.mxu0
  %v822 = vadd.f32 %v733, %v821
  %v823 = vpop.f32.mrf.mxu0
  %v824 = vadd.f32 %v735, %v823
  %825 = vmatmul.bf16.gmra.mxu0 %v679
  %v826 = vpop.f32.mrf.mxu0
  %v827 = vadd.f32 %v738, %v826
  %v828 = vpop.f32.mrf.mxu0
  %v829 = vadd.f32 %v740, %v828
  %830 = vmatmul.bf16.gmra.mxu0 %v682
  %v831 = vpop.f32.mrf.mxu0
  %v832 = vadd.f32 %v743, %v831
  %v833 = vpop.f32.mrf.mxu0
  %v834 = vadd.f32 %v745, %v833
  %835 = vmatmul.bf16.gmra.mxu0 %v685
  %v836 = vpop.f32.mrf.mxu0
  %v837 = vadd.f32 %v748, %v836
  %v838 = vpop.f32.mrf.mxu0
  %v839 = vadd.f32 %v750, %v838
  %840 = vmatmul.bf16.gmra.mxu0 %v688
  %v841 = vpop.f32.mrf.mxu0
  %v842 = vadd.f32 %v753, %v841
  %v843 = vpop.f32.mrf.mxu0
  %v844 = vadd.f32 %v755, %v843
  %845 = vmatmul.bf16.gmra.mxu0 %v691
  %v846 = vpop.f32.mrf.mxu0
  %v847 = vadd.f32 %v758, %v846
  %v848 = vpop.f32.mrf.mxu0
  %v849 = vadd.f32 %v760, %v848
  %850 = vmatmul.bf16.gmra.mxu0 %v694
  %v851 = vpop.f32.mrf.mxu0
  %v852 = vadd.f32 %v763, %v851
  %v853 = vpop.f32.mrf.mxu0
  %v854 = vadd.f32 %v765, %v853
  %855 = vmatmul.bf16.gmra.mxu0 %v697
  %v856 = vpop.f32.mrf.mxu0
  %v857 = vadd.f32 %v768, %v856
  %v858 = vpop.f32.mrf.mxu0
  %v859 = vadd.f32 %v770, %v858
  %860 = vmatmul.bf16.gmra.mxu0 %v700
  %v861 = vpop.f32.mrf.mxu0
  %v862 = vadd.f32 %v773, %v861
  %v863 = vpop.f32.mrf.mxu0
  %v864 = vadd.f32 %v775, %v863
  %865 = vmatmul.bf16.gmra.mxu0 %v703
  %v866 = vpop.f32.mrf.mxu0
  %v867 = vadd.f32 %v778, %v866
  %v868 = vpop.f32.mrf.mxu0
  %v869 = vadd.f32 %v780, %v868
  %870 = vmatmul.bf16.gmra.mxu0 %v706
  %v871 = vpop.f32.mrf.mxu0
  %v872 = vadd.f32 %v783, %v871
  %v873 = vpop.f32.mrf.mxu0
  %v874 = vadd.f32 %v785, %v873
  %875 = vmatmul.bf16.gmra.mxu0 %v709
  %v876 = vpop.f32.mrf.mxu0
  %v877 = vadd.f32 %v788, %v876
  %v878 = vpop.f32.mrf.mxu0
  %v879 = vadd.f32 %v790, %v878
  %880 = vmatmul.bf16.gmra.mxu0 %v712
  %v881 = vpop.f32.mrf.mxu0
  %v882 = vadd.f32 %v793, %v881
  %v883 = vpop.f32.mrf.mxu0
  %v884 = vadd.f32 %v795, %v883
  %885 = vmatmul.bf16.gmra.mxu0 %v715
  %v886 = vpop.f32.mrf.mxu0
  %v887 = vadd.f32 %v798, %v886
  %v888 = vpop.f32.mrf.mxu0
  %v889 = vadd.f32 %v800, %v888
  %890 = vmatmul.bf16.gmra.mxu0 %v718
  %v891 = vpop.f32.mrf.mxu0
  %v892 = vadd.f32 %v803, %v891
  %v893 = vpop.f32.mrf.mxu0
  %v894 = vadd.f32 %v805, %v893
  %895 = vmatmul.bf16.gmra.mxu0 %v721
  %v896 = vpop.f32.mrf.mxu0
  %v897 = vadd.f32 %v808, %v896
  %v898 = vpop.f32.mrf.mxu0
  %v899 = vadd.f32 %v810, %v898
  %900 = vdwg.mxu0
  %v901 = vmax.f32 %v419, %v822
  %v902 = vmax.f32 %v421, %v824
  %v903 = vmax.f32 %v424, %v827
  %v904 = vmax.f32 %v426, %v829
  %v905 = vmax.f32 %v429, %v832
  %v906 = vmax.f32 %v431, %v834
  %v907 = vmax.f32 %v434, %v837
  %v908 = vmax.f32 %v436, %v839
  %v909 = vmax.f32 %v439, %v842
  %v910 = vmax.f32 %v441, %v844
  %v911 = vmax.f32 %v444, %v847
  %v912 = vmax.f32 %v446, %v849
  %v913 = vmax.f32 %v449, %v852
  %v914 = vmax.f32 %v451, %v854
  %v915 = vmax.f32 %v454, %v857
  %v916 = vmax.f32 %v456, %v859
  %v917 = vmax.f32 %v459, %v862
  %v918 = vmax.f32 %v461, %v864
  %v919 = vmax.f32 %v464, %v867
  %v920 = vmax.f32 %v466, %v869
  %v921 = vmax.f32 %v469, %v872
  %v922 = vmax.f32 %v471, %v874
  %v923 = vmax.f32 %v474, %v877
  %v924 = vmax.f32 %v476, %v879
  %v925 = vmax.f32 %v479, %v882
  %v926 = vmax.f32 %v481, %v884
  %v927 = vmax.f32 %v484, %v887
  %v928 = vmax.f32 %v486, %v889
  %v929 = vmax.f32 %v489, %v892
  %v930 = vmax.f32 %v491, %v894
  %v931 = vmax.f32 %v494, %v897
  %v932 = vmax.f32 %v496, %v899
  %s933 = scalar_lea.vmem %s0, 512
  %v934 = vld [vmem:[%s933] sm:$0xff]
  %v935 = vld [vmem:[%s933 + $0x8] sm:$0xff]
  %v936 = vld [vmem:[%s933 + $0x10] sm:$0xff]
  %v937 = vld [vmem:[%s933 + $0x18] sm:$0xff]
  %v938 = vld [vmem:[%s933 + $0x20] sm:$0xff]
  %v939 = vld [vmem:[%s933 + $0x28] sm:$0xff]
  %v940 = vld [vmem:[%s933 + $0x30] sm:$0xff]
  %v941 = vld [vmem:[%s933 + $0x38] sm:$0xff]
  %v942 = vld [vmem:[%s933 + $0x40] sm:$0xff]
  %v943 = vld [vmem:[%s933 + $0x48] sm:$0xff]
  %v944 = vld [vmem:[%s933 + $0x50] sm:$0xff]
  %v945 = vld [vmem:[%s933 + $0x58] sm:$0xff]
  %v946 = vld [vmem:[%s933 + $0x60] sm:$0xff]
  %v947 = vld [vmem:[%s933 + $0x68] sm:$0xff]
  %v948 = vld [vmem:[%s933 + $0x70] sm:$0xff]
  %v949 = vld [vmem:[%s933 + $0x78] sm:$0xff]
  %v950 = vld [vmem:[%s933 + $0x80] sm:$0xff]
  %v951 = vld [vmem:[%s933 + $0x88] sm:$0xff]
  %v952 = vld [vmem:[%s933 + $0x90] sm:$0xff]
  %v953 = vld [vmem:[%s933 + $0x98] sm:$0xff]
  %v954 = vld [vmem:[%s933 + $0xa0] sm:$0xff]
  %v955 = vld [vmem:[%s933 + $0xa8] sm:$0xff]
  %v956 = vld [vmem:[%s933 + $0xb0] sm:$0xff]
  %v957 = vld [vmem:[%s933 + $0xb8] sm:$0xff]
  %v958 = vld [vmem:[%s933 + $0xc0] sm:$0xff]
  %v959 = vld [vmem:[%s933 + $0xc8] sm:$0xff]
  %v960 = vld [vmem:[%s933 + $0xd0] sm:$0xff]
  %v961 = vld [vmem:[%s933 + $0xd8] sm:$0xff]
  %v962 = vld [vmem:[%s933 + $0xe0] sm:$0xff]
  %v963 = vld [vmem:[%s933 + $0xe8] sm:$0xff]
  %v964 = vld [vmem:[%s933 + $0xf0] sm:$0xff]
  %v965 = vld [vmem:[%s933 + $0xf8] sm:$0xff]
  %v998 = vunpack.c.l.b16 %v934
  %v999 = vunpack.c.h.b16 %v934
  %v1000 = vunpack.c.l.b16 %v935
  %v1001 = vunpack.c.h.b16 %v935
  %v1002 = vunpack.c.l.b16 %v936
  %v1003 = vunpack.c.h.b16 %v936
  %v1004 = vunpack.c.l.b16 %v937
  %v1005 = vunpack.c.h.b16 %v937
  %v1006 = vunpack.c.l.b16 %v938
  %v1007 = vunpack.c.h.b16 %v938
  %v1008 = vunpack.c.l.b16 %v939
  %v1009 = vunpack.c.h.b16 %v939
  %v1010 = vunpack.c.l.b16 %v940
  %v1011 = vunpack.c.h.b16 %v940
  %v1012 = vunpack.c.l.b16 %v941
  %v1013 = vunpack.c.h.b16 %v941
  %v1014 = vunpack.c.l.b16 %v942
  %v1015 = vunpack.c.h.b16 %v942
  %v1016 = vunpack.c.l.b16 %v943
  %v1017 = vunpack.c.h.b16 %v943
  %v1018 = vunpack.c.l.b16 %v944
  %v1019 = vunpack.c.h.b16 %v944
  %v1020 = vunpack.c.l.b16 %v945
  %v1021 = vunpack.c.h.b16 %v945
  %v1022 = vunpack.c.l.b16 %v946
  %v1023 = vunpack.c.h.b16 %v946
  %v1024 = vunpack.c.l.b16 %v947
  %v1025 = vunpack.c.h.b16 %v947
  %v1026 = vunpack.c.l.b16 %v948
  %v1027 = vunpack.c.h.b16 %v948
  %v1028 = vunpack.c.l.b16 %v949
  %v1029 = vunpack.c.h.b16 %v949
  %v1030 = vunpack.c.l.b16 %v950
  %v1031 = vunpack.c.h.b16 %v950
  %v1032 = vunpack.c.l.b16 %v951
  %v1033 = vunpack.c.h.b16 %v951
  %v1034 = vunpack.c.l.b16 %v952
  %v1035 = vunpack.c.h.b16 %v952
  %v1036 = vunpack.c.l.b16 %v953
  %v1037 = vunpack.c.h.b16 %v953
  %v1038 = vunpack.c.l.b16 %v954
  %v1039 = vunpack.c.h.b16 %v954
  %v1040 = vunpack.c.l.b16 %v955
  %v1041 = vunpack.c.h.b16 %v955
  %v1042 = vunpack.c.l.b16 %v956
  %v1043 = vunpack.c.h.b16 %v956
  %v1044 = vunpack.c.l.b16 %v957
  %v1045 = vunpack.c.h.b16 %v957
  %v1046 = vunpack.c.l.b16 %v958
  %v1047 = vunpack.c.h.b16 %v958
  %v1048 = vunpack.c.l.b16 %v959
  %v1049 = vunpack.c.h.b16 %v959
  %v1050 = vunpack.c.l.b16 %v960
  %v1051 = vunpack.c.h.b16 %v960
  %v1052 = vunpack.c.l.b16 %v961
  %v1053 = vunpack.c.h.b16 %v961
  %v1054 = vunpack.c.l.b16 %v962
  %v1055 = vunpack.c.h.b16 %v962
  %v1056 = vunpack.c.l.b16 %v963
  %v1057 = vunpack.c.h.b16 %v963
  %v1058 = vunpack.c.l.b16 %v964
  %v1059 = vunpack.c.h.b16 %v964
  %v1060 = vunpack.c.l.b16 %v965
  %v1061 = vunpack.c.h.b16 %v965
  %v1062 = vpack.c.b16 %v1000, %v998
  %v1063 = vpack.c.b16 %v1001, %v999
  %v1064 = vpack.c.b16 %v1004, %v1002
  %v1065 = vpack.c.b16 %v1005, %v1003
  %v1066 = vpack.c.b16 %v1008, %v1006
  %v1067 = vpack.c.b16 %v1009, %v1007
  %v1068 = vpack.c.b16 %v1012, %v1010
  %v1069 = vpack.c.b16 %v1013, %v1011
  %v1070 = vpack.c.b16 %v1016, %v1014
  %v1071 = vpack.c.b16 %v1017, %v1015
  %v1072 = vpack.c.b16 %v1020, %v1018
  %v1073 = vpack.c.b16 %v1021, %v1019
  %v1074 = vpack.c.b16 %v1024, %v1022
  %v1075 = vpack.c.b16 %v1025, %v1023
  %v1076 = vpack.c.b16 %v1028, %v1026
  %v1077 = vpack.c.b16 %v1029, %v1027
  %v1078 = vpack.c.b16 %v1032, %v1030
  %v1079 = vpack.c.b16 %v1033, %v1031
  %v1080 = vpack.c.b16 %v1036, %v1034
  %v1081 = vpack.c.b16 %v1037, %v1035
  %v1082 = vpack.c.b16 %v1040, %v1038
  %v1083 = vpack.c.b16 %v1041, %v1039
  %v1084 = vpack.c.b16 %v1044, %v1042
  %v1085 = vpack.c.b16 %v1045, %v1043
  %v1086 = vpack.c.b16 %v1048, %v1046
  %v1087 = vpack.c.b16 %v1049, %v1047
  %v1088 = vpack.c.b16 %v1052, %v1050
  %v1089 = vpack.c.b16 %v1053, %v1051
  %v1090 = vpack.c.b16 %v1056, %v1054
  %v1091 = vpack.c.b16 %v1057, %v1055
  %v1092 = vpack.c.b16 %v1060, %v1058
  %v1093 = vpack.c.b16 %v1061, %v1059
  %v1111 = vsel %vm267, %v1063, 0
  %v1114 = vsel %vm267, %v1065, 0
  %v1117 = vsel %vm267, %v1067, 0
  %v1120 = vsel %vm267, %v1069, 0
  %v1123 = vsel %vm267, %v1071, 0
  %v1126 = vsel %vm267, %v1073, 0
  %v1129 = vsel %vm267, %v1075, 0
  %v1132 = vsel %vm267, %v1077, 0
  %v1135 = vsel %vm267, %v1079, 0
  %v1138 = vsel %vm267, %v1081, 0
  %v1141 = vsel %vm267, %v1083, 0
  %v1144 = vsel %vm267, %v1085, 0
  %v1147 = vsel %vm267, %v1087, 0
  %v1150 = vsel %vm267, %v1089, 0
  %v1153 = vsel %vm267, %v1091, 0
  %v1156 = vsel %vm267, %v1093, 0
  %1158 = vmatpush.bf16.msra.mxu0 %v255
  %1159 = vmatpush.bf16.msra.mxu0 %v254
  %1160 = vmatpush.bf16.msra.mxu0 %v253
  %1161 = vmatpush.bf16.msra.mxu0 %v252
  %1162 = vmatpush.bf16.msra.mxu0 %v251
  %1163 = vmatpush.bf16.msra.mxu0 %v250
  %1164 = vmatpush.bf16.msra.mxu0 %v249
  %1165 = vmatpush.bf16.msra.mxu0 %v248
  %1166 = vmatmul.bf16.gmra.mxu0 %v1062
  %v1167 = vpop.f32.mrf.mxu0
  %v1168 = vadd.f32 0.0, %v1167
  %v1169 = vpop.f32.mrf.mxu0
  %v1170 = vadd.f32 0.0, %v1169
  %1171 = vmatmul.bf16.gmra.mxu0 %v1064
  %v1172 = vpop.f32.mrf.mxu0
  %v1173 = vadd.f32 0.0, %v1172
  %v1174 = vpop.f32.mrf.mxu0
  %v1175 = vadd.f32 0.0, %v1174
  %1176 = vmatmul.bf16.gmra.mxu0 %v1066
  %v1177 = vpop.f32.mrf.mxu0
  %v1178 = vadd.f32 0.0, %v1177
  %v1179 = vpop.f32.mrf.mxu0
  %v1180 = vadd.f32 0.0, %v1179
  %1181 = vmatmul.bf16.gmra.mxu0 %v1068
  %v1182 = vpop.f32.mrf.mxu0
  %v1183 = vadd.f32 0.0, %v1182
  %v1184 = vpop.f32.mrf.mxu0
  %v1185 = vadd.f32 0.0, %v1184
  %1186 = vmatmul.bf16.gmra.mxu0 %v1070
  %v1187 = vpop.f32.mrf.mxu0
  %v1188 = vadd.f32 0.0, %v1187
  %v1189 = vpop.f32.mrf.mxu0
  %v1190 = vadd.f32 0.0, %v1189
  %1191 = vmatmul.bf16.gmra.mxu0 %v1072
  %v1192 = vpop.f32.mrf.mxu0
  %v1193 = vadd.f32 0.0, %v1192
  %v1194 = vpop.f32.mrf.mxu0
  %v1195 = vadd.f32 0.0, %v1194
  %1196 = vmatmul.bf16.gmra.mxu0 %v1074
  %v1197 = vpop.f32.mrf.mxu0
  %v1198 = vadd.f32 0.0, %v1197
  %v1199 = vpop.f32.mrf.mxu0
  %v1200 = vadd.f32 0.0, %v1199
  %1201 = vmatmul.bf16.gmra.mxu0 %v1076
  %v1202 = vpop.f32.mrf.mxu0
  %v1203 = vadd.f32 0.0, %v1202
  %v1204 = vpop.f32.mrf.mxu0
  %v1205 = vadd.f32 0.0, %v1204
  %1206 = vmatmul.bf16.gmra.mxu0 %v1078
  %v1207 = vpop.f32.mrf.mxu0
  %v1208 = vadd.f32 0.0, %v1207
  %v1209 = vpop.f32.mrf.mxu0
  %v1210 = vadd.f32 0.0, %v1209
  %1211 = vmatmul.bf16.gmra.mxu0 %v1080
  %v1212 = vpop.f32.mrf.mxu0
  %v1213 = vadd.f32 0.0, %v1212
  %v1214 = vpop.f32.mrf.mxu0
  %v1215 = vadd.f32 0.0, %v1214
  %1216 = vmatmul.bf16.gmra.mxu0 %v1082
  %v1217 = vpop.f32.mrf.mxu0
  %v1218 = vadd.f32 0.0, %v1217
  %v1219 = vpop.f32.mrf.mxu0
  %v1220 = vadd.f32 0.0, %v1219
  %1221 = vmatmul.bf16.gmra.mxu0 %v1084
  %v1222 = vpop.f32.mrf.mxu0
  %v1223 = vadd.f32 0.0, %v1222
  %v1224 = vpop.f32.mrf.mxu0
  %v1225 = vadd.f32 0.0, %v1224
  %1226 = vmatmul.bf16.gmra.mxu0 %v1086
  %v1227 = vpop.f32.mrf.mxu0
  %v1228 = vadd.f32 0.0, %v1227
  %v1229 = vpop.f32.mrf.mxu0
  %v1230 = vadd.f32 0.0, %v1229
  %1231 = vmatmul.bf16.gmra.mxu0 %v1088
  %v1232 = vpop.f32.mrf.mxu0
  %v1233 = vadd.f32 0.0, %v1232
  %v1234 = vpop.f32.mrf.mxu0
  %v1235 = vadd.f32 0.0, %v1234
  %1236 = vmatmul.bf16.gmra.mxu0 %v1090
  %v1237 = vpop.f32.mrf.mxu0
  %v1238 = vadd.f32 0.0, %v1237
  %v1239 = vpop.f32.mrf.mxu0
  %v1240 = vadd.f32 0.0, %v1239
  %1241 = vmatmul.bf16.gmra.mxu0 %v1092
  %v1242 = vpop.f32.mrf.mxu0
  %v1243 = vadd.f32 0.0, %v1242
  %v1244 = vpop.f32.mrf.mxu0
  %v1245 = vadd.f32 0.0, %v1244
  %1246 = vdwg.mxu0
  %1247 = vmatpush.bf16.msra.mxu0 0
  %1248 = vmatpush.bf16.msra.mxu0 0
  %1249 = vmatpush.bf16.msra.mxu0 0
  %1250 = vmatpush.bf16.msra.mxu0 0
  %1251 = vmatpush.bf16.msra.mxu0 0
  %1252 = vmatpush.bf16.msra.mxu0 0
  %1253 = vmatpush.bf16.msra.mxu0 %v318
  %1254 = vmatpush.bf16.msra.mxu0 %v256
  %1255 = vmatmul.bf16.gmra.mxu0 %v1111
  %v1256 = vpop.f32.mrf.mxu0
  %v1257 = vadd.f32 %v1168, %v1256
  %v1258 = vpop.f32.mrf.mxu0
  %v1259 = vadd.f32 %v1170, %v1258
  %1260 = vmatmul.bf16.gmra.mxu0 %v1114
  %v1261 = vpop.f32.mrf.mxu0
  %v1262 = vadd.f32 %v1173, %v1261
  %v1263 = vpop.f32.mrf.mxu0
  %v1264 = vadd.f32 %v1175, %v1263
  %1265 = vmatmul.bf16.gmra.mxu0 %v1117
  %v1266 = vpop.f32.mrf.mxu0
  %v1267 = vadd.f32 %v1178, %v1266
  %v1268 = vpop.f32.mrf.mxu0
  %v1269 = vadd.f32 %v1180, %v1268
  %1270 = vmatmul.bf16.gmra.mxu0 %v1120
  %v1271 = vpop.f32.mrf.mxu0
  %v1272 = vadd.f32 %v1183, %v1271
  %v1273 = vpop.f32.mrf.mxu0
  %v1274 = vadd.f32 %v1185, %v1273
  %1275 = vmatmul.bf16.gmra.mxu0 %v1123
  %v1276 = vpop.f32.mrf.mxu0
  %v1277 = vadd.f32 %v1188, %v1276
  %v1278 = vpop.f32.mrf.mxu0
  %v1279 = vadd.f32 %v1190, %v1278
  %1280 = vmatmul.bf16.gmra.mxu0 %v1126
  %v1281 = vpop.f32.mrf.mxu0
  %v1282 = vadd.f32 %v1193, %v1281
  %v1283 = vpop.f32.mrf.mxu0
  %v1284 = vadd.f32 %v1195, %v1283
  %1285 = vmatmul.bf16.gmra.mxu0 %v1129
  %v1286 = vpop.f32.mrf.mxu0
  %v1287 = vadd.f32 %v1198, %v1286
  %v1288 = vpop.f32.mrf.mxu0
  %v1289 = vadd.f32 %v1200, %v1288
  %1290 = vmatmul.bf16.gmra.mxu0 %v1132
  %v1291 = vpop.f32.mrf.mxu0
  %v1292 = vadd.f32 %v1203, %v1291
  %v1293 = vpop.f32.mrf.mxu0
  %v1294 = vadd.f32 %v1205, %v1293
  %1295 = vmatmul.bf16.gmra.mxu0 %v1135
  %v1296 = vpop.f32.mrf.mxu0
  %v1297 = vadd.f32 %v1208, %v1296
  %v1298 = vpop.f32.mrf.mxu0
  %v1299 = vadd.f32 %v1210, %v1298
  %1300 = vmatmul.bf16.gmra.mxu0 %v1138
  %v1301 = vpop.f32.mrf.mxu0
  %v1302 = vadd.f32 %v1213, %v1301
  %v1303 = vpop.f32.mrf.mxu0
  %v1304 = vadd.f32 %v1215, %v1303
  %1305 = vmatmul.bf16.gmra.mxu0 %v1141
  %v1306 = vpop.f32.mrf.mxu0
  %v1307 = vadd.f32 %v1218, %v1306
  %v1308 = vpop.f32.mrf.mxu0
  %v1309 = vadd.f32 %v1220, %v1308
  %1310 = vmatmul.bf16.gmra.mxu0 %v1144
  %v1311 = vpop.f32.mrf.mxu0
  %v1312 = vadd.f32 %v1223, %v1311
  %v1313 = vpop.f32.mrf.mxu0
  %v1314 = vadd.f32 %v1225, %v1313
  %1315 = vmatmul.bf16.gmra.mxu0 %v1147
  %v1316 = vpop.f32.mrf.mxu0
  %v1317 = vadd.f32 %v1228, %v1316
  %v1318 = vpop.f32.mrf.mxu0
  %v1319 = vadd.f32 %v1230, %v1318
  %1320 = vmatmul.bf16.gmra.mxu0 %v1150
  %v1321 = vpop.f32.mrf.mxu0
  %v1322 = vadd.f32 %v1233, %v1321
  %v1323 = vpop.f32.mrf.mxu0
  %v1324 = vadd.f32 %v1235, %v1323
  %1325 = vmatmul.bf16.gmra.mxu0 %v1153
  %v1326 = vpop.f32.mrf.mxu0
  %v1327 = vadd.f32 %v1238, %v1326
  %v1328 = vpop.f32.mrf.mxu0
  %v1329 = vadd.f32 %v1240, %v1328
  %1330 = vmatmul.bf16.gmra.mxu0 %v1156
  %v1331 = vpop.f32.mrf.mxu0
  %v1332 = vadd.f32 %v1243, %v1331
  %v1333 = vpop.f32.mrf.mxu0
  %v1334 = vadd.f32 %v1245, %v1333
  %1335 = vdwg.mxu0
  %s1336 = scalar_lea.vmem %s0, 768
  %v1337 = vld [vmem:[%s1336] sm:$0xff]
  %v1338 = vld [vmem:[%s1336 + $0x8] sm:$0xff]
  %v1339 = vld [vmem:[%s1336 + $0x10] sm:$0xff]
  %v1340 = vld [vmem:[%s1336 + $0x18] sm:$0xff]
  %v1341 = vld [vmem:[%s1336 + $0x20] sm:$0xff]
  %v1342 = vld [vmem:[%s1336 + $0x28] sm:$0xff]
  %v1343 = vld [vmem:[%s1336 + $0x30] sm:$0xff]
  %v1344 = vld [vmem:[%s1336 + $0x38] sm:$0xff]
  %v1345 = vld [vmem:[%s1336 + $0x40] sm:$0xff]
  %v1346 = vld [vmem:[%s1336 + $0x48] sm:$0xff]
  %v1347 = vld [vmem:[%s1336 + $0x50] sm:$0xff]
  %v1348 = vld [vmem:[%s1336 + $0x58] sm:$0xff]
  %v1349 = vld [vmem:[%s1336 + $0x60] sm:$0xff]
  %v1350 = vld [vmem:[%s1336 + $0x68] sm:$0xff]
  %v1351 = vld [vmem:[%s1336 + $0x70] sm:$0xff]
  %v1352 = vld [vmem:[%s1336 + $0x78] sm:$0xff]
  %v1353 = vld [vmem:[%s1336 + $0x80] sm:$0xff]
  %v1354 = vld [vmem:[%s1336 + $0x88] sm:$0xff]
  %v1355 = vld [vmem:[%s1336 + $0x90] sm:$0xff]
  %v1356 = vld [vmem:[%s1336 + $0x98] sm:$0xff]
  %v1357 = vld [vmem:[%s1336 + $0xa0] sm:$0xff]
  %v1358 = vld [vmem:[%s1336 + $0xa8] sm:$0xff]
  %v1359 = vld [vmem:[%s1336 + $0xb0] sm:$0xff]
  %v1360 = vld [vmem:[%s1336 + $0xb8] sm:$0xff]
  %v1361 = vld [vmem:[%s1336 + $0xc0] sm:$0xff]
  %v1362 = vld [vmem:[%s1336 + $0xc8] sm:$0xff]
  %v1363 = vld [vmem:[%s1336 + $0xd0] sm:$0xff]
  %v1364 = vld [vmem:[%s1336 + $0xd8] sm:$0xff]
  %v1365 = vld [vmem:[%s1336 + $0xe0] sm:$0xff]
  %v1366 = vld [vmem:[%s1336 + $0xe8] sm:$0xff]
  %v1367 = vld [vmem:[%s1336 + $0xf0] sm:$0xff]
  %v1368 = vld [vmem:[%s1336 + $0xf8] sm:$0xff]
  %v1401 = vunpack.c.l.b16 %v1337
  %v1402 = vunpack.c.h.b16 %v1337
  %v1403 = vunpack.c.l.b16 %v1338
  %v1404 = vunpack.c.h.b16 %v1338
  %v1405 = vunpack.c.l.b16 %v1339
  %v1406 = vunpack.c.h.b16 %v1339
  %v1407 = vunpack.c.l.b16 %v1340
  %v1408 = vunpack.c.h.b16 %v1340
  %v1409 = vunpack.c.l.b16 %v1341
  %v1410 = vunpack.c.h.b16 %v1341
  %v1411 = vunpack.c.l.b16 %v1342
  %v1412 = vunpack.c.h.b16 %v1342
  %v1413 = vunpack.c.l.b16 %v1343
  %v1414 = vunpack.c.h.b16 %v1343
  %v1415 = vunpack.c.l.b16 %v1344
  %v1416 = vunpack.c.h.b16 %v1344
  %v1417 = vunpack.c.l.b16 %v1345
  %v1418 = vunpack.c.h.b16 %v1345
  %v1419 = vunpack.c.l.b16 %v1346
  %v1420 = vunpack.c.h.b16 %v1346
  %v1421 = vunpack.c.l.b16 %v1347
  %v1422 = vunpack.c.h.b16 %v1347
  %v1423 = vunpack.c.l.b16 %v1348
  %v1424 = vunpack.c.h.b16 %v1348
  %v1425 = vunpack.c.l.b16 %v1349
  %v1426 = vunpack.c.h.b16 %v1349
  %v1427 = vunpack.c.l.b16 %v1350
  %v1428 = vunpack.c.h.b16 %v1350
  %v1429 = vunpack.c.l.b16 %v1351
  %v1430 = vunpack.c.h.b16 %v1351
  %v1431 = vunpack.c.l.b16 %v1352
  %v1432 = vunpack.c.h.b16 %v1352
  %v1433 = vunpack.c.l.b16 %v1353
  %v1434 = vunpack.c.h.b16 %v1353
  %v1435 = vunpack.c.l.b16 %v1354
  %v1436 = vunpack.c.h.b16 %v1354
  %v1437 = vunpack.c.l.b16 %v1355
  %v1438 = vunpack.c.h.b16 %v1355
  %v1439 = vunpack.c.l.b16 %v1356
  %v1440 = vunpack.c.h.b16 %v1356
  %v1441 = vunpack.c.l.b16 %v1357
  %v1442 = vunpack.c.h.b16 %v1357
  %v1443 = vunpack.c.l.b16 %v1358
  %v1444 = vunpack.c.h.b16 %v1358
  %v1445 = vunpack.c.l.b16 %v1359
  %v1446 = vunpack.c.h.b16 %v1359
  %v1447 = vunpack.c.l.b16 %v1360
  %v1448 = vunpack.c.h.b16 %v1360
  %v1449 = vunpack.c.l.b16 %v1361
  %v1450 = vunpack.c.h.b16 %v1361
  %v1451 = vunpack.c.l.b16 %v1362
  %v1452 = vunpack.c.h.b16 %v1362
  %v1453 = vunpack.c.l.b16 %v1363
  %v1454 = vunpack.c.h.b16 %v1363
  %v1455 = vunpack.c.l.b16 %v1364
  %v1456 = vunpack.c.h.b16 %v1364
  %v1457 = vunpack.c.l.b16 %v1365
  %v1458 = vunpack.c.h.b16 %v1365
  %v1459 = vunpack.c.l.b16 %v1366
  %v1460 = vunpack.c.h.b16 %v1366
  %v1461 = vunpack.c.l.b16 %v1367
  %v1462 = vunpack.c.h.b16 %v1367
  %v1463 = vunpack.c.l.b16 %v1368
  %v1464 = vunpack.c.h.b16 %v1368
  %v1465 = vpack.c.b16 %v1403, %v1401
  %v1466 = vpack.c.b16 %v1404, %v1402
  %v1467 = vpack.c.b16 %v1407, %v1405
  %v1468 = vpack.c.b16 %v1408, %v1406
  %v1469 = vpack.c.b16 %v1411, %v1409
  %v1470 = vpack.c.b16 %v1412, %v1410
  %v1471 = vpack.c.b16 %v1415, %v1413
  %v1472 = vpack.c.b16 %v1416, %v1414
  %v1473 = vpack.c.b16 %v1419, %v1417
  %v1474 = vpack.c.b16 %v1420, %v1418
  %v1475 = vpack.c.b16 %v1423, %v1421
  %v1476 = vpack.c.b16 %v1424, %v1422
  %v1477 = vpack.c.b16 %v1427, %v1425
  %v1478 = vpack.c.b16 %v1428, %v1426
  %v1479 = vpack.c.b16 %v1431, %v1429
  %v1480 = vpack.c.b16 %v1432, %v1430
  %v1481 = vpack.c.b16 %v1435, %v1433
  %v1482 = vpack.c.b16 %v1436, %v1434
  %v1483 = vpack.c.b16 %v1439, %v1437
  %v1484 = vpack.c.b16 %v1440, %v1438
  %v1485 = vpack.c.b16 %v1443, %v1441
  %v1486 = vpack.c.b16 %v1444, %v1442
  %v1487 = vpack.c.b16 %v1447, %v1445
  %v1488 = vpack.c.b16 %v1448, %v1446
  %v1489 = vpack.c.b16 %v1451, %v1449
  %v1490 = vpack.c.b16 %v1452, %v1450
  %v1491 = vpack.c.b16 %v1455, %v1453
  %v1492 = vpack.c.b16 %v1456, %v1454
  %v1493 = vpack.c.b16 %v1459, %v1457
  %v1494 = vpack.c.b16 %v1460, %v1458
  %v1495 = vpack.c.b16 %v1463, %v1461
  %v1496 = vpack.c.b16 %v1464, %v1462
  %v1514 = vsel %vm267, %v1466, 0
  %v1517 = vsel %vm267, %v1468, 0
  %v1520 = vsel %vm267, %v1470, 0
  %v1523 = vsel %vm267, %v1472, 0
  %v1526 = vsel %vm267, %v1474, 0
  %v1529 = vsel %vm267, %v1476, 0
  %v1532 = vsel %vm267, %v1478, 0
  %v1535 = vsel %vm267, %v1480, 0
  %v1538 = vsel %vm267, %v1482, 0
  %v1541 = vsel %vm267, %v1484, 0
  %v1544 = vsel %vm267, %v1486, 0
  %v1547 = vsel %vm267, %v1488, 0
  %v1550 = vsel %vm267, %v1490, 0
  %v1553 = vsel %vm267, %v1492, 0
  %v1556 = vsel %vm267, %v1494, 0
  %v1559 = vsel %vm267, %v1496, 0
  %1561 = vmatpush.bf16.msra.mxu0 %v255
  %1562 = vmatpush.bf16.msra.mxu0 %v254
  %1563 = vmatpush.bf16.msra.mxu0 %v253
  %1564 = vmatpush.bf16.msra.mxu0 %v252
  %1565 = vmatpush.bf16.msra.mxu0 %v251
  %1566 = vmatpush.bf16.msra.mxu0 %v250
  %1567 = vmatpush.bf16.msra.mxu0 %v249
  %1568 = vmatpush.bf16.msra.mxu0 %v248
  %1569 = vmatmul.bf16.gmra.mxu0 %v1465
  %v1570 = vpop.f32.mrf.mxu0
  %v1571 = vadd.f32 0.0, %v1570
  %v1572 = vpop.f32.mrf.mxu0
  %v1573 = vadd.f32 0.0, %v1572
  %1574 = vmatmul.bf16.gmra.mxu0 %v1467
  %v1575 = vpop.f32.mrf.mxu0
  %v1576 = vadd.f32 0.0, %v1575
  %v1577 = vpop.f32.mrf.mxu0
  %v1578 = vadd.f32 0.0, %v1577
  %1579 = vmatmul.bf16.gmra.mxu0 %v1469
  %v1580 = vpop.f32.mrf.mxu0
  %v1581 = vadd.f32 0.0, %v1580
  %v1582 = vpop.f32.mrf.mxu0
  %v1583 = vadd.f32 0.0, %v1582
  %1584 = vmatmul.bf16.gmra.mxu0 %v1471
  %v1585 = vpop.f32.mrf.mxu0
  %v1586 = vadd.f32 0.0, %v1585
  %v1587 = vpop.f32.mrf.mxu0
  %v1588 = vadd.f32 0.0, %v1587
  %1589 = vmatmul.bf16.gmra.mxu0 %v1473
  %v1590 = vpop.f32.mrf.mxu0
  %v1591 = vadd.f32 0.0, %v1590
  %v1592 = vpop.f32.mrf.mxu0
  %v1593 = vadd.f32 0.0, %v1592
  %1594 = vmatmul.bf16.gmra.mxu0 %v1475
  %v1595 = vpop.f32.mrf.mxu0
  %v1596 = vadd.f32 0.0, %v1595
  %v1597 = vpop.f32.mrf.mxu0
  %v1598 = vadd.f32 0.0, %v1597
  %1599 = vmatmul.bf16.gmra.mxu0 %v1477
  %v1600 = vpop.f32.mrf.mxu0
  %v1601 = vadd.f32 0.0, %v1600
  %v1602 = vpop.f32.mrf.mxu0
  %v1603 = vadd.f32 0.0, %v1602
  %1604 = vmatmul.bf16.gmra.mxu0 %v1479
  %v1605 = vpop.f32.mrf.mxu0
  %v1606 = vadd.f32 0.0, %v1605
  %v1607 = vpop.f32.mrf.mxu0
  %v1608 = vadd.f32 0.0, %v1607
  %1609 = vmatmul.bf16.gmra.mxu0 %v1481
  %v1610 = vpop.f32.mrf.mxu0
  %v1611 = vadd.f32 0.0, %v1610
  %v1612 = vpop.f32.mrf.mxu0
  %v1613 = vadd.f32 0.0, %v1612
  %1614 = vmatmul.bf16.gmra.mxu0 %v1483
  %v1615 = vpop.f32.mrf.mxu0
  %v1616 = vadd.f32 0.0, %v1615
  %v1617 = vpop.f32.mrf.mxu0
  %v1618 = vadd.f32 0.0, %v1617
  %1619 = vmatmul.bf16.gmra.mxu0 %v1485
  %v1620 = vpop.f32.mrf.mxu0
  %v1621 = vadd.f32 0.0, %v1620
  %v1622 = vpop.f32.mrf.mxu0
  %v1623 = vadd.f32 0.0, %v1622
  %1624 = vmatmul.bf16.gmra.mxu0 %v1487
  %v1625 = vpop.f32.mrf.mxu0
  %v1626 = vadd.f32 0.0, %v1625
  %v1627 = vpop.f32.mrf.mxu0
  %v1628 = vadd.f32 0.0, %v1627
  %1629 = vmatmul.bf16.gmra.mxu0 %v1489
  %v1630 = vpop.f32.mrf.mxu0
  %v1631 = vadd.f32 0.0, %v1630
  %v1632 = vpop.f32.mrf.mxu0
  %v1633 = vadd.f32 0.0, %v1632
  %1634 = vmatmul.bf16.gmra.mxu0 %v1491
  %v1635 = vpop.f32.mrf.mxu0
  %v1636 = vadd.f32 0.0, %v1635
  %v1637 = vpop.f32.mrf.mxu0
  %v1638 = vadd.f32 0.0, %v1637
  %1639 = vmatmul.bf16.gmra.mxu0 %v1493
  %v1640 = vpop.f32.mrf.mxu0
  %v1641 = vadd.f32 0.0, %v1640
  %v1642 = vpop.f32.mrf.mxu0
  %v1643 = vadd.f32 0.0, %v1642
  %1644 = vmatmul.bf16.gmra.mxu0 %v1495
  %v1645 = vpop.f32.mrf.mxu0
  %v1646 = vadd.f32 0.0, %v1645
  %v1647 = vpop.f32.mrf.mxu0
  %v1648 = vadd.f32 0.0, %v1647
  %1649 = vdwg.mxu0
  %1650 = vmatpush.bf16.msra.mxu0 0
  %1651 = vmatpush.bf16.msra.mxu0 0
  %1652 = vmatpush.bf16.msra.mxu0 0
  %1653 = vmatpush.bf16.msra.mxu0 0
  %1654 = vmatpush.bf16.msra.mxu0 0
  %1655 = vmatpush.bf16.msra.mxu0 0
  %1656 = vmatpush.bf16.msra.mxu0 %v318
  %1657 = vmatpush.bf16.msra.mxu0 %v256
  %1658 = vmatmul.bf16.gmra.mxu0 %v1514
  %v1659 = vpop.f32.mrf.mxu0
  %v1660 = vadd.f32 %v1571, %v1659
  %v1661 = vpop.f32.mrf.mxu0
  %v1662 = vadd.f32 %v1573, %v1661
  %1663 = vmatmul.bf16.gmra.mxu0 %v1517
  %v1664 = vpop.f32.mrf.mxu0
  %v1665 = vadd.f32 %v1576, %v1664
  %v1666 = vpop.f32.mrf.mxu0
  %v1667 = vadd.f32 %v1578, %v1666
  %1668 = vmatmul.bf16.gmra.mxu0 %v1520
  %v1669 = vpop.f32.mrf.mxu0
  %v1670 = vadd.f32 %v1581, %v1669
  %v1671 = vpop.f32.mrf.mxu0
  %v1672 = vadd.f32 %v1583, %v1671
  %1673 = vmatmul.bf16.gmra.mxu0 %v1523
  %v1674 = vpop.f32.mrf.mxu0
  %v1675 = vadd.f32 %v1586, %v1674
  %v1676 = vpop.f32.mrf.mxu0
  %v1677 = vadd.f32 %v1588, %v1676
  %1678 = vmatmul.bf16.gmra.mxu0 %v1526
  %v1679 = vpop.f32.mrf.mxu0
  %v1680 = vadd.f32 %v1591, %v1679
  %v1681 = vpop.f32.mrf.mxu0
  %v1682 = vadd.f32 %v1593, %v1681
  %1683 = vmatmul.bf16.gmra.mxu0 %v1529
  %v1684 = vpop.f32.mrf.mxu0
  %v1685 = vadd.f32 %v1596, %v1684
  %v1686 = vpop.f32.mrf.mxu0
  %v1687 = vadd.f32 %v1598, %v1686
  %1688 = vmatmul.bf16.gmra.mxu0 %v1532
  %v1689 = vpop.f32.mrf.mxu0
  %v1690 = vadd.f32 %v1601, %v1689
  %v1691 = vpop.f32.mrf.mxu0
  %v1692 = vadd.f32 %v1603, %v1691
  %1693 = vmatmul.bf16.gmra.mxu0 %v1535
  %v1694 = vpop.f32.mrf.mxu0
  %v1695 = vadd.f32 %v1606, %v1694
  %v1696 = vpop.f32.mrf.mxu0
  %v1697 = vadd.f32 %v1608, %v1696
  %1698 = vmatmul.bf16.gmra.mxu0 %v1538
  %v1699 = vpop.f32.mrf.mxu0
  %v1700 = vadd.f32 %v1611, %v1699
  %v1701 = vpop.f32.mrf.mxu0
  %v1702 = vadd.f32 %v1613, %v1701
  %1703 = vmatmul.bf16.gmra.mxu0 %v1541
  %v1704 = vpop.f32.mrf.mxu0
  %v1705 = vadd.f32 %v1616, %v1704
  %v1706 = vpop.f32.mrf.mxu0
  %v1707 = vadd.f32 %v1618, %v1706
  %1708 = vmatmul.bf16.gmra.mxu0 %v1544
  %v1709 = vpop.f32.mrf.mxu0
  %v1710 = vadd.f32 %v1621, %v1709
  %v1711 = vpop.f32.mrf.mxu0
  %v1712 = vadd.f32 %v1623, %v1711
  %1713 = vmatmul.bf16.gmra.mxu0 %v1547
  %v1714 = vpop.f32.mrf.mxu0
  %v1715 = vadd.f32 %v1626, %v1714
  %v1716 = vpop.f32.mrf.mxu0
  %v1717 = vadd.f32 %v1628, %v1716
  %1718 = vmatmul.bf16.gmra.mxu0 %v1550
  %v1719 = vpop.f32.mrf.mxu0
  %v1720 = vadd.f32 %v1631, %v1719
  %v1721 = vpop.f32.mrf.mxu0
  %v1722 = vadd.f32 %v1633, %v1721
  %1723 = vmatmul.bf16.gmra.mxu0 %v1553
  %v1724 = vpop.f32.mrf.mxu0
  %v1725 = vadd.f32 %v1636, %v1724
  %v1726 = vpop.f32.mrf.mxu0
  %v1727 = vadd.f32 %v1638, %v1726
  %1728 = vmatmul.bf16.gmra.mxu0 %v1556
  %v1729 = vpop.f32.mrf.mxu0
  %v1730 = vadd.f32 %v1641, %v1729
  %v1731 = vpop.f32.mrf.mxu0
  %v1732 = vadd.f32 %v1643, %v1731
  %1733 = vmatmul.bf16.gmra.mxu0 %v1559
  %v1734 = vpop.f32.mrf.mxu0
  %v1735 = vadd.f32 %v1646, %v1734
  %v1736 = vpop.f32.mrf.mxu0
  %v1737 = vadd.f32 %v1648, %v1736
  %1738 = vdwg.mxu0
  %v1739 = vmax.f32 %v1257, %v1660
  %v1740 = vmax.f32 %v1259, %v1662
  %v1741 = vmax.f32 %v1262, %v1665
  %v1742 = vmax.f32 %v1264, %v1667
  %v1743 = vmax.f32 %v1267, %v1670
  %v1744 = vmax.f32 %v1269, %v1672
  %v1745 = vmax.f32 %v1272, %v1675
  %v1746 = vmax.f32 %v1274, %v1677
  %v1747 = vmax.f32 %v1277, %v1680
  %v1748 = vmax.f32 %v1279, %v1682
  %v1749 = vmax.f32 %v1282, %v1685
  %v1750 = vmax.f32 %v1284, %v1687
  %v1751 = vmax.f32 %v1287, %v1690
  %v1752 = vmax.f32 %v1289, %v1692
  %v1753 = vmax.f32 %v1292, %v1695
  %v1754 = vmax.f32 %v1294, %v1697
  %v1755 = vmax.f32 %v1297, %v1700
  %v1756 = vmax.f32 %v1299, %v1702
  %v1757 = vmax.f32 %v1302, %v1705
  %v1758 = vmax.f32 %v1304, %v1707
  %v1759 = vmax.f32 %v1307, %v1710
  %v1760 = vmax.f32 %v1309, %v1712
  %v1761 = vmax.f32 %v1312, %v1715
  %v1762 = vmax.f32 %v1314, %v1717
  %v1763 = vmax.f32 %v1317, %v1720
  %v1764 = vmax.f32 %v1319, %v1722
  %v1765 = vmax.f32 %v1322, %v1725
  %v1766 = vmax.f32 %v1324, %v1727
  %v1767 = vmax.f32 %v1327, %v1730
  %v1768 = vmax.f32 %v1329, %v1732
  %v1769 = vmax.f32 %v1332, %v1735
  %v1770 = vmax.f32 %v1334, %v1737
  %v1771 = vmax.f32 %v901, %v1739
  %v1772 = vmax.f32 %v902, %v1740
  %v1773 = vmax.f32 %v903, %v1741
  %v1774 = vmax.f32 %v904, %v1742
  %v1775 = vmax.f32 %v905, %v1743
  %v1776 = vmax.f32 %v906, %v1744
  %v1777 = vmax.f32 %v907, %v1745
  %v1778 = vmax.f32 %v908, %v1746
  %v1779 = vmax.f32 %v909, %v1747
  %v1780 = vmax.f32 %v910, %v1748
  %v1781 = vmax.f32 %v911, %v1749
  %v1782 = vmax.f32 %v912, %v1750
  %v1783 = vmax.f32 %v913, %v1751
  %v1784 = vmax.f32 %v914, %v1752
  %v1785 = vmax.f32 %v915, %v1753
  %v1786 = vmax.f32 %v916, %v1754
  %v1787 = vmax.f32 %v917, %v1755
  %v1788 = vmax.f32 %v918, %v1756
  %v1789 = vmax.f32 %v919, %v1757
  %v1790 = vmax.f32 %v920, %v1758
  %v1791 = vmax.f32 %v921, %v1759
  %v1792 = vmax.f32 %v922, %v1760
  %v1793 = vmax.f32 %v923, %v1761
  %v1794 = vmax.f32 %v924, %v1762
  %v1795 = vmax.f32 %v925, %v1763
  %v1796 = vmax.f32 %v926, %v1764
  %v1797 = vmax.f32 %v927, %v1765
  %v1798 = vmax.f32 %v928, %v1766
  %v1799 = vmax.f32 %v929, %v1767
  %v1800 = vmax.f32 %v930, %v1768
  %v1801 = vmax.f32 %v931, %v1769
  %v1802 = vmax.f32 %v932, %v1770
  %v1803 = vld [vmem:[%s2] sm:$0x1]
  %v1805 = vperm.slane %v1803, 0
  %v1807 = vadd.f32 %v1771, %v1805
  %v1808 = vadd.f32 %v1772, %v1805
  %v1809 = vadd.f32 %v1773, %v1805
  %v1810 = vadd.f32 %v1774, %v1805
  %v1811 = vadd.f32 %v1775, %v1805
  %v1812 = vadd.f32 %v1776, %v1805
  %v1813 = vadd.f32 %v1777, %v1805
  %v1814 = vadd.f32 %v1778, %v1805
  %v1815 = vadd.f32 %v1779, %v1805
  %v1816 = vadd.f32 %v1780, %v1805
  %v1817 = vadd.f32 %v1781, %v1805
  %v1818 = vadd.f32 %v1782, %v1805
  %v1819 = vadd.f32 %v1783, %v1805
  %v1820 = vadd.f32 %v1784, %v1805
  %v1821 = vadd.f32 %v1785, %v1805
  %v1822 = vadd.f32 %v1786, %v1805
  %v1823 = vadd.f32 %v1787, %v1805
  %v1824 = vadd.f32 %v1788, %v1805
  %v1825 = vadd.f32 %v1789, %v1805
  %v1826 = vadd.f32 %v1790, %v1805
  %v1827 = vadd.f32 %v1791, %v1805
  %v1828 = vadd.f32 %v1792, %v1805
  %v1829 = vadd.f32 %v1793, %v1805
  %v1830 = vadd.f32 %v1794, %v1805
  %v1831 = vadd.f32 %v1795, %v1805
  %v1832 = vadd.f32 %v1796, %v1805
  %v1833 = vadd.f32 %v1797, %v1805
  %v1834 = vadd.f32 %v1798, %v1805
  %v1835 = vadd.f32 %v1799, %v1805
  %v1836 = vadd.f32 %v1800, %v1805
  %v1837 = vadd.f32 %v1801, %v1805
  %v1838 = vadd.f32 %v1802, %v1805
  %v1839 = vmax.f32 %v1807, 0.0
  %v1840 = vmax.f32 %v1808, 0.0
  %v1841 = vmax.f32 %v1809, 0.0
  %v1842 = vmax.f32 %v1810, 0.0
  %v1843 = vmax.f32 %v1811, 0.0
  %v1844 = vmax.f32 %v1812, 0.0
  %v1845 = vmax.f32 %v1813, 0.0
  %v1846 = vmax.f32 %v1814, 0.0
  %v1847 = vmax.f32 %v1815, 0.0
  %v1848 = vmax.f32 %v1816, 0.0
  %v1849 = vmax.f32 %v1817, 0.0
  %v1850 = vmax.f32 %v1818, 0.0
  %v1851 = vmax.f32 %v1819, 0.0
  %v1852 = vmax.f32 %v1820, 0.0
  %v1853 = vmax.f32 %v1821, 0.0
  %v1854 = vmax.f32 %v1822, 0.0
  %v1855 = vmax.f32 %v1823, 0.0
  %v1856 = vmax.f32 %v1824, 0.0
  %v1857 = vmax.f32 %v1825, 0.0
  %v1858 = vmax.f32 %v1826, 0.0
  %v1859 = vmax.f32 %v1827, 0.0
  %v1860 = vmax.f32 %v1828, 0.0
  %v1861 = vmax.f32 %v1829, 0.0
  %v1862 = vmax.f32 %v1830, 0.0
  %v1863 = vmax.f32 %v1831, 0.0
  %v1864 = vmax.f32 %v1832, 0.0
  %v1865 = vmax.f32 %v1833, 0.0
  %v1866 = vmax.f32 %v1834, 0.0
  %v1867 = vmax.f32 %v1835, 0.0
  %v1868 = vmax.f32 %v1836, 0.0
  %v1869 = vmax.f32 %v1837, 0.0
  %v1870 = vmax.f32 %v1838, 0.0
  %v1871 = vpack.c.bf16 %v1839, %v1839
  %v1872 = vpack.c.bf16 %v1840, %v1840
  %v1873 = vpack.c.bf16 %v1841, %v1841
  %v1874 = vpack.c.bf16 %v1842, %v1842
  %v1875 = vpack.c.bf16 %v1843, %v1843
  %v1876 = vpack.c.bf16 %v1844, %v1844
  %v1877 = vpack.c.bf16 %v1845, %v1845
  %v1878 = vpack.c.bf16 %v1846, %v1846
  %v1879 = vpack.c.bf16 %v1847, %v1847
  %v1880 = vpack.c.bf16 %v1848, %v1848
  %v1881 = vpack.c.bf16 %v1849, %v1849
  %v1882 = vpack.c.bf16 %v1850, %v1850
  %v1883 = vpack.c.bf16 %v1851, %v1851
  %v1884 = vpack.c.bf16 %v1852, %v1852
  %v1885 = vpack.c.bf16 %v1853, %v1853
  %v1886 = vpack.c.bf16 %v1854, %v1854
  %v1887 = vpack.c.bf16 %v1855, %v1855
  %v1888 = vpack.c.bf16 %v1856, %v1856
  %v1889 = vpack.c.bf16 %v1857, %v1857
  %v1890 = vpack.c.bf16 %v1858, %v1858
  %v1891 = vpack.c.bf16 %v1859, %v1859
  %v1892 = vpack.c.bf16 %v1860, %v1860
  %v1893 = vpack.c.bf16 %v1861, %v1861
  %v1894 = vpack.c.bf16 %v1862, %v1862
  %v1895 = vpack.c.bf16 %v1863, %v1863
  %v1896 = vpack.c.bf16 %v1864, %v1864
  %v1897 = vpack.c.bf16 %v1865, %v1865
  %v1898 = vpack.c.bf16 %v1866, %v1866
  %v1899 = vpack.c.bf16 %v1867, %v1867
  %v1900 = vpack.c.bf16 %v1868, %v1868
  %v1901 = vpack.c.bf16 %v1869, %v1869
  %v1902 = vpack.c.bf16 %v1870, %v1870
  %vm1903 = vcmask 125952
  %1904 = vst.msk [vmem:[%s3] sm:$0xf] %vm1903, %v1871
  %1905 = vst.msk [vmem:[%s3 + $0x4] sm:$0xf] %vm1903, %v1872
  %1906 = vst.msk [vmem:[%s3 + $0x8] sm:$0xf] %vm1903, %v1873
  %1907 = vst.msk [vmem:[%s3 + $0xc] sm:$0xf] %vm1903, %v1874
  %1908 = vst.msk [vmem:[%s3 + $0x10] sm:$0xf] %vm1903, %v1875
  %1909 = vst.msk [vmem:[%s3 + $0x14] sm:$0xf] %vm1903, %v1876
  %1910 = vst.msk [vmem:[%s3 + $0x18] sm:$0xf] %vm1903, %v1877
  %1911 = vst.msk [vmem:[%s3 + $0x1c] sm:$0xf] %vm1903, %v1878
  %1912 = vst.msk [vmem:[%s3 + $0x20] sm:$0xf] %vm1903, %v1879
  %1913 = vst.msk [vmem:[%s3 + $0x24] sm:$0xf] %vm1903, %v1880
  %1914 = vst.msk [vmem:[%s3 + $0x28] sm:$0xf] %vm1903, %v1881
  %1915 = vst.msk [vmem:[%s3 + $0x2c] sm:$0xf] %vm1903, %v1882
  %1916 = vst.msk [vmem:[%s3 + $0x30] sm:$0xf] %vm1903, %v1883
  %1917 = vst.msk [vmem:[%s3 + $0x34] sm:$0xf] %vm1903, %v1884
  %1918 = vst.msk [vmem:[%s3 + $0x38] sm:$0xf] %vm1903, %v1885
  %1919 = vst.msk [vmem:[%s3 + $0x3c] sm:$0xf] %vm1903, %v1886
  %1920 = vst.msk [vmem:[%s3 + $0x40] sm:$0xf] %vm1903, %v1887
  %1921 = vst.msk [vmem:[%s3 + $0x44] sm:$0xf] %vm1903, %v1888
  %1922 = vst.msk [vmem:[%s3 + $0x48] sm:$0xf] %vm1903, %v1889
  %1923 = vst.msk [vmem:[%s3 + $0x4c] sm:$0xf] %vm1903, %v1890
  %1924 = vst.msk [vmem:[%s3 + $0x50] sm:$0xf] %vm1903, %v1891
  %1925 = vst.msk [vmem:[%s3 + $0x54] sm:$0xf] %vm1903, %v1892
  %1926 = vst.msk [vmem:[%s3 + $0x58] sm:$0xf] %vm1903, %v1893
  %1927 = vst.msk [vmem:[%s3 + $0x5c] sm:$0xf] %vm1903, %v1894
  %1928 = vst.msk [vmem:[%s3 + $0x60] sm:$0xf] %vm1903, %v1895
  %1929 = vst.msk [vmem:[%s3 + $0x64] sm:$0xf] %vm1903, %v1896
  %1930 = vst.msk [vmem:[%s3 + $0x68] sm:$0xf] %vm1903, %v1897
  %1931 = vst.msk [vmem:[%s3 + $0x6c] sm:$0xf] %vm1903, %v1898
  %1932 = vst.msk [vmem:[%s3 + $0x70] sm:$0xf] %vm1903, %v1899
  %1933 = vst.msk [vmem:[%s3 + $0x74] sm:$0xf] %vm1903, %v1900
  %1934 = vst.msk [vmem:[%s3 + $0x78] sm:$0xf] %vm1903, %v1901
  %1935 = vst.msk [vmem:[%s3 + $0x7c] sm:$0xf] %vm1903, %v1902
  // Predicated region
  $region14: #{net_forward.4} parent=0 // pred_check
    _
  $region15: #{net_forward.4} parent=0 // pred_check_branch
    %1937 = sbr.rel (0) target = $region17
  $region16: #{net_forward.4} parent=0 // pred_region
    _
  $region17: #{net_forward.4} parent=0 // pred_fallthru
    _
  // Predicated region
  $region18: #{net_forward.4} parent=0 // pred_check
    _
  $region19: #{net_forward.4} parent=0 // pred_check_branch
    %1939 = sbr.rel (0) target = $region21
  $region20: #{net_forward.4} parent=0 // pred_region
    _
  $region21: #{net_forward.4} parent=0 // pred_fallthru
    _

</llo_original>
